<compile_context>
chip_gen: v6e
topology: v6e:2x2x1
jax: 0.10.0
libtpu: 0.0.40
codegen_flags: <defaults>
</compile_context>

<pallas_src>
import functools

import jax
import jax.numpy as jnp
from jax import lax
from jax.experimental import pallas as pl
from jax.experimental.pallas import tpu as pltpu

EPS = 1e-5
VMEM_LIMIT_BYTES = 32 * 1024 * 1024  # safe on v5e/v6e (128 MiB phys) and v7x (64 MiB phys)


# ----------------------------------------------------------------------------
# Pallas kernels
# ----------------------------------------------------------------------------
def _conv3x3_kernel(x_ref, w_ref, scale_ref, shift_ref, y_ref, s_ref, *,
                    th, wimg, cin, apply_input_act):
    """Fused reflect-padded 3x3 conv over one halo'd NHWC row-block tile.

    x_ref:     (th+2, wimg+2, cin) bf16  reflect-padded input rows (+/-1 row halo)
    w_ref:     (9, cin, cout)      bf16  tap-major weights (tap index = kh*3 + kw)
    scale_ref: (1, cin)            f32   folded BN affine of the *previous* layer
    shift_ref: (1, cin)            f32   (applied + ReLU on the input path when
                                          apply_input_act=True; ignored otherwise)
    y_ref:     (th*wimg, cout)     bf16  conv output rows for this tile
    s_ref:     (2, cout)           f32   per-tile [sum; sum(y^2)] BN partials
    """
    cout = y_ref.shape[-1]
    if apply_input_act:
        scale = scale_ref[...]
        shift = shift_ref[...]

    acc = jnp.zeros((th * wimg, cout), jnp.float32)
    # 3x3 conv == 9 shifted-slice matmuls accumulated in f32 on the MXU
    # (in-kernel im2col: the patch matrix never hits HBM).
    for t in range(9):
        di, dj = t // 3, t % 3
        tap = x_ref[di:di + th, dj:dj + wimg, :].reshape(th * wimg, cin)
        if apply_input_act:
            # Fused BN1 affine + ReLU on the conv2 input path (f32 VPU, then bf16 for MXU).
            tap = jnp.maximum(tap.astype(jnp.float32) * scale + shift,
                              0.0).astype(jnp.bfloat16)
        acc = acc + jnp.dot(tap, w_ref[t], preferred_element_type=jnp.float32)

    y_ref[...] = acc.astype(y_ref.dtype)
    # Single-pass BN batch-stat partials from the f32 accumulator, written row-by-row.
    s_ref[0:1, :] = jnp.sum(acc, axis=0, keepdims=True)
    s_ref[1:2, :] = jnp.sum(acc * acc, axis=0, keepdims=True)


def _bn_residual_kernel(y_ref, scale_ref, shift_ref, res_ref, o_ref):
    """out = BN2(y2) + x, with BN folded into a per-channel scale/shift."""
    y = y_ref[...].astype(jnp.float32)
    o_ref[...] = y * scale_ref[...] + shift_ref[...] + res_ref[...]


# ----------------------------------------------------------------------------
# Pallas wrappers
# ----------------------------------------------------------------------------
def conv3x3_pallas(x_windows, w, scale, shift, *, apply_input_act):
    """x_windows: (N, R, th+2, W+2, C) bf16 -> (y: (N*H*W, Cout) bf16, stats: (N*R, 2, Cout) f32)."""
    n, r, thp2, wp2, cin = x_windows.shape
    th, wimg = thp2 - 2, wp2 - 2
    cout = w.shape[-1]
    tm = th * wimg                 # rows per tile (128 at the demo size; multiple of 16)
    m = n * r * tm

    kernel = functools.partial(_conv3x3_kernel, th=th, wimg=wimg, cin=cin,
                               apply_input_act=apply_input_act)
    return pl.pallas_call(
        kernel,
        out_shape=(jax.ShapeDtypeStruct((m, cout), jnp.bfloat16),
                   jax.ShapeDtypeStruct((n * r, 2, cout), jnp.float32)),
        grid=(n, r),
        in_specs=[
            pl.BlockSpec((None, None, thp2, wp2, cin), lambda i, j: (i, j, 0, 0, 0)),
            pl.BlockSpec((9, cin, cout), lambda i, j: (0, 0, 0)),   # weights grid-invariant
            pl.BlockSpec((1, cin), lambda i, j: (0, 0)),
            pl.BlockSpec((1, cin), lambda i, j: (0, 0)),
        ],
        out_specs=(
            pl.BlockSpec((tm, cout), lambda i, j: (i * r + j, 0)),
            pl.BlockSpec((None, 2, cout), lambda i, j: (i * r + j, 0, 0)),
        ),
        compiler_params=pltpu.CompilerParams(
            dimension_semantics=("parallel", "parallel"),
            vmem_limit_bytes=VMEM_LIMIT_BYTES),
    )(x_windows, w, scale, shift)


def bn_residual_pallas(y, scale, shift, res, *, tm):
    m, c = y.shape
    return pl.pallas_call(
        _bn_residual_kernel,
        out_shape=jax.ShapeDtypeStruct((m, c), jnp.float32),
        grid=(m // tm,),
        in_specs=[
            pl.BlockSpec((tm, c), lambda i: (i, 0)),
            pl.BlockSpec((1, c), lambda i: (0, 0)),
            pl.BlockSpec((1, c), lambda i: (0, 0)),
            pl.BlockSpec((tm, c), lambda i: (i, 0)),
        ],
        out_specs=pl.BlockSpec((tm, c), lambda i: (i, 0)),
        compiler_params=pltpu.CompilerParams(
            dimension_semantics=("parallel",),
            vmem_limit_bytes=VMEM_LIMIT_BYTES),
    )(y, scale, shift, res)


# ----------------------------------------------------------------------------
# XLA glue: reflect pad + halo'd row-block windows, BN stat folding, param prep
# ----------------------------------------------------------------------------
def _reflect_pad_windows(x_nhwc, th):
    """ReflectionPad2d(1), then split H into row blocks carrying a +/-1-row halo.
    (N, H, W, C) -> (N, H//th, th+2, W+2, C); dtype preserved."""
    n, h, w, c = x_nhwc.shape
    xp = jnp.pad(x_nhwc, ((0, 0), (1, 1), (1, 1), (0, 0)), mode="reflect")
    r = h // th
    wins = [xp[:, i * th:i * th + th + 2] for i in range(r)]
    return jnp.stack(wins, axis=1)


def _bn_scale_shift(stats, gamma, beta, m):
    """Reduce per-tile (sum, sum^2) partials; fold training-mode BN into scale/shift."""
    s = jnp.sum(stats, axis=0)                           # (2, C)
    mean = s[0] / m
    var = jnp.maximum(s[1] / m - mean * mean, 0.0)       # biased var (PyTorch training mode)
    scale = gamma * lax.rsqrt(var + EPS)
    shift = beta - mean * scale
    return scale, shift


def prep_params(w1, gamma1, beta1, w2, gamma2, beta2):
    """One-time prep: OIHW conv weights -> tap-major (9, Cin, Cout) bf16; BN params f32."""
    def prep_w(wt):
        cout, cin, kh, kw = wt.shape
        return (wt.transpose(2, 3, 1, 0)                 # (kh, kw, cin, cout)
                  .reshape(kh * kw, cin, cout)
                  .astype(jnp.bfloat16))

    return dict(w1=prep_w(w1), gamma1=gamma1.astype(jnp.float32),
                beta1=beta1.astype(jnp.float32),
                w2=prep_w(w2), gamma2=gamma2.astype(jnp.float32),
                beta2=beta2.astype(jnp.float32))


def _largest_row_tile(m, target):
    """Largest divisor of m that is <= target and a multiple of 16; fall back to m."""
    t = min(m, target)
    while t > 0 and (m % t or t % 16):
        t -= 1
    return t if t > 0 else m


# ----------------------------------------------------------------------------
# ResnetBlock forward
# ----------------------------------------------------------------------------
def resnet_block_forward(x_nchw, params, *, row_block=8, ew_rows=2048):
    """x: NCHW f32 -> out = x + conv_block(x), NCHW f32."""
    n, c, h, w = x_nchw.shape
    th = min(row_block, h)
    while h % th:
        th -= 1
    m = n * h * w

    x_nhwc = jnp.transpose(x_nchw, (0, 2, 3, 1))
    res = x_nhwc.reshape(m, c)                            # residual kept in f32

    ones = jnp.ones((1, c), jnp.float32)
    zeros = jnp.zeros((1, c), jnp.float32)

    # --- conv1 (reflect pad, 3x3, no bias) + BN1 batch-stat partials ---
    xw = _reflect_pad_windows(x_nhwc.astype(jnp.bfloat16), th)
    y1, st1 = conv3x3_pallas(xw, params["w1"], ones, zeros, apply_input_act=False)
    sc1, sh1 = _bn_scale_shift(st1, params["gamma1"], params["beta1"], m)

    # TODO(synk): nn.Dropout(0.5) for use_dropout=True is not implemented (config uses False).

    # --- conv2: BN1 affine + ReLU fused into the conv input path, + BN2 stat partials ---
    # (per-channel elementwise commutes with the reflect pad / halo row duplication)
    yw = _reflect_pad_windows(y1.reshape(n, h, w, c), th)
    y2, st2 = conv3x3_pallas(yw, params["w2"],
                             sc1.reshape(1, c), sh1.reshape(1, c),
                             apply_input_act=True)
    sc2, sh2 = _bn_scale_shift(st2, params["gamma2"], params["beta2"], m)

    # --- BN2 affine + residual add (fused elementwise epilogue) ---
    tm = _largest_row_tile(m, ew_rows)
    out = bn_residual_pallas(y2, sc2.reshape(1, c), sh2.reshape(1, c), res, tm=tm)

    return jnp.transpose(out.reshape(n, h, w, c), (0, 3, 1, 2))


# ----------------------------------------------------------------------------
# Pure-JAX f32 reference for correctness
# ----------------------------------------------------------------------------
def reference_forward(x, w1, gamma1, beta1, w2, gamma2, beta2):
    def conv(hh, wt):
        hp = jnp.pad(hh, ((0, 0), (0, 0), (1, 1), (1, 1)), mode="reflect")
        return lax.conv_general_dilated(
            hp, wt, window_strides=(1, 1), padding="VALID",
            dimension_numbers=("NCHW", "OIHW", "NCHW"))

    def bn(hh, g, b):
        mean = jnp.mean(hh, axis=(0, 2, 3), keepdims=True)
        var = jnp.mean((hh - mean) ** 2, axis=(0, 2, 3), keepdims=True)
        return ((hh - mean) * lax.rsqrt(var + EPS) * g.reshape(1, -1, 1, 1)
                + b.reshape(1, -1, 1, 1))

    y = jnp.maximum(bn(conv(x, w1), gamma1, beta1), 0.0)
    y = bn(conv(y, w2), gamma2, beta2)
    return x + y


if __name__ == "__main__":
    # ResnetBlock(dim=32), padding_type='reflect', BatchNorm2d, no dropout, bias=False.
    dim, N, H, W = 32, 2, 16, 16
    key = jax.random.PRNGKey(0)
    kx, k1, k2, k3, k4, k5, k6 = jax.random.split(key, 7)

    x = jax.random.normal(kx, (N, dim, H, W), jnp.float32)
    w1 = 0.05 * jax.random.normal(k1, (dim, dim, 3, 3), jnp.float32)
    w2 = 0.05 * jax.random.normal(k2, (dim, dim, 3, 3), jnp.float32)
    gamma1 = 1.0 + 0.1 * jax.random.normal(k3, (dim,), jnp.float32)
    beta1 = 0.1 * jax.random.normal(k4, (dim,), jnp.float32)
    gamma2 = 1.0 + 0.1 * jax.random.normal(k5, (dim,), jnp.float32)
    beta2 = 0.1 * jax.random.normal(k6, (dim,), jnp.float32)

    params = prep_params(w1, gamma1, beta1, w2, gamma2, beta2)

    fwd = jax.jit(resnet_block_forward)
    out = jax.block_until_ready(fwd(x, params))

    ref = jax.block_until_ready(
        reference_forward(x, w1, gamma1, beta1, w2, gamma2, beta2))

    assert out.shape == ref.shape, (out.shape, ref.shape)
    rel_l2 = float(jnp.linalg.norm(out - ref) / jnp.linalg.norm(ref))
    max_err = float(jnp.max(jnp.abs(out - ref)))
    # bf16 MXU operands + bf16-stored intermediates: ~3e-2 abs / 1.5e-2 rel-L2 budget.
    assert rel_l2 < 1.5e-2, (rel_l2, max_err)
    assert jnp.allclose(out, ref, rtol=3e-2, atol=3e-2), (max_err, rel_l2)

    print("KERNEL_OK")
</pallas_src>

<mosaic_0001>
module attributes {stable_mosaic.version = 11 : i64} {
  func.func @_conv3x3_kernel(%arg0: i32, %arg1: i32, %arg2: memref<1x1x10x18x32xbf16, #tpu.memory_space<vmem>>, %arg3: memref<9x32x32xbf16, #tpu.memory_space<vmem>>, %arg4: memref<1x32xf32, #tpu.memory_space<vmem>>, %arg5: memref<1x32xf32, #tpu.memory_space<vmem>>, %arg6: memref<128x32xbf16, #tpu.memory_space<vmem>>, %arg7: memref<1x2x32xf32, #tpu.memory_space<vmem>>) attributes {dimension_semantics = [#tpu.dimension_semantics<parallel>, #tpu.dimension_semantics<parallel>], iteration_bounds = array<i64: 2, 2>, scalar_prefetch = 0 : i64, scratch_operands = 0 : i64, tpu.core_type = #tpu.core_type<tc>, window_params = [{transform_indices = @transform_0, window_bounds = array<i64: 1, 1, 10, 18, 32>}, {pipeline_mode = #tpu.pipeline_mode<synchronous>, transform_indices = @transform_1, window_bounds = array<i64: 9, 32, 32>}, {pipeline_mode = #tpu.pipeline_mode<synchronous>, transform_indices = @transform_2, window_bounds = array<i64: 1, 32>}, {pipeline_mode = #tpu.pipeline_mode<synchronous>, transform_indices = @transform_3, window_bounds = array<i64: 1, 32>}, {transform_indices = @transform_4, window_bounds = array<i64: 128, 32>}, {transform_indices = @transform_5, window_bounds = array<i64: 1, 2, 32>}]} {
    %cst = arith.constant 0.000000e+00 : f32
    %0 = vector.broadcast %cst : f32 to vector<128x32xf32>
    %c0 = arith.constant 0 : index
    %c0_0 = arith.constant 0 : index
    %c0_1 = arith.constant 0 : index
    %c0_2 = arith.constant 0 : index
    %c0_3 = arith.constant 0 : index
    %1 = vector.load %arg2[%c0, %c0_0, %c0_1, %c0_2, %c0_3] : memref<1x1x10x18x32xbf16, #tpu.memory_space<vmem>>, vector<1x1x8x16x32xbf16>
    %2 = vector.shape_cast %1 : vector<1x1x8x16x32xbf16> to vector<8x16x32xbf16>
    %3 = vector.shape_cast %2 : vector<8x16x32xbf16> to vector<128x32xbf16>
    %c0_4 = arith.constant 0 : index
    %c0_5 = arith.constant 0 : index
    %c0_6 = arith.constant 0 : index
    %4 = vector.load %arg3[%c0_4, %c0_5, %c0_6] : memref<9x32x32xbf16, #tpu.memory_space<vmem>>, vector<1x32x32xbf16>
    %5 = vector.shape_cast %4 : vector<1x32x32xbf16> to vector<32x32xbf16>
    %cst_7 = arith.constant dense<0.000000e+00> : vector<128x32xf32>
    %6 = tpu.matmul %3, %5, %cst_7 {dimension_numbers = #tpu.dot_dimension_numbers<[1], [0], [0], [1], [0, 0, 1, 1], [], []>} : vector<128x32xbf16>, vector<32x32xbf16>, vector<128x32xf32> -> vector<128x32xf32>
    %7 = arith.addf %0, %6 : vector<128x32xf32>
    %c0_8 = arith.constant 0 : index
    %c0_9 = arith.constant 0 : index
    %c0_10 = arith.constant 0 : index
    %c1 = arith.constant 1 : index
    %c0_11 = arith.constant 0 : index
    %8 = vector.load %arg2[%c0_8, %c0_9, %c0_10, %c1, %c0_11] : memref<1x1x10x18x32xbf16, #tpu.memory_space<vmem>>, vector<1x1x8x16x32xbf16>
    %9 = vector.shape_cast %8 : vector<1x1x8x16x32xbf16> to vector<8x16x32xbf16>
    %10 = vector.shape_cast %9 : vector<8x16x32xbf16> to vector<128x32xbf16>
    %c1_12 = arith.constant 1 : index
    %c0_13 = arith.constant 0 : index
    %c0_14 = arith.constant 0 : index
    %11 = vector.load %arg3[%c1_12, %c0_13, %c0_14] : memref<9x32x32xbf16, #tpu.memory_space<vmem>>, vector<1x32x32xbf16>
    %12 = vector.shape_cast %11 : vector<1x32x32xbf16> to vector<32x32xbf16>
    %cst_15 = arith.constant dense<0.000000e+00> : vector<128x32xf32>
    %13 = tpu.matmul %10, %12, %cst_15 {dimension_numbers = #tpu.dot_dimension_numbers<[1], [0], [0], [1], [0, 0, 1, 1], [], []>} : vector<128x32xbf16>, vector<32x32xbf16>, vector<128x32xf32> -> vector<128x32xf32>
    %14 = arith.addf %7, %13 : vector<128x32xf32>
    %c0_16 = arith.constant 0 : index
    %c0_17 = arith.constant 0 : index
    %c0_18 = arith.constant 0 : index
    %c2 = arith.constant 2 : index
    %c0_19 = arith.constant 0 : index
    %15 = vector.load %arg2[%c0_16, %c0_17, %c0_18, %c2, %c0_19] : memref<1x1x10x18x32xbf16, #tpu.memory_space<vmem>>, vector<1x1x8x16x32xbf16>
    %16 = vector.shape_cast %15 : vector<1x1x8x16x32xbf16> to vector<8x16x32xbf16>
    %17 = vector.shape_cast %16 : vector<8x16x32xbf16> to vector<128x32xbf16>
    %c2_20 = arith.constant 2 : index
    %c0_21 = arith.constant 0 : index
    %c0_22 = arith.constant 0 : index
    %18 = vector.load %arg3[%c2_20, %c0_21, %c0_22] : memref<9x32x32xbf16, #tpu.memory_space<vmem>>, vector<1x32x32xbf16>
    %19 = vector.shape_cast %18 : vector<1x32x32xbf16> to vector<32x32xbf16>
    %cst_23 = arith.constant dense<0.000000e+00> : vector<128x32xf32>
    %20 = tpu.matmul %17, %19, %cst_23 {dimension_numbers = #tpu.dot_dimension_numbers<[1], [0], [0], [1], [0, 0, 1, 1], [], []>} : vector<128x32xbf16>, vector<32x32xbf16>, vector<128x32xf32> -> vector<128x32xf32>
    %21 = arith.addf %14, %20 : vector<128x32xf32>
    %c0_24 = arith.constant 0 : index
    %c0_25 = arith.constant 0 : index
    %c1_26 = arith.constant 1 : index
    %c0_27 = arith.constant 0 : index
    %c0_28 = arith.constant 0 : index
    %22 = vector.load %arg2[%c0_24, %c0_25, %c1_26, %c0_27, %c0_28] : memref<1x1x10x18x32xbf16, #tpu.memory_space<vmem>>, vector<1x1x8x16x32xbf16>
    %23 = vector.shape_cast %22 : vector<1x1x8x16x32xbf16> to vector<8x16x32xbf16>
    %24 = vector.shape_cast %23 : vector<8x16x32xbf16> to vector<128x32xbf16>
    %c3 = arith.constant 3 : index
    %c0_29 = arith.constant 0 : index
    %c0_30 = arith.constant 0 : index
    %25 = vector.load %arg3[%c3, %c0_29, %c0_30] : memref<9x32x32xbf16, #tpu.memory_space<vmem>>, vector<1x32x32xbf16>
    %26 = vector.shape_cast %25 : vector<1x32x32xbf16> to vector<32x32xbf16>
    %cst_31 = arith.constant dense<0.000000e+00> : vector<128x32xf32>
    %27 = tpu.matmul %24, %26, %cst_31 {dimension_numbers = #tpu.dot_dimension_numbers<[1], [0], [0], [1], [0, 0, 1, 1], [], []>} : vector<128x32xbf16>, vector<32x32xbf16>, vector<128x32xf32> -> vector<128x32xf32>
    %28 = arith.addf %21, %27 : vector<128x32xf32>
    %c0_32 = arith.constant 0 : index
    %c0_33 = arith.constant 0 : index
    %c1_34 = arith.constant 1 : index
    %c1_35 = arith.constant 1 : index
    %c0_36 = arith.constant 0 : index
    %29 = vector.load %arg2[%c0_32, %c0_33, %c1_34, %c1_35, %c0_36] : memref<1x1x10x18x32xbf16, #tpu.memory_space<vmem>>, vector<1x1x8x16x32xbf16>
    %30 = vector.shape_cast %29 : vector<1x1x8x16x32xbf16> to vector<8x16x32xbf16>
    %31 = vector.shape_cast %30 : vector<8x16x32xbf16> to vector<128x32xbf16>
    %c4 = arith.constant 4 : index
    %c0_37 = arith.constant 0 : index
    %c0_38 = arith.constant 0 : index
    %32 = vector.load %arg3[%c4, %c0_37, %c0_38] : memref<9x32x32xbf16, #tpu.memory_space<vmem>>, vector<1x32x32xbf16>
    %33 = vector.shape_cast %32 : vector<1x32x32xbf16> to vector<32x32xbf16>
    %cst_39 = arith.constant dense<0.000000e+00> : vector<128x32xf32>
    %34 = tpu.matmul %31, %33, %cst_39 {dimension_numbers = #tpu.dot_dimension_numbers<[1], [0], [0], [1], [0, 0, 1, 1], [], []>} : vector<128x32xbf16>, vector<32x32xbf16>, vector<128x32xf32> -> vector<128x32xf32>
    %35 = arith.addf %28, %34 : vector<128x32xf32>
    %c0_40 = arith.constant 0 : index
    %c0_41 = arith.constant 0 : index
    %c1_42 = arith.constant 1 : index
    %c2_43 = arith.constant 2 : index
    %c0_44 = arith.constant 0 : index
    %36 = vector.load %arg2[%c0_40, %c0_41, %c1_42, %c2_43, %c0_44] : memref<1x1x10x18x32xbf16, #tpu.memory_space<vmem>>, vector<1x1x8x16x32xbf16>
    %37 = vector.shape_cast %36 : vector<1x1x8x16x32xbf16> to vector<8x16x32xbf16>
    %38 = vector.shape_cast %37 : vector<8x16x32xbf16> to vector<128x32xbf16>
    %c5 = arith.constant 5 : index
    %c0_45 = arith.constant 0 : index
    %c0_46 = arith.constant 0 : index
    %39 = vector.load %arg3[%c5, %c0_45, %c0_46] : memref<9x32x32xbf16, #tpu.memory_space<vmem>>, vector<1x32x32xbf16>
    %40 = vector.shape_cast %39 : vector<1x32x32xbf16> to vector<32x32xbf16>
    %cst_47 = arith.constant dense<0.000000e+00> : vector<128x32xf32>
    %41 = tpu.matmul %38, %40, %cst_47 {dimension_numbers = #tpu.dot_dimension_numbers<[1], [0], [0], [1], [0, 0, 1, 1], [], []>} : vector<128x32xbf16>, vector<32x32xbf16>, vector<128x32xf32> -> vector<128x32xf32>
    %42 = arith.addf %35, %41 : vector<128x32xf32>
    %c0_48 = arith.constant 0 : index
    %c0_49 = arith.constant 0 : index
    %c2_50 = arith.constant 2 : index
    %c0_51 = arith.constant 0 : index
    %c0_52 = arith.constant 0 : index
    %43 = vector.load %arg2[%c0_48, %c0_49, %c2_50, %c0_51, %c0_52] : memref<1x1x10x18x32xbf16, #tpu.memory_space<vmem>>, vector<1x1x8x16x32xbf16>
    %44 = vector.shape_cast %43 : vector<1x1x8x16x32xbf16> to vector<8x16x32xbf16>
    %45 = vector.shape_cast %44 : vector<8x16x32xbf16> to vector<128x32xbf16>
    %c6 = arith.constant 6 : index
    %c0_53 = arith.constant 0 : index
    %c0_54 = arith.constant 0 : index
    %46 = vector.load %arg3[%c6, %c0_53, %c0_54] : memref<9x32x32xbf16, #tpu.memory_space<vmem>>, vector<1x32x32xbf16>
    %47 = vector.shape_cast %46 : vector<1x32x32xbf16> to vector<32x32xbf16>
    %cst_55 = arith.constant dense<0.000000e+00> : vector<128x32xf32>
    %48 = tpu.matmul %45, %47, %cst_55 {dimension_numbers = #tpu.dot_dimension_numbers<[1], [0], [0], [1], [0, 0, 1, 1], [], []>} : vector<128x32xbf16>, vector<32x32xbf16>, vector<128x32xf32> -> vector<128x32xf32>
    %49 = arith.addf %42, %48 : vector<128x32xf32>
    %c0_56 = arith.constant 0 : index
    %c0_57 = arith.constant 0 : index
    %c2_58 = arith.constant 2 : index
    %c1_59 = arith.constant 1 : index
    %c0_60 = arith.constant 0 : index
    %50 = vector.load %arg2[%c0_56, %c0_57, %c2_58, %c1_59, %c0_60] : memref<1x1x10x18x32xbf16, #tpu.memory_space<vmem>>, vector<1x1x8x16x32xbf16>
    %51 = vector.shape_cast %50 : vector<1x1x8x16x32xbf16> to vector<8x16x32xbf16>
    %52 = vector.shape_cast %51 : vector<8x16x32xbf16> to vector<128x32xbf16>
    %c7 = arith.constant 7 : index
    %c0_61 = arith.constant 0 : index
    %c0_62 = arith.constant 0 : index
    %53 = vector.load %arg3[%c7, %c0_61, %c0_62] : memref<9x32x32xbf16, #tpu.memory_space<vmem>>, vector<1x32x32xbf16>
    %54 = vector.shape_cast %53 : vector<1x32x32xbf16> to vector<32x32xbf16>
    %cst_63 = arith.constant dense<0.000000e+00> : vector<128x32xf32>
    %55 = tpu.matmul %52, %54, %cst_63 {dimension_numbers = #tpu.dot_dimension_numbers<[1], [0], [0], [1], [0, 0, 1, 1], [], []>} : vector<128x32xbf16>, vector<32x32xbf16>, vector<128x32xf32> -> vector<128x32xf32>
    %56 = arith.addf %49, %55 : vector<128x32xf32>
    %c0_64 = arith.constant 0 : index
    %c0_65 = arith.constant 0 : index
    %c2_66 = arith.constant 2 : index
    %c2_67 = arith.constant 2 : index
    %c0_68 = arith.constant 0 : index
    %57 = vector.load %arg2[%c0_64, %c0_65, %c2_66, %c2_67, %c0_68] : memref<1x1x10x18x32xbf16, #tpu.memory_space<vmem>>, vector<1x1x8x16x32xbf16>
    %58 = vector.shape_cast %57 : vector<1x1x8x16x32xbf16> to vector<8x16x32xbf16>
    %59 = vector.shape_cast %58 : vector<8x16x32xbf16> to vector<128x32xbf16>
    %c8 = arith.constant 8 : index
    %c0_69 = arith.constant 0 : index
    %c0_70 = arith.constant 0 : index
    %60 = vector.load %arg3[%c8, %c0_69, %c0_70] : memref<9x32x32xbf16, #tpu.memory_space<vmem>>, vector<1x32x32xbf16>
    %61 = vector.shape_cast %60 : vector<1x32x32xbf16> to vector<32x32xbf16>
    %cst_71 = arith.constant dense<0.000000e+00> : vector<128x32xf32>
    %62 = tpu.matmul %59, %61, %cst_71 {dimension_numbers = #tpu.dot_dimension_numbers<[1], [0], [0], [1], [0, 0, 1, 1], [], []>} : vector<128x32xbf16>, vector<32x32xbf16>, vector<128x32xf32> -> vector<128x32xf32>
    %63 = arith.addf %56, %62 : vector<128x32xf32>
    %64 = arith.truncf %63 : vector<128x32xf32> to vector<128x32xbf16>
    %c0_72 = arith.constant 0 : index
    %c0_73 = arith.constant 0 : index
    %65 = vector.load %arg6[%c0_72, %c0_73] : memref<128x32xbf16, #tpu.memory_space<vmem>>, vector<128x32xbf16>
    tpu.vector_store %arg6[%c0_72, %c0_73], %64 {strides = array<i32>} : memref<128x32xbf16, #tpu.memory_space<vmem>>, vector<128x32xbf16>,
    %cst_74 = arith.constant dense<0.000000e+00> : vector<32xf32>
    %66 = vector.multi_reduction <add>, %63, %cst_74 [0] : vector<128x32xf32> to vector<32xf32>
    %67 = vector.shape_cast %66 : vector<32xf32> to vector<1x32xf32>
    %c0_75 = arith.constant 0 : index
    %c0_76 = arith.constant 0 : index
    %c0_77 = arith.constant 0 : index
    %68 = vector.load %arg7[%c0_75, %c0_76, %c0_77] : memref<1x2x32xf32, #tpu.memory_space<vmem>>, vector<1x1x32xf32>
    %69 = vector.shape_cast %68 : vector<1x1x32xf32> to vector<1x32xf32>
    %70 = vector.shape_cast %67 : vector<1x32xf32> to vector<1x1x32xf32>
    tpu.vector_store %arg7[%c0_75, %c0_76, %c0_77], %70 {strides = array<i32>} : memref<1x2x32xf32, #tpu.memory_space<vmem>>, vector<1x1x32xf32>,
    %71 = arith.mulf %63, %63 : vector<128x32xf32>
    %cst_78 = arith.constant dense<0.000000e+00> : vector<32xf32>
    %72 = vector.multi_reduction <add>, %71, %cst_78 [0] : vector<128x32xf32> to vector<32xf32>
    %73 = vector.shape_cast %72 : vector<32xf32> to vector<1x32xf32>
    %c0_79 = arith.constant 0 : index
    %c1_80 = arith.constant 1 : index
    %c0_81 = arith.constant 0 : index
    %74 = vector.load %arg7[%c0_79, %c1_80, %c0_81] : memref<1x2x32xf32, #tpu.memory_space<vmem>>, vector<1x1x32xf32>
    %75 = vector.shape_cast %74 : vector<1x1x32xf32> to vector<1x32xf32>
    %76 = vector.shape_cast %73 : vector<1x32xf32> to vector<1x1x32xf32>
    tpu.vector_store %arg7[%c0_79, %c1_80, %c0_81], %76 {strides = array<i32>} : memref<1x2x32xf32, #tpu.memory_space<vmem>>, vector<1x1x32xf32>,
    return
  }
  func.func @transform_0(%arg0: i32, %arg1: i32) -> (i32, i32, i32, i32, i32) {
    %c0_i32 = arith.constant 0 : i32
    %c0_i32_0 = arith.constant 0 : i32
    %c0_i32_1 = arith.constant 0 : i32
    %c0_i32_2 = arith.constant 0 : i32
    return %arg0, %arg1, %c0_i32, %c0_i32_0, %c0_i32_1 : i32, i32, i32, i32, i32
  }
  func.func @transform_1(%arg0: i32, %arg1: i32) -> (i32, i32, i32) {
    %c0_i32 = arith.constant 0 : i32
    %c0_i32_0 = arith.constant 0 : i32
    %c0_i32_1 = arith.constant 0 : i32
    %c0_i32_2 = arith.constant 0 : i32
    return %c0_i32, %c0_i32_0, %c0_i32_1 : i32, i32, i32
  }
  func.func @transform_2(%arg0: i32, %arg1: i32) -> (i32, i32) {
    %c0_i32 = arith.constant 0 : i32
    %c0_i32_0 = arith.constant 0 : i32
    %c0_i32_1 = arith.constant 0 : i32
    return %c0_i32, %c0_i32_0 : i32, i32
  }
  func.func @transform_3(%arg0: i32, %arg1: i32) -> (i32, i32) {
    %c0_i32 = arith.constant 0 : i32
    %c0_i32_0 = arith.constant 0 : i32
    %c0_i32_1 = arith.constant 0 : i32
    return %c0_i32, %c0_i32_0 : i32, i32
  }
  func.func @transform_4(%arg0: i32, %arg1: i32) -> (i32, i32) {
    %c2_i32 = arith.constant 2 : i32
    %0 = arith.muli %arg0, %c2_i32 : i32
    %1 = arith.addi %0, %arg1 : i32
    %c0_i32 = arith.constant 0 : i32
    %c0_i32_0 = arith.constant 0 : i32
    return %1, %c0_i32 : i32, i32
  }
  func.func @transform_5(%arg0: i32, %arg1: i32) -> (i32, i32, i32) {
    %c2_i32 = arith.constant 2 : i32
    %0 = arith.muli %arg0, %c2_i32 : i32
    %1 = arith.addi %0, %arg1 : i32
    %c0_i32 = arith.constant 0 : i32
    %c0_i32_0 = arith.constant 0 : i32
    %c0_i32_1 = arith.constant 0 : i32
    return %1, %c0_i32, %c0_i32_0 : i32, i32, i32
  }
}

module attributes {stable_mosaic.version = 11 : i64} {
  func.func @_conv3x3_kernel(%arg0: i32, %arg1: i32, %arg2: memref<1x1x10x18x32xbf16, #tpu.memory_space<vmem>>, %arg3: memref<9x32x32xbf16, #tpu.memory_space<vmem>>, %arg4: memref<1x32xf32, #tpu.memory_space<vmem>>, %arg5: memref<1x32xf32, #tpu.memory_space<vmem>>, %arg6: memref<128x32xbf16, #tpu.memory_space<vmem>>, %arg7: memref<1x2x32xf32, #tpu.memory_space<vmem>>) attributes {dimension_semantics = [#tpu.dimension_semantics<parallel>, #tpu.dimension_semantics<parallel>], iteration_bounds = array<i64: 2, 2>, scalar_prefetch = 0 : i64, scratch_operands = 0 : i64, tpu.core_type = #tpu.core_type<tc>, window_params = [{transform_indices = @transform_0, window_bounds = array<i64: 1, 1, 10, 18, 32>}, {pipeline_mode = #tpu.pipeline_mode<synchronous>, transform_indices = @transform_1, window_bounds = array<i64: 9, 32, 32>}, {pipeline_mode = #tpu.pipeline_mode<synchronous>, transform_indices = @transform_2, window_bounds = array<i64: 1, 32>}, {pipeline_mode = #tpu.pipeline_mode<synchronous>, transform_indices = @transform_3, window_bounds = array<i64: 1, 32>}, {transform_indices = @transform_4, window_bounds = array<i64: 128, 32>}, {transform_indices = @transform_5, window_bounds = array<i64: 1, 2, 32>}]} {
    %c0 = arith.constant 0 : index
    %c0_0 = arith.constant 0 : index
    %0 = vector.load %arg4[%c0, %c0_0] : memref<1x32xf32, #tpu.memory_space<vmem>>, vector<1x32xf32>
    %c0_1 = arith.constant 0 : index
    %c0_2 = arith.constant 0 : index
    %1 = vector.load %arg5[%c0_1, %c0_2] : memref<1x32xf32, #tpu.memory_space<vmem>>, vector<1x32xf32>
    %cst = arith.constant 0.000000e+00 : f32
    %2 = vector.broadcast %cst : f32 to vector<128x32xf32>
    %c0_3 = arith.constant 0 : index
    %c0_4 = arith.constant 0 : index
    %c0_5 = arith.constant 0 : index
    %c0_6 = arith.constant 0 : index
    %c0_7 = arith.constant 0 : index
    %3 = vector.load %arg2[%c0_3, %c0_4, %c0_5, %c0_6, %c0_7] : memref<1x1x10x18x32xbf16, #tpu.memory_space<vmem>>, vector<1x1x8x16x32xbf16>
    %4 = vector.shape_cast %3 : vector<1x1x8x16x32xbf16> to vector<8x16x32xbf16>
    %5 = vector.shape_cast %4 : vector<8x16x32xbf16> to vector<128x32xbf16>
    %6 = arith.extf %5 : vector<128x32xbf16> to vector<128x32xf32>
    %7 = vector.broadcast %0 : vector<1x32xf32> to vector<128x32xf32>
    %8 = arith.mulf %6, %7 : vector<128x32xf32>
    %9 = vector.broadcast %1 : vector<1x32xf32> to vector<128x32xf32>
    %10 = arith.addf %8, %9 : vector<128x32xf32>
    %cst_8 = arith.constant 0.000000e+00 : f32
    %11 = vector.broadcast %cst_8 : f32 to vector<128x32xf32>
    %12 = arith.maximumf %10, %11 : vector<128x32xf32>
    %13 = arith.truncf %12 : vector<128x32xf32> to vector<128x32xbf16>
    %c0_9 = arith.constant 0 : index
    %c0_10 = arith.constant 0 : index
    %c0_11 = arith.constant 0 : index
    %14 = vector.load %arg3[%c0_9, %c0_10, %c0_11] : memref<9x32x32xbf16, #tpu.memory_space<vmem>>, vector<1x32x32xbf16>
    %15 = vector.shape_cast %14 : vector<1x32x32xbf16> to vector<32x32xbf16>
    %cst_12 = arith.constant dense<0.000000e+00> : vector<128x32xf32>
    %16 = tpu.matmul %13, %15, %cst_12 {dimension_numbers = #tpu.dot_dimension_numbers<[1], [0], [0], [1], [0, 0, 1, 1], [], []>} : vector<128x32xbf16>, vector<32x32xbf16>, vector<128x32xf32> -> vector<128x32xf32>
    %17 = arith.addf %2, %16 : vector<128x32xf32>
    %c0_13 = arith.constant 0 : index
    %c0_14 = arith.constant 0 : index
    %c0_15 = arith.constant 0 : index
    %c1 = arith.constant 1 : index
    %c0_16 = arith.constant 0 : index
    %18 = vector.load %arg2[%c0_13, %c0_14, %c0_15, %c1, %c0_16] : memref<1x1x10x18x32xbf16, #tpu.memory_space<vmem>>, vector<1x1x8x16x32xbf16>
    %19 = vector.shape_cast %18 : vector<1x1x8x16x32xbf16> to vector<8x16x32xbf16>
    %20 = vector.shape_cast %19 : vector<8x16x32xbf16> to vector<128x32xbf16>
    %21 = arith.extf %20 : vector<128x32xbf16> to vector<128x32xf32>
    %22 = vector.broadcast %0 : vector<1x32xf32> to vector<128x32xf32>
    %23 = arith.mulf %21, %22 : vector<128x32xf32>
    %24 = vector.broadcast %1 : vector<1x32xf32> to vector<128x32xf32>
    %25 = arith.addf %23, %24 : vector<128x32xf32>
    %cst_17 = arith.constant 0.000000e+00 : f32
    %26 = vector.broadcast %cst_17 : f32 to vector<128x32xf32>
    %27 = arith.maximumf %25, %26 : vector<128x32xf32>
    %28 = arith.truncf %27 : vector<128x32xf32> to vector<128x32xbf16>
    %c1_18 = arith.constant 1 : index
    %c0_19 = arith.constant 0 : index
    %c0_20 = arith.constant 0 : index
    %29 = vector.load %arg3[%c1_18, %c0_19, %c0_20] : memref<9x32x32xbf16, #tpu.memory_space<vmem>>, vector<1x32x32xbf16>
    %30 = vector.shape_cast %29 : vector<1x32x32xbf16> to vector<32x32xbf16>
    %cst_21 = arith.constant dense<0.000000e+00> : vector<128x32xf32>
    %31 = tpu.matmul %28, %30, %cst_21 {dimension_numbers = #tpu.dot_dimension_numbers<[1], [0], [0], [1], [0, 0, 1, 1], [], []>} : vector<128x32xbf16>, vector<32x32xbf16>, vector<128x32xf32> -> vector<128x32xf32>
    %32 = arith.addf %17, %31 : vector<128x32xf32>
    %c0_22 = arith.constant 0 : index
    %c0_23 = arith.constant 0 : index
    %c0_24 = arith.constant 0 : index
    %c2 = arith.constant 2 : index
    %c0_25 = arith.constant 0 : index
    %33 = vector.load %arg2[%c0_22, %c0_23, %c0_24, %c2, %c0_25] : memref<1x1x10x18x32xbf16, #tpu.memory_space<vmem>>, vector<1x1x8x16x32xbf16>
    %34 = vector.shape_cast %33 : vector<1x1x8x16x32xbf16> to vector<8x16x32xbf16>
    %35 = vector.shape_cast %34 : vector<8x16x32xbf16> to vector<128x32xbf16>
    %36 = arith.extf %35 : vector<128x32xbf16> to vector<128x32xf32>
    %37 = vector.broadcast %0 : vector<1x32xf32> to vector<128x32xf32>
    %38 = arith.mulf %36, %37 : vector<128x32xf32>
    %39 = vector.broadcast %1 : vector<1x32xf32> to vector<128x32xf32>
    %40 = arith.addf %38, %39 : vector<128x32xf32>
    %cst_26 = arith.constant 0.000000e+00 : f32
    %41 = vector.broadcast %cst_26 : f32 to vector<128x32xf32>
    %42 = arith.maximumf %40, %41 : vector<128x32xf32>
    %43 = arith.truncf %42 : vector<128x32xf32> to vector<128x32xbf16>
    %c2_27 = arith.constant 2 : index
    %c0_28 = arith.constant 0 : index
    %c0_29 = arith.constant 0 : index
    %44 = vector.load %arg3[%c2_27, %c0_28, %c0_29] : memref<9x32x32xbf16, #tpu.memory_space<vmem>>, vector<1x32x32xbf16>
    %45 = vector.shape_cast %44 : vector<1x32x32xbf16> to vector<32x32xbf16>
    %cst_30 = arith.constant dense<0.000000e+00> : vector<128x32xf32>
    %46 = tpu.matmul %43, %45, %cst_30 {dimension_numbers = #tpu.dot_dimension_numbers<[1], [0], [0], [1], [0, 0, 1, 1], [], []>} : vector<128x32xbf16>, vector<32x32xbf16>, vector<128x32xf32> -> vector<128x32xf32>
    %47 = arith.addf %32, %46 : vector<128x32xf32>
    %c0_31 = arith.constant 0 : index
    %c0_32 = arith.constant 0 : index
    %c1_33 = arith.constant 1 : index
    %c0_34 = arith.constant 0 : index
    %c0_35 = arith.constant 0 : index
    %48 = vector.load %arg2[%c0_31, %c0_32, %c1_33, %c0_34, %c0_35] : memref<1x1x10x18x32xbf16, #tpu.memory_space<vmem>>, vector<1x1x8x16x32xbf16>
    %49 = vector.shape_cast %48 : vector<1x1x8x16x32xbf16> to vector<8x16x32xbf16>
    %50 = vector.shape_cast %49 : vector<8x16x32xbf16> to vector<128x32xbf16>
    %51 = arith.extf %50 : vector<128x32xbf16> to vector<128x32xf32>
    %52 = vector.broadcast %0 : vector<1x32xf32> to vector<128x32xf32>
    %53 = arith.mulf %51, %52 : vector<128x32xf32>
    %54 = vector.broadcast %1 : vector<1x32xf32> to vector<128x32xf32>
    %55 = arith.addf %53, %54 : vector<128x32xf32>
    %cst_36 = arith.constant 0.000000e+00 : f32
    %56 = vector.broadcast %cst_36 : f32 to vector<128x32xf32>
    %57 = arith.maximumf %55, %56 : vector<128x32xf32>
    %58 = arith.truncf %57 : vector<128x32xf32> to vector<128x32xbf16>
    %c3 = arith.constant 3 : index
    %c0_37 = arith.constant 0 : index
    %c0_38 = arith.constant 0 : index
    %59 = vector.load %arg3[%c3, %c0_37, %c0_38] : memref<9x32x32xbf16, #tpu.memory_space<vmem>>, vector<1x32x32xbf16>
    %60 = vector.shape_cast %59 : vector<1x32x32xbf16> to vector<32x32xbf16>
    %cst_39 = arith.constant dense<0.000000e+00> : vector<128x32xf32>
    %61 = tpu.matmul %58, %60, %cst_39 {dimension_numbers = #tpu.dot_dimension_numbers<[1], [0], [0], [1], [0, 0, 1, 1], [], []>} : vector<128x32xbf16>, vector<32x32xbf16>, vector<128x32xf32> -> vector<128x32xf32>
    %62 = arith.addf %47, %61 : vector<128x32xf32>
    %c0_40 = arith.constant 0 : index
    %c0_41 = arith.constant 0 : index
    %c1_42 = arith.constant 1 : index
    %c1_43 = arith.constant 1 : index
    %c0_44 = arith.constant 0 : index
    %63 = vector.load %arg2[%c0_40, %c0_41, %c1_42, %c1_43, %c0_44] : memref<1x1x10x18x32xbf16, #tpu.memory_space<vmem>>, vector<1x1x8x16x32xbf16>
    %64 = vector.shape_cast %63 : vector<1x1x8x16x32xbf16> to vector<8x16x32xbf16>
    %65 = vector.shape_cast %64 : vector<8x16x32xbf16> to vector<128x32xbf16>
    %66 = arith.extf %65 : vector<128x32xbf16> to vector<128x32xf32>
    %67 = vector.broadcast %0 : vector<1x32xf32> to vector<128x32xf32>
    %68 = arith.mulf %66, %67 : vector<128x32xf32>
    %69 = vector.broadcast %1 : vector<1x32xf32> to vector<128x32xf32>
    %70 = arith.addf %68, %69 : vector<128x32xf32>
    %cst_45 = arith.constant 0.000000e+00 : f32
    %71 = vector.broadcast %cst_45 : f32 to vector<128x32xf32>
    %72 = arith.maximumf %70, %71 : vector<128x32xf32>
    %73 = arith.truncf %72 : vector<128x32xf32> to vector<128x32xbf16>
    %c4 = arith.constant 4 : index
    %c0_46 = arith.constant 0 : index
    %c0_47 = arith.constant 0 : index
    %74 = vector.load %arg3[%c4, %c0_46, %c0_47] : memref<9x32x32xbf16, #tpu.memory_space<vmem>>, vector<1x32x32xbf16>
    %75 = vector.shape_cast %74 : vector<1x32x32xbf16> to vector<32x32xbf16>
    %cst_48 = arith.constant dense<0.000000e+00> : vector<128x32xf32>
    %76 = tpu.matmul %73, %75, %cst_48 {dimension_numbers = #tpu.dot_dimension_numbers<[1], [0], [0], [1], [0, 0, 1, 1], [], []>} : vector<128x32xbf16>, vector<32x32xbf16>, vector<128x32xf32> -> vector<128x32xf32>
    %77 = arith.addf %62, %76 : vector<128x32xf32>
    %c0_49 = arith.constant 0 : index
    %c0_50 = arith.constant 0 : index
    %c1_51 = arith.constant 1 : index
    %c2_52 = arith.constant 2 : index
    %c0_53 = arith.constant 0 : index
    %78 = vector.load %arg2[%c0_49, %c0_50, %c1_51, %c2_52, %c0_53] : memref<1x1x10x18x32xbf16, #tpu.memory_space<vmem>>, vector<1x1x8x16x32xbf16>
    %79 = vector.shape_cast %78 : vector<1x1x8x16x32xbf16> to vector<8x16x32xbf16>
    %80 = vector.shape_cast %79 : vector<8x16x32xbf16> to vector<128x32xbf16>
    %81 = arith.extf %80 : vector<128x32xbf16> to vector<128x32xf32>
    %82 = vector.broadcast %0 : vector<1x32xf32> to vector<128x32xf32>
    %83 = arith.mulf %81, %82 : vector<128x32xf32>
    %84 = vector.broadcast %1 : vector<1x32xf32> to vector<128x32xf32>
    %85 = arith.addf %83, %84 : vector<128x32xf32>
    %cst_54 = arith.constant 0.000000e+00 : f32
    %86 = vector.broadcast %cst_54 : f32 to vector<128x32xf32>
    %87 = arith.maximumf %85, %86 : vector<128x32xf32>
    %88 = arith.truncf %87 : vector<128x32xf32> to vector<128x32xbf16>
    %c5 = arith.constant 5 : index
    %c0_55 = arith.constant 0 : index
    %c0_56 = arith.constant 0 : index
    %89 = vector.load %arg3[%c5, %c0_55, %c0_56] : memref<9x32x32xbf16, #tpu.memory_space<vmem>>, vector<1x32x32xbf16>
    %90 = vector.shape_cast %89 : vector<1x32x32xbf16> to vector<32x32xbf16>
    %cst_57 = arith.constant dense<0.000000e+00> : vector<128x32xf32>
    %91 = tpu.matmul %88, %90, %cst_57 {dimension_numbers = #tpu.dot_dimension_numbers<[1], [0], [0], [1], [0, 0, 1, 1], [], []>} : vector<128x32xbf16>, vector<32x32xbf16>, vector<128x32xf32> -> vector<128x32xf32>
    %92 = arith.addf %77, %91 : vector<128x32xf32>
    %c0_58 = arith.constant 0 : index
    %c0_59 = arith.constant 0 : index
    %c2_60 = arith.constant 2 : index
    %c0_61 = arith.constant 0 : index
    %c0_62 = arith.constant 0 : index
    %93 = vector.load %arg2[%c0_58, %c0_59, %c2_60, %c0_61, %c0_62] : memref<1x1x10x18x32xbf16, #tpu.memory_space<vmem>>, vector<1x1x8x16x32xbf16>
    %94 = vector.shape_cast %93 : vector<1x1x8x16x32xbf16> to vector<8x16x32xbf16>
    %95 = vector.shape_cast %94 : vector<8x16x32xbf16> to vector<128x32xbf16>
    %96 = arith.extf %95 : vector<128x32xbf16> to vector<128x32xf32>
    %97 = vector.broadcast %0 : vector<1x32xf32> to vector<128x32xf32>
    %98 = arith.mulf %96, %97 : vector<128x32xf32>
    %99 = vector.broadcast %1 : vector<1x32xf32> to vector<128x32xf32>
    %100 = arith.addf %98, %99 : vector<128x32xf32>
    %cst_63 = arith.constant 0.000000e+00 : f32
    %101 = vector.broadcast %cst_63 : f32 to vector<128x32xf32>
    %102 = arith.maximumf %100, %101 : vector<128x32xf32>
    %103 = arith.truncf %102 : vector<128x32xf32> to vector<128x32xbf16>
    %c6 = arith.constant 6 : index
    %c0_64 = arith.constant 0 : index
    %c0_65 = arith.constant 0 : index
    %104 = vector.load %arg3[%c6, %c0_64, %c0_65] : memref<9x32x32xbf16, #tpu.memory_space<vmem>>, vector<1x32x32xbf16>
    %105 = vector.shape_cast %104 : vector<1x32x32xbf16> to vector<32x32xbf16>
    %cst_66 = arith.constant dense<0.000000e+00> : vector<128x32xf32>
    %106 = tpu.matmul %103, %105, %cst_66 {dimension_numbers = #tpu.dot_dimension_numbers<[1], [0], [0], [1], [0, 0, 1, 1], [], []>} : vector<128x32xbf16>, vector<32x32xbf16>, vector<128x32xf32> -> vector<128x32xf32>
    %107 = arith.addf %92, %106 : vector<128x32xf32>
    %c0_67 = arith.constant 0 : index
    %c0_68 = arith.constant 0 : index
    %c2_69 = arith.constant 2 : index
    %c1_70 = arith.constant 1 : index
    %c0_71 = arith.constant 0 : index
    %108 = vector.load %arg2[%c0_67, %c0_68, %c2_69, %c1_70, %c0_71] : memref<1x1x10x18x32xbf16, #tpu.memory_space<vmem>>, vector<1x1x8x16x32xbf16>
    %109 = vector.shape_cast %108 : vector<1x1x8x16x32xbf16> to vector<8x16x32xbf16>
    %110 = vector.shape_cast %109 : vector<8x16x32xbf16> to vector<128x32xbf16>
    %111 = arith.extf %110 : vector<128x32xbf16> to vector<128x32xf32>
    %112 = vector.broadcast %0 : vector<1x32xf32> to vector<128x32xf32>
    %113 = arith.mulf %111, %112 : vector<128x32xf32>
    %114 = vector.broadcast %1 : vector<1x32xf32> to vector<128x32xf32>
    %115 = arith.addf %113, %114 : vector<128x32xf32>
    %cst_72 = arith.constant 0.000000e+00 : f32
    %116 = vector.broadcast %cst_72 : f32 to vector<128x32xf32>
    %117 = arith.maximumf %115, %116 : vector<128x32xf32>
    %118 = arith.truncf %117 : vector<128x32xf32> to vector<128x32xbf16>
    %c7 = arith.constant 7 : index
    %c0_73 = arith.constant 0 : index
    %c0_74 = arith.constant 0 : index
    %119 = vector.load %arg3[%c7, %c0_73, %c0_74] : memref<9x32x32xbf16, #tpu.memory_space<vmem>>, vector<1x32x32xbf16>
    %120 = vector.shape_cast %119 : vector<1x32x32xbf16> to vector<32x32xbf16>
    %cst_75 = arith.constant dense<0.000000e+00> : vector<128x32xf32>
    %121 = tpu.matmul %118, %120, %cst_75 {dimension_numbers = #tpu.dot_dimension_numbers<[1], [0], [0], [1], [0, 0, 1, 1], [], []>} : vector<128x32xbf16>, vector<32x32xbf16>, vector<128x32xf32> -> vector<128x32xf32>
    %122 = arith.addf %107, %121 : vector<128x32xf32>
    %c0_76 = arith.constant 0 : index
    %c0_77 = arith.constant 0 : index
    %c2_78 = arith.constant 2 : index
    %c2_79 = arith.constant 2 : index
    %c0_80 = arith.constant 0 : index
    %123 = vector.load %arg2[%c0_76, %c0_77, %c2_78, %c2_79, %c0_80] : memref<1x1x10x18x32xbf16, #tpu.memory_space<vmem>>, vector<1x1x8x16x32xbf16>
    %124 = vector.shape_cast %123 : vector<1x1x8x16x32xbf16> to vector<8x16x32xbf16>
    %125 = vector.shape_cast %124 : vector<8x16x32xbf16> to vector<128x32xbf16>
    %126 = arith.extf %125 : vector<128x32xbf16> to vector<128x32xf32>
    %127 = vector.broadcast %0 : vector<1x32xf32> to vector<128x32xf32>
    %128 = arith.mulf %126, %127 : vector<128x32xf32>
    %129 = vector.broadcast %1 : vector<1x32xf32> to vector<128x32xf32>
    %130 = arith.addf %128, %129 : vector<128x32xf32>
    %cst_81 = arith.constant 0.000000e+00 : f32
    %131 = vector.broadcast %cst_81 : f32 to vector<128x32xf32>
    %132 = arith.maximumf %130, %131 : vector<128x32xf32>
    %133 = arith.truncf %132 : vector<128x32xf32> to vector<128x32xbf16>
    %c8 = arith.constant 8 : index
    %c0_82 = arith.constant 0 : index
    %c0_83 = arith.constant 0 : index
    %134 = vector.load %arg3[%c8, %c0_82, %c0_83] : memref<9x32x32xbf16, #tpu.memory_space<vmem>>, vector<1x32x32xbf16>
    %135 = vector.shape_cast %134 : vector<1x32x32xbf16> to vector<32x32xbf16>
    %cst_84 = arith.constant dense<0.000000e+00> : vector<128x32xf32>
    %136 = tpu.matmul %133, %135, %cst_84 {dimension_numbers = #tpu.dot_dimension_numbers<[1], [0], [0], [1], [0, 0, 1, 1], [], []>} : vector<128x32xbf16>, vector<32x32xbf16>, vector<128x32xf32> -> vector<128x32xf32>
    %137 = arith.addf %122, %136 : vector<128x32xf32>
    %138 = arith.truncf %137 : vector<128x32xf32> to vector<128x32xbf16>
    %c0_85 = arith.constant 0 : index
    %c0_86 = arith.constant 0 : index
    %139 = vector.load %arg6[%c0_85, %c0_86] : memref<128x32xbf16, #tpu.memory_space<vmem>>, vector<128x32xbf16>
    tpu.vector_store %arg6[%c0_85, %c0_86], %138 {strides = array<i32>} : memref<128x32xbf16, #tpu.memory_space<vmem>>, vector<128x32xbf16>,
    %cst_87 = arith.constant dense<0.000000e+00> : vector<32xf32>
    %140 = vector.multi_reduction <add>, %137, %cst_87 [0] : vector<128x32xf32> to vector<32xf32>
    %141 = vector.shape_cast %140 : vector<32xf32> to vector<1x32xf32>
    %c0_88 = arith.constant 0 : index
    %c0_89 = arith.constant 0 : index
    %c0_90 = arith.constant 0 : index
    %142 = vector.load %arg7[%c0_88, %c0_89, %c0_90] : memref<1x2x32xf32, #tpu.memory_space<vmem>>, vector<1x1x32xf32>
    %143 = vector.shape_cast %142 : vector<1x1x32xf32> to vector<1x32xf32>
    %144 = vector.shape_cast %141 : vector<1x32xf32> to vector<1x1x32xf32>
    tpu.vector_store %arg7[%c0_88, %c0_89, %c0_90], %144 {strides = array<i32>} : memref<1x2x32xf32, #tpu.memory_space<vmem>>, vector<1x1x32xf32>,
    %145 = arith.mulf %137, %137 : vector<128x32xf32>
    %cst_91 = arith.constant dense<0.000000e+00> : vector<32xf32>
    %146 = vector.multi_reduction <add>, %145, %cst_91 [0] : vector<128x32xf32> to vector<32xf32>
    %147 = vector.shape_cast %146 : vector<32xf32> to vector<1x32xf32>
    %c0_92 = arith.constant 0 : index
    %c1_93 = arith.constant 1 : index
    %c0_94 = arith.constant 0 : index
    %148 = vector.load %arg7[%c0_92, %c1_93, %c0_94] : memref<1x2x32xf32, #tpu.memory_space<vmem>>, vector<1x1x32xf32>
    %149 = vector.shape_cast %148 : vector<1x1x32xf32> to vector<1x32xf32>
    %150 = vector.shape_cast %147 : vector<1x32xf32> to vector<1x1x32xf32>
    tpu.vector_store %arg7[%c0_92, %c1_93, %c0_94], %150 {strides = array<i32>} : memref<1x2x32xf32, #tpu.memory_space<vmem>>, vector<1x1x32xf32>,
    return
  }
  func.func @transform_0(%arg0: i32, %arg1: i32) -> (i32, i32, i32, i32, i32) {
    %c0_i32 = arith.constant 0 : i32
    %c0_i32_0 = arith.constant 0 : i32
    %c0_i32_1 = arith.constant 0 : i32
    %c0_i32_2 = arith.constant 0 : i32
    return %arg0, %arg1, %c0_i32, %c0_i32_0, %c0_i32_1 : i32, i32, i32, i32, i32
  }
  func.func @transform_1(%arg0: i32, %arg1: i32) -> (i32, i32, i32) {
    %c0_i32 = arith.constant 0 : i32
    %c0_i32_0 = arith.constant 0 : i32
    %c0_i32_1 = arith.constant 0 : i32
    %c0_i32_2 = arith.constant 0 : i32
    return %c0_i32, %c0_i32_0, %c0_i32_1 : i32, i32, i32
  }
  func.func @transform_2(%arg0: i32, %arg1: i32) -> (i32, i32) {
    %c0_i32 = arith.constant 0 : i32
    %c0_i32_0 = arith.constant 0 : i32
    %c0_i32_1 = arith.constant 0 : i32
    return %c0_i32, %c0_i32_0 : i32, i32
  }
  func.func @transform_3(%arg0: i32, %arg1: i32) -> (i32, i32) {
    %c0_i32 = arith.constant 0 : i32
    %c0_i32_0 = arith.constant 0 : i32
    %c0_i32_1 = arith.constant 0 : i32
    return %c0_i32, %c0_i32_0 : i32, i32
  }
  func.func @transform_4(%arg0: i32, %arg1: i32) -> (i32, i32) {
    %c2_i32 = arith.constant 2 : i32
    %0 = arith.muli %arg0, %c2_i32 : i32
    %1 = arith.addi %0, %arg1 : i32
    %c0_i32 = arith.constant 0 : i32
    %c0_i32_0 = arith.constant 0 : i32
    return %1, %c0_i32 : i32, i32
  }
  func.func @transform_5(%arg0: i32, %arg1: i32) -> (i32, i32, i32) {
    %c2_i32 = arith.constant 2 : i32
    %0 = arith.muli %arg0, %c2_i32 : i32
    %1 = arith.addi %0, %arg1 : i32
    %c0_i32 = arith.constant 0 : i32
    %c0_i32_0 = arith.constant 0 : i32
    %c0_i32_1 = arith.constant 0 : i32
    return %1, %c0_i32, %c0_i32_0 : i32, i32, i32
  }
}

module attributes {stable_mosaic.version = 11 : i64} {
  func.func @_bn_residual_kernel(%arg0: i32, %arg1: memref<512x32xbf16, #tpu.memory_space<vmem>>, %arg2: memref<1x32xf32, #tpu.memory_space<vmem>>, %arg3: memref<1x32xf32, #tpu.memory_space<vmem>>, %arg4: memref<512x32xf32, #tpu.memory_space<vmem>>, %arg5: memref<512x32xf32, #tpu.memory_space<vmem>>) attributes {dimension_semantics = [#tpu.dimension_semantics<parallel>], iteration_bounds = array<i64: 1>, scalar_prefetch = 0 : i64, scratch_operands = 0 : i64, tpu.core_type = #tpu.core_type<tc>, window_params = [{transform_indices = @transform_0, window_bounds = array<i64: 512, 32>}, {pipeline_mode = #tpu.pipeline_mode<synchronous>, transform_indices = @transform_1, window_bounds = array<i64: 1, 32>}, {pipeline_mode = #tpu.pipeline_mode<synchronous>, transform_indices = @transform_2, window_bounds = array<i64: 1, 32>}, {transform_indices = @transform_3, window_bounds = array<i64: 512, 32>}, {transform_indices = @transform_4, window_bounds = array<i64: 512, 32>}]} {
    %c0 = arith.constant 0 : index
    %c0_0 = arith.constant 0 : index
    %0 = vector.load %arg1[%c0, %c0_0] : memref<512x32xbf16, #tpu.memory_space<vmem>>, vector<512x32xbf16>
    %1 = arith.extf %0 : vector<512x32xbf16> to vector<512x32xf32>
    %c0_1 = arith.constant 0 : index
    %c0_2 = arith.constant 0 : index
    %2 = vector.load %arg2[%c0_1, %c0_2] : memref<1x32xf32, #tpu.memory_space<vmem>>, vector<1x32xf32>
    %3 = vector.broadcast %2 : vector<1x32xf32> to vector<512x32xf32>
    %4 = arith.mulf %1, %3 : vector<512x32xf32>
    %c0_3 = arith.constant 0 : index
    %c0_4 = arith.constant 0 : index
    %5 = vector.load %arg3[%c0_3, %c0_4] : memref<1x32xf32, #tpu.memory_space<vmem>>, vector<1x32xf32>
    %6 = vector.broadcast %5 : vector<1x32xf32> to vector<512x32xf32>
    %7 = arith.addf %4, %6 : vector<512x32xf32>
    %c0_5 = arith.constant 0 : index
    %c0_6 = arith.constant 0 : index
    %8 = vector.load %arg4[%c0_5, %c0_6] : memref<512x32xf32, #tpu.memory_space<vmem>>, vector<512x32xf32>
    %9 = arith.addf %7, %8 : vector<512x32xf32>
    %c0_7 = arith.constant 0 : index
    %c0_8 = arith.constant 0 : index
    %10 = vector.load %arg5[%c0_7, %c0_8] : memref<512x32xf32, #tpu.memory_space<vmem>>, vector<512x32xf32>
    tpu.vector_store %arg5[%c0_7, %c0_8], %9 {strides = array<i32>} : memref<512x32xf32, #tpu.memory_space<vmem>>, vector<512x32xf32>,
    return
  }
  func.func @transform_0(%arg0: i32) -> (i32, i32) {
    %c0_i32 = arith.constant 0 : i32
    %c0_i32_0 = arith.constant 0 : i32
    return %arg0, %c0_i32 : i32, i32
  }
  func.func @transform_1(%arg0: i32) -> (i32, i32) {
    %c0_i32 = arith.constant 0 : i32
    %c0_i32_0 = arith.constant 0 : i32
    %c0_i32_1 = arith.constant 0 : i32
    return %c0_i32, %c0_i32_0 : i32, i32
  }
  func.func @transform_2(%arg0: i32) -> (i32, i32) {
    %c0_i32 = arith.constant 0 : i32
    %c0_i32_0 = arith.constant 0 : i32
    %c0_i32_1 = arith.constant 0 : i32
    return %c0_i32, %c0_i32_0 : i32, i32
  }
  func.func @transform_3(%arg0: i32) -> (i32, i32) {
    %c0_i32 = arith.constant 0 : i32
    %c0_i32_0 = arith.constant 0 : i32
    return %arg0, %c0_i32 : i32, i32
  }
  func.func @transform_4(%arg0: i32) -> (i32, i32) {
    %c0_i32 = arith.constant 0 : i32
    %c0_i32_0 = arith.constant 0 : i32
    return %arg0, %c0_i32 : i32, i32
  }
}

</mosaic_0001>

<llo_original>
// kernel: resnet_block_forward.5
$region0: #{resnet_block_forward.5}
  #allocation0 [shape = 'u32[]', space=smem, size = 0x4, offset = 0x4, fixed_abs, tag = 'smem constant byte address 0x4 - core index']
  #allocation1 [shape = 'u32[144,128]{1,0:T(1,128)}', space=vmem, size = 0x12000, scoped, tag = 'internal scratch']
  %s0 = inlined_call_operand.vmem [shape: bf16[512,32], index: 0, kind: input, shape index: {}]
  %s1 = inlined_call_operand.vmem [shape: f32[1,32], index: 1, kind: input, shape index: {}]
  %s2 = inlined_call_operand.vmem [shape: f32[1,32], index: 2, kind: input, shape index: {}]
  %s3 = inlined_call_operand.vmem [shape: f32[512,32], index: 3, kind: input, shape index: {}]
  %s4 = inlined_call_operand.hbm [shape: f32[512,32], index: 4, kind: output, shape index: {}]
  %s5 = sld [smem:[#allocation0]]
  $region26: #{resnet_block_forward.5} parent=0
    _
  %s7 = ssub.s32 1, %s5
  %s8 = scalar_select 0, %s7, %s5
  $region1: #{resnet_block_forward.5} parent=0
    #allocation2 [shape = 'u8[262144]{0}', space=vmem, size = 0x40000, scoped, tag = 'output window, operand 0, single buffered']
    #allocation3 [shape = 's32[1]{0}', space=sflag, size = 0x4, scoped, tag = 'scoped memory for resnet_block_forward.5']
    %9 = vsyncpa [#allocation3], 0
    // Predicated region
    $region2: #{resnet_block_forward.5} parent=1 // pred_check
      _
    $region3: #{resnet_block_forward.5} parent=1 // pred_check_branch
      %11 = sbr.rel (0) target = $region5
    $region4: #{resnet_block_forward.5} parent=1 // pred_region
      _
    $region5: #{resnet_block_forward.5} parent=1 // pred_fallthru
      _
    // Predicated region
    $region6: #{resnet_block_forward.5} parent=1 // pred_check
      _
    $region7: #{resnet_block_forward.5} parent=1 // pred_check_branch
      %13 = sbr.rel (0) target = $region9
    $region8: #{resnet_block_forward.5} parent=1 // pred_region
      _
    $region9: #{resnet_block_forward.5} parent=1 // pred_fallthru
      _
    // Predicated region
    $region10: #{resnet_block_forward.5} parent=1 // pred_check
      _
    $region11: #{resnet_block_forward.5} parent=1 // pred_check_branch
      %15 = sbr.rel (0) target = $region13
    $region12: #{resnet_block_forward.5} parent=1 // pred_region
      _
    $region13: #{resnet_block_forward.5} parent=1 // pred_fallthru
      _
    // Predicated region
    $region14: #{resnet_block_forward.5} parent=1 // pred_check
      _
    $region15: #{resnet_block_forward.5} parent=1 // pred_check_branch
      %17 = sbr.rel (0) target = $region17
    $region16: #{resnet_block_forward.5} parent=1 // pred_region
      _
    $region17: #{resnet_block_forward.5} parent=1 // pred_fallthru
      _
    %v18 = vld [vmem:[%s0] sm:$0xf]
    %v19 = vld [vmem:[%s0 + $0x4] sm:$0xf]
    %v20 = vld [vmem:[%s0 + $0x8] sm:$0xf]
    %v21 = vld [vmem:[%s0 + $0xc] sm:$0xf]
    %v22 = vld [vmem:[%s0 + $0x10] sm:$0xf]
    %v23 = vld [vmem:[%s0 + $0x14] sm:$0xf]
    %v24 = vld [vmem:[%s0 + $0x18] sm:$0xf]
    %v25 = vld [vmem:[%s0 + $0x1c] sm:$0xf]
    %v26 = vld [vmem:[%s0 + $0x20] sm:$0xf]
    %v27 = vld [vmem:[%s0 + $0x24] sm:$0xf]
    %v28 = vld [vmem:[%s0 + $0x28] sm:$0xf]
    %v29 = vld [vmem:[%s0 + $0x2c] sm:$0xf]
    %v30 = vld [vmem:[%s0 + $0x30] sm:$0xf]
    %v31 = vld [vmem:[%s0 + $0x34] sm:$0xf]
    %v32 = vld [vmem:[%s0 + $0x38] sm:$0xf]
    %v33 = vld [vmem:[%s0 + $0x3c] sm:$0xf]
    %v34 = vld [vmem:[%s0 + $0x40] sm:$0xf]
    %v35 = vld [vmem:[%s0 + $0x44] sm:$0xf]
    %v36 = vld [vmem:[%s0 + $0x48] sm:$0xf]
    %v37 = vld [vmem:[%s0 + $0x4c] sm:$0xf]
    %v38 = vld [vmem:[%s0 + $0x50] sm:$0xf]
    %v39 = vld [vmem:[%s0 + $0x54] sm:$0xf]
    %v40 = vld [vmem:[%s0 + $0x58] sm:$0xf]
    %v41 = vld [vmem:[%s0 + $0x5c] sm:$0xf]
    %v42 = vld [vmem:[%s0 + $0x60] sm:$0xf]
    %v43 = vld [vmem:[%s0 + $0x64] sm:$0xf]
    %v44 = vld [vmem:[%s0 + $0x68] sm:$0xf]
    %v45 = vld [vmem:[%s0 + $0x6c] sm:$0xf]
    %v46 = vld [vmem:[%s0 + $0x70] sm:$0xf]
    %v47 = vld [vmem:[%s0 + $0x74] sm:$0xf]
    %v48 = vld [vmem:[%s0 + $0x78] sm:$0xf]
    %v49 = vld [vmem:[%s0 + $0x7c] sm:$0xf]
    %v50 = vld [vmem:[%s0 + $0x80] sm:$0xf]
    %v51 = vld [vmem:[%s0 + $0x84] sm:$0xf]
    %v52 = vld [vmem:[%s0 + $0x88] sm:$0xf]
    %v53 = vld [vmem:[%s0 + $0x8c] sm:$0xf]
    %v54 = vld [vmem:[%s0 + $0x90] sm:$0xf]
    %v55 = vld [vmem:[%s0 + $0x94] sm:$0xf]
    %v56 = vld [vmem:[%s0 + $0x98] sm:$0xf]
    %v57 = vld [vmem:[%s0 + $0x9c] sm:$0xf]
    %v58 = vld [vmem:[%s0 + $0xa0] sm:$0xf]
    %v59 = vld [vmem:[%s0 + $0xa4] sm:$0xf]
    %v60 = vld [vmem:[%s0 + $0xa8] sm:$0xf]
    %v61 = vld [vmem:[%s0 + $0xac] sm:$0xf]
    %v62 = vld [vmem:[%s0 + $0xb0] sm:$0xf]
    %v63 = vld [vmem:[%s0 + $0xb4] sm:$0xf]
    %v64 = vld [vmem:[%s0 + $0xb8] sm:$0xf]
    %v65 = vld [vmem:[%s0 + $0xbc] sm:$0xf]
    %v66 = vld [vmem:[%s0 + $0xc0] sm:$0xf]
    %v67 = vld [vmem:[%s0 + $0xc4] sm:$0xf]
    %v68 = vld [vmem:[%s0 + $0xc8] sm:$0xf]
    %v69 = vld [vmem:[%s0 + $0xcc] sm:$0xf]
    %v70 = vld [vmem:[%s0 + $0xd0] sm:$0xf]
    %v71 = vld [vmem:[%s0 + $0xd4] sm:$0xf]
    %v72 = vld [vmem:[%s0 + $0xd8] sm:$0xf]
    %v73 = vld [vmem:[%s0 + $0xdc] sm:$0xf]
    %v74 = vld [vmem:[%s0 + $0xe0] sm:$0xf]
    %v75 = vld [vmem:[%s0 + $0xe4] sm:$0xf]
    %v76 = vld [vmem:[%s0 + $0xe8] sm:$0xf]
    %v77 = vld [vmem:[%s0 + $0xec] sm:$0xf]
    %v78 = vld [vmem:[%s0 + $0xf0] sm:$0xf]
    %v79 = vld [vmem:[%s0 + $0xf4] sm:$0xf]
    %v80 = vld [vmem:[%s0 + $0xf8] sm:$0xf]
    %v81 = vld [vmem:[%s0 + $0xfc] sm:$0xf]
    %v82 = vunpack.c.l.bf16 %v18
    %v83 = vunpack.c.l.bf16 %v19
    %v84 = vunpack.c.l.bf16 %v20
    %v85 = vunpack.c.l.bf16 %v21
    %v86 = vunpack.c.l.bf16 %v22
    %v87 = vunpack.c.l.bf16 %v23
    %v88 = vunpack.c.l.bf16 %v24
    %v89 = vunpack.c.l.bf16 %v25
    %v90 = vunpack.c.l.bf16 %v26
    %v91 = vunpack.c.l.bf16 %v27
    %v92 = vunpack.c.l.bf16 %v28
    %v93 = vunpack.c.l.bf16 %v29
    %v94 = vunpack.c.l.bf16 %v30
    %v95 = vunpack.c.l.bf16 %v31
    %v96 = vunpack.c.l.bf16 %v32
    %v97 = vunpack.c.l.bf16 %v33
    %v98 = vunpack.c.l.bf16 %v34
    %v99 = vunpack.c.l.bf16 %v35
    %v100 = vunpack.c.l.bf16 %v36
    %v101 = vunpack.c.l.bf16 %v37
    %v102 = vunpack.c.l.bf16 %v38
    %v103 = vunpack.c.l.bf16 %v39
    %v104 = vunpack.c.l.bf16 %v40
    %v105 = vunpack.c.l.bf16 %v41
    %v106 = vunpack.c.l.bf16 %v42
    %v107 = vunpack.c.l.bf16 %v43
    %v108 = vunpack.c.l.bf16 %v44
    %v109 = vunpack.c.l.bf16 %v45
    %v110 = vunpack.c.l.bf16 %v46
    %v111 = vunpack.c.l.bf16 %v47
    %v112 = vunpack.c.l.bf16 %v48
    %v113 = vunpack.c.l.bf16 %v49
    %v114 = vunpack.c.l.bf16 %v50
    %v115 = vunpack.c.l.bf16 %v51
    %v116 = vunpack.c.l.bf16 %v52
    %v117 = vunpack.c.l.bf16 %v53
    %v118 = vunpack.c.l.bf16 %v54
    %v119 = vunpack.c.l.bf16 %v55
    %v120 = vunpack.c.l.bf16 %v56
    %v121 = vunpack.c.l.bf16 %v57
    %v122 = vunpack.c.l.bf16 %v58
    %v123 = vunpack.c.l.bf16 %v59
    %v124 = vunpack.c.l.bf16 %v60
    %v125 = vunpack.c.l.bf16 %v61
    %v126 = vunpack.c.l.bf16 %v62
    %v127 = vunpack.c.l.bf16 %v63
    %v128 = vunpack.c.l.bf16 %v64
    %v129 = vunpack.c.l.bf16 %v65
    %v130 = vunpack.c.l.bf16 %v66
    %v131 = vunpack.c.l.bf16 %v67
    %v132 = vunpack.c.l.bf16 %v68
    %v133 = vunpack.c.l.bf16 %v69
    %v134 = vunpack.c.l.bf16 %v70
    %v135 = vunpack.c.l.bf16 %v71
    %v136 = vunpack.c.l.bf16 %v72
    %v137 = vunpack.c.l.bf16 %v73
    %v138 = vunpack.c.l.bf16 %v74
    %v139 = vunpack.c.l.bf16 %v75
    %v140 = vunpack.c.l.bf16 %v76
    %v141 = vunpack.c.l.bf16 %v77
    %v142 = vunpack.c.l.bf16 %v78
    %v143 = vunpack.c.l.bf16 %v79
    %v144 = vunpack.c.l.bf16 %v80
    %v145 = vunpack.c.l.bf16 %v81
    %v146 = vld [vmem:[%s1] sm:$0x1]
    %v148 = vlaneseq
    %v149 = vshrl.u32 %v148, 7
    %v150 = vsub.s32 0, %v149
    %v151 = vrot.slane %v146, %v150
    %v153 = vmul.f32 %v82, %v151
    %v154 = vmul.f32 %v83, %v151
    %v155 = vmul.f32 %v84, %v151
    %v156 = vmul.f32 %v85, %v151
    %v157 = vmul.f32 %v86, %v151
    %v158 = vmul.f32 %v87, %v151
    %v159 = vmul.f32 %v88, %v151
    %v160 = vmul.f32 %v89, %v151
    %v161 = vmul.f32 %v90, %v151
    %v162 = vmul.f32 %v91, %v151
    %v163 = vmul.f32 %v92, %v151
    %v164 = vmul.f32 %v93, %v151
    %v165 = vmul.f32 %v94, %v151
    %v166 = vmul.f32 %v95, %v151
    %v167 = vmul.f32 %v96, %v151
    %v168 = vmul.f32 %v97, %v151
    %v169 = vmul.f32 %v98, %v151
    %v170 = vmul.f32 %v99, %v151
    %v171 = vmul.f32 %v100, %v151
    %v172 = vmul.f32 %v101, %v151
    %v173 = vmul.f32 %v102, %v151
    %v174 = vmul.f32 %v103, %v151
    %v175 = vmul.f32 %v104, %v151
    %v176 = vmul.f32 %v105, %v151
    %v177 = vmul.f32 %v106, %v151
    %v178 = vmul.f32 %v107, %v151
    %v179 = vmul.f32 %v108, %v151
    %v180 = vmul.f32 %v109, %v151
    %v181 = vmul.f32 %v110, %v151
    %v182 = vmul.f32 %v111, %v151
    %v183 = vmul.f32 %v112, %v151
    %v184 = vmul.f32 %v113, %v151
    %v185 = vmul.f32 %v114, %v151
    %v186 = vmul.f32 %v115, %v151
    %v187 = vmul.f32 %v116, %v151
    %v188 = vmul.f32 %v117, %v151
    %v189 = vmul.f32 %v118, %v151
    %v190 = vmul.f32 %v119, %v151
    %v191 = vmul.f32 %v120, %v151
    %v192 = vmul.f32 %v121, %v151
    %v193 = vmul.f32 %v122, %v151
    %v194 = vmul.f32 %v123, %v151
    %v195 = vmul.f32 %v124, %v151
    %v196 = vmul.f32 %v125, %v151
    %v197 = vmul.f32 %v126, %v151
    %v198 = vmul.f32 %v127, %v151
    %v199 = vmul.f32 %v128, %v151
    %v200 = vmul.f32 %v129, %v151
    %v201 = vmul.f32 %v130, %v151
    %v202 = vmul.f32 %v131, %v151
    %v203 = vmul.f32 %v132, %v151
    %v204 = vmul.f32 %v133, %v151
    %v205 = vmul.f32 %v134, %v151
    %v206 = vmul.f32 %v135, %v151
    %v207 = vmul.f32 %v136, %v151
    %v208 = vmul.f32 %v137, %v151
    %v209 = vmul.f32 %v138, %v151
    %v210 = vmul.f32 %v139, %v151
    %v211 = vmul.f32 %v140, %v151
    %v212 = vmul.f32 %v141, %v151
    %v213 = vmul.f32 %v142, %v151
    %v214 = vmul.f32 %v143, %v151
    %v215 = vmul.f32 %v144, %v151
    %v216 = vmul.f32 %v145, %v151
    %v217 = vld [vmem:[%s2] sm:$0x1]
    %v219 = vlaneseq
    %v220 = vshrl.u32 %v219, 7
    %v221 = vsub.s32 0, %v220
    %v222 = vrot.slane %v217, %v221
    %v224 = vadd.f32 %v153, %v222
    %v225 = vadd.f32 %v154, %v222
    %v226 = vadd.f32 %v155, %v222
    %v227 = vadd.f32 %v156, %v222
    %v228 = vadd.f32 %v157, %v222
    %v229 = vadd.f32 %v158, %v222
    %v230 = vadd.f32 %v159, %v222
    %v231 = vadd.f32 %v160, %v222
    %v232 = vadd.f32 %v161, %v222
    %v233 = vadd.f32 %v162, %v222
    %v234 = vadd.f32 %v163, %v222
    %v235 = vadd.f32 %v164, %v222
    %v236 = vadd.f32 %v165, %v222
    %v237 = vadd.f32 %v166, %v222
    %v238 = vadd.f32 %v167, %v222
    %v239 = vadd.f32 %v168, %v222
    %v240 = vadd.f32 %v169, %v222
    %v241 = vadd.f32 %v170, %v222
    %v242 = vadd.f32 %v171, %v222
    %v243 = vadd.f32 %v172, %v222
    %v244 = vadd.f32 %v173, %v222
    %v245 = vadd.f32 %v174, %v222
    %v246 = vadd.f32 %v175, %v222
    %v247 = vadd.f32 %v176, %v222
    %v248 = vadd.f32 %v177, %v222
    %v249 = vadd.f32 %v178, %v222
    %v250 = vadd.f32 %v179, %v222
    %v251 = vadd.f32 %v180, %v222
    %v252 = vadd.f32 %v181, %v222
    %v253 = vadd.f32 %v182, %v222
    %v254 = vadd.f32 %v183, %v222
    %v255 = vadd.f32 %v184, %v222
    %v256 = vadd.f32 %v185, %v222
    %v257 = vadd.f32 %v186, %v222
    %v258 = vadd.f32 %v187, %v222
    %v259 = vadd.f32 %v188, %v222
    %v260 = vadd.f32 %v189, %v222
    %v261 = vadd.f32 %v190, %v222
    %v262 = vadd.f32 %v191, %v222
    %v263 = vadd.f32 %v192, %v222
    %v264 = vadd.f32 %v193, %v222
    %v265 = vadd.f32 %v194, %v222
    %v266 = vadd.f32 %v195, %v222
    %v267 = vadd.f32 %v196, %v222
    %v268 = vadd.f32 %v197, %v222
    %v269 = vadd.f32 %v198, %v222
    %v270 = vadd.f32 %v199, %v222
    %v271 = vadd.f32 %v200, %v222
    %v272 = vadd.f32 %v201, %v222
    %v273 = vadd.f32 %v202, %v222
    %v274 = vadd.f32 %v203, %v222
    %v275 = vadd.f32 %v204, %v222
    %v276 = vadd.f32 %v205, %v222
    %v277 = vadd.f32 %v206, %v222
    %v278 = vadd.f32 %v207, %v222
    %v279 = vadd.f32 %v208, %v222
    %v280 = vadd.f32 %v209, %v222
    %v281 = vadd.f32 %v210, %v222
    %v282 = vadd.f32 %v211, %v222
    %v283 = vadd.f32 %v212, %v222
    %v284 = vadd.f32 %v213, %v222
    %v285 = vadd.f32 %v214, %v222
    %v286 = vadd.f32 %v215, %v222
    %v287 = vadd.f32 %v216, %v222
    %v288 = vld [vmem:[%s3] sm:$0xff]
    %v289 = vld [vmem:[%s3 + $0x8] sm:$0xff]
    %v290 = vld [vmem:[%s3 + $0x10] sm:$0xff]
    %v291 = vld [vmem:[%s3 + $0x18] sm:$0xff]
    %v292 = vld [vmem:[%s3 + $0x20] sm:$0xff]
    %v293 = vld [vmem:[%s3 + $0x28] sm:$0xff]
    %v294 = vld [vmem:[%s3 + $0x30] sm:$0xff]
    %v295 = vld [vmem:[%s3 + $0x38] sm:$0xff]
    %v296 = vld [vmem:[%s3 + $0x40] sm:$0xff]
    %v297 = vld [vmem:[%s3 + $0x48] sm:$0xff]
    %v298 = vld [vmem:[%s3 + $0x50] sm:$0xff]
    %v299 = vld [vmem:[%s3 + $0x58] sm:$0xff]
    %v300 = vld [vmem:[%s3 + $0x60] sm:$0xff]
    %v301 = vld [vmem:[%s3 + $0x68] sm:$0xff]
    %v302 = vld [vmem:[%s3 + $0x70] sm:$0xff]
    %v303 = vld [vmem:[%s3 + $0x78] sm:$0xff]
    %v304 = vld [vmem:[%s3 + $0x80] sm:$0xff]
    %v305 = vld [vmem:[%s3 + $0x88] sm:$0xff]
    %v306 = vld [vmem:[%s3 + $0x90] sm:$0xff]
    %v307 = vld [vmem:[%s3 + $0x98] sm:$0xff]
    %v308 = vld [vmem:[%s3 + $0xa0] sm:$0xff]
    %v309 = vld [vmem:[%s3 + $0xa8] sm:$0xff]
    %v310 = vld [vmem:[%s3 + $0xb0] sm:$0xff]
    %v311 = vld [vmem:[%s3 + $0xb8] sm:$0xff]
    %v312 = vld [vmem:[%s3 + $0xc0] sm:$0xff]
    %v313 = vld [vmem:[%s3 + $0xc8] sm:$0xff]
    %v314 = vld [vmem:[%s3 + $0xd0] sm:$0xff]
    %v315 = vld [vmem:[%s3 + $0xd8] sm:$0xff]
    %v316 = vld [vmem:[%s3 + $0xe0] sm:$0xff]
    %v317 = vld [vmem:[%s3 + $0xe8] sm:$0xff]
    %v318 = vld [vmem:[%s3 + $0xf0] sm:$0xff]
    %v319 = vld [vmem:[%s3 + $0xf8] sm:$0xff]
    %v320 = vld [vmem:[%s3 + $0x100] sm:$0xff]
    %v321 = vld [vmem:[%s3 + $0x108] sm:$0xff]
    %v322 = vld [vmem:[%s3 + $0x110] sm:$0xff]
    %v323 = vld [vmem:[%s3 + $0x118] sm:$0xff]
    %v324 = vld [vmem:[%s3 + $0x120] sm:$0xff]
    %v325 = vld [vmem:[%s3 + $0x128] sm:$0xff]
    %v326 = vld [vmem:[%s3 + $0x130] sm:$0xff]
    %v327 = vld [vmem:[%s3 + $0x138] sm:$0xff]
    %v328 = vld [vmem:[%s3 + $0x140] sm:$0xff]
    %v329 = vld [vmem:[%s3 + $0x148] sm:$0xff]
    %v330 = vld [vmem:[%s3 + $0x150] sm:$0xff]
    %v331 = vld [vmem:[%s3 + $0x158] sm:$0xff]
    %v332 = vld [vmem:[%s3 + $0x160] sm:$0xff]
    %v333 = vld [vmem:[%s3 + $0x168] sm:$0xff]
    %v334 = vld [vmem:[%s3 + $0x170] sm:$0xff]
    %v335 = vld [vmem:[%s3 + $0x178] sm:$0xff]
    %v336 = vld [vmem:[%s3 + $0x180] sm:$0xff]
    %v337 = vld [vmem:[%s3 + $0x188] sm:$0xff]
    %v338 = vld [vmem:[%s3 + $0x190] sm:$0xff]
    %v339 = vld [vmem:[%s3 + $0x198] sm:$0xff]
    %v340 = vld [vmem:[%s3 + $0x1a0] sm:$0xff]
    %v341 = vld [vmem:[%s3 + $0x1a8] sm:$0xff]
    %v342 = vld [vmem:[%s3 + $0x1b0] sm:$0xff]
    %v343 = vld [vmem:[%s3 + $0x1b8] sm:$0xff]
    %v344 = vld [vmem:[%s3 + $0x1c0] sm:$0xff]
    %v345 = vld [vmem:[%s3 + $0x1c8] sm:$0xff]
    %v346 = vld [vmem:[%s3 + $0x1d0] sm:$0xff]
    %v347 = vld [vmem:[%s3 + $0x1d8] sm:$0xff]
    %v348 = vld [vmem:[%s3 + $0x1e0] sm:$0xff]
    %v349 = vld [vmem:[%s3 + $0x1e8] sm:$0xff]
    %v350 = vld [vmem:[%s3 + $0x1f0] sm:$0xff]
    %v351 = vld [vmem:[%s3 + $0x1f8] sm:$0xff]
    %v352 = vadd.f32 %v224, %v288
    %v353 = vadd.f32 %v225, %v289
    %v354 = vadd.f32 %v226, %v290
    %v355 = vadd.f32 %v227, %v291
    %v356 = vadd.f32 %v228, %v292
    %v357 = vadd.f32 %v229, %v293
    %v358 = vadd.f32 %v230, %v294
    %v359 = vadd.f32 %v231, %v295
    %v360 = vadd.f32 %v232, %v296
    %v361 = vadd.f32 %v233, %v297
    %v362 = vadd.f32 %v234, %v298
    %v363 = vadd.f32 %v235, %v299
    %v364 = vadd.f32 %v236, %v300
    %v365 = vadd.f32 %v237, %v301
    %v366 = vadd.f32 %v238, %v302
    %v367 = vadd.f32 %v239, %v303
    %v368 = vadd.f32 %v240, %v304
    %v369 = vadd.f32 %v241, %v305
    %v370 = vadd.f32 %v242, %v306
    %v371 = vadd.f32 %v243, %v307
    %v372 = vadd.f32 %v244, %v308
    %v373 = vadd.f32 %v245, %v309
    %v374 = vadd.f32 %v246, %v310
    %v375 = vadd.f32 %v247, %v311
    %v376 = vadd.f32 %v248, %v312
    %v377 = vadd.f32 %v249, %v313
    %v378 = vadd.f32 %v250, %v314
    %v379 = vadd.f32 %v251, %v315
    %v380 = vadd.f32 %v252, %v316
    %v381 = vadd.f32 %v253, %v317
    %v382 = vadd.f32 %v254, %v318
    %v383 = vadd.f32 %v255, %v319
    %v384 = vadd.f32 %v256, %v320
    %v385 = vadd.f32 %v257, %v321
    %v386 = vadd.f32 %v258, %v322
    %v387 = vadd.f32 %v259, %v323
    %v388 = vadd.f32 %v260, %v324
    %v389 = vadd.f32 %v261, %v325
    %v390 = vadd.f32 %v262, %v326
    %v391 = vadd.f32 %v263, %v327
    %v392 = vadd.f32 %v264, %v328
    %v393 = vadd.f32 %v265, %v329
    %v394 = vadd.f32 %v266, %v330
    %v395 = vadd.f32 %v267, %v331
    %v396 = vadd.f32 %v268, %v332
    %v397 = vadd.f32 %v269, %v333
    %v398 = vadd.f32 %v270, %v334
    %v399 = vadd.f32 %v271, %v335
    %v400 = vadd.f32 %v272, %v336
    %v401 = vadd.f32 %v273, %v337
    %v402 = vadd.f32 %v274, %v338
    %v403 = vadd.f32 %v275, %v339
    %v404 = vadd.f32 %v276, %v340
    %v405 = vadd.f32 %v277, %v341
    %v406 = vadd.f32 %v278, %v342
    %v407 = vadd.f32 %v279, %v343
    %v408 = vadd.f32 %v280, %v344
    %v409 = vadd.f32 %v281, %v345
    %v410 = vadd.f32 %v282, %v346
    %v411 = vadd.f32 %v283, %v347
    %v412 = vadd.f32 %v284, %v348
    %v413 = vadd.f32 %v285, %v349
    %v414 = vadd.f32 %v286, %v350
    %v415 = vadd.f32 %v287, %v351
    %vm416 = vcmask 261120
    %417 = vst.msk [vmem:[#allocation2] sm:$0xff] %vm416, %v352
    %418 = vst.msk [vmem:[#allocation2 + $0x8] sm:$0xff] %vm416, %v353
    %419 = vst.msk [vmem:[#allocation2 + $0x10] sm:$0xff] %vm416, %v354
    %420 = vst.msk [vmem:[#allocation2 + $0x18] sm:$0xff] %vm416, %v355
    %421 = vst.msk [vmem:[#allocation2 + $0x20] sm:$0xff] %vm416, %v356
    %422 = vst.msk [vmem:[#allocation2 + $0x28] sm:$0xff] %vm416, %v357
    %423 = vst.msk [vmem:[#allocation2 + $0x30] sm:$0xff] %vm416, %v358
    %424 = vst.msk [vmem:[#allocation2 + $0x38] sm:$0xff] %vm416, %v359
    %425 = vst.msk [vmem:[#allocation2 + $0x40] sm:$0xff] %vm416, %v360
    %426 = vst.msk [vmem:[#allocation2 + $0x48] sm:$0xff] %vm416, %v361
    %427 = vst.msk [vmem:[#allocation2 + $0x50] sm:$0xff] %vm416, %v362
    %428 = vst.msk [vmem:[#allocation2 + $0x58] sm:$0xff] %vm416, %v363
    %429 = vst.msk [vmem:[#allocation2 + $0x60] sm:$0xff] %vm416, %v364
    %430 = vst.msk [vmem:[#allocation2 + $0x68] sm:$0xff] %vm416, %v365
    %431 = vst.msk [vmem:[#allocation2 + $0x70] sm:$0xff] %vm416, %v366
    %432 = vst.msk [vmem:[#allocation2 + $0x78] sm:$0xff] %vm416, %v367
    %433 = vst.msk [vmem:[#allocation2 + $0x80] sm:$0xff] %vm416, %v368
    %434 = vst.msk [vmem:[#allocation2 + $0x88] sm:$0xff] %vm416, %v369
    %435 = vst.msk [vmem:[#allocation2 + $0x90] sm:$0xff] %vm416, %v370
    %436 = vst.msk [vmem:[#allocation2 + $0x98] sm:$0xff] %vm416, %v371
    %437 = vst.msk [vmem:[#allocation2 + $0xa0] sm:$0xff] %vm416, %v372
    %438 = vst.msk [vmem:[#allocation2 + $0xa8] sm:$0xff] %vm416, %v373
    %439 = vst.msk [vmem:[#allocation2 + $0xb0] sm:$0xff] %vm416, %v374
    %440 = vst.msk [vmem:[#allocation2 + $0xb8] sm:$0xff] %vm416, %v375
    %441 = vst.msk [vmem:[#allocation2 + $0xc0] sm:$0xff] %vm416, %v376
    %442 = vst.msk [vmem:[#allocation2 + $0xc8] sm:$0xff] %vm416, %v377
    %443 = vst.msk [vmem:[#allocation2 + $0xd0] sm:$0xff] %vm416, %v378
    %444 = vst.msk [vmem:[#allocation2 + $0xd8] sm:$0xff] %vm416, %v379
    %445 = vst.msk [vmem:[#allocation2 + $0xe0] sm:$0xff] %vm416, %v380
    %446 = vst.msk [vmem:[#allocation2 + $0xe8] sm:$0xff] %vm416, %v381
    %447 = vst.msk [vmem:[#allocation2 + $0xf0] sm:$0xff] %vm416, %v382
    %448 = vst.msk [vmem:[#allocation2 + $0xf8] sm:$0xff] %vm416, %v383
    %449 = vst.msk [vmem:[#allocation2 + $0x100] sm:$0xff] %vm416, %v384
    %450 = vst.msk [vmem:[#allocation2 + $0x108] sm:$0xff] %vm416, %v385
    %451 = vst.msk [vmem:[#allocation2 + $0x110] sm:$0xff] %vm416, %v386
    %452 = vst.msk [vmem:[#allocation2 + $0x118] sm:$0xff] %vm416, %v387
    %453 = vst.msk [vmem:[#allocation2 + $0x120] sm:$0xff] %vm416, %v388
    %454 = vst.msk [vmem:[#allocation2 + $0x128] sm:$0xff] %vm416, %v389
    %455 = vst.msk [vmem:[#allocation2 + $0x130] sm:$0xff] %vm416, %v390
    %456 = vst.msk [vmem:[#allocation2 + $0x138] sm:$0xff] %vm416, %v391
    %457 = vst.msk [vmem:[#allocation2 + $0x140] sm:$0xff] %vm416, %v392
    %458 = vst.msk [vmem:[#allocation2 + $0x148] sm:$0xff] %vm416, %v393
    %459 = vst.msk [vmem:[#allocation2 + $0x150] sm:$0xff] %vm416, %v394
    %460 = vst.msk [vmem:[#allocation2 + $0x158] sm:$0xff] %vm416, %v395
    %461 = vst.msk [vmem:[#allocation2 + $0x160] sm:$0xff] %vm416, %v396
    %462 = vst.msk [vmem:[#allocation2 + $0x168] sm:$0xff] %vm416, %v397
    %463 = vst.msk [vmem:[#allocation2 + $0x170] sm:$0xff] %vm416, %v398
    %464 = vst.msk [vmem:[#allocation2 + $0x178] sm:$0xff] %vm416, %v399
    %465 = vst.msk [vmem:[#allocation2 + $0x180] sm:$0xff] %vm416, %v400
    %466 = vst.msk [vmem:[#allocation2 + $0x188] sm:$0xff] %vm416, %v401
    %467 = vst.msk [vmem:[#allocation2 + $0x190] sm:$0xff] %vm416, %v402
    %468 = vst.msk [vmem:[#allocation2 + $0x198] sm:$0xff] %vm416, %v403
    %469 = vst.msk [vmem:[#allocation2 + $0x1a0] sm:$0xff] %vm416, %v404
    %470 = vst.msk [vmem:[#allocation2 + $0x1a8] sm:$0xff] %vm416, %v405
    %471 = vst.msk [vmem:[#allocation2 + $0x1b0] sm:$0xff] %vm416, %v406
    %472 = vst.msk [vmem:[#allocation2 + $0x1b8] sm:$0xff] %vm416, %v407
    %473 = vst.msk [vmem:[#allocation2 + $0x1c0] sm:$0xff] %vm416, %v408
    %474 = vst.msk [vmem:[#allocation2 + $0x1c8] sm:$0xff] %vm416, %v409
    %475 = vst.msk [vmem:[#allocation2 + $0x1d0] sm:$0xff] %vm416, %v410
    %476 = vst.msk [vmem:[#allocation2 + $0x1d8] sm:$0xff] %vm416, %v411
    %477 = vst.msk [vmem:[#allocation2 + $0x1e0] sm:$0xff] %vm416, %v412
    %478 = vst.msk [vmem:[#allocation2 + $0x1e8] sm:$0xff] %vm416, %v413
    %479 = vst.msk [vmem:[#allocation2 + $0x1f0] sm:$0xff] %vm416, %v414
    %480 = vst.msk [vmem:[#allocation2 + $0x1f8] sm:$0xff] %vm416, %v415
    // Predicated region
    $region18: #{resnet_block_forward.5} parent=1 // pred_check
      _
    $region19: #{resnet_block_forward.5} parent=1 // pred_check_branch
      %482 = sbr.rel (0) target = $region21
    $region20: #{resnet_block_forward.5} parent=1 // pred_region
      %s484 = ssub.s32 8192, 8192
      %485 = vsyncadd [#allocation3], %s484
      %s486 = sshll.u32 [#allocation2], 4
      %s487 = int_to_ptr.vmem [resolvable:$true] %s486
      %492 = dma.vmem_to_hbm [thread:$0]  %s487, 8192, %s4, [#allocation3], 128, 128, 8
    $region21: #{resnet_block_forward.5} parent=1 // pred_fallthru
      _
    // Predicated region
    $region22: #{resnet_block_forward.5} parent=1 // pred_check
      _
    $region23: #{resnet_block_forward.5} parent=1 // pred_check_branch
      %494 = sbr.rel (0) target = $region25
    $region24: #{resnet_block_forward.5} parent=1 // pred_region
      %495 = dma.done [#allocation3], 8192
    $region25: #{resnet_block_forward.5} parent=1 // pred_fallthru
      _
    %496 = vsyncpa [#allocation3], 1

// kernel: resnet_block_forward.3
$region0: #{resnet_block_forward.3}
  #allocation0 [shape = 'u32[]', space=smem, size = 0x4, offset = 0x4, fixed_abs, tag = 'smem constant byte address 0x4 - core index']
  #allocation1 [shape = 'u32[144,128]{1,0:T(1,128)}', space=vmem, size = 0x12000, scoped, tag = 'internal scratch']
  %s0 = inlined_call_operand.vmem [shape: bf16[2,2,10,18,32], index: 0, kind: input, shape index: {}]
  %s1 = inlined_call_operand.vmem [shape: bf16[9,32,32], index: 1, kind: input, shape index: {}]
  %s2 = inlined_call_operand.vmem [shape: f32[1,32], index: 2, kind: input, shape index: {}]
  %s3 = inlined_call_operand.vmem [shape: f32[1,32], index: 3, kind: input, shape index: {}]
  %s4 = inlined_call_operand.vmem [shape: bf16[512,32], index: 4, kind: output, shape index: {0}]
  %s5 = inlined_call_operand.vmem [shape: f32[4,2,32], index: 5, kind: output, shape index: {1}]
  %6 = xla_tuple %s4, %s5
  %s7 = sld [smem:[#allocation0]]
  $region57: #{resnet_block_forward.3} parent=0
    _
  %s9 = ssub.s32 1, %s7
  %s10 = scalar_select 0, %s9, %s7
  loop: start=0, step=1, limit=6
  $region2: #{resnet_block_forward.3} parent=0 // loop_pre_header
    _
  $region3: #{resnet_block_forward.3} parent=0 // loop_header
    %s12 = sphi 0, %s16
    %p13 = scmp.ge.s32.totalorder %s12, 6
    %s19 = sphi 0, %s31
    %s20 = sphi 0, %s27
    %s21 = sphi 0, %s19
    %s22 = sphi 0, %s20
    %s23 = sphi 0, %s21
    %s24 = sphi 0, %s22
    %s36 = sphi 0, %s38
    %s39 = sphi 0, %s36
    %s40 = sphi 0, %s39
    %s56 = sphi 0, %s40
    %s60 = sphi 0, %s60
    %s62 = sphi 0, %s60
    %s63 = sphi 0, %s62
    %s77 = sphi 0, %s63
    %s81 = sphi 0, %s81
    %s83 = sphi 0, %s81
    %s84 = sphi 0, %s83
    %s98 = sphi 0, %s84
    %s102 = sphi 0, %s102
    %s104 = sphi 0, %s102
    %s105 = sphi 0, %s104
    %s119 = sphi 0, %s105
    %s129 = sphi 0, %s131
    %s132 = sphi 0, %s129
    %s133 = sphi 0, %s132
    %s149 = sphi 0, %s133
    %s159 = sphi 0, %s161
    %s162 = sphi 0, %s159
    %s163 = sphi 0, %s162
    %s179 = sphi 0, %s163
  $region4: #{resnet_block_forward.3} parent=0 // loop_header_branch
    %15 = sbr.rel (%p13) target = $region8
  $region5: #{resnet_block_forward.3} parent=0 // loop_body
    %s17 = ssub.s32 %s12, 1
    %s18 = ssub.s32 %s12, 2
    %s25 = sadd.s32 1, %s20
    %p26 = scmp.ge.s32.totalorder %s25, 2
    %s27 = scalar_select %p26, 0, %s25
    %s28 = sadd.s32 1, %s19
    %s29 = scalar_select %p26, %s28, %s19
    %p30 = scmp.ge.s32.totalorder %s29, 2
    %s31 = scalar_select %p30, 0, %s29
    %s32 = ssub.s32 %s19, %s31
    %s33 = ssub.s32 %s20, %s27
    %s34 = sor.u32 %s32, %s33
    %p35 = scmp.eq.s32.totalorder %s34, 0
    %s37 = sadd.s32 %s36, 1
    %s38 = scalar_select %p35, %s36, %s37
    %p41 = pneg %p35
    %p42 = scmp.eq.s32.totalorder %s12, 3
    %p43 = por %p41, %p42
    %p44 = scmp.ne.s32.totalorder %s36, %s39
    %p45 = scmp.eq.s32.totalorder %s12, 0
    %p46 = por %p44, %p45
    %p47 = scmp.ne.s32.totalorder %s36, %s39
    %p48 = scmp.eq.s32.totalorder %s17, 3
    %p49 = por %p47, %p48
    %p50 = scmp.ne.s32.totalorder %s39, %s40
    %p51 = scmp.eq.s32.totalorder %s17, 0
    %p52 = por %p50, %p51
    %p53 = scmp.ne.s32.totalorder %s39, %s40
    %p54 = scmp.eq.s32.totalorder %s18, 3
    %p55 = por %p53, %p54
    %p57 = scmp.ne.s32.totalorder %s40, %s56
    %p58 = scmp.eq.s32.totalorder %s18, 0
    %p59 = por %p57, %p58
    %s61 = sadd.s32 %s60, 1
    %p64 = scmp.eq.s32.totalorder %s12, 3
    %p65 = scmp.ne.s32.totalorder %s60, %s62
    %p66 = scmp.eq.s32.totalorder %s12, 0
    %p67 = por %p65, %p66
    %p68 = scmp.ne.s32.totalorder %s60, %s62
    %p69 = scmp.eq.s32.totalorder %s17, 3
    %p70 = por %p68, %p69
    %p71 = scmp.ne.s32.totalorder %s62, %s63
    %p72 = scmp.eq.s32.totalorder %s17, 0
    %p73 = por %p71, %p72
    %p74 = scmp.ne.s32.totalorder %s62, %s63
    %p75 = scmp.eq.s32.totalorder %s18, 3
    %p76 = por %p74, %p75
    %p78 = scmp.ne.s32.totalorder %s63, %s77
    %p79 = scmp.eq.s32.totalorder %s18, 0
    %p80 = por %p78, %p79
    %s82 = sadd.s32 %s81, 1
    %p85 = scmp.eq.s32.totalorder %s12, 3
    %p86 = scmp.ne.s32.totalorder %s81, %s83
    %p87 = scmp.eq.s32.totalorder %s12, 0
    %p88 = por %p86, %p87
    %p89 = scmp.ne.s32.totalorder %s81, %s83
    %p90 = scmp.eq.s32.totalorder %s17, 3
    %p91 = por %p89, %p90
    %p92 = scmp.ne.s32.totalorder %s83, %s84
    %p93 = scmp.eq.s32.totalorder %s17, 0
    %p94 = por %p92, %p93
    %p95 = scmp.ne.s32.totalorder %s83, %s84
    %p96 = scmp.eq.s32.totalorder %s18, 3
    %p97 = por %p95, %p96
    %p99 = scmp.ne.s32.totalorder %s84, %s98
    %p100 = scmp.eq.s32.totalorder %s18, 0
    %p101 = por %p99, %p100
    %s103 = sadd.s32 %s102, 1
    %p106 = scmp.eq.s32.totalorder %s12, 3
    %p107 = scmp.ne.s32.totalorder %s102, %s104
    %p108 = scmp.eq.s32.totalorder %s12, 0
    %p109 = por %p107, %p108
    %p110 = scmp.ne.s32.totalorder %s102, %s104
    %p111 = scmp.eq.s32.totalorder %s17, 3
    %p112 = por %p110, %p111
    %p113 = scmp.ne.s32.totalorder %s104, %s105
    %p114 = scmp.eq.s32.totalorder %s17, 0
    %p115 = por %p113, %p114
    %p116 = scmp.ne.s32.totalorder %s104, %s105
    %p117 = scmp.eq.s32.totalorder %s18, 3
    %p118 = por %p116, %p117
    %p120 = scmp.ne.s32.totalorder %s105, %s119
    %p121 = scmp.eq.s32.totalorder %s18, 0
    %p122 = por %p120, %p121
    %s123 = smul.u32 %s19, 2
    %s124 = sadd.s32 %s123, %s20
    %s125 = smul.u32 %s31, 2
    %s126 = sadd.s32 %s125, %s27
    %s127 = ssub.s32 %s124, %s126
    %p128 = scmp.eq.s32.totalorder %s127, 0
    %s130 = sadd.s32 %s129, 1
    %s131 = scalar_select %p128, %s129, %s130
    %p134 = pneg %p128
    %p135 = scmp.eq.s32.totalorder %s12, 3
    %p136 = por %p134, %p135
    %p137 = scmp.ne.s32.totalorder %s129, %s132
    %p138 = scmp.eq.s32.totalorder %s12, 0
    %p139 = por %p137, %p138
    %p140 = scmp.ne.s32.totalorder %s129, %s132
    %p141 = scmp.eq.s32.totalorder %s17, 3
    %p142 = por %p140, %p141
    %p143 = scmp.ne.s32.totalorder %s132, %s133
    %p144 = scmp.eq.s32.totalorder %s17, 0
    %p145 = por %p143, %p144
    %p146 = scmp.ne.s32.totalorder %s132, %s133
    %p147 = scmp.eq.s32.totalorder %s18, 3
    %p148 = por %p146, %p147
    %p150 = scmp.ne.s32.totalorder %s133, %s149
    %p151 = scmp.eq.s32.totalorder %s18, 0
    %p152 = por %p150, %p151
    %s153 = smul.u32 %s19, 2
    %s154 = sadd.s32 %s153, %s20
    %s155 = smul.u32 %s31, 2
    %s156 = sadd.s32 %s155, %s27
    %s157 = ssub.s32 %s154, %s156
    %p158 = scmp.eq.s32.totalorder %s157, 0
    %s160 = sadd.s32 %s159, 1
    %s161 = scalar_select %p158, %s159, %s160
    %p164 = pneg %p158
    %p165 = scmp.eq.s32.totalorder %s12, 3
    %p166 = por %p164, %p165
    %p167 = scmp.ne.s32.totalorder %s159, %s162
    %p168 = scmp.eq.s32.totalorder %s12, 0
    %p169 = por %p167, %p168
    %p170 = scmp.ne.s32.totalorder %s159, %s162
    %p171 = scmp.eq.s32.totalorder %s17, 3
    %p172 = por %p170, %p171
    %p173 = scmp.ne.s32.totalorder %s162, %s163
    %p174 = scmp.eq.s32.totalorder %s17, 0
    %p175 = por %p173, %p174
    %p176 = scmp.ne.s32.totalorder %s162, %s163
    %p177 = scmp.eq.s32.totalorder %s18, 3
    %p178 = por %p176, %p177
    %p180 = scmp.ne.s32.totalorder %s163, %s179
    %p181 = scmp.eq.s32.totalorder %s18, 0
    %p182 = por %p180, %p181
    %p183 = scmp.le.s32.totalorder 1, %s12
    %p184 = scmp.lt.s32.totalorder %s12, 5
    %p185 = pnand %p183, %p184
    %p186 = pneg %p185
    // Predicated region
    $region9: #{resnet_block_forward.3} parent=5 // pred_check
      _
    $region10: #{resnet_block_forward.3} parent=5 // pred_check_branch
      %188 = sbr.rel (%p185) target = $region12
    $region11: #{resnet_block_forward.3} parent=5 // pred_region
      %s189 = ssub.s32 %s12, 1
      // Predicated region
      $region13: #{resnet_block_forward.3} parent=11 // pred_check
        %p190 = pneg %p73
      $region14: #{resnet_block_forward.3} parent=11 // pred_check_branch
        %192 = sbr.rel (%p190) target = $region16
      $region15: #{resnet_block_forward.3} parent=11 // pred_region
        _
      $region16: #{resnet_block_forward.3} parent=11 // pred_fallthru
        _
      // Predicated region
      $region17: #{resnet_block_forward.3} parent=11 // pred_check
        %p193 = pneg %p94
      $region18: #{resnet_block_forward.3} parent=11 // pred_check_branch
        %195 = sbr.rel (%p193) target = $region20
      $region19: #{resnet_block_forward.3} parent=11 // pred_region
        _
      $region20: #{resnet_block_forward.3} parent=11 // pred_fallthru
        _
      // Predicated region
      $region21: #{resnet_block_forward.3} parent=11 // pred_check
        %p196 = pneg %p115
      $region22: #{resnet_block_forward.3} parent=11 // pred_check_branch
        %198 = sbr.rel (%p196) target = $region24
      $region23: #{resnet_block_forward.3} parent=11 // pred_region
        _
      $region24: #{resnet_block_forward.3} parent=11 // pred_fallthru
        _
    $region12: #{resnet_block_forward.3} parent=5 // pred_fallthru
      _
    %p199 = scmp.lt.s32.totalorder %s12, 4
    // Predicated region
    $region25: #{resnet_block_forward.3} parent=5 // pred_check
      %p200 = pneg %p199
    $region26: #{resnet_block_forward.3} parent=5 // pred_check_branch
      %202 = sbr.rel (%p200) target = $region28
    $region27: #{resnet_block_forward.3} parent=5 // pred_region
      // Predicated region
      $region29: #{resnet_block_forward.3} parent=27 // pred_check
        %p203 = pneg %p46
      $region30: #{resnet_block_forward.3} parent=27 // pred_check_branch
        %205 = sbr.rel (%p203) target = $region32
      $region31: #{resnet_block_forward.3} parent=27 // pred_region
        %p206 = scmp.lt.s32.totalorder %s19, 1
        %s207 = scalar_select %p206, %s19, 1
        %p208 = scmp.lt.s32.totalorder %s20, 1
        %s209 = scalar_select %p208, %s20, 1
        %s210 = smul.addr %s209, 30
        %s211 = smul.addr %s207, 60
        %s212 = sadd.s32 %s210, %s211
        %s213 = smul.addr %s212, 4
        %s214 = scalar_lea.vmem %s0, %s213
      $region32: #{resnet_block_forward.3} parent=27 // pred_fallthru
        _
    $region28: #{resnet_block_forward.3} parent=5 // pred_fallthru
      _
    %p215 = scmp.le.s32.totalorder 1, %s12
    %p216 = scmp.lt.s32.totalorder %s12, 5
    %p217 = pnand %p215, %p216
    %p218 = pneg %p217
    // Predicated region
    $region33: #{resnet_block_forward.3} parent=5 // pred_check
      _
    $region34: #{resnet_block_forward.3} parent=5 // pred_check_branch
      %220 = sbr.rel (%p217) target = $region36
    $region35: #{resnet_block_forward.3} parent=5 // pred_region
      %s221 = ssub.s32 %s12, 1
      %p222 = scmp.lt.s32.totalorder %s21, 1
      %s223 = scalar_select %p222, %s21, 1
      %p224 = scmp.lt.s32.totalorder %s22, 1
      %s225 = scalar_select %p224, %s22, 1
      %s226 = smul.addr %s225, 30
      %s227 = smul.addr %s223, 60
      %s228 = sadd.s32 %s226, %s227
      %s229 = smul.addr %s228, 4
      %s230 = scalar_lea.vmem %s0, %s229
      %p231 = pneg %p52
      %p232 = pneg %p49
      %p233 = pneg %p73
      %p234 = pneg %p70
      %p235 = pneg %p94
      %p236 = pneg %p91
      %p237 = pneg %p115
      %p238 = pneg %p112
      %p239 = pneg %p145
      %p240 = pneg %p142
      %s241 = smul.u32 %s21, 2
      %s242 = sadd.s32 %s241, %s22
      %s243 = smul.u32 16, %s242
      %p244 = scmp.lt.s32.totalorder %s243, 63
      %s245 = scalar_select %p244, %s243, 63
      %s246 = smul.addr %s245, 4
      %s247 = scalar_lea.vmem %s4, %s246
      %p248 = pneg %p175
      %p249 = pneg %p172
      %s250 = smul.u32 %s21, 2
      %s251 = sadd.s32 %s250, %s22
      %p252 = scmp.lt.s32.totalorder %s251, 3
      %s253 = scalar_select %p252, %s251, 3
      %s254 = smul.addr %s253, 2
      %s255 = scalar_lea.vmem %s5, %s254
      %p256 = scmp.lt.s32.totalorder %s21, 1
      %s257 = scalar_select %p256, %s21, 1
      %p258 = scmp.lt.s32.totalorder %s22, 1
      %s259 = scalar_select %p258, %s22, 1
      %s260 = smul.addr %s259, 30
      %s261 = smul.addr %s257, 60
      %s262 = sadd.s32 %s260, %s261
      %s263 = smul.addr %s262, 4
      %s264 = scalar_lea.vmem %s0, %s263
      %s265 = smul.u32 %s21, 2
      %s266 = sadd.s32 %s265, %s22
      %s267 = smul.u32 16, %s266
      %p268 = scmp.lt.s32.totalorder %s267, 63
      %s269 = scalar_select %p268, %s267, 63
      %s270 = smul.addr %s269, 4
      %s271 = scalar_lea.vmem %s4, %s270
      %s272 = smul.u32 %s21, 2
      %s273 = sadd.s32 %s272, %s22
      %s274 = smul.u32 16, %s273
      %s275 = smul.u32 %s21, 2
      %s276 = sadd.s32 %s275, %s22
      %p277 = scmp.lt.s32.totalorder %s276, 3
      %s278 = scalar_select %p277, %s276, 3
      %s279 = smul.addr %s278, 2
      %s280 = scalar_lea.vmem %s5, %s279
      %s281 = smul.u32 %s21, 2
      %s282 = sadd.s32 %s281, %s22
      %v284 = vld [vmem:[%s264] sm:$0xf]
      %v285 = vld [vmem:[%s264 + $0x4] sm:$0xf]
      %v286 = vld [vmem:[%s264 + $0xc] sm:$0xf]
      %v287 = vld [vmem:[%s264 + $0x10] sm:$0xf]
      %v288 = vld [vmem:[%s264 + $0x18] sm:$0xf]
      %v289 = vld [vmem:[%s264 + $0x1c] sm:$0xf]
      %v290 = vld [vmem:[%s264 + $0x24] sm:$0xf]
      %v291 = vld [vmem:[%s264 + $0x28] sm:$0xf]
      %v292 = vld [vmem:[%s264 + $0x30] sm:$0xf]
      %v293 = vld [vmem:[%s264 + $0x34] sm:$0xf]
      %v294 = vld [vmem:[%s264 + $0x3c] sm:$0xf]
      %v295 = vld [vmem:[%s264 + $0x40] sm:$0xf]
      %v296 = vld [vmem:[%s264 + $0x48] sm:$0xf]
      %v297 = vld [vmem:[%s264 + $0x4c] sm:$0xf]
      %v298 = vld [vmem:[%s264 + $0x54] sm:$0xf]
      %v299 = vld [vmem:[%s264 + $0x58] sm:$0xf]
      %v300 = vld [vmem:[%s1] sm:$0xf]
      %v301 = vld [vmem:[%s1 + $0x4] sm:$0xf]
      %v302 = vld [vmem:[%s1 + $0x8] sm:$0xf]
      %v303 = vld [vmem:[%s1 + $0xc] sm:$0xf]
      %v304 = vld [vmem:[%s264 + $0x8] sm:$0x1]
      %v305 = vld [vmem:[%s264 + $0x14] sm:$0x1]
      %v306 = vld [vmem:[%s264 + $0x20] sm:$0x1]
      %v307 = vld [vmem:[%s264 + $0x2c] sm:$0x1]
      %v308 = vld [vmem:[%s264 + $0x38] sm:$0x1]
      %v309 = vld [vmem:[%s264 + $0x44] sm:$0x1]
      %v310 = vld [vmem:[%s264 + $0x50] sm:$0x1]
      %v311 = vld [vmem:[%s264 + $0x5c] sm:$0x1]
      %vm312 = vsmask.f32 3328
      %vm313 = vsmask.f32 7440
      %vm314 = vmor %vm312, %vm313
      %v316 = vshrl.u32 %v284, 16
      %v318 = vrot.slane %v316, 4
      %v319 = vshll.u32 %v284, 16
      %v321 = vrot.slane %v319, 5
      %v322 = vor.u32 %v318, %v321
      %v323 = vrot.slane %v322, 4
      %v325 = vshll.u32 %v285, 16
      %v327 = vrot.slane %v325, 5
      %v328 = vsel %vm314, %v323, %v327
      %v329 = vshrl.u32 %v285, 16
      %v331 = vrot.slane %v329, 4
      %v332 = vor.u32 %v331, %v327
      %v333 = vrot.slane %v332, 4
      %v335 = vshll.u32 %v304, 16
      %v337 = vrot.slane %v335, 5
      %v338 = vsel %vm314, %v333, %v337
      %v340 = vshrl.u32 %v286, 16
      %v342 = vrot.slane %v340, 4
      %v343 = vshll.u32 %v286, 16
      %v345 = vrot.slane %v343, 5
      %v346 = vor.u32 %v342, %v345
      %v347 = vrot.slane %v346, 4
      %v349 = vshll.u32 %v287, 16
      %v351 = vrot.slane %v349, 5
      %v352 = vsel %vm314, %v347, %v351
      %v353 = vshrl.u32 %v287, 16
      %v355 = vrot.slane %v353, 4
      %v356 = vor.u32 %v355, %v351
      %v357 = vrot.slane %v356, 4
      %v359 = vshll.u32 %v305, 16
      %v361 = vrot.slane %v359, 5
      %v362 = vsel %vm314, %v357, %v361
      %v364 = vshrl.u32 %v288, 16
      %v366 = vrot.slane %v364, 4
      %v367 = vshll.u32 %v288, 16
      %v369 = vrot.slane %v367, 5
      %v370 = vor.u32 %v366, %v369
      %v371 = vrot.slane %v370, 4
      %v373 = vshll.u32 %v289, 16
      %v375 = vrot.slane %v373, 5
      %v376 = vsel %vm314, %v371, %v375
      %v377 = vshrl.u32 %v289, 16
      %v379 = vrot.slane %v377, 4
      %v380 = vor.u32 %v379, %v375
      %v381 = vrot.slane %v380, 4
      %v383 = vshll.u32 %v306, 16
      %v385 = vrot.slane %v383, 5
      %v386 = vsel %vm314, %v381, %v385
      %v388 = vshrl.u32 %v290, 16
      %v390 = vrot.slane %v388, 4
      %v391 = vshll.u32 %v290, 16
      %v393 = vrot.slane %v391, 5
      %v394 = vor.u32 %v390, %v393
      %v395 = vrot.slane %v394, 4
      %v397 = vshll.u32 %v291, 16
      %v399 = vrot.slane %v397, 5
      %v400 = vsel %vm314, %v395, %v399
      %v401 = vshrl.u32 %v291, 16
      %v403 = vrot.slane %v401, 4
      %v404 = vor.u32 %v403, %v399
      %v405 = vrot.slane %v404, 4
      %v407 = vshll.u32 %v307, 16
      %v409 = vrot.slane %v407, 5
      %v410 = vsel %vm314, %v405, %v409
      %v412 = vshrl.u32 %v292, 16
      %v414 = vrot.slane %v412, 4
      %v415 = vshll.u32 %v292, 16
      %v417 = vrot.slane %v415, 5
      %v418 = vor.u32 %v414, %v417
      %v419 = vrot.slane %v418, 4
      %v421 = vshll.u32 %v293, 16
      %v423 = vrot.slane %v421, 5
      %v424 = vsel %vm314, %v419, %v423
      %v425 = vshrl.u32 %v293, 16
      %v427 = vrot.slane %v425, 4
      %v428 = vor.u32 %v427, %v423
      %v429 = vrot.slane %v428, 4
      %v431 = vshll.u32 %v308, 16
      %v433 = vrot.slane %v431, 5
      %v434 = vsel %vm314, %v429, %v433
      %v436 = vshrl.u32 %v294, 16
      %v438 = vrot.slane %v436, 4
      %v439 = vshll.u32 %v294, 16
      %v441 = vrot.slane %v439, 5
      %v442 = vor.u32 %v438, %v441
      %v443 = vrot.slane %v442, 4
      %v445 = vshll.u32 %v295, 16
      %v447 = vrot.slane %v445, 5
      %v448 = vsel %vm314, %v443, %v447
      %v449 = vshrl.u32 %v295, 16
      %v451 = vrot.slane %v449, 4
      %v452 = vor.u32 %v451, %v447
      %v453 = vrot.slane %v452, 4
      %v455 = vshll.u32 %v309, 16
      %v457 = vrot.slane %v455, 5
      %v458 = vsel %vm314, %v453, %v457
      %v460 = vshrl.u32 %v296, 16
      %v462 = vrot.slane %v460, 4
      %v463 = vshll.u32 %v296, 16
      %v465 = vrot.slane %v463, 5
      %v466 = vor.u32 %v462, %v465
      %v467 = vrot.slane %v466, 4
      %v469 = vshll.u32 %v297, 16
      %v471 = vrot.slane %v469, 5
      %v472 = vsel %vm314, %v467, %v471
      %v473 = vshrl.u32 %v297, 16
      %v475 = vrot.slane %v473, 4
      %v476 = vor.u32 %v475, %v471
      %v477 = vrot.slane %v476, 4
      %v479 = vshll.u32 %v310, 16
      %v481 = vrot.slane %v479, 5
      %v482 = vsel %vm314, %v477, %v481
      %v484 = vshrl.u32 %v298, 16
      %v486 = vrot.slane %v484, 4
      %v487 = vshll.u32 %v298, 16
      %v489 = vrot.slane %v487, 5
      %v490 = vor.u32 %v486, %v489
      %v491 = vrot.slane %v490, 4
      %v493 = vshll.u32 %v299, 16
      %v495 = vrot.slane %v493, 5
      %v496 = vsel %vm314, %v491, %v495
      %v497 = vshrl.u32 %v299, 16
      %v499 = vrot.slane %v497, 4
      %v500 = vor.u32 %v499, %v495
      %v501 = vrot.slane %v500, 4
      %v503 = vshll.u32 %v311, 16
      %v505 = vrot.slane %v503, 5
      %v506 = vsel %vm314, %v501, %v505
      %s507 = scalar_lea.vmem %s1, 16
      %v508 = vld [vmem:[%s507] sm:$0xf]
      %v509 = vld [vmem:[%s507 + $0x4] sm:$0xf]
      %v510 = vld [vmem:[%s507 + $0x8] sm:$0xf]
      %v511 = vld [vmem:[%s507 + $0xc] sm:$0xf]
      %v512 = vunpack.c.l.b16 %v328
      %v513 = vunpack.c.l.b16 %v338
      %v514 = vunpack.c.l.b16 %v352
      %v515 = vunpack.c.l.b16 %v362
      %v516 = vunpack.c.l.b16 %v376
      %v517 = vunpack.c.l.b16 %v386
      %v518 = vunpack.c.l.b16 %v400
      %v519 = vunpack.c.l.b16 %v410
      %v520 = vunpack.c.l.b16 %v424
      %v521 = vunpack.c.l.b16 %v434
      %v522 = vunpack.c.l.b16 %v448
      %v523 = vunpack.c.l.b16 %v458
      %v524 = vunpack.c.l.b16 %v472
      %v525 = vunpack.c.l.b16 %v482
      %v526 = vunpack.c.l.b16 %v496
      %v527 = vunpack.c.l.b16 %v506
      %v528 = vpack.c.b16 %v513, %v512
      %v529 = vpack.c.b16 %v515, %v514
      %v530 = vpack.c.b16 %v517, %v516
      %v531 = vpack.c.b16 %v519, %v518
      %v532 = vpack.c.b16 %v521, %v520
      %v533 = vpack.c.b16 %v523, %v522
      %v534 = vpack.c.b16 %v525, %v524
      %v535 = vpack.c.b16 %v527, %v526
      %v540 = vunpack.c.l.b16 %v508
      %v541 = vunpack.c.l.b16 %v509
      %v542 = vunpack.c.l.b16 %v510
      %v543 = vunpack.c.l.b16 %v511
      %v544 = vpack.c.b16 %v541, %v540
      %v545 = vpack.c.b16 %v543, %v542
      %vm548 = vcmask 261120
      %v550 = vsel %vm548, %v528, 0
      %v553 = vsel %vm548, %v529, 0
      %v556 = vsel %vm548, %v530, 0
      %v559 = vsel %vm548, %v531, 0
      %v562 = vsel %vm548, %v532, 0
      %v565 = vsel %vm548, %v533, 0
      %v568 = vsel %vm548, %v534, 0
      %v571 = vsel %vm548, %v535, 0
      %573 = vmatprep.subr.bf16.mxu0 0
      %574 = vmatpush1.bf16.msra.mxu0 0
      %575 = vmatprep.subr.bf16.mxu0 0
      %576 = vmatpush1.bf16.msra.mxu0 0
      %577 = vmatprep.subr.bf16.mxu0 0
      %578 = vmatpush1.bf16.msra.mxu0 0
      %579 = vmatprep.subr.bf16.mxu0 0
      %580 = vmatpush1.bf16.msra.mxu0 0
      %581 = vmatprep.subr.bf16.mxu0 0
      %582 = vmatpush1.bf16.msra.mxu0 0
      %583 = vmatprep.subr.bf16.mxu0 0
      %584 = vmatpush1.bf16.msra.mxu0 0
      %585 = vmatprep.subr.bf16.mxu0 0
      %586 = vmatpush1.bf16.msra.mxu0 %v545
      %587 = vmatprep.subr.bf16.mxu0 0
      %588 = vmatpush1.bf16.msra.mxu0 %v544
      %589 = vmatprep.subr.bf16.mxu0 0
      %590 = vmatpush2.bf16.msra.mxu0 0
      %591 = vmatprep.subr.bf16.mxu0 0
      %592 = vmatpush2.bf16.msra.mxu0 0
      %593 = vmatprep.subr.bf16.mxu0 0
      %594 = vmatpush2.bf16.msra.mxu0 0
      %595 = vmatprep.subr.bf16.mxu0 0
      %596 = vmatpush2.bf16.msra.mxu0 0
      %597 = vmatprep.subr.bf16.mxu0 0
      %598 = vmatpush2.bf16.msra.mxu0 0
      %599 = vmatprep.subr.bf16.mxu0 0
      %600 = vmatpush2.bf16.msra.mxu0 0
      %601 = vmatprep.subr.bf16.mxu0 0
      %602 = vmatpush2.bf16.msra.mxu0 0
      %603 = vmatprep.subr.bf16.mxu0 0
      %604 = vmatpush2.bf16.msra.mxu0 0
      %605 = vmatprep.mubr.bf16.mxu0 0
      %606 = vmatmul.mubr.bf16.gmra.mxu0 %v550
      %v607 = vpop.f32.mrf.mxu0
      %v608 = vadd.f32 0.0, %v607
      %v609 = vpop.f32.mrf.mxu0
      %v610 = vpop.f32.mrf.mxu0
      %v611 = vadd.f32 0.0, %v610
      %v612 = vpop.f32.mrf.mxu0
      %613 = vmatprep.mubr.bf16.mxu0 0
      %614 = vmatmul.mubr.bf16.gmra.mxu0 %v553
      %v615 = vpop.f32.mrf.mxu0
      %v616 = vadd.f32 0.0, %v615
      %v617 = vpop.f32.mrf.mxu0
      %v618 = vpop.f32.mrf.mxu0
      %v619 = vadd.f32 0.0, %v618
      %v620 = vpop.f32.mrf.mxu0
      %621 = vmatprep.mubr.bf16.mxu0 0
      %622 = vmatmul.mubr.bf16.gmra.mxu0 %v556
      %v623 = vpop.f32.mrf.mxu0
      %v624 = vadd.f32 0.0, %v623
      %v625 = vpop.f32.mrf.mxu0
      %v626 = vpop.f32.mrf.mxu0
      %v627 = vadd.f32 0.0, %v626
      %v628 = vpop.f32.mrf.mxu0
      %629 = vmatprep.mubr.bf16.mxu0 0
      %630 = vmatmul.mubr.bf16.gmra.mxu0 %v559
      %v631 = vpop.f32.mrf.mxu0
      %v632 = vadd.f32 0.0, %v631
      %v633 = vpop.f32.mrf.mxu0
      %v634 = vpop.f32.mrf.mxu0
      %v635 = vadd.f32 0.0, %v634
      %v636 = vpop.f32.mrf.mxu0
      %637 = vmatprep.mubr.bf16.mxu0 0
      %638 = vmatmul.mubr.bf16.gmra.mxu0 %v562
      %v639 = vpop.f32.mrf.mxu0
      %v640 = vadd.f32 0.0, %v639
      %v641 = vpop.f32.mrf.mxu0
      %v642 = vpop.f32.mrf.mxu0
      %v643 = vadd.f32 0.0, %v642
      %v644 = vpop.f32.mrf.mxu0
      %645 = vmatprep.mubr.bf16.mxu0 0
      %646 = vmatmul.mubr.bf16.gmra.mxu0 %v565
      %v647 = vpop.f32.mrf.mxu0
      %v648 = vadd.f32 0.0, %v647
      %v649 = vpop.f32.mrf.mxu0
      %v650 = vpop.f32.mrf.mxu0
      %v651 = vadd.f32 0.0, %v650
      %v652 = vpop.f32.mrf.mxu0
      %653 = vmatprep.mubr.bf16.mxu0 0
      %654 = vmatmul.mubr.bf16.gmra.mxu0 %v568
      %v655 = vpop.f32.mrf.mxu0
      %v656 = vadd.f32 0.0, %v655
      %v657 = vpop.f32.mrf.mxu0
      %v658 = vpop.f32.mrf.mxu0
      %v659 = vadd.f32 0.0, %v658
      %v660 = vpop.f32.mrf.mxu0
      %661 = vmatprep.mubr.bf16.mxu0 0
      %662 = vmatmul.mubr.bf16.gmra.mxu0 %v571
      %v663 = vpop.f32.mrf.mxu0
      %v664 = vadd.f32 0.0, %v663
      %v665 = vpop.f32.mrf.mxu0
      %v666 = vpop.f32.mrf.mxu0
      %v667 = vadd.f32 0.0, %v666
      %v668 = vpop.f32.mrf.mxu0
      %669 = vdwg.mxu0
      %v686 = vunpack.c.l.b16 %v284
      %v687 = vunpack.c.l.b16 %v285
      %v688 = vunpack.c.l.b16 %v286
      %v689 = vunpack.c.l.b16 %v287
      %v690 = vunpack.c.l.b16 %v288
      %v691 = vunpack.c.l.b16 %v289
      %v692 = vunpack.c.l.b16 %v290
      %v693 = vunpack.c.l.b16 %v291
      %v694 = vunpack.c.l.b16 %v292
      %v695 = vunpack.c.l.b16 %v293
      %v696 = vunpack.c.l.b16 %v294
      %v697 = vunpack.c.l.b16 %v295
      %v698 = vunpack.c.l.b16 %v296
      %v699 = vunpack.c.l.b16 %v297
      %v700 = vunpack.c.l.b16 %v298
      %v701 = vunpack.c.l.b16 %v299
      %v702 = vpack.c.b16 %v687, %v686
      %v703 = vpack.c.b16 %v689, %v688
      %v704 = vpack.c.b16 %v691, %v690
      %v705 = vpack.c.b16 %v693, %v692
      %v706 = vpack.c.b16 %v695, %v694
      %v707 = vpack.c.b16 %v697, %v696
      %v708 = vpack.c.b16 %v699, %v698
      %v709 = vpack.c.b16 %v701, %v700
      %v714 = vunpack.c.l.b16 %v300
      %v715 = vunpack.c.l.b16 %v301
      %v716 = vunpack.c.l.b16 %v302
      %v717 = vunpack.c.l.b16 %v303
      %v718 = vpack.c.b16 %v715, %v714
      %v719 = vpack.c.b16 %v717, %v716
      %v723 = vsel %vm548, %v702, 0
      %v726 = vsel %vm548, %v703, 0
      %v729 = vsel %vm548, %v704, 0
      %v732 = vsel %vm548, %v705, 0
      %v735 = vsel %vm548, %v706, 0
      %v738 = vsel %vm548, %v707, 0
      %v741 = vsel %vm548, %v708, 0
      %v744 = vsel %vm548, %v709, 0
      %746 = vmatprep.subr.bf16.mxu0 0
      %747 = vmatpush1.bf16.msra.mxu0 0
      %748 = vmatprep.subr.bf16.mxu0 0
      %749 = vmatpush1.bf16.msra.mxu0 0
      %750 = vmatprep.subr.bf16.mxu0 0
      %751 = vmatpush1.bf16.msra.mxu0 0
      %752 = vmatprep.subr.bf16.mxu0 0
      %753 = vmatpush1.bf16.msra.mxu0 0
      %754 = vmatprep.subr.bf16.mxu0 0
      %755 = vmatpush1.bf16.msra.mxu0 0
      %756 = vmatprep.subr.bf16.mxu0 0
      %757 = vmatpush1.bf16.msra.mxu0 0
      %758 = vmatprep.subr.bf16.mxu0 0
      %759 = vmatpush1.bf16.msra.mxu0 %v719
      %760 = vmatprep.subr.bf16.mxu0 0
      %761 = vmatpush1.bf16.msra.mxu0 %v718
      %762 = vmatprep.subr.bf16.mxu0 0
      %763 = vmatpush2.bf16.msra.mxu0 0
      %764 = vmatprep.subr.bf16.mxu0 0
      %765 = vmatpush2.bf16.msra.mxu0 0
      %766 = vmatprep.subr.bf16.mxu0 0
      %767 = vmatpush2.bf16.msra.mxu0 0
      %768 = vmatprep.subr.bf16.mxu0 0
      %769 = vmatpush2.bf16.msra.mxu0 0
      %770 = vmatprep.subr.bf16.mxu0 0
      %771 = vmatpush2.bf16.msra.mxu0 0
      %772 = vmatprep.subr.bf16.mxu0 0
      %773 = vmatpush2.bf16.msra.mxu0 0
      %774 = vmatprep.subr.bf16.mxu0 0
      %775 = vmatpush2.bf16.msra.mxu0 0
      %776 = vmatprep.subr.bf16.mxu0 0
      %777 = vmatpush2.bf16.msra.mxu0 0
      %778 = vmatprep.mubr.bf16.mxu0 0
      %779 = vmatmul.mubr.bf16.gmra.mxu0 %v723
      %v780 = vpop.f32.mrf.mxu0
      %v781 = vadd.f32 %v608, %v780
      %v782 = vpop.f32.mrf.mxu0
      %v783 = vpop.f32.mrf.mxu0
      %v784 = vadd.f32 %v611, %v783
      %v785 = vpop.f32.mrf.mxu0
      %786 = vmatprep.mubr.bf16.mxu0 0
      %787 = vmatmul.mubr.bf16.gmra.mxu0 %v726
      %v788 = vpop.f32.mrf.mxu0
      %v789 = vadd.f32 %v616, %v788
      %v790 = vpop.f32.mrf.mxu0
      %v791 = vpop.f32.mrf.mxu0
      %v792 = vadd.f32 %v619, %v791
      %v793 = vpop.f32.mrf.mxu0
      %794 = vmatprep.mubr.bf16.mxu0 0
      %795 = vmatmul.mubr.bf16.gmra.mxu0 %v729
      %v796 = vpop.f32.mrf.mxu0
      %v797 = vadd.f32 %v624, %v796
      %v798 = vpop.f32.mrf.mxu0
      %v799 = vpop.f32.mrf.mxu0
      %v800 = vadd.f32 %v627, %v799
      %v801 = vpop.f32.mrf.mxu0
      %802 = vmatprep.mubr.bf16.mxu0 0
      %803 = vmatmul.mubr.bf16.gmra.mxu0 %v732
      %v804 = vpop.f32.mrf.mxu0
      %v805 = vadd.f32 %v632, %v804
      %v806 = vpop.f32.mrf.mxu0
      %v807 = vpop.f32.mrf.mxu0
      %v808 = vadd.f32 %v635, %v807
      %v809 = vpop.f32.mrf.mxu0
      %810 = vmatprep.mubr.bf16.mxu0 0
      %811 = vmatmul.mubr.bf16.gmra.mxu0 %v735
      %v812 = vpop.f32.mrf.mxu0
      %v813 = vadd.f32 %v640, %v812
      %v814 = vpop.f32.mrf.mxu0
      %v815 = vpop.f32.mrf.mxu0
      %v816 = vadd.f32 %v643, %v815
      %v817 = vpop.f32.mrf.mxu0
      %818 = vmatprep.mubr.bf16.mxu0 0
      %819 = vmatmul.mubr.bf16.gmra.mxu0 %v738
      %v820 = vpop.f32.mrf.mxu0
      %v821 = vadd.f32 %v648, %v820
      %v822 = vpop.f32.mrf.mxu0
      %v823 = vpop.f32.mrf.mxu0
      %v824 = vadd.f32 %v651, %v823
      %v825 = vpop.f32.mrf.mxu0
      %826 = vmatprep.mubr.bf16.mxu0 0
      %827 = vmatmul.mubr.bf16.gmra.mxu0 %v741
      %v828 = vpop.f32.mrf.mxu0
      %v829 = vadd.f32 %v656, %v828
      %v830 = vpop.f32.mrf.mxu0
      %v831 = vpop.f32.mrf.mxu0
      %v832 = vadd.f32 %v659, %v831
      %v833 = vpop.f32.mrf.mxu0
      %834 = vmatprep.mubr.bf16.mxu0 0
      %835 = vmatmul.mubr.bf16.gmra.mxu0 %v744
      %v836 = vpop.f32.mrf.mxu0
      %v837 = vadd.f32 %v664, %v836
      %v838 = vpop.f32.mrf.mxu0
      %v839 = vpop.f32.mrf.mxu0
      %v840 = vadd.f32 %v667, %v839
      %v841 = vpop.f32.mrf.mxu0
      %842 = vdwg.mxu0
      %v843 = vld [vmem:[%s264] sm:$0xe]
      %v844 = vld [vmem:[%s264 + $0xc] sm:$0xe]
      %v845 = vld [vmem:[%s264 + $0x18] sm:$0xe]
      %v846 = vld [vmem:[%s264 + $0x24] sm:$0xe]
      %v847 = vld [vmem:[%s264 + $0x30] sm:$0xe]
      %v848 = vld [vmem:[%s264 + $0x3c] sm:$0xe]
      %v849 = vld [vmem:[%s264 + $0x48] sm:$0xe]
      %v850 = vld [vmem:[%s264 + $0x54] sm:$0xe]
      %vm867 = vcmask 1042432
      %vm868 = vcmask 1046532
      %vm869 = vmor %vm867, %vm868
      %v870 = vrot.slane %v843, 5
      %v871 = vrot.slane %v870, 4
      %v872 = vrot.slane %v285, 5
      %v873 = vsel %vm869, %v871, %v872
      %v874 = vrot.slane %v872, 4
      %v875 = vrot.slane %v304, 5
      %v876 = vsel %vm869, %v874, %v875
      %v877 = vrot.slane %v844, 5
      %v878 = vrot.slane %v877, 4
      %v879 = vrot.slane %v287, 5
      %v880 = vsel %vm869, %v878, %v879
      %v881 = vrot.slane %v879, 4
      %v882 = vrot.slane %v305, 5
      %v883 = vsel %vm869, %v881, %v882
      %v884 = vrot.slane %v845, 5
      %v885 = vrot.slane %v884, 4
      %v886 = vrot.slane %v289, 5
      %v887 = vsel %vm869, %v885, %v886
      %v888 = vrot.slane %v886, 4
      %v889 = vrot.slane %v306, 5
      %v890 = vsel %vm869, %v888, %v889
      %v891 = vrot.slane %v846, 5
      %v892 = vrot.slane %v891, 4
      %v893 = vrot.slane %v291, 5
      %v894 = vsel %vm869, %v892, %v893
      %v895 = vrot.slane %v893, 4
      %v896 = vrot.slane %v307, 5
      %v897 = vsel %vm869, %v895, %v896
      %v898 = vrot.slane %v847, 5
      %v899 = vrot.slane %v898, 4
      %v900 = vrot.slane %v293, 5
      %v901 = vsel %vm869, %v899, %v900
      %v902 = vrot.slane %v900, 4
      %v903 = vrot.slane %v308, 5
      %v904 = vsel %vm869, %v902, %v903
      %v905 = vrot.slane %v848, 5
      %v906 = vrot.slane %v905, 4
      %v907 = vrot.slane %v295, 5
      %v908 = vsel %vm869, %v906, %v907
      %v909 = vrot.slane %v907, 4
      %v910 = vrot.slane %v309, 5
      %v911 = vsel %vm869, %v909, %v910
      %v912 = vrot.slane %v849, 5
      %v913 = vrot.slane %v912, 4
      %v914 = vrot.slane %v297, 5
      %v915 = vsel %vm869, %v913, %v914
      %v916 = vrot.slane %v914, 4
      %v917 = vrot.slane %v310, 5
      %v918 = vsel %vm869, %v916, %v917
      %v919 = vrot.slane %v850, 5
      %v920 = vrot.slane %v919, 4
      %v921 = vrot.slane %v299, 5
      %v922 = vsel %vm869, %v920, %v921
      %v923 = vrot.slane %v921, 4
      %v924 = vrot.slane %v311, 5
      %v925 = vsel %vm869, %v923, %v924
      %s926 = scalar_lea.vmem %s1, 32
      %v927 = vld [vmem:[%s926] sm:$0xf]
      %v928 = vld [vmem:[%s926 + $0x4] sm:$0xf]
      %v929 = vld [vmem:[%s926 + $0x8] sm:$0xf]
      %v930 = vld [vmem:[%s926 + $0xc] sm:$0xf]
      %v931 = vunpack.c.l.b16 %v873
      %v932 = vunpack.c.l.b16 %v876
      %v933 = vunpack.c.l.b16 %v880
      %v934 = vunpack.c.l.b16 %v883
      %v935 = vunpack.c.l.b16 %v887
      %v936 = vunpack.c.l.b16 %v890
      %v937 = vunpack.c.l.b16 %v894
      %v938 = vunpack.c.l.b16 %v897
      %v939 = vunpack.c.l.b16 %v901
      %v940 = vunpack.c.l.b16 %v904
      %v941 = vunpack.c.l.b16 %v908
      %v942 = vunpack.c.l.b16 %v911
      %v943 = vunpack.c.l.b16 %v915
      %v944 = vunpack.c.l.b16 %v918
      %v945 = vunpack.c.l.b16 %v922
      %v946 = vunpack.c.l.b16 %v925
      %v947 = vpack.c.b16 %v932, %v931
      %v948 = vpack.c.b16 %v934, %v933
      %v949 = vpack.c.b16 %v936, %v935
      %v950 = vpack.c.b16 %v938, %v937
      %v951 = vpack.c.b16 %v940, %v939
      %v952 = vpack.c.b16 %v942, %v941
      %v953 = vpack.c.b16 %v944, %v943
      %v954 = vpack.c.b16 %v946, %v945
      %v959 = vunpack.c.l.b16 %v927
      %v960 = vunpack.c.l.b16 %v928
      %v961 = vunpack.c.l.b16 %v929
      %v962 = vunpack.c.l.b16 %v930
      %v963 = vpack.c.b16 %v960, %v959
      %v964 = vpack.c.b16 %v962, %v961
      %v968 = vsel %vm548, %v947, 0
      %v971 = vsel %vm548, %v948, 0
      %v974 = vsel %vm548, %v949, 0
      %v977 = vsel %vm548, %v950, 0
      %v980 = vsel %vm548, %v951, 0
      %v983 = vsel %vm548, %v952, 0
      %v986 = vsel %vm548, %v953, 0
      %v989 = vsel %vm548, %v954, 0
      %991 = vmatprep.subr.bf16.mxu0 0
      %992 = vmatpush1.bf16.msra.mxu0 0
      %993 = vmatprep.subr.bf16.mxu0 0
      %994 = vmatpush1.bf16.msra.mxu0 0
      %995 = vmatprep.subr.bf16.mxu0 0
      %996 = vmatpush1.bf16.msra.mxu0 0
      %997 = vmatprep.subr.bf16.mxu0 0
      %998 = vmatpush1.bf16.msra.mxu0 0
      %999 = vmatprep.subr.bf16.mxu0 0
      %1000 = vmatpush1.bf16.msra.mxu0 0
      %1001 = vmatprep.subr.bf16.mxu0 0
      %1002 = vmatpush1.bf16.msra.mxu0 0
      %1003 = vmatprep.subr.bf16.mxu0 0
      %1004 = vmatpush1.bf16.msra.mxu0 %v964
      %1005 = vmatprep.subr.bf16.mxu0 0
      %1006 = vmatpush1.bf16.msra.mxu0 %v963
      %1007 = vmatprep.subr.bf16.mxu0 0
      %1008 = vmatpush2.bf16.msra.mxu0 0
      %1009 = vmatprep.subr.bf16.mxu0 0
      %1010 = vmatpush2.bf16.msra.mxu0 0
      %1011 = vmatprep.subr.bf16.mxu0 0
      %1012 = vmatpush2.bf16.msra.mxu0 0
      %1013 = vmatprep.subr.bf16.mxu0 0
      %1014 = vmatpush2.bf16.msra.mxu0 0
      %1015 = vmatprep.subr.bf16.mxu0 0
      %1016 = vmatpush2.bf16.msra.mxu0 0
      %1017 = vmatprep.subr.bf16.mxu0 0
      %1018 = vmatpush2.bf16.msra.mxu0 0
      %1019 = vmatprep.subr.bf16.mxu0 0
      %1020 = vmatpush2.bf16.msra.mxu0 0
      %1021 = vmatprep.subr.bf16.mxu0 0
      %1022 = vmatpush2.bf16.msra.mxu0 0
      %1023 = vmatprep.mubr.bf16.mxu0 0
      %1024 = vmatmul.mubr.bf16.gmra.mxu0 %v968
      %v1025 = vpop.f32.mrf.mxu0
      %v1026 = vadd.f32 0.0, %v1025
      %v1027 = vpop.f32.mrf.mxu0
      %v1028 = vpop.f32.mrf.mxu0
      %v1029 = vadd.f32 0.0, %v1028
      %v1030 = vpop.f32.mrf.mxu0
      %1031 = vmatprep.mubr.bf16.mxu0 0
      %1032 = vmatmul.mubr.bf16.gmra.mxu0 %v971
      %v1033 = vpop.f32.mrf.mxu0
      %v1034 = vadd.f32 0.0, %v1033
      %v1035 = vpop.f32.mrf.mxu0
      %v1036 = vpop.f32.mrf.mxu0
      %v1037 = vadd.f32 0.0, %v1036
      %v1038 = vpop.f32.mrf.mxu0
      %1039 = vmatprep.mubr.bf16.mxu0 0
      %1040 = vmatmul.mubr.bf16.gmra.mxu0 %v974
      %v1041 = vpop.f32.mrf.mxu0
      %v1042 = vadd.f32 0.0, %v1041
      %v1043 = vpop.f32.mrf.mxu0
      %v1044 = vpop.f32.mrf.mxu0
      %v1045 = vadd.f32 0.0, %v1044
      %v1046 = vpop.f32.mrf.mxu0
      %1047 = vmatprep.mubr.bf16.mxu0 0
      %1048 = vmatmul.mubr.bf16.gmra.mxu0 %v977
      %v1049 = vpop.f32.mrf.mxu0
      %v1050 = vadd.f32 0.0, %v1049
      %v1051 = vpop.f32.mrf.mxu0
      %v1052 = vpop.f32.mrf.mxu0
      %v1053 = vadd.f32 0.0, %v1052
      %v1054 = vpop.f32.mrf.mxu0
      %1055 = vmatprep.mubr.bf16.mxu0 0
      %1056 = vmatmul.mubr.bf16.gmra.mxu0 %v980
      %v1057 = vpop.f32.mrf.mxu0
      %v1058 = vadd.f32 0.0, %v1057
      %v1059 = vpop.f32.mrf.mxu0
      %v1060 = vpop.f32.mrf.mxu0
      %v1061 = vadd.f32 0.0, %v1060
      %v1062 = vpop.f32.mrf.mxu0
      %1063 = vmatprep.mubr.bf16.mxu0 0
      %1064 = vmatmul.mubr.bf16.gmra.mxu0 %v983
      %v1065 = vpop.f32.mrf.mxu0
      %v1066 = vadd.f32 0.0, %v1065
      %v1067 = vpop.f32.mrf.mxu0
      %v1068 = vpop.f32.mrf.mxu0
      %v1069 = vadd.f32 0.0, %v1068
      %v1070 = vpop.f32.mrf.mxu0
      %1071 = vmatprep.mubr.bf16.mxu0 0
      %1072 = vmatmul.mubr.bf16.gmra.mxu0 %v986
      %v1073 = vpop.f32.mrf.mxu0
      %v1074 = vadd.f32 0.0, %v1073
      %v1075 = vpop.f32.mrf.mxu0
      %v1076 = vpop.f32.mrf.mxu0
      %v1077 = vadd.f32 0.0, %v1076
      %v1078 = vpop.f32.mrf.mxu0
      %1079 = vmatprep.mubr.bf16.mxu0 0
      %1080 = vmatmul.mubr.bf16.gmra.mxu0 %v989
      %v1081 = vpop.f32.mrf.mxu0
      %v1082 = vadd.f32 0.0, %v1081
      %v1083 = vpop.f32.mrf.mxu0
      %v1084 = vpop.f32.mrf.mxu0
      %v1085 = vadd.f32 0.0, %v1084
      %v1086 = vpop.f32.mrf.mxu0
      %1087 = vdwg.mxu0
      %v1088 = vadd.f32 %v781, %v1026
      %v1089 = vadd.f32 %v784, %v1029
      %v1090 = vadd.f32 %v789, %v1034
      %v1091 = vadd.f32 %v792, %v1037
      %v1092 = vadd.f32 %v797, %v1042
      %v1093 = vadd.f32 %v800, %v1045
      %v1094 = vadd.f32 %v805, %v1050
      %v1095 = vadd.f32 %v808, %v1053
      %v1096 = vadd.f32 %v813, %v1058
      %v1097 = vadd.f32 %v816, %v1061
      %v1098 = vadd.f32 %v821, %v1066
      %v1099 = vadd.f32 %v824, %v1069
      %v1100 = vadd.f32 %v829, %v1074
      %v1101 = vadd.f32 %v832, %v1077
      %v1102 = vadd.f32 %v837, %v1082
      %v1103 = vadd.f32 %v840, %v1085
      %s1104 = scalar_lea.vmem %s264, 12
      %v1105 = vld [vmem:[%s1104] sm:$0xf]
      %v1106 = vld [vmem:[%s1104 + $0x4] sm:$0xf]
      %v1107 = vld [vmem:[%s1104 + $0xc] sm:$0xf]
      %v1108 = vld [vmem:[%s1104 + $0x10] sm:$0xf]
      %v1109 = vld [vmem:[%s1104 + $0x18] sm:$0xf]
      %v1110 = vld [vmem:[%s1104 + $0x1c] sm:$0xf]
      %v1111 = vld [vmem:[%s1104 + $0x24] sm:$0xf]
      %v1112 = vld [vmem:[%s1104 + $0x28] sm:$0xf]
      %v1113 = vld [vmem:[%s1104 + $0x30] sm:$0xf]
      %v1114 = vld [vmem:[%s1104 + $0x34] sm:$0xf]
      %v1115 = vld [vmem:[%s1104 + $0x3c] sm:$0xf]
      %v1116 = vld [vmem:[%s1104 + $0x40] sm:$0xf]
      %v1117 = vld [vmem:[%s1104 + $0x48] sm:$0xf]
      %v1118 = vld [vmem:[%s1104 + $0x4c] sm:$0xf]
      %v1119 = vld [vmem:[%s1104 + $0x54] sm:$0xf]
      %v1120 = vld [vmem:[%s1104 + $0x58] sm:$0xf]
      %s1121 = scalar_lea.vmem %s1, 48
      %v1122 = vld [vmem:[%s1121] sm:$0xf]
      %v1123 = vld [vmem:[%s1121 + $0x4] sm:$0xf]
      %v1124 = vld [vmem:[%s1121 + $0x8] sm:$0xf]
      %v1125 = vld [vmem:[%s1121 + $0xc] sm:$0xf]
      %v1142 = vunpack.c.l.b16 %v1105
      %v1143 = vunpack.c.l.b16 %v1106
      %v1144 = vunpack.c.l.b16 %v1107
      %v1145 = vunpack.c.l.b16 %v1108
      %v1146 = vunpack.c.l.b16 %v1109
      %v1147 = vunpack.c.l.b16 %v1110
      %v1148 = vunpack.c.l.b16 %v1111
      %v1149 = vunpack.c.l.b16 %v1112
      %v1150 = vunpack.c.l.b16 %v1113
      %v1151 = vunpack.c.l.b16 %v1114
      %v1152 = vunpack.c.l.b16 %v1115
      %v1153 = vunpack.c.l.b16 %v1116
      %v1154 = vunpack.c.l.b16 %v1117
      %v1155 = vunpack.c.l.b16 %v1118
      %v1156 = vunpack.c.l.b16 %v1119
      %v1157 = vunpack.c.l.b16 %v1120
      %v1158 = vpack.c.b16 %v1143, %v1142
      %v1159 = vpack.c.b16 %v1145, %v1144
      %v1160 = vpack.c.b16 %v1147, %v1146
      %v1161 = vpack.c.b16 %v1149, %v1148
      %v1162 = vpack.c.b16 %v1151, %v1150
      %v1163 = vpack.c.b16 %v1153, %v1152
      %v1164 = vpack.c.b16 %v1155, %v1154
      %v1165 = vpack.c.b16 %v1157, %v1156
      %v1170 = vunpack.c.l.b16 %v1122
      %v1171 = vunpack.c.l.b16 %v1123
      %v1172 = vunpack.c.l.b16 %v1124
      %v1173 = vunpack.c.l.b16 %v1125
      %v1174 = vpack.c.b16 %v1171, %v1170
      %v1175 = vpack.c.b16 %v1173, %v1172
      %v1179 = vsel %vm548, %v1158, 0
      %v1182 = vsel %vm548, %v1159, 0
      %v1185 = vsel %vm548, %v1160, 0
      %v1188 = vsel %vm548, %v1161, 0
      %v1191 = vsel %vm548, %v1162, 0
      %v1194 = vsel %vm548, %v1163, 0
      %v1197 = vsel %vm548, %v1164, 0
      %v1200 = vsel %vm548, %v1165, 0
      %1202 = vmatprep.subr.bf16.mxu0 0
      %1203 = vmatpush1.bf16.msra.mxu0 0
      %1204 = vmatprep.subr.bf16.mxu0 0
      %1205 = vmatpush1.bf16.msra.mxu0 0
      %1206 = vmatprep.subr.bf16.mxu0 0
      %1207 = vmatpush1.bf16.msra.mxu0 0
      %1208 = vmatprep.subr.bf16.mxu0 0
      %1209 = vmatpush1.bf16.msra.mxu0 0
      %1210 = vmatprep.subr.bf16.mxu0 0
      %1211 = vmatpush1.bf16.msra.mxu0 0
      %1212 = vmatprep.subr.bf16.mxu0 0
      %1213 = vmatpush1.bf16.msra.mxu0 0
      %1214 = vmatprep.subr.bf16.mxu0 0
      %1215 = vmatpush1.bf16.msra.mxu0 %v1175
      %1216 = vmatprep.subr.bf16.mxu0 0
      %1217 = vmatpush1.bf16.msra.mxu0 %v1174
      %1218 = vmatprep.subr.bf16.mxu0 0
      %1219 = vmatpush2.bf16.msra.mxu0 0
      %1220 = vmatprep.subr.bf16.mxu0 0
      %1221 = vmatpush2.bf16.msra.mxu0 0
      %1222 = vmatprep.subr.bf16.mxu0 0
      %1223 = vmatpush2.bf16.msra.mxu0 0
      %1224 = vmatprep.subr.bf16.mxu0 0
      %1225 = vmatpush2.bf16.msra.mxu0 0
      %1226 = vmatprep.subr.bf16.mxu0 0
      %1227 = vmatpush2.bf16.msra.mxu0 0
      %1228 = vmatprep.subr.bf16.mxu0 0
      %1229 = vmatpush2.bf16.msra.mxu0 0
      %1230 = vmatprep.subr.bf16.mxu0 0
      %1231 = vmatpush2.bf16.msra.mxu0 0
      %1232 = vmatprep.subr.bf16.mxu0 0
      %1233 = vmatpush2.bf16.msra.mxu0 0
      %1234 = vmatprep.mubr.bf16.mxu0 0
      %1235 = vmatmul.mubr.bf16.gmra.mxu0 %v1179
      %v1236 = vpop.f32.mrf.mxu0
      %v1237 = vadd.f32 0.0, %v1236
      %v1238 = vpop.f32.mrf.mxu0
      %v1239 = vpop.f32.mrf.mxu0
      %v1240 = vadd.f32 0.0, %v1239
      %v1241 = vpop.f32.mrf.mxu0
      %1242 = vmatprep.mubr.bf16.mxu0 0
      %1243 = vmatmul.mubr.bf16.gmra.mxu0 %v1182
      %v1244 = vpop.f32.mrf.mxu0
      %v1245 = vadd.f32 0.0, %v1244
      %v1246 = vpop.f32.mrf.mxu0
      %v1247 = vpop.f32.mrf.mxu0
      %v1248 = vadd.f32 0.0, %v1247
      %v1249 = vpop.f32.mrf.mxu0
      %1250 = vmatprep.mubr.bf16.mxu0 0
      %1251 = vmatmul.mubr.bf16.gmra.mxu0 %v1185
      %v1252 = vpop.f32.mrf.mxu0
      %v1253 = vadd.f32 0.0, %v1252
      %v1254 = vpop.f32.mrf.mxu0
      %v1255 = vpop.f32.mrf.mxu0
      %v1256 = vadd.f32 0.0, %v1255
      %v1257 = vpop.f32.mrf.mxu0
      %1258 = vmatprep.mubr.bf16.mxu0 0
      %1259 = vmatmul.mubr.bf16.gmra.mxu0 %v1188
      %v1260 = vpop.f32.mrf.mxu0
      %v1261 = vadd.f32 0.0, %v1260
      %v1262 = vpop.f32.mrf.mxu0
      %v1263 = vpop.f32.mrf.mxu0
      %v1264 = vadd.f32 0.0, %v1263
      %v1265 = vpop.f32.mrf.mxu0
      %1266 = vmatprep.mubr.bf16.mxu0 0
      %1267 = vmatmul.mubr.bf16.gmra.mxu0 %v1191
      %v1268 = vpop.f32.mrf.mxu0
      %v1269 = vadd.f32 0.0, %v1268
      %v1270 = vpop.f32.mrf.mxu0
      %v1271 = vpop.f32.mrf.mxu0
      %v1272 = vadd.f32 0.0, %v1271
      %v1273 = vpop.f32.mrf.mxu0
      %1274 = vmatprep.mubr.bf16.mxu0 0
      %1275 = vmatmul.mubr.bf16.gmra.mxu0 %v1194
      %v1276 = vpop.f32.mrf.mxu0
      %v1277 = vadd.f32 0.0, %v1276
      %v1278 = vpop.f32.mrf.mxu0
      %v1279 = vpop.f32.mrf.mxu0
      %v1280 = vadd.f32 0.0, %v1279
      %v1281 = vpop.f32.mrf.mxu0
      %1282 = vmatprep.mubr.bf16.mxu0 0
      %1283 = vmatmul.mubr.bf16.gmra.mxu0 %v1197
      %v1284 = vpop.f32.mrf.mxu0
      %v1285 = vadd.f32 0.0, %v1284
      %v1286 = vpop.f32.mrf.mxu0
      %v1287 = vpop.f32.mrf.mxu0
      %v1288 = vadd.f32 0.0, %v1287
      %v1289 = vpop.f32.mrf.mxu0
      %1290 = vmatprep.mubr.bf16.mxu0 0
      %1291 = vmatmul.mubr.bf16.gmra.mxu0 %v1200
      %v1292 = vpop.f32.mrf.mxu0
      %v1293 = vadd.f32 0.0, %v1292
      %v1294 = vpop.f32.mrf.mxu0
      %v1295 = vpop.f32.mrf.mxu0
      %v1296 = vadd.f32 0.0, %v1295
      %v1297 = vpop.f32.mrf.mxu0
      %1298 = vdwg.mxu0
      %v1299 = vadd.f32 %v1088, %v1237
      %v1300 = vadd.f32 %v1089, %v1240
      %v1301 = vadd.f32 %v1090, %v1245
      %v1302 = vadd.f32 %v1091, %v1248
      %v1303 = vadd.f32 %v1092, %v1253
      %v1304 = vadd.f32 %v1093, %v1256
      %v1305 = vadd.f32 %v1094, %v1261
      %v1306 = vadd.f32 %v1095, %v1264
      %v1307 = vadd.f32 %v1096, %v1269
      %v1308 = vadd.f32 %v1097, %v1272
      %v1309 = vadd.f32 %v1098, %v1277
      %v1310 = vadd.f32 %v1099, %v1280
      %v1311 = vadd.f32 %v1100, %v1285
      %v1312 = vadd.f32 %v1101, %v1288
      %v1313 = vadd.f32 %v1102, %v1293
      %v1314 = vadd.f32 %v1103, %v1296
      %v1315 = vld [vmem:[%s1104] sm:$0xf]
      %v1316 = vld [vmem:[%s1104 + $0x4] sm:$0xf]
      %v1317 = vld [vmem:[%s1104 + $0x8] sm:$0x1]
      %v1318 = vld [vmem:[%s1104 + $0xc] sm:$0xf]
      %v1319 = vld [vmem:[%s1104 + $0x10] sm:$0xf]
      %v1320 = vld [vmem:[%s1104 + $0x14] sm:$0x1]
      %v1321 = vld [vmem:[%s1104 + $0x18] sm:$0xf]
      %v1322 = vld [vmem:[%s1104 + $0x1c] sm:$0xf]
      %v1323 = vld [vmem:[%s1104 + $0x20] sm:$0x1]
      %v1324 = vld [vmem:[%s1104 + $0x24] sm:$0xf]
      %v1325 = vld [vmem:[%s1104 + $0x28] sm:$0xf]
      %v1326 = vld [vmem:[%s1104 + $0x2c] sm:$0x1]
      %v1327 = vld [vmem:[%s1104 + $0x30] sm:$0xf]
      %v1328 = vld [vmem:[%s1104 + $0x34] sm:$0xf]
      %v1329 = vld [vmem:[%s1104 + $0x38] sm:$0x1]
      %v1330 = vld [vmem:[%s1104 + $0x3c] sm:$0xf]
      %v1331 = vld [vmem:[%s1104 + $0x40] sm:$0xf]
      %v1332 = vld [vmem:[%s1104 + $0x44] sm:$0x1]
      %v1333 = vld [vmem:[%s1104 + $0x48] sm:$0xf]
      %v1334 = vld [vmem:[%s1104 + $0x4c] sm:$0xf]
      %v1335 = vld [vmem:[%s1104 + $0x50] sm:$0x1]
      %v1336 = vld [vmem:[%s1104 + $0x54] sm:$0xf]
      %v1337 = vld [vmem:[%s1104 + $0x58] sm:$0xf]
      %v1338 = vld [vmem:[%s1104 + $0x5c] sm:$0x1]
      %v1340 = vshrl.u32 %v1315, 16
      %v1342 = vrot.slane %v1340, 4
      %v1343 = vshll.u32 %v1315, 16
      %v1345 = vrot.slane %v1343, 5
      %v1346 = vor.u32 %v1342, %v1345
      %v1347 = vrot.slane %v1346, 4
      %v1349 = vshll.u32 %v1316, 16
      %v1351 = vrot.slane %v1349, 5
      %v1352 = vsel %vm314, %v1347, %v1351
      %v1353 = vshrl.u32 %v1316, 16
      %v1355 = vrot.slane %v1353, 4
      %v1356 = vor.u32 %v1355, %v1351
      %v1357 = vrot.slane %v1356, 4
      %v1359 = vshll.u32 %v1317, 16
      %v1361 = vrot.slane %v1359, 5
      %v1362 = vsel %vm314, %v1357, %v1361
      %v1364 = vshrl.u32 %v1318, 16
      %v1366 = vrot.slane %v1364, 4
      %v1367 = vshll.u32 %v1318, 16
      %v1369 = vrot.slane %v1367, 5
      %v1370 = vor.u32 %v1366, %v1369
      %v1371 = vrot.slane %v1370, 4
      %v1373 = vshll.u32 %v1319, 16
      %v1375 = vrot.slane %v1373, 5
      %v1376 = vsel %vm314, %v1371, %v1375
      %v1377 = vshrl.u32 %v1319, 16
      %v1379 = vrot.slane %v1377, 4
      %v1380 = vor.u32 %v1379, %v1375
      %v1381 = vrot.slane %v1380, 4
      %v1383 = vshll.u32 %v1320, 16
      %v1385 = vrot.slane %v1383, 5
      %v1386 = vsel %vm314, %v1381, %v1385
      %v1388 = vshrl.u32 %v1321, 16
      %v1390 = vrot.slane %v1388, 4
      %v1391 = vshll.u32 %v1321, 16
      %v1393 = vrot.slane %v1391, 5
      %v1394 = vor.u32 %v1390, %v1393
      %v1395 = vrot.slane %v1394, 4
      %v1397 = vshll.u32 %v1322, 16
      %v1399 = vrot.slane %v1397, 5
      %v1400 = vsel %vm314, %v1395, %v1399
      %v1401 = vshrl.u32 %v1322, 16
      %v1403 = vrot.slane %v1401, 4
      %v1404 = vor.u32 %v1403, %v1399
      %v1405 = vrot.slane %v1404, 4
      %v1407 = vshll.u32 %v1323, 16
      %v1409 = vrot.slane %v1407, 5
      %v1410 = vsel %vm314, %v1405, %v1409
      %v1412 = vshrl.u32 %v1324, 16
      %v1414 = vrot.slane %v1412, 4
      %v1415 = vshll.u32 %v1324, 16
      %v1417 = vrot.slane %v1415, 5
      %v1418 = vor.u32 %v1414, %v1417
      %v1419 = vrot.slane %v1418, 4
      %v1421 = vshll.u32 %v1325, 16
      %v1423 = vrot.slane %v1421, 5
      %v1424 = vsel %vm314, %v1419, %v1423
      %v1425 = vshrl.u32 %v1325, 16
      %v1427 = vrot.slane %v1425, 4
      %v1428 = vor.u32 %v1427, %v1423
      %v1429 = vrot.slane %v1428, 4
      %v1431 = vshll.u32 %v1326, 16
      %v1433 = vrot.slane %v1431, 5
      %v1434 = vsel %vm314, %v1429, %v1433
      %v1436 = vshrl.u32 %v1327, 16
      %v1438 = vrot.slane %v1436, 4
      %v1439 = vshll.u32 %v1327, 16
      %v1441 = vrot.slane %v1439, 5
      %v1442 = vor.u32 %v1438, %v1441
      %v1443 = vrot.slane %v1442, 4
      %v1445 = vshll.u32 %v1328, 16
      %v1447 = vrot.slane %v1445, 5
      %v1448 = vsel %vm314, %v1443, %v1447
      %v1449 = vshrl.u32 %v1328, 16
      %v1451 = vrot.slane %v1449, 4
      %v1452 = vor.u32 %v1451, %v1447
      %v1453 = vrot.slane %v1452, 4
      %v1455 = vshll.u32 %v1329, 16
      %v1457 = vrot.slane %v1455, 5
      %v1458 = vsel %vm314, %v1453, %v1457
      %v1460 = vshrl.u32 %v1330, 16
      %v1462 = vrot.slane %v1460, 4
      %v1463 = vshll.u32 %v1330, 16
      %v1465 = vrot.slane %v1463, 5
      %v1466 = vor.u32 %v1462, %v1465
      %v1467 = vrot.slane %v1466, 4
      %v1469 = vshll.u32 %v1331, 16
      %v1471 = vrot.slane %v1469, 5
      %v1472 = vsel %vm314, %v1467, %v1471
      %v1473 = vshrl.u32 %v1331, 16
      %v1475 = vrot.slane %v1473, 4
      %v1476 = vor.u32 %v1475, %v1471
      %v1477 = vrot.slane %v1476, 4
      %v1479 = vshll.u32 %v1332, 16
      %v1481 = vrot.slane %v1479, 5
      %v1482 = vsel %vm314, %v1477, %v1481
      %v1484 = vshrl.u32 %v1333, 16
      %v1486 = vrot.slane %v1484, 4
      %v1487 = vshll.u32 %v1333, 16
      %v1489 = vrot.slane %v1487, 5
      %v1490 = vor.u32 %v1486, %v1489
      %v1491 = vrot.slane %v1490, 4
      %v1493 = vshll.u32 %v1334, 16
      %v1495 = vrot.slane %v1493, 5
      %v1496 = vsel %vm314, %v1491, %v1495
      %v1497 = vshrl.u32 %v1334, 16
      %v1499 = vrot.slane %v1497, 4
      %v1500 = vor.u32 %v1499, %v1495
      %v1501 = vrot.slane %v1500, 4
      %v1503 = vshll.u32 %v1335, 16
      %v1505 = vrot.slane %v1503, 5
      %v1506 = vsel %vm314, %v1501, %v1505
      %v1508 = vshrl.u32 %v1336, 16
      %v1510 = vrot.slane %v1508, 4
      %v1511 = vshll.u32 %v1336, 16
      %v1513 = vrot.slane %v1511, 5
      %v1514 = vor.u32 %v1510, %v1513
      %v1515 = vrot.slane %v1514, 4
      %v1517 = vshll.u32 %v1337, 16
      %v1519 = vrot.slane %v1517, 5
      %v1520 = vsel %vm314, %v1515, %v1519
      %v1521 = vshrl.u32 %v1337, 16
      %v1523 = vrot.slane %v1521, 4
      %v1524 = vor.u32 %v1523, %v1519
      %v1525 = vrot.slane %v1524, 4
      %v1527 = vshll.u32 %v1338, 16
      %v1529 = vrot.slane %v1527, 5
      %v1530 = vsel %vm314, %v1525, %v1529
      %s1531 = scalar_lea.vmem %s1, 64
      %v1532 = vld [vmem:[%s1531] sm:$0xf]
      %v1533 = vld [vmem:[%s1531 + $0x4] sm:$0xf]
      %v1534 = vld [vmem:[%s1531 + $0x8] sm:$0xf]
      %v1535 = vld [vmem:[%s1531 + $0xc] sm:$0xf]
      %v1536 = vunpack.c.l.b16 %v1352
      %v1537 = vunpack.c.l.b16 %v1362
      %v1538 = vunpack.c.l.b16 %v1376
      %v1539 = vunpack.c.l.b16 %v1386
      %v1540 = vunpack.c.l.b16 %v1400
      %v1541 = vunpack.c.l.b16 %v1410
      %v1542 = vunpack.c.l.b16 %v1424
      %v1543 = vunpack.c.l.b16 %v1434
      %v1544 = vunpack.c.l.b16 %v1448
      %v1545 = vunpack.c.l.b16 %v1458
      %v1546 = vunpack.c.l.b16 %v1472
      %v1547 = vunpack.c.l.b16 %v1482
      %v1548 = vunpack.c.l.b16 %v1496
      %v1549 = vunpack.c.l.b16 %v1506
      %v1550 = vunpack.c.l.b16 %v1520
      %v1551 = vunpack.c.l.b16 %v1530
      %v1552 = vpack.c.b16 %v1537, %v1536
      %v1553 = vpack.c.b16 %v1539, %v1538
      %v1554 = vpack.c.b16 %v1541, %v1540
      %v1555 = vpack.c.b16 %v1543, %v1542
      %v1556 = vpack.c.b16 %v1545, %v1544
      %v1557 = vpack.c.b16 %v1547, %v1546
      %v1558 = vpack.c.b16 %v1549, %v1548
      %v1559 = vpack.c.b16 %v1551, %v1550
      %v1564 = vunpack.c.l.b16 %v1532
      %v1565 = vunpack.c.l.b16 %v1533
      %v1566 = vunpack.c.l.b16 %v1534
      %v1567 = vunpack.c.l.b16 %v1535
      %v1568 = vpack.c.b16 %v1565, %v1564
      %v1569 = vpack.c.b16 %v1567, %v1566
      %v1573 = vsel %vm548, %v1552, 0
      %v1576 = vsel %vm548, %v1553, 0
      %v1579 = vsel %vm548, %v1554, 0
      %v1582 = vsel %vm548, %v1555, 0
      %v1585 = vsel %vm548, %v1556, 0
      %v1588 = vsel %vm548, %v1557, 0
      %v1591 = vsel %vm548, %v1558, 0
      %v1594 = vsel %vm548, %v1559, 0
      %1596 = vmatprep.subr.bf16.mxu0 0
      %1597 = vmatpush1.bf16.msra.mxu0 0
      %1598 = vmatprep.subr.bf16.mxu0 0
      %1599 = vmatpush1.bf16.msra.mxu0 0
      %1600 = vmatprep.subr.bf16.mxu0 0
      %1601 = vmatpush1.bf16.msra.mxu0 0
      %1602 = vmatprep.subr.bf16.mxu0 0
      %1603 = vmatpush1.bf16.msra.mxu0 0
      %1604 = vmatprep.subr.bf16.mxu0 0
      %1605 = vmatpush1.bf16.msra.mxu0 0
      %1606 = vmatprep.subr.bf16.mxu0 0
      %1607 = vmatpush1.bf16.msra.mxu0 0
      %1608 = vmatprep.subr.bf16.mxu0 0
      %1609 = vmatpush1.bf16.msra.mxu0 %v1569
      %1610 = vmatprep.subr.bf16.mxu0 0
      %1611 = vmatpush1.bf16.msra.mxu0 %v1568
      %1612 = vmatprep.subr.bf16.mxu0 0
      %1613 = vmatpush2.bf16.msra.mxu0 0
      %1614 = vmatprep.subr.bf16.mxu0 0
      %1615 = vmatpush2.bf16.msra.mxu0 0
      %1616 = vmatprep.subr.bf16.mxu0 0
      %1617 = vmatpush2.bf16.msra.mxu0 0
      %1618 = vmatprep.subr.bf16.mxu0 0
      %1619 = vmatpush2.bf16.msra.mxu0 0
      %1620 = vmatprep.subr.bf16.mxu0 0
      %1621 = vmatpush2.bf16.msra.mxu0 0
      %1622 = vmatprep.subr.bf16.mxu0 0
      %1623 = vmatpush2.bf16.msra.mxu0 0
      %1624 = vmatprep.subr.bf16.mxu0 0
      %1625 = vmatpush2.bf16.msra.mxu0 0
      %1626 = vmatprep.subr.bf16.mxu0 0
      %1627 = vmatpush2.bf16.msra.mxu0 0
      %1628 = vmatprep.mubr.bf16.mxu0 0
      %1629 = vmatmul.mubr.bf16.gmra.mxu0 %v1573
      %v1630 = vpop.f32.mrf.mxu0
      %v1631 = vadd.f32 0.0, %v1630
      %v1632 = vpop.f32.mrf.mxu0
      %v1633 = vpop.f32.mrf.mxu0
      %v1634 = vadd.f32 0.0, %v1633
      %v1635 = vpop.f32.mrf.mxu0
      %1636 = vmatprep.mubr.bf16.mxu0 0
      %1637 = vmatmul.mubr.bf16.gmra.mxu0 %v1576
      %v1638 = vpop.f32.mrf.mxu0
      %v1639 = vadd.f32 0.0, %v1638
      %v1640 = vpop.f32.mrf.mxu0
      %v1641 = vpop.f32.mrf.mxu0
      %v1642 = vadd.f32 0.0, %v1641
      %v1643 = vpop.f32.mrf.mxu0
      %1644 = vmatprep.mubr.bf16.mxu0 0
      %1645 = vmatmul.mubr.bf16.gmra.mxu0 %v1579
      %v1646 = vpop.f32.mrf.mxu0
      %v1647 = vadd.f32 0.0, %v1646
      %v1648 = vpop.f32.mrf.mxu0
      %v1649 = vpop.f32.mrf.mxu0
      %v1650 = vadd.f32 0.0, %v1649
      %v1651 = vpop.f32.mrf.mxu0
      %1652 = vmatprep.mubr.bf16.mxu0 0
      %1653 = vmatmul.mubr.bf16.gmra.mxu0 %v1582
      %v1654 = vpop.f32.mrf.mxu0
      %v1655 = vadd.f32 0.0, %v1654
      %v1656 = vpop.f32.mrf.mxu0
      %v1657 = vpop.f32.mrf.mxu0
      %v1658 = vadd.f32 0.0, %v1657
      %v1659 = vpop.f32.mrf.mxu0
      %1660 = vmatprep.mubr.bf16.mxu0 0
      %1661 = vmatmul.mubr.bf16.gmra.mxu0 %v1585
      %v1662 = vpop.f32.mrf.mxu0
      %v1663 = vadd.f32 0.0, %v1662
      %v1664 = vpop.f32.mrf.mxu0
      %v1665 = vpop.f32.mrf.mxu0
      %v1666 = vadd.f32 0.0, %v1665
      %v1667 = vpop.f32.mrf.mxu0
      %1668 = vmatprep.mubr.bf16.mxu0 0
      %1669 = vmatmul.mubr.bf16.gmra.mxu0 %v1588
      %v1670 = vpop.f32.mrf.mxu0
      %v1671 = vadd.f32 0.0, %v1670
      %v1672 = vpop.f32.mrf.mxu0
      %v1673 = vpop.f32.mrf.mxu0
      %v1674 = vadd.f32 0.0, %v1673
      %v1675 = vpop.f32.mrf.mxu0
      %1676 = vmatprep.mubr.bf16.mxu0 0
      %1677 = vmatmul.mubr.bf16.gmra.mxu0 %v1591
      %v1678 = vpop.f32.mrf.mxu0
      %v1679 = vadd.f32 0.0, %v1678
      %v1680 = vpop.f32.mrf.mxu0
      %v1681 = vpop.f32.mrf.mxu0
      %v1682 = vadd.f32 0.0, %v1681
      %v1683 = vpop.f32.mrf.mxu0
      %1684 = vmatprep.mubr.bf16.mxu0 0
      %1685 = vmatmul.mubr.bf16.gmra.mxu0 %v1594
      %v1686 = vpop.f32.mrf.mxu0
      %v1687 = vadd.f32 0.0, %v1686
      %v1688 = vpop.f32.mrf.mxu0
      %v1689 = vpop.f32.mrf.mxu0
      %v1690 = vadd.f32 0.0, %v1689
      %v1691 = vpop.f32.mrf.mxu0
      %1692 = vdwg.mxu0
      %v1693 = vadd.f32 %v1299, %v1631
      %v1694 = vadd.f32 %v1300, %v1634
      %v1695 = vadd.f32 %v1301, %v1639
      %v1696 = vadd.f32 %v1302, %v1642
      %v1697 = vadd.f32 %v1303, %v1647
      %v1698 = vadd.f32 %v1304, %v1650
      %v1699 = vadd.f32 %v1305, %v1655
      %v1700 = vadd.f32 %v1306, %v1658
      %v1701 = vadd.f32 %v1307, %v1663
      %v1702 = vadd.f32 %v1308, %v1666
      %v1703 = vadd.f32 %v1309, %v1671
      %v1704 = vadd.f32 %v1310, %v1674
      %v1705 = vadd.f32 %v1311, %v1679
      %v1706 = vadd.f32 %v1312, %v1682
      %v1707 = vadd.f32 %v1313, %v1687
      %v1708 = vadd.f32 %v1314, %v1690
      %v1709 = vld [vmem:[%s1104] sm:$0xe]
      %v1710 = vld [vmem:[%s1104 + $0xc] sm:$0xe]
      %v1711 = vld [vmem:[%s1104 + $0x18] sm:$0xe]
      %v1712 = vld [vmem:[%s1104 + $0x24] sm:$0xe]
      %v1713 = vld [vmem:[%s1104 + $0x30] sm:$0xe]
      %v1714 = vld [vmem:[%s1104 + $0x3c] sm:$0xe]
      %v1715 = vld [vmem:[%s1104 + $0x48] sm:$0xe]
      %v1716 = vld [vmem:[%s1104 + $0x54] sm:$0xe]
      %v1741 = vrot.slane %v1709, 5
      %v1742 = vrot.slane %v1741, 4
      %v1743 = vrot.slane %v1316, 5
      %v1744 = vsel %vm869, %v1742, %v1743
      %v1745 = vrot.slane %v1743, 4
      %v1746 = vrot.slane %v1317, 5
      %v1747 = vsel %vm869, %v1745, %v1746
      %v1748 = vrot.slane %v1710, 5
      %v1749 = vrot.slane %v1748, 4
      %v1750 = vrot.slane %v1319, 5
      %v1751 = vsel %vm869, %v1749, %v1750
      %v1752 = vrot.slane %v1750, 4
      %v1753 = vrot.slane %v1320, 5
      %v1754 = vsel %vm869, %v1752, %v1753
      %v1755 = vrot.slane %v1711, 5
      %v1756 = vrot.slane %v1755, 4
      %v1757 = vrot.slane %v1322, 5
      %v1758 = vsel %vm869, %v1756, %v1757
      %v1759 = vrot.slane %v1757, 4
      %v1760 = vrot.slane %v1323, 5
      %v1761 = vsel %vm869, %v1759, %v1760
      %v1762 = vrot.slane %v1712, 5
      %v1763 = vrot.slane %v1762, 4
      %v1764 = vrot.slane %v1325, 5
      %v1765 = vsel %vm869, %v1763, %v1764
      %v1766 = vrot.slane %v1764, 4
      %v1767 = vrot.slane %v1326, 5
      %v1768 = vsel %vm869, %v1766, %v1767
      %v1769 = vrot.slane %v1713, 5
      %v1770 = vrot.slane %v1769, 4
      %v1771 = vrot.slane %v1328, 5
      %v1772 = vsel %vm869, %v1770, %v1771
      %v1773 = vrot.slane %v1771, 4
      %v1774 = vrot.slane %v1329, 5
      %v1775 = vsel %vm869, %v1773, %v1774
      %v1776 = vrot.slane %v1714, 5
      %v1777 = vrot.slane %v1776, 4
      %v1778 = vrot.slane %v1331, 5
      %v1779 = vsel %vm869, %v1777, %v1778
      %v1780 = vrot.slane %v1778, 4
      %v1781 = vrot.slane %v1332, 5
      %v1782 = vsel %vm869, %v1780, %v1781
      %v1783 = vrot.slane %v1715, 5
      %v1784 = vrot.slane %v1783, 4
      %v1785 = vrot.slane %v1334, 5
      %v1786 = vsel %vm869, %v1784, %v1785
      %v1787 = vrot.slane %v1785, 4
      %v1788 = vrot.slane %v1335, 5
      %v1789 = vsel %vm869, %v1787, %v1788
      %v1790 = vrot.slane %v1716, 5
      %v1791 = vrot.slane %v1790, 4
      %v1792 = vrot.slane %v1337, 5
      %v1793 = vsel %vm869, %v1791, %v1792
      %v1794 = vrot.slane %v1792, 4
      %v1795 = vrot.slane %v1338, 5
      %v1796 = vsel %vm869, %v1794, %v1795
      %s1797 = scalar_lea.vmem %s1, 80
      %v1798 = vld [vmem:[%s1797] sm:$0xf]
      %v1799 = vld [vmem:[%s1797 + $0x4] sm:$0xf]
      %v1800 = vld [vmem:[%s1797 + $0x8] sm:$0xf]
      %v1801 = vld [vmem:[%s1797 + $0xc] sm:$0xf]
      %v1802 = vunpack.c.l.b16 %v1744
      %v1803 = vunpack.c.l.b16 %v1747
      %v1804 = vunpack.c.l.b16 %v1751
      %v1805 = vunpack.c.l.b16 %v1754
      %v1806 = vunpack.c.l.b16 %v1758
      %v1807 = vunpack.c.l.b16 %v1761
      %v1808 = vunpack.c.l.b16 %v1765
      %v1809 = vunpack.c.l.b16 %v1768
      %v1810 = vunpack.c.l.b16 %v1772
      %v1811 = vunpack.c.l.b16 %v1775
      %v1812 = vunpack.c.l.b16 %v1779
      %v1813 = vunpack.c.l.b16 %v1782
      %v1814 = vunpack.c.l.b16 %v1786
      %v1815 = vunpack.c.l.b16 %v1789
      %v1816 = vunpack.c.l.b16 %v1793
      %v1817 = vunpack.c.l.b16 %v1796
      %v1818 = vpack.c.b16 %v1803, %v1802
      %v1819 = vpack.c.b16 %v1805, %v1804
      %v1820 = vpack.c.b16 %v1807, %v1806
      %v1821 = vpack.c.b16 %v1809, %v1808
      %v1822 = vpack.c.b16 %v1811, %v1810
      %v1823 = vpack.c.b16 %v1813, %v1812
      %v1824 = vpack.c.b16 %v1815, %v1814
      %v1825 = vpack.c.b16 %v1817, %v1816
      %v1830 = vunpack.c.l.b16 %v1798
      %v1831 = vunpack.c.l.b16 %v1799
      %v1832 = vunpack.c.l.b16 %v1800
      %v1833 = vunpack.c.l.b16 %v1801
      %v1834 = vpack.c.b16 %v1831, %v1830
      %v1835 = vpack.c.b16 %v1833, %v1832
      %v1839 = vsel %vm548, %v1818, 0
      %v1842 = vsel %vm548, %v1819, 0
      %v1845 = vsel %vm548, %v1820, 0
      %v1848 = vsel %vm548, %v1821, 0
      %v1851 = vsel %vm548, %v1822, 0
      %v1854 = vsel %vm548, %v1823, 0
      %v1857 = vsel %vm548, %v1824, 0
      %v1860 = vsel %vm548, %v1825, 0
      %1862 = vmatprep.subr.bf16.mxu0 0
      %1863 = vmatpush1.bf16.msra.mxu0 0
      %1864 = vmatprep.subr.bf16.mxu0 0
      %1865 = vmatpush1.bf16.msra.mxu0 0
      %1866 = vmatprep.subr.bf16.mxu0 0
      %1867 = vmatpush1.bf16.msra.mxu0 0
      %1868 = vmatprep.subr.bf16.mxu0 0
      %1869 = vmatpush1.bf16.msra.mxu0 0
      %1870 = vmatprep.subr.bf16.mxu0 0
      %1871 = vmatpush1.bf16.msra.mxu0 0
      %1872 = vmatprep.subr.bf16.mxu0 0
      %1873 = vmatpush1.bf16.msra.mxu0 0
      %1874 = vmatprep.subr.bf16.mxu0 0
      %1875 = vmatpush1.bf16.msra.mxu0 %v1835
      %1876 = vmatprep.subr.bf16.mxu0 0
      %1877 = vmatpush1.bf16.msra.mxu0 %v1834
      %1878 = vmatprep.subr.bf16.mxu0 0
      %1879 = vmatpush2.bf16.msra.mxu0 0
      %1880 = vmatprep.subr.bf16.mxu0 0
      %1881 = vmatpush2.bf16.msra.mxu0 0
      %1882 = vmatprep.subr.bf16.mxu0 0
      %1883 = vmatpush2.bf16.msra.mxu0 0
      %1884 = vmatprep.subr.bf16.mxu0 0
      %1885 = vmatpush2.bf16.msra.mxu0 0
      %1886 = vmatprep.subr.bf16.mxu0 0
      %1887 = vmatpush2.bf16.msra.mxu0 0
      %1888 = vmatprep.subr.bf16.mxu0 0
      %1889 = vmatpush2.bf16.msra.mxu0 0
      %1890 = vmatprep.subr.bf16.mxu0 0
      %1891 = vmatpush2.bf16.msra.mxu0 0
      %1892 = vmatprep.subr.bf16.mxu0 0
      %1893 = vmatpush2.bf16.msra.mxu0 0
      %1894 = vmatprep.mubr.bf16.mxu0 0
      %1895 = vmatmul.mubr.bf16.gmra.mxu0 %v1839
      %v1896 = vpop.f32.mrf.mxu0
      %v1897 = vadd.f32 0.0, %v1896
      %v1898 = vpop.f32.mrf.mxu0
      %v1899 = vpop.f32.mrf.mxu0
      %v1900 = vadd.f32 0.0, %v1899
      %v1901 = vpop.f32.mrf.mxu0
      %1902 = vmatprep.mubr.bf16.mxu0 0
      %1903 = vmatmul.mubr.bf16.gmra.mxu0 %v1842
      %v1904 = vpop.f32.mrf.mxu0
      %v1905 = vadd.f32 0.0, %v1904
      %v1906 = vpop.f32.mrf.mxu0
      %v1907 = vpop.f32.mrf.mxu0
      %v1908 = vadd.f32 0.0, %v1907
      %v1909 = vpop.f32.mrf.mxu0
      %1910 = vmatprep.mubr.bf16.mxu0 0
      %1911 = vmatmul.mubr.bf16.gmra.mxu0 %v1845
      %v1912 = vpop.f32.mrf.mxu0
      %v1913 = vadd.f32 0.0, %v1912
      %v1914 = vpop.f32.mrf.mxu0
      %v1915 = vpop.f32.mrf.mxu0
      %v1916 = vadd.f32 0.0, %v1915
      %v1917 = vpop.f32.mrf.mxu0
      %1918 = vmatprep.mubr.bf16.mxu0 0
      %1919 = vmatmul.mubr.bf16.gmra.mxu0 %v1848
      %v1920 = vpop.f32.mrf.mxu0
      %v1921 = vadd.f32 0.0, %v1920
      %v1922 = vpop.f32.mrf.mxu0
      %v1923 = vpop.f32.mrf.mxu0
      %v1924 = vadd.f32 0.0, %v1923
      %v1925 = vpop.f32.mrf.mxu0
      %1926 = vmatprep.mubr.bf16.mxu0 0
      %1927 = vmatmul.mubr.bf16.gmra.mxu0 %v1851
      %v1928 = vpop.f32.mrf.mxu0
      %v1929 = vadd.f32 0.0, %v1928
      %v1930 = vpop.f32.mrf.mxu0
      %v1931 = vpop.f32.mrf.mxu0
      %v1932 = vadd.f32 0.0, %v1931
      %v1933 = vpop.f32.mrf.mxu0
      %1934 = vmatprep.mubr.bf16.mxu0 0
      %1935 = vmatmul.mubr.bf16.gmra.mxu0 %v1854
      %v1936 = vpop.f32.mrf.mxu0
      %v1937 = vadd.f32 0.0, %v1936
      %v1938 = vpop.f32.mrf.mxu0
      %v1939 = vpop.f32.mrf.mxu0
      %v1940 = vadd.f32 0.0, %v1939
      %v1941 = vpop.f32.mrf.mxu0
      %1942 = vmatprep.mubr.bf16.mxu0 0
      %1943 = vmatmul.mubr.bf16.gmra.mxu0 %v1857
      %v1944 = vpop.f32.mrf.mxu0
      %v1945 = vadd.f32 0.0, %v1944
      %v1946 = vpop.f32.mrf.mxu0
      %v1947 = vpop.f32.mrf.mxu0
      %v1948 = vadd.f32 0.0, %v1947
      %v1949 = vpop.f32.mrf.mxu0
      %1950 = vmatprep.mubr.bf16.mxu0 0
      %1951 = vmatmul.mubr.bf16.gmra.mxu0 %v1860
      %v1952 = vpop.f32.mrf.mxu0
      %v1953 = vadd.f32 0.0, %v1952
      %v1954 = vpop.f32.mrf.mxu0
      %v1955 = vpop.f32.mrf.mxu0
      %v1956 = vadd.f32 0.0, %v1955
      %v1957 = vpop.f32.mrf.mxu0
      %1958 = vdwg.mxu0
      %v1959 = vadd.f32 %v1693, %v1897
      %v1960 = vadd.f32 %v1694, %v1900
      %v1961 = vadd.f32 %v1695, %v1905
      %v1962 = vadd.f32 %v1696, %v1908
      %v1963 = vadd.f32 %v1697, %v1913
      %v1964 = vadd.f32 %v1698, %v1916
      %v1965 = vadd.f32 %v1699, %v1921
      %v1966 = vadd.f32 %v1700, %v1924
      %v1967 = vadd.f32 %v1701, %v1929
      %v1968 = vadd.f32 %v1702, %v1932
      %v1969 = vadd.f32 %v1703, %v1937
      %v1970 = vadd.f32 %v1704, %v1940
      %v1971 = vadd.f32 %v1705, %v1945
      %v1972 = vadd.f32 %v1706, %v1948
      %v1973 = vadd.f32 %v1707, %v1953
      %v1974 = vadd.f32 %v1708, %v1956
      %s1975 = scalar_lea.vmem %s264, 24
      %v1976 = vld [vmem:[%s1975] sm:$0xf]
      %v1977 = vld [vmem:[%s1975 + $0x4] sm:$0xf]
      %v1978 = vld [vmem:[%s1975 + $0xc] sm:$0xf]
      %v1979 = vld [vmem:[%s1975 + $0x10] sm:$0xf]
      %v1980 = vld [vmem:[%s1975 + $0x18] sm:$0xf]
      %v1981 = vld [vmem:[%s1975 + $0x1c] sm:$0xf]
      %v1982 = vld [vmem:[%s1975 + $0x24] sm:$0xf]
      %v1983 = vld [vmem:[%s1975 + $0x28] sm:$0xf]
      %v1984 = vld [vmem:[%s1975 + $0x30] sm:$0xf]
      %v1985 = vld [vmem:[%s1975 + $0x34] sm:$0xf]
      %v1986 = vld [vmem:[%s1975 + $0x3c] sm:$0xf]
      %v1987 = vld [vmem:[%s1975 + $0x40] sm:$0xf]
      %v1988 = vld [vmem:[%s1975 + $0x48] sm:$0xf]
      %v1989 = vld [vmem:[%s1975 + $0x4c] sm:$0xf]
      %v1990 = vld [vmem:[%s1975 + $0x54] sm:$0xf]
      %v1991 = vld [vmem:[%s1975 + $0x58] sm:$0xf]
      %s1992 = scalar_lea.vmem %s1, 96
      %v1993 = vld [vmem:[%s1992] sm:$0xf]
      %v1994 = vld [vmem:[%s1992 + $0x4] sm:$0xf]
      %v1995 = vld [vmem:[%s1992 + $0x8] sm:$0xf]
      %v1996 = vld [vmem:[%s1992 + $0xc] sm:$0xf]
      %v2013 = vunpack.c.l.b16 %v1976
      %v2014 = vunpack.c.l.b16 %v1977
      %v2015 = vunpack.c.l.b16 %v1978
      %v2016 = vunpack.c.l.b16 %v1979
      %v2017 = vunpack.c.l.b16 %v1980
      %v2018 = vunpack.c.l.b16 %v1981
      %v2019 = vunpack.c.l.b16 %v1982
      %v2020 = vunpack.c.l.b16 %v1983
      %v2021 = vunpack.c.l.b16 %v1984
      %v2022 = vunpack.c.l.b16 %v1985
      %v2023 = vunpack.c.l.b16 %v1986
      %v2024 = vunpack.c.l.b16 %v1987
      %v2025 = vunpack.c.l.b16 %v1988
      %v2026 = vunpack.c.l.b16 %v1989
      %v2027 = vunpack.c.l.b16 %v1990
      %v2028 = vunpack.c.l.b16 %v1991
      %v2029 = vpack.c.b16 %v2014, %v2013
      %v2030 = vpack.c.b16 %v2016, %v2015
      %v2031 = vpack.c.b16 %v2018, %v2017
      %v2032 = vpack.c.b16 %v2020, %v2019
      %v2033 = vpack.c.b16 %v2022, %v2021
      %v2034 = vpack.c.b16 %v2024, %v2023
      %v2035 = vpack.c.b16 %v2026, %v2025
      %v2036 = vpack.c.b16 %v2028, %v2027
      %v2041 = vunpack.c.l.b16 %v1993
      %v2042 = vunpack.c.l.b16 %v1994
      %v2043 = vunpack.c.l.b16 %v1995
      %v2044 = vunpack.c.l.b16 %v1996
      %v2045 = vpack.c.b16 %v2042, %v2041
      %v2046 = vpack.c.b16 %v2044, %v2043
      %v2050 = vsel %vm548, %v2029, 0
      %v2053 = vsel %vm548, %v2030, 0
      %v2056 = vsel %vm548, %v2031, 0
      %v2059 = vsel %vm548, %v2032, 0
      %v2062 = vsel %vm548, %v2033, 0
      %v2065 = vsel %vm548, %v2034, 0
      %v2068 = vsel %vm548, %v2035, 0
      %v2071 = vsel %vm548, %v2036, 0
      %2073 = vmatprep.subr.bf16.mxu0 0
      %2074 = vmatpush1.bf16.msra.mxu0 0
      %2075 = vmatprep.subr.bf16.mxu0 0
      %2076 = vmatpush1.bf16.msra.mxu0 0
      %2077 = vmatprep.subr.bf16.mxu0 0
      %2078 = vmatpush1.bf16.msra.mxu0 0
      %2079 = vmatprep.subr.bf16.mxu0 0
      %2080 = vmatpush1.bf16.msra.mxu0 0
      %2081 = vmatprep.subr.bf16.mxu0 0
      %2082 = vmatpush1.bf16.msra.mxu0 0
      %2083 = vmatprep.subr.bf16.mxu0 0
      %2084 = vmatpush1.bf16.msra.mxu0 0
      %2085 = vmatprep.subr.bf16.mxu0 0
      %2086 = vmatpush1.bf16.msra.mxu0 %v2046
      %2087 = vmatprep.subr.bf16.mxu0 0
      %2088 = vmatpush1.bf16.msra.mxu0 %v2045
      %2089 = vmatprep.subr.bf16.mxu0 0
      %2090 = vmatpush2.bf16.msra.mxu0 0
      %2091 = vmatprep.subr.bf16.mxu0 0
      %2092 = vmatpush2.bf16.msra.mxu0 0
      %2093 = vmatprep.subr.bf16.mxu0 0
      %2094 = vmatpush2.bf16.msra.mxu0 0
      %2095 = vmatprep.subr.bf16.mxu0 0
      %2096 = vmatpush2.bf16.msra.mxu0 0
      %2097 = vmatprep.subr.bf16.mxu0 0
      %2098 = vmatpush2.bf16.msra.mxu0 0
      %2099 = vmatprep.subr.bf16.mxu0 0
      %2100 = vmatpush2.bf16.msra.mxu0 0
      %2101 = vmatprep.subr.bf16.mxu0 0
      %2102 = vmatpush2.bf16.msra.mxu0 0
      %2103 = vmatprep.subr.bf16.mxu0 0
      %2104 = vmatpush2.bf16.msra.mxu0 0
      %2105 = vmatprep.mubr.bf16.mxu0 0
      %2106 = vmatmul.mubr.bf16.gmra.mxu0 %v2050
      %v2107 = vpop.f32.mrf.mxu0
      %v2108 = vadd.f32 0.0, %v2107
      %v2109 = vpop.f32.mrf.mxu0
      %v2110 = vpop.f32.mrf.mxu0
      %v2111 = vadd.f32 0.0, %v2110
      %v2112 = vpop.f32.mrf.mxu0
      %2113 = vmatprep.mubr.bf16.mxu0 0
      %2114 = vmatmul.mubr.bf16.gmra.mxu0 %v2053
      %v2115 = vpop.f32.mrf.mxu0
      %v2116 = vadd.f32 0.0, %v2115
      %v2117 = vpop.f32.mrf.mxu0
      %v2118 = vpop.f32.mrf.mxu0
      %v2119 = vadd.f32 0.0, %v2118
      %v2120 = vpop.f32.mrf.mxu0
      %2121 = vmatprep.mubr.bf16.mxu0 0
      %2122 = vmatmul.mubr.bf16.gmra.mxu0 %v2056
      %v2123 = vpop.f32.mrf.mxu0
      %v2124 = vadd.f32 0.0, %v2123
      %v2125 = vpop.f32.mrf.mxu0
      %v2126 = vpop.f32.mrf.mxu0
      %v2127 = vadd.f32 0.0, %v2126
      %v2128 = vpop.f32.mrf.mxu0
      %2129 = vmatprep.mubr.bf16.mxu0 0
      %2130 = vmatmul.mubr.bf16.gmra.mxu0 %v2059
      %v2131 = vpop.f32.mrf.mxu0
      %v2132 = vadd.f32 0.0, %v2131
      %v2133 = vpop.f32.mrf.mxu0
      %v2134 = vpop.f32.mrf.mxu0
      %v2135 = vadd.f32 0.0, %v2134
      %v2136 = vpop.f32.mrf.mxu0
      %2137 = vmatprep.mubr.bf16.mxu0 0
      %2138 = vmatmul.mubr.bf16.gmra.mxu0 %v2062
      %v2139 = vpop.f32.mrf.mxu0
      %v2140 = vadd.f32 0.0, %v2139
      %v2141 = vpop.f32.mrf.mxu0
      %v2142 = vpop.f32.mrf.mxu0
      %v2143 = vadd.f32 0.0, %v2142
      %v2144 = vpop.f32.mrf.mxu0
      %2145 = vmatprep.mubr.bf16.mxu0 0
      %2146 = vmatmul.mubr.bf16.gmra.mxu0 %v2065
      %v2147 = vpop.f32.mrf.mxu0
      %v2148 = vadd.f32 0.0, %v2147
      %v2149 = vpop.f32.mrf.mxu0
      %v2150 = vpop.f32.mrf.mxu0
      %v2151 = vadd.f32 0.0, %v2150
      %v2152 = vpop.f32.mrf.mxu0
      %2153 = vmatprep.mubr.bf16.mxu0 0
      %2154 = vmatmul.mubr.bf16.gmra.mxu0 %v2068
      %v2155 = vpop.f32.mrf.mxu0
      %v2156 = vadd.f32 0.0, %v2155
      %v2157 = vpop.f32.mrf.mxu0
      %v2158 = vpop.f32.mrf.mxu0
      %v2159 = vadd.f32 0.0, %v2158
      %v2160 = vpop.f32.mrf.mxu0
      %2161 = vmatprep.mubr.bf16.mxu0 0
      %2162 = vmatmul.mubr.bf16.gmra.mxu0 %v2071
      %v2163 = vpop.f32.mrf.mxu0
      %v2164 = vadd.f32 0.0, %v2163
      %v2165 = vpop.f32.mrf.mxu0
      %v2166 = vpop.f32.mrf.mxu0
      %v2167 = vadd.f32 0.0, %v2166
      %v2168 = vpop.f32.mrf.mxu0
      %2169 = vdwg.mxu0
      %v2170 = vadd.f32 %v1959, %v2108
      %v2171 = vadd.f32 %v1960, %v2111
      %v2172 = vadd.f32 %v1961, %v2116
      %v2173 = vadd.f32 %v1962, %v2119
      %v2174 = vadd.f32 %v1963, %v2124
      %v2175 = vadd.f32 %v1964, %v2127
      %v2176 = vadd.f32 %v1965, %v2132
      %v2177 = vadd.f32 %v1966, %v2135
      %v2178 = vadd.f32 %v1967, %v2140
      %v2179 = vadd.f32 %v1968, %v2143
      %v2180 = vadd.f32 %v1969, %v2148
      %v2181 = vadd.f32 %v1970, %v2151
      %v2182 = vadd.f32 %v1971, %v2156
      %v2183 = vadd.f32 %v1972, %v2159
      %v2184 = vadd.f32 %v1973, %v2164
      %v2185 = vadd.f32 %v1974, %v2167
      %v2186 = vld [vmem:[%s1975] sm:$0xf]
      %v2187 = vld [vmem:[%s1975 + $0x4] sm:$0xf]
      %v2188 = vld [vmem:[%s1975 + $0x8] sm:$0x1]
      %v2189 = vld [vmem:[%s1975 + $0xc] sm:$0xf]
      %v2190 = vld [vmem:[%s1975 + $0x10] sm:$0xf]
      %v2191 = vld [vmem:[%s1975 + $0x14] sm:$0x1]
      %v2192 = vld [vmem:[%s1975 + $0x18] sm:$0xf]
      %v2193 = vld [vmem:[%s1975 + $0x1c] sm:$0xf]
      %v2194 = vld [vmem:[%s1975 + $0x20] sm:$0x1]
      %v2195 = vld [vmem:[%s1975 + $0x24] sm:$0xf]
      %v2196 = vld [vmem:[%s1975 + $0x28] sm:$0xf]
      %v2197 = vld [vmem:[%s1975 + $0x2c] sm:$0x1]
      %v2198 = vld [vmem:[%s1975 + $0x30] sm:$0xf]
      %v2199 = vld [vmem:[%s1975 + $0x34] sm:$0xf]
      %v2200 = vld [vmem:[%s1975 + $0x38] sm:$0x1]
      %v2201 = vld [vmem:[%s1975 + $0x3c] sm:$0xf]
      %v2202 = vld [vmem:[%s1975 + $0x40] sm:$0xf]
      %v2203 = vld [vmem:[%s1975 + $0x44] sm:$0x1]
      %v2204 = vld [vmem:[%s1975 + $0x48] sm:$0xf]
      %v2205 = vld [vmem:[%s1975 + $0x4c] sm:$0xf]
      %v2206 = vld [vmem:[%s1975 + $0x50] sm:$0x1]
      %v2207 = vld [vmem:[%s1975 + $0x54] sm:$0xf]
      %v2208 = vld [vmem:[%s1975 + $0x58] sm:$0xf]
      %v2209 = vld [vmem:[%s1975 + $0x5c] sm:$0x1]
      %v2211 = vshrl.u32 %v2186, 16
      %v2213 = vrot.slane %v2211, 4
      %v2214 = vshll.u32 %v2186, 16
      %v2216 = vrot.slane %v2214, 5
      %v2217 = vor.u32 %v2213, %v2216
      %v2218 = vrot.slane %v2217, 4
      %v2220 = vshll.u32 %v2187, 16
      %v2222 = vrot.slane %v2220, 5
      %v2223 = vsel %vm314, %v2218, %v2222
      %v2224 = vshrl.u32 %v2187, 16
      %v2226 = vrot.slane %v2224, 4
      %v2227 = vor.u32 %v2226, %v2222
      %v2228 = vrot.slane %v2227, 4
      %v2230 = vshll.u32 %v2188, 16
      %v2232 = vrot.slane %v2230, 5
      %v2233 = vsel %vm314, %v2228, %v2232
      %v2235 = vshrl.u32 %v2189, 16
      %v2237 = vrot.slane %v2235, 4
      %v2238 = vshll.u32 %v2189, 16
      %v2240 = vrot.slane %v2238, 5
      %v2241 = vor.u32 %v2237, %v2240
      %v2242 = vrot.slane %v2241, 4
      %v2244 = vshll.u32 %v2190, 16
      %v2246 = vrot.slane %v2244, 5
      %v2247 = vsel %vm314, %v2242, %v2246
      %v2248 = vshrl.u32 %v2190, 16
      %v2250 = vrot.slane %v2248, 4
      %v2251 = vor.u32 %v2250, %v2246
      %v2252 = vrot.slane %v2251, 4
      %v2254 = vshll.u32 %v2191, 16
      %v2256 = vrot.slane %v2254, 5
      %v2257 = vsel %vm314, %v2252, %v2256
      %v2259 = vshrl.u32 %v2192, 16
      %v2261 = vrot.slane %v2259, 4
      %v2262 = vshll.u32 %v2192, 16
      %v2264 = vrot.slane %v2262, 5
      %v2265 = vor.u32 %v2261, %v2264
      %v2266 = vrot.slane %v2265, 4
      %v2268 = vshll.u32 %v2193, 16
      %v2270 = vrot.slane %v2268, 5
      %v2271 = vsel %vm314, %v2266, %v2270
      %v2272 = vshrl.u32 %v2193, 16
      %v2274 = vrot.slane %v2272, 4
      %v2275 = vor.u32 %v2274, %v2270
      %v2276 = vrot.slane %v2275, 4
      %v2278 = vshll.u32 %v2194, 16
      %v2280 = vrot.slane %v2278, 5
      %v2281 = vsel %vm314, %v2276, %v2280
      %v2283 = vshrl.u32 %v2195, 16
      %v2285 = vrot.slane %v2283, 4
      %v2286 = vshll.u32 %v2195, 16
      %v2288 = vrot.slane %v2286, 5
      %v2289 = vor.u32 %v2285, %v2288
      %v2290 = vrot.slane %v2289, 4
      %v2292 = vshll.u32 %v2196, 16
      %v2294 = vrot.slane %v2292, 5
      %v2295 = vsel %vm314, %v2290, %v2294
      %v2296 = vshrl.u32 %v2196, 16
      %v2298 = vrot.slane %v2296, 4
      %v2299 = vor.u32 %v2298, %v2294
      %v2300 = vrot.slane %v2299, 4
      %v2302 = vshll.u32 %v2197, 16
      %v2304 = vrot.slane %v2302, 5
      %v2305 = vsel %vm314, %v2300, %v2304
      %v2307 = vshrl.u32 %v2198, 16
      %v2309 = vrot.slane %v2307, 4
      %v2310 = vshll.u32 %v2198, 16
      %v2312 = vrot.slane %v2310, 5
      %v2313 = vor.u32 %v2309, %v2312
      %v2314 = vrot.slane %v2313, 4
      %v2316 = vshll.u32 %v2199, 16
      %v2318 = vrot.slane %v2316, 5
      %v2319 = vsel %vm314, %v2314, %v2318
      %v2320 = vshrl.u32 %v2199, 16
      %v2322 = vrot.slane %v2320, 4
      %v2323 = vor.u32 %v2322, %v2318
      %v2324 = vrot.slane %v2323, 4
      %v2326 = vshll.u32 %v2200, 16
      %v2328 = vrot.slane %v2326, 5
      %v2329 = vsel %vm314, %v2324, %v2328
      %v2331 = vshrl.u32 %v2201, 16
      %v2333 = vrot.slane %v2331, 4
      %v2334 = vshll.u32 %v2201, 16
      %v2336 = vrot.slane %v2334, 5
      %v2337 = vor.u32 %v2333, %v2336
      %v2338 = vrot.slane %v2337, 4
      %v2340 = vshll.u32 %v2202, 16
      %v2342 = vrot.slane %v2340, 5
      %v2343 = vsel %vm314, %v2338, %v2342
      %v2344 = vshrl.u32 %v2202, 16
      %v2346 = vrot.slane %v2344, 4
      %v2347 = vor.u32 %v2346, %v2342
      %v2348 = vrot.slane %v2347, 4
      %v2350 = vshll.u32 %v2203, 16
      %v2352 = vrot.slane %v2350, 5
      %v2353 = vsel %vm314, %v2348, %v2352
      %v2355 = vshrl.u32 %v2204, 16
      %v2357 = vrot.slane %v2355, 4
      %v2358 = vshll.u32 %v2204, 16
      %v2360 = vrot.slane %v2358, 5
      %v2361 = vor.u32 %v2357, %v2360
      %v2362 = vrot.slane %v2361, 4
      %v2364 = vshll.u32 %v2205, 16
      %v2366 = vrot.slane %v2364, 5
      %v2367 = vsel %vm314, %v2362, %v2366
      %v2368 = vshrl.u32 %v2205, 16
      %v2370 = vrot.slane %v2368, 4
      %v2371 = vor.u32 %v2370, %v2366
      %v2372 = vrot.slane %v2371, 4
      %v2374 = vshll.u32 %v2206, 16
      %v2376 = vrot.slane %v2374, 5
      %v2377 = vsel %vm314, %v2372, %v2376
      %v2379 = vshrl.u32 %v2207, 16
      %v2381 = vrot.slane %v2379, 4
      %v2382 = vshll.u32 %v2207, 16
      %v2384 = vrot.slane %v2382, 5
      %v2385 = vor.u32 %v2381, %v2384
      %v2386 = vrot.slane %v2385, 4
      %v2388 = vshll.u32 %v2208, 16
      %v2390 = vrot.slane %v2388, 5
      %v2391 = vsel %vm314, %v2386, %v2390
      %v2392 = vshrl.u32 %v2208, 16
      %v2394 = vrot.slane %v2392, 4
      %v2395 = vor.u32 %v2394, %v2390
      %v2396 = vrot.slane %v2395, 4
      %v2398 = vshll.u32 %v2209, 16
      %v2400 = vrot.slane %v2398, 5
      %v2401 = vsel %vm314, %v2396, %v2400
      %s2402 = scalar_lea.vmem %s1, 112
      %v2403 = vld [vmem:[%s2402] sm:$0xf]
      %v2404 = vld [vmem:[%s2402 + $0x4] sm:$0xf]
      %v2405 = vld [vmem:[%s2402 + $0x8] sm:$0xf]
      %v2406 = vld [vmem:[%s2402 + $0xc] sm:$0xf]
      %v2407 = vunpack.c.l.b16 %v2223
      %v2408 = vunpack.c.l.b16 %v2233
      %v2409 = vunpack.c.l.b16 %v2247
      %v2410 = vunpack.c.l.b16 %v2257
      %v2411 = vunpack.c.l.b16 %v2271
      %v2412 = vunpack.c.l.b16 %v2281
      %v2413 = vunpack.c.l.b16 %v2295
      %v2414 = vunpack.c.l.b16 %v2305
      %v2415 = vunpack.c.l.b16 %v2319
      %v2416 = vunpack.c.l.b16 %v2329
      %v2417 = vunpack.c.l.b16 %v2343
      %v2418 = vunpack.c.l.b16 %v2353
      %v2419 = vunpack.c.l.b16 %v2367
      %v2420 = vunpack.c.l.b16 %v2377
      %v2421 = vunpack.c.l.b16 %v2391
      %v2422 = vunpack.c.l.b16 %v2401
      %v2423 = vpack.c.b16 %v2408, %v2407
      %v2424 = vpack.c.b16 %v2410, %v2409
      %v2425 = vpack.c.b16 %v2412, %v2411
      %v2426 = vpack.c.b16 %v2414, %v2413
      %v2427 = vpack.c.b16 %v2416, %v2415
      %v2428 = vpack.c.b16 %v2418, %v2417
      %v2429 = vpack.c.b16 %v2420, %v2419
      %v2430 = vpack.c.b16 %v2422, %v2421
      %v2435 = vunpack.c.l.b16 %v2403
      %v2436 = vunpack.c.l.b16 %v2404
      %v2437 = vunpack.c.l.b16 %v2405
      %v2438 = vunpack.c.l.b16 %v2406
      %v2439 = vpack.c.b16 %v2436, %v2435
      %v2440 = vpack.c.b16 %v2438, %v2437
      %v2444 = vsel %vm548, %v2423, 0
      %v2447 = vsel %vm548, %v2424, 0
      %v2450 = vsel %vm548, %v2425, 0
      %v2453 = vsel %vm548, %v2426, 0
      %v2456 = vsel %vm548, %v2427, 0
      %v2459 = vsel %vm548, %v2428, 0
      %v2462 = vsel %vm548, %v2429, 0
      %v2465 = vsel %vm548, %v2430, 0
      %2467 = vmatprep.subr.bf16.mxu0 0
      %2468 = vmatpush1.bf16.msra.mxu0 0
      %2469 = vmatprep.subr.bf16.mxu0 0
      %2470 = vmatpush1.bf16.msra.mxu0 0
      %2471 = vmatprep.subr.bf16.mxu0 0
      %2472 = vmatpush1.bf16.msra.mxu0 0
      %2473 = vmatprep.subr.bf16.mxu0 0
      %2474 = vmatpush1.bf16.msra.mxu0 0
      %2475 = vmatprep.subr.bf16.mxu0 0
      %2476 = vmatpush1.bf16.msra.mxu0 0
      %2477 = vmatprep.subr.bf16.mxu0 0
      %2478 = vmatpush1.bf16.msra.mxu0 0
      %2479 = vmatprep.subr.bf16.mxu0 0
      %2480 = vmatpush1.bf16.msra.mxu0 %v2440
      %2481 = vmatprep.subr.bf16.mxu0 0
      %2482 = vmatpush1.bf16.msra.mxu0 %v2439
      %2483 = vmatprep.subr.bf16.mxu0 0
      %2484 = vmatpush2.bf16.msra.mxu0 0
      %2485 = vmatprep.subr.bf16.mxu0 0
      %2486 = vmatpush2.bf16.msra.mxu0 0
      %2487 = vmatprep.subr.bf16.mxu0 0
      %2488 = vmatpush2.bf16.msra.mxu0 0
      %2489 = vmatprep.subr.bf16.mxu0 0
      %2490 = vmatpush2.bf16.msra.mxu0 0
      %2491 = vmatprep.subr.bf16.mxu0 0
      %2492 = vmatpush2.bf16.msra.mxu0 0
      %2493 = vmatprep.subr.bf16.mxu0 0
      %2494 = vmatpush2.bf16.msra.mxu0 0
      %2495 = vmatprep.subr.bf16.mxu0 0
      %2496 = vmatpush2.bf16.msra.mxu0 0
      %2497 = vmatprep.subr.bf16.mxu0 0
      %2498 = vmatpush2.bf16.msra.mxu0 0
      %2499 = vmatprep.mubr.bf16.mxu0 0
      %2500 = vmatmul.mubr.bf16.gmra.mxu0 %v2444
      %v2501 = vpop.f32.mrf.mxu0
      %v2502 = vadd.f32 0.0, %v2501
      %v2503 = vpop.f32.mrf.mxu0
      %v2504 = vpop.f32.mrf.mxu0
      %v2505 = vadd.f32 0.0, %v2504
      %v2506 = vpop.f32.mrf.mxu0
      %2507 = vmatprep.mubr.bf16.mxu0 0
      %2508 = vmatmul.mubr.bf16.gmra.mxu0 %v2447
      %v2509 = vpop.f32.mrf.mxu0
      %v2510 = vadd.f32 0.0, %v2509
      %v2511 = vpop.f32.mrf.mxu0
      %v2512 = vpop.f32.mrf.mxu0
      %v2513 = vadd.f32 0.0, %v2512
      %v2514 = vpop.f32.mrf.mxu0
      %2515 = vmatprep.mubr.bf16.mxu0 0
      %2516 = vmatmul.mubr.bf16.gmra.mxu0 %v2450
      %v2517 = vpop.f32.mrf.mxu0
      %v2518 = vadd.f32 0.0, %v2517
      %v2519 = vpop.f32.mrf.mxu0
      %v2520 = vpop.f32.mrf.mxu0
      %v2521 = vadd.f32 0.0, %v2520
      %v2522 = vpop.f32.mrf.mxu0
      %2523 = vmatprep.mubr.bf16.mxu0 0
      %2524 = vmatmul.mubr.bf16.gmra.mxu0 %v2453
      %v2525 = vpop.f32.mrf.mxu0
      %v2526 = vadd.f32 0.0, %v2525
      %v2527 = vpop.f32.mrf.mxu0
      %v2528 = vpop.f32.mrf.mxu0
      %v2529 = vadd.f32 0.0, %v2528
      %v2530 = vpop.f32.mrf.mxu0
      %2531 = vmatprep.mubr.bf16.mxu0 0
      %2532 = vmatmul.mubr.bf16.gmra.mxu0 %v2456
      %v2533 = vpop.f32.mrf.mxu0
      %v2534 = vadd.f32 0.0, %v2533
      %v2535 = vpop.f32.mrf.mxu0
      %v2536 = vpop.f32.mrf.mxu0
      %v2537 = vadd.f32 0.0, %v2536
      %v2538 = vpop.f32.mrf.mxu0
      %2539 = vmatprep.mubr.bf16.mxu0 0
      %2540 = vmatmul.mubr.bf16.gmra.mxu0 %v2459
      %v2541 = vpop.f32.mrf.mxu0
      %v2542 = vadd.f32 0.0, %v2541
      %v2543 = vpop.f32.mrf.mxu0
      %v2544 = vpop.f32.mrf.mxu0
      %v2545 = vadd.f32 0.0, %v2544
      %v2546 = vpop.f32.mrf.mxu0
      %2547 = vmatprep.mubr.bf16.mxu0 0
      %2548 = vmatmul.mubr.bf16.gmra.mxu0 %v2462
      %v2549 = vpop.f32.mrf.mxu0
      %v2550 = vadd.f32 0.0, %v2549
      %v2551 = vpop.f32.mrf.mxu0
      %v2552 = vpop.f32.mrf.mxu0
      %v2553 = vadd.f32 0.0, %v2552
      %v2554 = vpop.f32.mrf.mxu0
      %2555 = vmatprep.mubr.bf16.mxu0 0
      %2556 = vmatmul.mubr.bf16.gmra.mxu0 %v2465
      %v2557 = vpop.f32.mrf.mxu0
      %v2558 = vadd.f32 0.0, %v2557
      %v2559 = vpop.f32.mrf.mxu0
      %v2560 = vpop.f32.mrf.mxu0
      %v2561 = vadd.f32 0.0, %v2560
      %v2562 = vpop.f32.mrf.mxu0
      %2563 = vdwg.mxu0
      %v2564 = vadd.f32 %v2170, %v2502
      %v2565 = vadd.f32 %v2171, %v2505
      %v2566 = vadd.f32 %v2172, %v2510
      %v2567 = vadd.f32 %v2173, %v2513
      %v2568 = vadd.f32 %v2174, %v2518
      %v2569 = vadd.f32 %v2175, %v2521
      %v2570 = vadd.f32 %v2176, %v2526
      %v2571 = vadd.f32 %v2177, %v2529
      %v2572 = vadd.f32 %v2178, %v2534
      %v2573 = vadd.f32 %v2179, %v2537
      %v2574 = vadd.f32 %v2180, %v2542
      %v2575 = vadd.f32 %v2181, %v2545
      %v2576 = vadd.f32 %v2182, %v2550
      %v2577 = vadd.f32 %v2183, %v2553
      %v2578 = vadd.f32 %v2184, %v2558
      %v2579 = vadd.f32 %v2185, %v2561
      %v2580 = vld [vmem:[%s1975] sm:$0xe]
      %v2581 = vld [vmem:[%s1975 + $0xc] sm:$0xe]
      %v2582 = vld [vmem:[%s1975 + $0x18] sm:$0xe]
      %v2583 = vld [vmem:[%s1975 + $0x24] sm:$0xe]
      %v2584 = vld [vmem:[%s1975 + $0x30] sm:$0xe]
      %v2585 = vld [vmem:[%s1975 + $0x3c] sm:$0xe]
      %v2586 = vld [vmem:[%s1975 + $0x48] sm:$0xe]
      %v2587 = vld [vmem:[%s1975 + $0x54] sm:$0xe]
      %v2612 = vrot.slane %v2580, 5
      %v2613 = vrot.slane %v2612, 4
      %v2614 = vrot.slane %v2187, 5
      %v2615 = vsel %vm869, %v2613, %v2614
      %v2616 = vrot.slane %v2614, 4
      %v2617 = vrot.slane %v2188, 5
      %v2618 = vsel %vm869, %v2616, %v2617
      %v2619 = vrot.slane %v2581, 5
      %v2620 = vrot.slane %v2619, 4
      %v2621 = vrot.slane %v2190, 5
      %v2622 = vsel %vm869, %v2620, %v2621
      %v2623 = vrot.slane %v2621, 4
      %v2624 = vrot.slane %v2191, 5
      %v2625 = vsel %vm869, %v2623, %v2624
      %v2626 = vrot.slane %v2582, 5
      %v2627 = vrot.slane %v2626, 4
      %v2628 = vrot.slane %v2193, 5
      %v2629 = vsel %vm869, %v2627, %v2628
      %v2630 = vrot.slane %v2628, 4
      %v2631 = vrot.slane %v2194, 5
      %v2632 = vsel %vm869, %v2630, %v2631
      %v2633 = vrot.slane %v2583, 5
      %v2634 = vrot.slane %v2633, 4
      %v2635 = vrot.slane %v2196, 5
      %v2636 = vsel %vm869, %v2634, %v2635
      %v2637 = vrot.slane %v2635, 4
      %v2638 = vrot.slane %v2197, 5
      %v2639 = vsel %vm869, %v2637, %v2638
      %v2640 = vrot.slane %v2584, 5
      %v2641 = vrot.slane %v2640, 4
      %v2642 = vrot.slane %v2199, 5
      %v2643 = vsel %vm869, %v2641, %v2642
      %v2644 = vrot.slane %v2642, 4
      %v2645 = vrot.slane %v2200, 5
      %v2646 = vsel %vm869, %v2644, %v2645
      %v2647 = vrot.slane %v2585, 5
      %v2648 = vrot.slane %v2647, 4
      %v2649 = vrot.slane %v2202, 5
      %v2650 = vsel %vm869, %v2648, %v2649
      %v2651 = vrot.slane %v2649, 4
      %v2652 = vrot.slane %v2203, 5
      %v2653 = vsel %vm869, %v2651, %v2652
      %v2654 = vrot.slane %v2586, 5
      %v2655 = vrot.slane %v2654, 4
      %v2656 = vrot.slane %v2205, 5
      %v2657 = vsel %vm869, %v2655, %v2656
      %v2658 = vrot.slane %v2656, 4
      %v2659 = vrot.slane %v2206, 5
      %v2660 = vsel %vm869, %v2658, %v2659
      %v2661 = vrot.slane %v2587, 5
      %v2662 = vrot.slane %v2661, 4
      %v2663 = vrot.slane %v2208, 5
      %v2664 = vsel %vm869, %v2662, %v2663
      %v2665 = vrot.slane %v2663, 4
      %v2666 = vrot.slane %v2209, 5
      %v2667 = vsel %vm869, %v2665, %v2666
      %s2668 = scalar_lea.vmem %s1, 128
      %v2669 = vld [vmem:[%s2668] sm:$0xf]
      %v2670 = vld [vmem:[%s2668 + $0x4] sm:$0xf]
      %v2671 = vld [vmem:[%s2668 + $0x8] sm:$0xf]
      %v2672 = vld [vmem:[%s2668 + $0xc] sm:$0xf]
      %v2673 = vunpack.c.l.b16 %v2615
      %v2674 = vunpack.c.l.b16 %v2618
      %v2675 = vunpack.c.l.b16 %v2622
      %v2676 = vunpack.c.l.b16 %v2625
      %v2677 = vunpack.c.l.b16 %v2629
      %v2678 = vunpack.c.l.b16 %v2632
      %v2679 = vunpack.c.l.b16 %v2636
      %v2680 = vunpack.c.l.b16 %v2639
      %v2681 = vunpack.c.l.b16 %v2643
      %v2682 = vunpack.c.l.b16 %v2646
      %v2683 = vunpack.c.l.b16 %v2650
      %v2684 = vunpack.c.l.b16 %v2653
      %v2685 = vunpack.c.l.b16 %v2657
      %v2686 = vunpack.c.l.b16 %v2660
      %v2687 = vunpack.c.l.b16 %v2664
      %v2688 = vunpack.c.l.b16 %v2667
      %v2689 = vpack.c.b16 %v2674, %v2673
      %v2690 = vpack.c.b16 %v2676, %v2675
      %v2691 = vpack.c.b16 %v2678, %v2677
      %v2692 = vpack.c.b16 %v2680, %v2679
      %v2693 = vpack.c.b16 %v2682, %v2681
      %v2694 = vpack.c.b16 %v2684, %v2683
      %v2695 = vpack.c.b16 %v2686, %v2685
      %v2696 = vpack.c.b16 %v2688, %v2687
      %v2701 = vunpack.c.l.b16 %v2669
      %v2702 = vunpack.c.l.b16 %v2670
      %v2703 = vunpack.c.l.b16 %v2671
      %v2704 = vunpack.c.l.b16 %v2672
      %v2705 = vpack.c.b16 %v2702, %v2701
      %v2706 = vpack.c.b16 %v2704, %v2703
      %v2710 = vsel %vm548, %v2689, 0
      %v2713 = vsel %vm548, %v2690, 0
      %v2716 = vsel %vm548, %v2691, 0
      %v2719 = vsel %vm548, %v2692, 0
      %v2722 = vsel %vm548, %v2693, 0
      %v2725 = vsel %vm548, %v2694, 0
      %v2728 = vsel %vm548, %v2695, 0
      %v2731 = vsel %vm548, %v2696, 0
      %2733 = vmatprep.subr.bf16.mxu0 0
      %2734 = vmatpush1.bf16.msra.mxu0 0
      %2735 = vmatprep.subr.bf16.mxu0 0
      %2736 = vmatpush1.bf16.msra.mxu0 0
      %2737 = vmatprep.subr.bf16.mxu0 0
      %2738 = vmatpush1.bf16.msra.mxu0 0
      %2739 = vmatprep.subr.bf16.mxu0 0
      %2740 = vmatpush1.bf16.msra.mxu0 0
      %2741 = vmatprep.subr.bf16.mxu0 0
      %2742 = vmatpush1.bf16.msra.mxu0 0
      %2743 = vmatprep.subr.bf16.mxu0 0
      %2744 = vmatpush1.bf16.msra.mxu0 0
      %2745 = vmatprep.subr.bf16.mxu0 0
      %2746 = vmatpush1.bf16.msra.mxu0 %v2706
      %2747 = vmatprep.subr.bf16.mxu0 0
      %2748 = vmatpush1.bf16.msra.mxu0 %v2705
      %2749 = vmatprep.subr.bf16.mxu0 0
      %2750 = vmatpush2.bf16.msra.mxu0 0
      %2751 = vmatprep.subr.bf16.mxu0 0
      %2752 = vmatpush2.bf16.msra.mxu0 0
      %2753 = vmatprep.subr.bf16.mxu0 0
      %2754 = vmatpush2.bf16.msra.mxu0 0
      %2755 = vmatprep.subr.bf16.mxu0 0
      %2756 = vmatpush2.bf16.msra.mxu0 0
      %2757 = vmatprep.subr.bf16.mxu0 0
      %2758 = vmatpush2.bf16.msra.mxu0 0
      %2759 = vmatprep.subr.bf16.mxu0 0
      %2760 = vmatpush2.bf16.msra.mxu0 0
      %2761 = vmatprep.subr.bf16.mxu0 0
      %2762 = vmatpush2.bf16.msra.mxu0 0
      %2763 = vmatprep.subr.bf16.mxu0 0
      %2764 = vmatpush2.bf16.msra.mxu0 0
      %2765 = vmatprep.mubr.bf16.mxu0 0
      %2766 = vmatmul.mubr.bf16.gmra.mxu0 %v2710
      %v2767 = vpop.f32.mrf.mxu0
      %v2768 = vadd.f32 0.0, %v2767
      %v2769 = vpop.f32.mrf.mxu0
      %v2770 = vpop.f32.mrf.mxu0
      %v2771 = vadd.f32 0.0, %v2770
      %v2772 = vpop.f32.mrf.mxu0
      %2773 = vmatprep.mubr.bf16.mxu0 0
      %2774 = vmatmul.mubr.bf16.gmra.mxu0 %v2713
      %v2775 = vpop.f32.mrf.mxu0
      %v2776 = vadd.f32 0.0, %v2775
      %v2777 = vpop.f32.mrf.mxu0
      %v2778 = vpop.f32.mrf.mxu0
      %v2779 = vadd.f32 0.0, %v2778
      %v2780 = vpop.f32.mrf.mxu0
      %2781 = vmatprep.mubr.bf16.mxu0 0
      %2782 = vmatmul.mubr.bf16.gmra.mxu0 %v2716
      %v2783 = vpop.f32.mrf.mxu0
      %v2784 = vadd.f32 0.0, %v2783
      %v2785 = vpop.f32.mrf.mxu0
      %v2786 = vpop.f32.mrf.mxu0
      %v2787 = vadd.f32 0.0, %v2786
      %v2788 = vpop.f32.mrf.mxu0
      %2789 = vmatprep.mubr.bf16.mxu0 0
      %2790 = vmatmul.mubr.bf16.gmra.mxu0 %v2719
      %v2791 = vpop.f32.mrf.mxu0
      %v2792 = vadd.f32 0.0, %v2791
      %v2793 = vpop.f32.mrf.mxu0
      %v2794 = vpop.f32.mrf.mxu0
      %v2795 = vadd.f32 0.0, %v2794
      %v2796 = vpop.f32.mrf.mxu0
      %2797 = vmatprep.mubr.bf16.mxu0 0
      %2798 = vmatmul.mubr.bf16.gmra.mxu0 %v2722
      %v2799 = vpop.f32.mrf.mxu0
      %v2800 = vadd.f32 0.0, %v2799
      %v2801 = vpop.f32.mrf.mxu0
      %v2802 = vpop.f32.mrf.mxu0
      %v2803 = vadd.f32 0.0, %v2802
      %v2804 = vpop.f32.mrf.mxu0
      %2805 = vmatprep.mubr.bf16.mxu0 0
      %2806 = vmatmul.mubr.bf16.gmra.mxu0 %v2725
      %v2807 = vpop.f32.mrf.mxu0
      %v2808 = vadd.f32 0.0, %v2807
      %v2809 = vpop.f32.mrf.mxu0
      %v2810 = vpop.f32.mrf.mxu0
      %v2811 = vadd.f32 0.0, %v2810
      %v2812 = vpop.f32.mrf.mxu0
      %2813 = vmatprep.mubr.bf16.mxu0 0
      %2814 = vmatmul.mubr.bf16.gmra.mxu0 %v2728
      %v2815 = vpop.f32.mrf.mxu0
      %v2816 = vadd.f32 0.0, %v2815
      %v2817 = vpop.f32.mrf.mxu0
      %v2818 = vpop.f32.mrf.mxu0
      %v2819 = vadd.f32 0.0, %v2818
      %v2820 = vpop.f32.mrf.mxu0
      %2821 = vmatprep.mubr.bf16.mxu0 0
      %2822 = vmatmul.mubr.bf16.gmra.mxu0 %v2731
      %v2823 = vpop.f32.mrf.mxu0
      %v2824 = vadd.f32 0.0, %v2823
      %v2825 = vpop.f32.mrf.mxu0
      %v2826 = vpop.f32.mrf.mxu0
      %v2827 = vadd.f32 0.0, %v2826
      %v2828 = vpop.f32.mrf.mxu0
      %2829 = vdwg.mxu0
      %v2830 = vadd.f32 %v2564, %v2768
      %v2831 = vadd.f32 %v2565, %v2771
      %v2832 = vadd.f32 %v2566, %v2776
      %v2833 = vadd.f32 %v2567, %v2779
      %v2834 = vadd.f32 %v2568, %v2784
      %v2835 = vadd.f32 %v2569, %v2787
      %v2836 = vadd.f32 %v2570, %v2792
      %v2837 = vadd.f32 %v2571, %v2795
      %v2838 = vadd.f32 %v2572, %v2800
      %v2839 = vadd.f32 %v2573, %v2803
      %v2840 = vadd.f32 %v2574, %v2808
      %v2841 = vadd.f32 %v2575, %v2811
      %v2842 = vadd.f32 %v2576, %v2816
      %v2843 = vadd.f32 %v2577, %v2819
      %v2844 = vadd.f32 %v2578, %v2824
      %v2845 = vadd.f32 %v2579, %v2827
      %v2846 = vpack.c.bf16 %v2831, %v2830
      %v2847 = vpack.c.bf16 %v2833, %v2832
      %v2848 = vpack.c.bf16 %v2835, %v2834
      %v2849 = vpack.c.bf16 %v2837, %v2836
      %v2850 = vpack.c.bf16 %v2839, %v2838
      %v2851 = vpack.c.bf16 %v2841, %v2840
      %v2852 = vpack.c.bf16 %v2843, %v2842
      %v2853 = vpack.c.bf16 %v2845, %v2844
      %v2862 = vunpack.c.l.b16 %v2846
      %v2863 = vunpack.c.h.b16 %v2846
      %v2864 = vunpack.c.l.b16 %v2847
      %v2865 = vunpack.c.h.b16 %v2847
      %v2866 = vunpack.c.l.b16 %v2848
      %v2867 = vunpack.c.h.b16 %v2848
      %v2868 = vunpack.c.l.b16 %v2849
      %v2869 = vunpack.c.h.b16 %v2849
      %v2870 = vunpack.c.l.b16 %v2850
      %v2871 = vunpack.c.h.b16 %v2850
      %v2872 = vunpack.c.l.b16 %v2851
      %v2873 = vunpack.c.h.b16 %v2851
      %v2874 = vunpack.c.l.b16 %v2852
      %v2875 = vunpack.c.h.b16 %v2852
      %v2876 = vunpack.c.l.b16 %v2853
      %v2877 = vunpack.c.h.b16 %v2853
      %v2878 = vpack.c.b16 %v2862, %v2862
      %v2879 = vpack.c.b16 %v2863, %v2863
      %v2880 = vpack.c.b16 %v2864, %v2864
      %v2881 = vpack.c.b16 %v2865, %v2865
      %v2882 = vpack.c.b16 %v2866, %v2866
      %v2883 = vpack.c.b16 %v2867, %v2867
      %v2884 = vpack.c.b16 %v2868, %v2868
      %v2885 = vpack.c.b16 %v2869, %v2869
      %v2886 = vpack.c.b16 %v2870, %v2870
      %v2887 = vpack.c.b16 %v2871, %v2871
      %v2888 = vpack.c.b16 %v2872, %v2872
      %v2889 = vpack.c.b16 %v2873, %v2873
      %v2890 = vpack.c.b16 %v2874, %v2874
      %v2891 = vpack.c.b16 %v2875, %v2875
      %v2892 = vpack.c.b16 %v2876, %v2876
      %v2893 = vpack.c.b16 %v2877, %v2877
      %vm2910 = vcmask 257024
      %2911 = vst.msk [vmem:[%s271] sm:$0xf] %vm2910, %v2878
      %2912 = vst.msk [vmem:[%s271 + $0x4] sm:$0xf] %vm2910, %v2879
      %2913 = vst.msk [vmem:[%s271 + $0x8] sm:$0xf] %vm2910, %v2880
      %2914 = vst.msk [vmem:[%s271 + $0xc] sm:$0xf] %vm2910, %v2881
      %2915 = vst.msk [vmem:[%s271 + $0x10] sm:$0xf] %vm2910, %v2882
      %2916 = vst.msk [vmem:[%s271 + $0x14] sm:$0xf] %vm2910, %v2883
      %2917 = vst.msk [vmem:[%s271 + $0x18] sm:$0xf] %vm2910, %v2884
      %2918 = vst.msk [vmem:[%s271 + $0x1c] sm:$0xf] %vm2910, %v2885
      %2919 = vst.msk [vmem:[%s271 + $0x20] sm:$0xf] %vm2910, %v2886
      %2920 = vst.msk [vmem:[%s271 + $0x24] sm:$0xf] %vm2910, %v2887
      %2921 = vst.msk [vmem:[%s271 + $0x28] sm:$0xf] %vm2910, %v2888
      %2922 = vst.msk [vmem:[%s271 + $0x2c] sm:$0xf] %vm2910, %v2889
      %2923 = vst.msk [vmem:[%s271 + $0x30] sm:$0xf] %vm2910, %v2890
      %2924 = vst.msk [vmem:[%s271 + $0x34] sm:$0xf] %vm2910, %v2891
      %2925 = vst.msk [vmem:[%s271 + $0x38] sm:$0xf] %vm2910, %v2892
      %2926 = vst.msk [vmem:[%s271 + $0x3c] sm:$0xf] %vm2910, %v2893
      %v2927 = vsel %vm548, %v2830, 0.0
      %v2928 = vsel %vm548, %v2831, 0.0
      %v2929 = vadd.f32 %v2927, %v2928
      %v2930 = vsel %vm548, %v2832, 0.0
      %v2931 = vadd.f32 %v2929, %v2930
      %v2932 = vsel %vm548, %v2833, 0.0
      %v2933 = vadd.f32 %v2931, %v2932
      %v2934 = vsel %vm548, %v2834, 0.0
      %v2935 = vadd.f32 %v2933, %v2934
      %v2936 = vsel %vm548, %v2835, 0.0
      %v2937 = vadd.f32 %v2935, %v2936
      %v2938 = vsel %vm548, %v2836, 0.0
      %v2939 = vadd.f32 %v2937, %v2938
      %v2940 = vsel %vm548, %v2837, 0.0
      %v2941 = vadd.f32 %v2939, %v2940
      %v2942 = vsel %vm548, %v2838, 0.0
      %v2943 = vadd.f32 %v2941, %v2942
      %v2944 = vsel %vm548, %v2839, 0.0
      %v2945 = vadd.f32 %v2943, %v2944
      %v2946 = vsel %vm548, %v2840, 0.0
      %v2947 = vadd.f32 %v2945, %v2946
      %v2948 = vsel %vm548, %v2841, 0.0
      %v2949 = vadd.f32 %v2947, %v2948
      %v2950 = vsel %vm548, %v2842, 0.0
      %v2951 = vadd.f32 %v2949, %v2950
      %v2952 = vsel %vm548, %v2843, 0.0
      %v2953 = vadd.f32 %v2951, %v2952
      %v2954 = vsel %vm548, %v2844, 0.0
      %v2955 = vadd.f32 %v2953, %v2954
      %v2956 = vsel %vm548, %v2845, 0.0
      %v2957 = vadd.f32 %v2955, %v2956
      %v2958 = vrot.slane %v2957, 4
      %v2959 = vadd.f32 %v2957, %v2958
      %v2960 = vrot.slane %v2959, 2
      %v2961 = vadd.f32 %v2959, %v2960
      %v2962 = vrot.slane %v2961, 1
      %v2963 = vadd.f32 %v2961, %v2962
      %vm2964 = vcmask 253952
      %2965 = vst.msk [vmem:[%s280] sm:$0x1] %vm2964, %v2963
      %v2966 = vmul.f32 %v2830, %v2830
      %v2967 = vmul.f32 %v2831, %v2831
      %v2968 = vmul.f32 %v2832, %v2832
      %v2969 = vmul.f32 %v2833, %v2833
      %v2970 = vmul.f32 %v2834, %v2834
      %v2971 = vmul.f32 %v2835, %v2835
      %v2972 = vmul.f32 %v2836, %v2836
      %v2973 = vmul.f32 %v2837, %v2837
      %v2974 = vmul.f32 %v2838, %v2838
      %v2975 = vmul.f32 %v2839, %v2839
      %v2976 = vmul.f32 %v2840, %v2840
      %v2977 = vmul.f32 %v2841, %v2841
      %v2978 = vmul.f32 %v2842, %v2842
      %v2979 = vmul.f32 %v2843, %v2843
      %v2980 = vmul.f32 %v2844, %v2844
      %v2981 = vmul.f32 %v2845, %v2845
      %v2982 = vsel %vm548, %v2966, 0.0
      %v2983 = vsel %vm548, %v2967, 0.0
      %v2984 = vadd.f32 %v2982, %v2983
      %v2985 = vsel %vm548, %v2968, 0.0
      %v2986 = vadd.f32 %v2984, %v2985
      %v2987 = vsel %vm548, %v2969, 0.0
      %v2988 = vadd.f32 %v2986, %v2987
      %v2989 = vsel %vm548, %v2970, 0.0
      %v2990 = vadd.f32 %v2988, %v2989
      %v2991 = vsel %vm548, %v2971, 0.0
      %v2992 = vadd.f32 %v2990, %v2991
      %v2993 = vsel %vm548, %v2972, 0.0
      %v2994 = vadd.f32 %v2992, %v2993
      %v2995 = vsel %vm548, %v2973, 0.0
      %v2996 = vadd.f32 %v2994, %v2995
      %v2997 = vsel %vm548, %v2974, 0.0
      %v2998 = vadd.f32 %v2996, %v2997
      %v2999 = vsel %vm548, %v2975, 0.0
      %v3000 = vadd.f32 %v2998, %v2999
      %v3001 = vsel %vm548, %v2976, 0.0
      %v3002 = vadd.f32 %v3000, %v3001
      %v3003 = vsel %vm548, %v2977, 0.0
      %v3004 = vadd.f32 %v3002, %v3003
      %v3005 = vsel %vm548, %v2978, 0.0
      %v3006 = vadd.f32 %v3004, %v3005
      %v3007 = vsel %vm548, %v2979, 0.0
      %v3008 = vadd.f32 %v3006, %v3007
      %v3009 = vsel %vm548, %v2980, 0.0
      %v3010 = vadd.f32 %v3008, %v3009
      %v3011 = vsel %vm548, %v2981, 0.0
      %v3012 = vadd.f32 %v3010, %v3011
      %v3013 = vrot.slane %v3012, 4
      %v3014 = vadd.f32 %v3012, %v3013
      %v3015 = vrot.slane %v3014, 2
      %v3016 = vadd.f32 %v3014, %v3015
      %v3017 = vrot.slane %v3016, 1
      %v3018 = vadd.f32 %v3016, %v3017
      %3019 = vst.msk [vmem:[%s280 + $0x1] sm:$0x1] %vm2964, %v3018
      %s3020 = smul.u32 %s21, 2
      %s3021 = sadd.s32 %s3020, %s22
      %s3022 = smul.u32 16, %s3021
      %p3023 = scmp.lt.s32.totalorder %s3022, 63
      %s3024 = scalar_select %p3023, %s3022, 63
      %s3025 = smul.addr %s3024, 4
      %s3026 = scalar_lea.vmem %s4, %s3025
      %s3027 = smul.u32 %s21, 2
      %s3028 = sadd.s32 %s3027, %s22
      %p3029 = scmp.lt.s32.totalorder %s3028, 3
      %s3030 = scalar_select %p3029, %s3028, 3
      %s3031 = smul.addr %s3030, 2
      %s3032 = scalar_lea.vmem %s5, %s3031
      // Predicated region
      $region37: #{resnet_block_forward.3} parent=35 // pred_check
        %p3033 = pneg %p142
      $region38: #{resnet_block_forward.3} parent=35 // pred_check_branch
        %3035 = sbr.rel (%p3033) target = $region40
      $region39: #{resnet_block_forward.3} parent=35 // pred_region
        %s3036 = smul.u32 %s21, 2
        %s3037 = sadd.s32 %s3036, %s22
        %s3038 = smul.u32 16, %s3037
      $region40: #{resnet_block_forward.3} parent=35 // pred_fallthru
        _
      // Predicated region
      $region41: #{resnet_block_forward.3} parent=35 // pred_check
        %p3039 = pneg %p172
      $region42: #{resnet_block_forward.3} parent=35 // pred_check_branch
        %3041 = sbr.rel (%p3039) target = $region44
      $region43: #{resnet_block_forward.3} parent=35 // pred_region
        %s3042 = smul.u32 %s21, 2
        %s3043 = sadd.s32 %s3042, %s22
      $region44: #{resnet_block_forward.3} parent=35 // pred_fallthru
        _
    $region36: #{resnet_block_forward.3} parent=5 // pred_fallthru
      _
    %p3044 = scmp.le.s32.totalorder 2, %s12
    // Predicated region
    $region45: #{resnet_block_forward.3} parent=5 // pred_check
      %p3045 = pneg %p3044
    $region46: #{resnet_block_forward.3} parent=5 // pred_check_branch
      %3047 = sbr.rel (%p3045) target = $region48
    $region47: #{resnet_block_forward.3} parent=5 // pred_region
      %s3048 = ssub.s32 %s12, 2
      // Predicated region
      $region49: #{resnet_block_forward.3} parent=47 // pred_check
        %p3049 = pneg %p148
      $region50: #{resnet_block_forward.3} parent=47 // pred_check_branch
        %3051 = sbr.rel (%p3049) target = $region52
      $region51: #{resnet_block_forward.3} parent=47 // pred_region
        %s3052 = smul.u32 %s23, 2
        %s3053 = sadd.s32 %s3052, %s24
        %s3054 = smul.u32 16, %s3053
        %p3055 = scmp.lt.s32.totalorder %s3054, 63
        %s3056 = scalar_select %p3055, %s3054, 63
        %s3057 = smul.addr %s3056, 4
        %s3058 = scalar_lea.vmem %s4, %s3057
      $region52: #{resnet_block_forward.3} parent=47 // pred_fallthru
        _
      // Predicated region
      $region53: #{resnet_block_forward.3} parent=47 // pred_check
        %p3059 = pneg %p178
      $region54: #{resnet_block_forward.3} parent=47 // pred_check_branch
        %3061 = sbr.rel (%p3059) target = $region56
      $region55: #{resnet_block_forward.3} parent=47 // pred_region
        %s3062 = smul.u32 %s23, 2
        %s3063 = sadd.s32 %s3062, %s24
        %p3064 = scmp.lt.s32.totalorder %s3063, 3
        %s3065 = scalar_select %p3064, %s3063, 3
        %s3066 = smul.addr %s3065, 2
        %s3067 = scalar_lea.vmem %s5, %s3066
      $region56: #{resnet_block_forward.3} parent=47 // pred_fallthru
        _
    $region48: #{resnet_block_forward.3} parent=5 // pred_fallthru
      _
  $region6: #{resnet_block_forward.3} parent=0 // loop_footer
    %s16 = sadd.s32 1, %s12
  $region7: #{resnet_block_forward.3} parent=0 // loop_footer_branch
    %11 = sbr.rel target = $region3
  $region8: #{resnet_block_forward.3} parent=0 // loop_exit
    _

// kernel: resnet_block_forward.4
$region0: #{resnet_block_forward.4}
  #allocation0 [shape = 'u32[]', space=smem, size = 0x4, offset = 0x4, fixed_abs, tag = 'smem constant byte address 0x4 - core index']
  #allocation1 [shape = 'u32[144,128]{1,0:T(1,128)}', space=vmem, size = 0x12000, scoped, tag = 'internal scratch']
  %s0 = inlined_call_operand.vmem [shape: bf16[2,2,10,18,32], index: 0, kind: input, shape index: {}]
  %s1 = inlined_call_operand.vmem [shape: bf16[9,32,32], index: 1, kind: input, shape index: {}]
  %s2 = inlined_call_operand.vmem [shape: f32[1,32], index: 2, kind: input, shape index: {}]
  %s3 = inlined_call_operand.vmem [shape: f32[1,32], index: 3, kind: input, shape index: {}]
  %s4 = inlined_call_operand.vmem [shape: bf16[512,32], index: 4, kind: output, shape index: {0}]
  %s5 = inlined_call_operand.vmem [shape: f32[4,2,32], index: 5, kind: output, shape index: {1}]
  %6 = xla_tuple %s4, %s5
  %s7 = sld [smem:[#allocation0]]
  $region57: #{resnet_block_forward.4} parent=0
    _
  %s9 = ssub.s32 1, %s7
  %s10 = scalar_select 0, %s9, %s7
  loop: start=0, step=1, limit=6
  $region2: #{resnet_block_forward.4} parent=0 // loop_pre_header
    _
  $region3: #{resnet_block_forward.4} parent=0 // loop_header
    %s12 = sphi 0, %s16
    %p13 = scmp.ge.s32.totalorder %s12, 6
    %s19 = sphi 0, %s31
    %s20 = sphi 0, %s27
    %s21 = sphi 0, %s19
    %s22 = sphi 0, %s20
    %s23 = sphi 0, %s21
    %s24 = sphi 0, %s22
    %s36 = sphi 0, %s38
    %s39 = sphi 0, %s36
    %s40 = sphi 0, %s39
    %s56 = sphi 0, %s40
    %s60 = sphi 0, %s60
    %s62 = sphi 0, %s60
    %s63 = sphi 0, %s62
    %s77 = sphi 0, %s63
    %s81 = sphi 0, %s81
    %s83 = sphi 0, %s81
    %s84 = sphi 0, %s83
    %s98 = sphi 0, %s84
    %s102 = sphi 0, %s102
    %s104 = sphi 0, %s102
    %s105 = sphi 0, %s104
    %s119 = sphi 0, %s105
    %s129 = sphi 0, %s131
    %s132 = sphi 0, %s129
    %s133 = sphi 0, %s132
    %s149 = sphi 0, %s133
    %s159 = sphi 0, %s161
    %s162 = sphi 0, %s159
    %s163 = sphi 0, %s162
    %s179 = sphi 0, %s163
  $region4: #{resnet_block_forward.4} parent=0 // loop_header_branch
    %15 = sbr.rel (%p13) target = $region8
  $region5: #{resnet_block_forward.4} parent=0 // loop_body
    %s17 = ssub.s32 %s12, 1
    %s18 = ssub.s32 %s12, 2
    %s25 = sadd.s32 1, %s20
    %p26 = scmp.ge.s32.totalorder %s25, 2
    %s27 = scalar_select %p26, 0, %s25
    %s28 = sadd.s32 1, %s19
    %s29 = scalar_select %p26, %s28, %s19
    %p30 = scmp.ge.s32.totalorder %s29, 2
    %s31 = scalar_select %p30, 0, %s29
    %s32 = ssub.s32 %s19, %s31
    %s33 = ssub.s32 %s20, %s27
    %s34 = sor.u32 %s32, %s33
    %p35 = scmp.eq.s32.totalorder %s34, 0
    %s37 = sadd.s32 %s36, 1
    %s38 = scalar_select %p35, %s36, %s37
    %p41 = pneg %p35
    %p42 = scmp.eq.s32.totalorder %s12, 3
    %p43 = por %p41, %p42
    %p44 = scmp.ne.s32.totalorder %s36, %s39
    %p45 = scmp.eq.s32.totalorder %s12, 0
    %p46 = por %p44, %p45
    %p47 = scmp.ne.s32.totalorder %s36, %s39
    %p48 = scmp.eq.s32.totalorder %s17, 3
    %p49 = por %p47, %p48
    %p50 = scmp.ne.s32.totalorder %s39, %s40
    %p51 = scmp.eq.s32.totalorder %s17, 0
    %p52 = por %p50, %p51
    %p53 = scmp.ne.s32.totalorder %s39, %s40
    %p54 = scmp.eq.s32.totalorder %s18, 3
    %p55 = por %p53, %p54
    %p57 = scmp.ne.s32.totalorder %s40, %s56
    %p58 = scmp.eq.s32.totalorder %s18, 0
    %p59 = por %p57, %p58
    %s61 = sadd.s32 %s60, 1
    %p64 = scmp.eq.s32.totalorder %s12, 3
    %p65 = scmp.ne.s32.totalorder %s60, %s62
    %p66 = scmp.eq.s32.totalorder %s12, 0
    %p67 = por %p65, %p66
    %p68 = scmp.ne.s32.totalorder %s60, %s62
    %p69 = scmp.eq.s32.totalorder %s17, 3
    %p70 = por %p68, %p69
    %p71 = scmp.ne.s32.totalorder %s62, %s63
    %p72 = scmp.eq.s32.totalorder %s17, 0
    %p73 = por %p71, %p72
    %p74 = scmp.ne.s32.totalorder %s62, %s63
    %p75 = scmp.eq.s32.totalorder %s18, 3
    %p76 = por %p74, %p75
    %p78 = scmp.ne.s32.totalorder %s63, %s77
    %p79 = scmp.eq.s32.totalorder %s18, 0
    %p80 = por %p78, %p79
    %s82 = sadd.s32 %s81, 1
    %p85 = scmp.eq.s32.totalorder %s12, 3
    %p86 = scmp.ne.s32.totalorder %s81, %s83
    %p87 = scmp.eq.s32.totalorder %s12, 0
    %p88 = por %p86, %p87
    %p89 = scmp.ne.s32.totalorder %s81, %s83
    %p90 = scmp.eq.s32.totalorder %s17, 3
    %p91 = por %p89, %p90
    %p92 = scmp.ne.s32.totalorder %s83, %s84
    %p93 = scmp.eq.s32.totalorder %s17, 0
    %p94 = por %p92, %p93
    %p95 = scmp.ne.s32.totalorder %s83, %s84
    %p96 = scmp.eq.s32.totalorder %s18, 3
    %p97 = por %p95, %p96
    %p99 = scmp.ne.s32.totalorder %s84, %s98
    %p100 = scmp.eq.s32.totalorder %s18, 0
    %p101 = por %p99, %p100
    %s103 = sadd.s32 %s102, 1
    %p106 = scmp.eq.s32.totalorder %s12, 3
    %p107 = scmp.ne.s32.totalorder %s102, %s104
    %p108 = scmp.eq.s32.totalorder %s12, 0
    %p109 = por %p107, %p108
    %p110 = scmp.ne.s32.totalorder %s102, %s104
    %p111 = scmp.eq.s32.totalorder %s17, 3
    %p112 = por %p110, %p111
    %p113 = scmp.ne.s32.totalorder %s104, %s105
    %p114 = scmp.eq.s32.totalorder %s17, 0
    %p115 = por %p113, %p114
    %p116 = scmp.ne.s32.totalorder %s104, %s105
    %p117 = scmp.eq.s32.totalorder %s18, 3
    %p118 = por %p116, %p117
    %p120 = scmp.ne.s32.totalorder %s105, %s119
    %p121 = scmp.eq.s32.totalorder %s18, 0
    %p122 = por %p120, %p121
    %s123 = smul.u32 %s19, 2
    %s124 = sadd.s32 %s123, %s20
    %s125 = smul.u32 %s31, 2
    %s126 = sadd.s32 %s125, %s27
    %s127 = ssub.s32 %s124, %s126
    %p128 = scmp.eq.s32.totalorder %s127, 0
    %s130 = sadd.s32 %s129, 1
    %s131 = scalar_select %p128, %s129, %s130
    %p134 = pneg %p128
    %p135 = scmp.eq.s32.totalorder %s12, 3
    %p136 = por %p134, %p135
    %p137 = scmp.ne.s32.totalorder %s129, %s132
    %p138 = scmp.eq.s32.totalorder %s12, 0
    %p139 = por %p137, %p138
    %p140 = scmp.ne.s32.totalorder %s129, %s132
    %p141 = scmp.eq.s32.totalorder %s17, 3
    %p142 = por %p140, %p141
    %p143 = scmp.ne.s32.totalorder %s132, %s133
    %p144 = scmp.eq.s32.totalorder %s17, 0
    %p145 = por %p143, %p144
    %p146 = scmp.ne.s32.totalorder %s132, %s133
    %p147 = scmp.eq.s32.totalorder %s18, 3
    %p148 = por %p146, %p147
    %p150 = scmp.ne.s32.totalorder %s133, %s149
    %p151 = scmp.eq.s32.totalorder %s18, 0
    %p152 = por %p150, %p151
    %s153 = smul.u32 %s19, 2
    %s154 = sadd.s32 %s153, %s20
    %s155 = smul.u32 %s31, 2
    %s156 = sadd.s32 %s155, %s27
    %s157 = ssub.s32 %s154, %s156
    %p158 = scmp.eq.s32.totalorder %s157, 0
    %s160 = sadd.s32 %s159, 1
    %s161 = scalar_select %p158, %s159, %s160
    %p164 = pneg %p158
    %p165 = scmp.eq.s32.totalorder %s12, 3
    %p166 = por %p164, %p165
    %p167 = scmp.ne.s32.totalorder %s159, %s162
    %p168 = scmp.eq.s32.totalorder %s12, 0
    %p169 = por %p167, %p168
    %p170 = scmp.ne.s32.totalorder %s159, %s162
    %p171 = scmp.eq.s32.totalorder %s17, 3
    %p172 = por %p170, %p171
    %p173 = scmp.ne.s32.totalorder %s162, %s163
    %p174 = scmp.eq.s32.totalorder %s17, 0
    %p175 = por %p173, %p174
    %p176 = scmp.ne.s32.totalorder %s162, %s163
    %p177 = scmp.eq.s32.totalorder %s18, 3
    %p178 = por %p176, %p177
    %p180 = scmp.ne.s32.totalorder %s163, %s179
    %p181 = scmp.eq.s32.totalorder %s18, 0
    %p182 = por %p180, %p181
    %p183 = scmp.le.s32.totalorder 1, %s12
    %p184 = scmp.lt.s32.totalorder %s12, 5
    %p185 = pnand %p183, %p184
    %p186 = pneg %p185
    // Predicated region
    $region9: #{resnet_block_forward.4} parent=5 // pred_check
      _
    $region10: #{resnet_block_forward.4} parent=5 // pred_check_branch
      %188 = sbr.rel (%p185) target = $region12
    $region11: #{resnet_block_forward.4} parent=5 // pred_region
      %s189 = ssub.s32 %s12, 1
      // Predicated region
      $region13: #{resnet_block_forward.4} parent=11 // pred_check
        %p190 = pneg %p73
      $region14: #{resnet_block_forward.4} parent=11 // pred_check_branch
        %192 = sbr.rel (%p190) target = $region16
      $region15: #{resnet_block_forward.4} parent=11 // pred_region
        _
      $region16: #{resnet_block_forward.4} parent=11 // pred_fallthru
        _
      // Predicated region
      $region17: #{resnet_block_forward.4} parent=11 // pred_check
        %p193 = pneg %p94
      $region18: #{resnet_block_forward.4} parent=11 // pred_check_branch
        %195 = sbr.rel (%p193) target = $region20
      $region19: #{resnet_block_forward.4} parent=11 // pred_region
        _
      $region20: #{resnet_block_forward.4} parent=11 // pred_fallthru
        _
      // Predicated region
      $region21: #{resnet_block_forward.4} parent=11 // pred_check
        %p196 = pneg %p115
      $region22: #{resnet_block_forward.4} parent=11 // pred_check_branch
        %198 = sbr.rel (%p196) target = $region24
      $region23: #{resnet_block_forward.4} parent=11 // pred_region
        _
      $region24: #{resnet_block_forward.4} parent=11 // pred_fallthru
        _
    $region12: #{resnet_block_forward.4} parent=5 // pred_fallthru
      _
    %p199 = scmp.lt.s32.totalorder %s12, 4
    // Predicated region
    $region25: #{resnet_block_forward.4} parent=5 // pred_check
      %p200 = pneg %p199
    $region26: #{resnet_block_forward.4} parent=5 // pred_check_branch
      %202 = sbr.rel (%p200) target = $region28
    $region27: #{resnet_block_forward.4} parent=5 // pred_region
      // Predicated region
      $region29: #{resnet_block_forward.4} parent=27 // pred_check
        %p203 = pneg %p46
      $region30: #{resnet_block_forward.4} parent=27 // pred_check_branch
        %205 = sbr.rel (%p203) target = $region32
      $region31: #{resnet_block_forward.4} parent=27 // pred_region
        %p206 = scmp.lt.s32.totalorder %s19, 1
        %s207 = scalar_select %p206, %s19, 1
        %p208 = scmp.lt.s32.totalorder %s20, 1
        %s209 = scalar_select %p208, %s20, 1
        %s210 = smul.addr %s209, 30
        %s211 = smul.addr %s207, 60
        %s212 = sadd.s32 %s210, %s211
        %s213 = smul.addr %s212, 4
        %s214 = scalar_lea.vmem %s0, %s213
      $region32: #{resnet_block_forward.4} parent=27 // pred_fallthru
        _
    $region28: #{resnet_block_forward.4} parent=5 // pred_fallthru
      _
    %p215 = scmp.le.s32.totalorder 1, %s12
    %p216 = scmp.lt.s32.totalorder %s12, 5
    %p217 = pnand %p215, %p216
    %p218 = pneg %p217
    // Predicated region
    $region33: #{resnet_block_forward.4} parent=5 // pred_check
      _
    $region34: #{resnet_block_forward.4} parent=5 // pred_check_branch
      %220 = sbr.rel (%p217) target = $region36
    $region35: #{resnet_block_forward.4} parent=5 // pred_region
      %s221 = ssub.s32 %s12, 1
      %p222 = scmp.lt.s32.totalorder %s21, 1
      %s223 = scalar_select %p222, %s21, 1
      %p224 = scmp.lt.s32.totalorder %s22, 1
      %s225 = scalar_select %p224, %s22, 1
      %s226 = smul.addr %s225, 30
      %s227 = smul.addr %s223, 60
      %s228 = sadd.s32 %s226, %s227
      %s229 = smul.addr %s228, 4
      %s230 = scalar_lea.vmem %s0, %s229
      %p231 = pneg %p52
      %p232 = pneg %p49
      %p233 = pneg %p73
      %p234 = pneg %p70
      %p235 = pneg %p94
      %p236 = pneg %p91
      %p237 = pneg %p115
      %p238 = pneg %p112
      %p239 = pneg %p145
      %p240 = pneg %p142
      %s241 = smul.u32 %s21, 2
      %s242 = sadd.s32 %s241, %s22
      %s243 = smul.u32 16, %s242
      %p244 = scmp.lt.s32.totalorder %s243, 63
      %s245 = scalar_select %p244, %s243, 63
      %s246 = smul.addr %s245, 4
      %s247 = scalar_lea.vmem %s4, %s246
      %p248 = pneg %p175
      %p249 = pneg %p172
      %s250 = smul.u32 %s21, 2
      %s251 = sadd.s32 %s250, %s22
      %p252 = scmp.lt.s32.totalorder %s251, 3
      %s253 = scalar_select %p252, %s251, 3
      %s254 = smul.addr %s253, 2
      %s255 = scalar_lea.vmem %s5, %s254
      %p256 = scmp.lt.s32.totalorder %s21, 1
      %s257 = scalar_select %p256, %s21, 1
      %p258 = scmp.lt.s32.totalorder %s22, 1
      %s259 = scalar_select %p258, %s22, 1
      %s260 = smul.addr %s259, 30
      %s261 = smul.addr %s257, 60
      %s262 = sadd.s32 %s260, %s261
      %s263 = smul.addr %s262, 4
      %s264 = scalar_lea.vmem %s0, %s263
      %s265 = smul.u32 %s21, 2
      %s266 = sadd.s32 %s265, %s22
      %s267 = smul.u32 16, %s266
      %p268 = scmp.lt.s32.totalorder %s267, 63
      %s269 = scalar_select %p268, %s267, 63
      %s270 = smul.addr %s269, 4
      %s271 = scalar_lea.vmem %s4, %s270
      %s272 = smul.u32 %s21, 2
      %s273 = sadd.s32 %s272, %s22
      %s274 = smul.u32 16, %s273
      %s275 = smul.u32 %s21, 2
      %s276 = sadd.s32 %s275, %s22
      %p277 = scmp.lt.s32.totalorder %s276, 3
      %s278 = scalar_select %p277, %s276, 3
      %s279 = smul.addr %s278, 2
      %s280 = scalar_lea.vmem %s5, %s279
      %s281 = smul.u32 %s21, 2
      %s282 = sadd.s32 %s281, %s22
      %v284 = vld [vmem:[%s2] sm:$0x1]
      %v285 = vld [vmem:[%s3] sm:$0x1]
      %v286 = vld [vmem:[%s264] sm:$0xf]
      %v287 = vld [vmem:[%s264 + $0x4] sm:$0xf]
      %v288 = vld [vmem:[%s264 + $0xc] sm:$0xf]
      %v289 = vld [vmem:[%s264 + $0x10] sm:$0xf]
      %v290 = vld [vmem:[%s264 + $0x18] sm:$0xf]
      %v291 = vld [vmem:[%s264 + $0x1c] sm:$0xf]
      %v292 = vld [vmem:[%s264 + $0x24] sm:$0xf]
      %v293 = vld [vmem:[%s264 + $0x28] sm:$0xf]
      %v294 = vld [vmem:[%s264 + $0x30] sm:$0xf]
      %v295 = vld [vmem:[%s264 + $0x34] sm:$0xf]
      %v296 = vld [vmem:[%s264 + $0x3c] sm:$0xf]
      %v297 = vld [vmem:[%s264 + $0x40] sm:$0xf]
      %v298 = vld [vmem:[%s264 + $0x48] sm:$0xf]
      %v299 = vld [vmem:[%s264 + $0x4c] sm:$0xf]
      %v300 = vld [vmem:[%s264 + $0x54] sm:$0xf]
      %v301 = vld [vmem:[%s264 + $0x58] sm:$0xf]
      %v302 = vunpack.c.l.bf16 %v286
      %v303 = vunpack.c.l.bf16 %v287
      %v304 = vunpack.c.l.bf16 %v288
      %v305 = vunpack.c.l.bf16 %v289
      %v306 = vunpack.c.l.bf16 %v290
      %v307 = vunpack.c.l.bf16 %v291
      %v308 = vunpack.c.l.bf16 %v292
      %v309 = vunpack.c.l.bf16 %v293
      %v310 = vunpack.c.l.bf16 %v294
      %v311 = vunpack.c.l.bf16 %v295
      %v312 = vunpack.c.l.bf16 %v296
      %v313 = vunpack.c.l.bf16 %v297
      %v314 = vunpack.c.l.bf16 %v298
      %v315 = vunpack.c.l.bf16 %v299
      %v316 = vunpack.c.l.bf16 %v300
      %v317 = vunpack.c.l.bf16 %v301
      %v319 = vlaneseq
      %v320 = vshrl.u32 %v319, 7
      %v321 = vsub.s32 0, %v320
      %v322 = vrot.slane %v284, %v321
      %v324 = vmul.f32 %v302, %v322
      %v325 = vmul.f32 %v303, %v322
      %v326 = vmul.f32 %v304, %v322
      %v327 = vmul.f32 %v305, %v322
      %v328 = vmul.f32 %v306, %v322
      %v329 = vmul.f32 %v307, %v322
      %v330 = vmul.f32 %v308, %v322
      %v331 = vmul.f32 %v309, %v322
      %v332 = vmul.f32 %v310, %v322
      %v333 = vmul.f32 %v311, %v322
      %v334 = vmul.f32 %v312, %v322
      %v335 = vmul.f32 %v313, %v322
      %v336 = vmul.f32 %v314, %v322
      %v337 = vmul.f32 %v315, %v322
      %v338 = vmul.f32 %v316, %v322
      %v339 = vmul.f32 %v317, %v322
      %v341 = vlaneseq
      %v342 = vshrl.u32 %v341, 7
      %v343 = vsub.s32 0, %v342
      %v344 = vrot.slane %v285, %v343
      %v346 = vadd.f32 %v324, %v344
      %v347 = vadd.f32 %v325, %v344
      %v348 = vadd.f32 %v326, %v344
      %v349 = vadd.f32 %v327, %v344
      %v350 = vadd.f32 %v328, %v344
      %v351 = vadd.f32 %v329, %v344
      %v352 = vadd.f32 %v330, %v344
      %v353 = vadd.f32 %v331, %v344
      %v354 = vadd.f32 %v332, %v344
      %v355 = vadd.f32 %v333, %v344
      %v356 = vadd.f32 %v334, %v344
      %v357 = vadd.f32 %v335, %v344
      %v358 = vadd.f32 %v336, %v344
      %v359 = vadd.f32 %v337, %v344
      %v360 = vadd.f32 %v338, %v344
      %v361 = vadd.f32 %v339, %v344
      %v362 = vmax.f32 %v346, 0.0
      %v363 = vmax.f32 %v347, 0.0
      %v364 = vmax.f32 %v348, 0.0
      %v365 = vmax.f32 %v349, 0.0
      %v366 = vmax.f32 %v350, 0.0
      %v367 = vmax.f32 %v351, 0.0
      %v368 = vmax.f32 %v352, 0.0
      %v369 = vmax.f32 %v353, 0.0
      %v370 = vmax.f32 %v354, 0.0
      %v371 = vmax.f32 %v355, 0.0
      %v372 = vmax.f32 %v356, 0.0
      %v373 = vmax.f32 %v357, 0.0
      %v374 = vmax.f32 %v358, 0.0
      %v375 = vmax.f32 %v359, 0.0
      %v376 = vmax.f32 %v360, 0.0
      %v377 = vmax.f32 %v361, 0.0
      %v378 = vpack.c.bf16 %v363, %v362
      %v379 = vpack.c.bf16 %v365, %v364
      %v380 = vpack.c.bf16 %v367, %v366
      %v381 = vpack.c.bf16 %v369, %v368
      %v382 = vpack.c.bf16 %v371, %v370
      %v383 = vpack.c.bf16 %v373, %v372
      %v384 = vpack.c.bf16 %v375, %v374
      %v385 = vpack.c.bf16 %v377, %v376
      %v386 = vld [vmem:[%s1] sm:$0xf]
      %v387 = vld [vmem:[%s1 + $0x4] sm:$0xf]
      %v388 = vld [vmem:[%s1 + $0x8] sm:$0xf]
      %v389 = vld [vmem:[%s1 + $0xc] sm:$0xf]
      %v390 = vld [vmem:[%s264 + $0x8] sm:$0x1]
      %v391 = vld [vmem:[%s264 + $0x14] sm:$0x1]
      %v392 = vld [vmem:[%s264 + $0x20] sm:$0x1]
      %v393 = vld [vmem:[%s264 + $0x2c] sm:$0x1]
      %v394 = vld [vmem:[%s264 + $0x38] sm:$0x1]
      %v395 = vld [vmem:[%s264 + $0x44] sm:$0x1]
      %v396 = vld [vmem:[%s264 + $0x50] sm:$0x1]
      %v397 = vld [vmem:[%s264 + $0x5c] sm:$0x1]
      %vm398 = vsmask.f32 3328
      %vm399 = vsmask.f32 7440
      %vm400 = vmor %vm398, %vm399
      %v402 = vshrl.u32 %v286, 16
      %v404 = vrot.slane %v402, 4
      %v405 = vshll.u32 %v286, 16
      %v407 = vrot.slane %v405, 5
      %v408 = vor.u32 %v404, %v407
      %v409 = vrot.slane %v408, 4
      %v411 = vshll.u32 %v287, 16
      %v413 = vrot.slane %v411, 5
      %v414 = vsel %vm400, %v409, %v413
      %v415 = vshrl.u32 %v287, 16
      %v417 = vrot.slane %v415, 4
      %v418 = vor.u32 %v417, %v413
      %v419 = vrot.slane %v418, 4
      %v421 = vshll.u32 %v390, 16
      %v423 = vrot.slane %v421, 5
      %v424 = vsel %vm400, %v419, %v423
      %v426 = vshrl.u32 %v288, 16
      %v428 = vrot.slane %v426, 4
      %v429 = vshll.u32 %v288, 16
      %v431 = vrot.slane %v429, 5
      %v432 = vor.u32 %v428, %v431
      %v433 = vrot.slane %v432, 4
      %v435 = vshll.u32 %v289, 16
      %v437 = vrot.slane %v435, 5
      %v438 = vsel %vm400, %v433, %v437
      %v439 = vshrl.u32 %v289, 16
      %v441 = vrot.slane %v439, 4
      %v442 = vor.u32 %v441, %v437
      %v443 = vrot.slane %v442, 4
      %v445 = vshll.u32 %v391, 16
      %v447 = vrot.slane %v445, 5
      %v448 = vsel %vm400, %v443, %v447
      %v450 = vshrl.u32 %v290, 16
      %v452 = vrot.slane %v450, 4
      %v453 = vshll.u32 %v290, 16
      %v455 = vrot.slane %v453, 5
      %v456 = vor.u32 %v452, %v455
      %v457 = vrot.slane %v456, 4
      %v459 = vshll.u32 %v291, 16
      %v461 = vrot.slane %v459, 5
      %v462 = vsel %vm400, %v457, %v461
      %v463 = vshrl.u32 %v291, 16
      %v465 = vrot.slane %v463, 4
      %v466 = vor.u32 %v465, %v461
      %v467 = vrot.slane %v466, 4
      %v469 = vshll.u32 %v392, 16
      %v471 = vrot.slane %v469, 5
      %v472 = vsel %vm400, %v467, %v471
      %v474 = vshrl.u32 %v292, 16
      %v476 = vrot.slane %v474, 4
      %v477 = vshll.u32 %v292, 16
      %v479 = vrot.slane %v477, 5
      %v480 = vor.u32 %v476, %v479
      %v481 = vrot.slane %v480, 4
      %v483 = vshll.u32 %v293, 16
      %v485 = vrot.slane %v483, 5
      %v486 = vsel %vm400, %v481, %v485
      %v487 = vshrl.u32 %v293, 16
      %v489 = vrot.slane %v487, 4
      %v490 = vor.u32 %v489, %v485
      %v491 = vrot.slane %v490, 4
      %v493 = vshll.u32 %v393, 16
      %v495 = vrot.slane %v493, 5
      %v496 = vsel %vm400, %v491, %v495
      %v498 = vshrl.u32 %v294, 16
      %v500 = vrot.slane %v498, 4
      %v501 = vshll.u32 %v294, 16
      %v503 = vrot.slane %v501, 5
      %v504 = vor.u32 %v500, %v503
      %v505 = vrot.slane %v504, 4
      %v507 = vshll.u32 %v295, 16
      %v509 = vrot.slane %v507, 5
      %v510 = vsel %vm400, %v505, %v509
      %v511 = vshrl.u32 %v295, 16
      %v513 = vrot.slane %v511, 4
      %v514 = vor.u32 %v513, %v509
      %v515 = vrot.slane %v514, 4
      %v517 = vshll.u32 %v394, 16
      %v519 = vrot.slane %v517, 5
      %v520 = vsel %vm400, %v515, %v519
      %v522 = vshrl.u32 %v296, 16
      %v524 = vrot.slane %v522, 4
      %v525 = vshll.u32 %v296, 16
      %v527 = vrot.slane %v525, 5
      %v528 = vor.u32 %v524, %v527
      %v529 = vrot.slane %v528, 4
      %v531 = vshll.u32 %v297, 16
      %v533 = vrot.slane %v531, 5
      %v534 = vsel %vm400, %v529, %v533
      %v535 = vshrl.u32 %v297, 16
      %v537 = vrot.slane %v535, 4
      %v538 = vor.u32 %v537, %v533
      %v539 = vrot.slane %v538, 4
      %v541 = vshll.u32 %v395, 16
      %v543 = vrot.slane %v541, 5
      %v544 = vsel %vm400, %v539, %v543
      %v546 = vshrl.u32 %v298, 16
      %v548 = vrot.slane %v546, 4
      %v549 = vshll.u32 %v298, 16
      %v551 = vrot.slane %v549, 5
      %v552 = vor.u32 %v548, %v551
      %v553 = vrot.slane %v552, 4
      %v555 = vshll.u32 %v299, 16
      %v557 = vrot.slane %v555, 5
      %v558 = vsel %vm400, %v553, %v557
      %v559 = vshrl.u32 %v299, 16
      %v561 = vrot.slane %v559, 4
      %v562 = vor.u32 %v561, %v557
      %v563 = vrot.slane %v562, 4
      %v565 = vshll.u32 %v396, 16
      %v567 = vrot.slane %v565, 5
      %v568 = vsel %vm400, %v563, %v567
      %v570 = vshrl.u32 %v300, 16
      %v572 = vrot.slane %v570, 4
      %v573 = vshll.u32 %v300, 16
      %v575 = vrot.slane %v573, 5
      %v576 = vor.u32 %v572, %v575
      %v577 = vrot.slane %v576, 4
      %v579 = vshll.u32 %v301, 16
      %v581 = vrot.slane %v579, 5
      %v582 = vsel %vm400, %v577, %v581
      %v583 = vshrl.u32 %v301, 16
      %v585 = vrot.slane %v583, 4
      %v586 = vor.u32 %v585, %v581
      %v587 = vrot.slane %v586, 4
      %v589 = vshll.u32 %v397, 16
      %v591 = vrot.slane %v589, 5
      %v592 = vsel %vm400, %v587, %v591
      %v609 = vunpack.c.l.bf16 %v414
      %v610 = vunpack.c.l.bf16 %v424
      %v611 = vunpack.c.l.bf16 %v438
      %v612 = vunpack.c.l.bf16 %v448
      %v613 = vunpack.c.l.bf16 %v462
      %v614 = vunpack.c.l.bf16 %v472
      %v615 = vunpack.c.l.bf16 %v486
      %v616 = vunpack.c.l.bf16 %v496
      %v617 = vunpack.c.l.bf16 %v510
      %v618 = vunpack.c.l.bf16 %v520
      %v619 = vunpack.c.l.bf16 %v534
      %v620 = vunpack.c.l.bf16 %v544
      %v621 = vunpack.c.l.bf16 %v558
      %v622 = vunpack.c.l.bf16 %v568
      %v623 = vunpack.c.l.bf16 %v582
      %v624 = vunpack.c.l.bf16 %v592
      %v625 = vmul.f32 %v609, %v322
      %v626 = vmul.f32 %v610, %v322
      %v627 = vmul.f32 %v611, %v322
      %v628 = vmul.f32 %v612, %v322
      %v629 = vmul.f32 %v613, %v322
      %v630 = vmul.f32 %v614, %v322
      %v631 = vmul.f32 %v615, %v322
      %v632 = vmul.f32 %v616, %v322
      %v633 = vmul.f32 %v617, %v322
      %v634 = vmul.f32 %v618, %v322
      %v635 = vmul.f32 %v619, %v322
      %v636 = vmul.f32 %v620, %v322
      %v637 = vmul.f32 %v621, %v322
      %v638 = vmul.f32 %v622, %v322
      %v639 = vmul.f32 %v623, %v322
      %v640 = vmul.f32 %v624, %v322
      %v641 = vadd.f32 %v625, %v344
      %v642 = vadd.f32 %v626, %v344
      %v643 = vadd.f32 %v627, %v344
      %v644 = vadd.f32 %v628, %v344
      %v645 = vadd.f32 %v629, %v344
      %v646 = vadd.f32 %v630, %v344
      %v647 = vadd.f32 %v631, %v344
      %v648 = vadd.f32 %v632, %v344
      %v649 = vadd.f32 %v633, %v344
      %v650 = vadd.f32 %v634, %v344
      %v651 = vadd.f32 %v635, %v344
      %v652 = vadd.f32 %v636, %v344
      %v653 = vadd.f32 %v637, %v344
      %v654 = vadd.f32 %v638, %v344
      %v655 = vadd.f32 %v639, %v344
      %v656 = vadd.f32 %v640, %v344
      %v657 = vmax.f32 %v641, 0.0
      %v658 = vmax.f32 %v642, 0.0
      %v659 = vmax.f32 %v643, 0.0
      %v660 = vmax.f32 %v644, 0.0
      %v661 = vmax.f32 %v645, 0.0
      %v662 = vmax.f32 %v646, 0.0
      %v663 = vmax.f32 %v647, 0.0
      %v664 = vmax.f32 %v648, 0.0
      %v665 = vmax.f32 %v649, 0.0
      %v666 = vmax.f32 %v650, 0.0
      %v667 = vmax.f32 %v651, 0.0
      %v668 = vmax.f32 %v652, 0.0
      %v669 = vmax.f32 %v653, 0.0
      %v670 = vmax.f32 %v654, 0.0
      %v671 = vmax.f32 %v655, 0.0
      %v672 = vmax.f32 %v656, 0.0
      %v673 = vpack.c.bf16 %v658, %v657
      %v674 = vpack.c.bf16 %v660, %v659
      %v675 = vpack.c.bf16 %v662, %v661
      %v676 = vpack.c.bf16 %v664, %v663
      %v677 = vpack.c.bf16 %v666, %v665
      %v678 = vpack.c.bf16 %v668, %v667
      %v679 = vpack.c.bf16 %v670, %v669
      %v680 = vpack.c.bf16 %v672, %v671
      %s681 = scalar_lea.vmem %s1, 16
      %v682 = vld [vmem:[%s681] sm:$0xf]
      %v683 = vld [vmem:[%s681 + $0x4] sm:$0xf]
      %v684 = vld [vmem:[%s681 + $0x8] sm:$0xf]
      %v685 = vld [vmem:[%s681 + $0xc] sm:$0xf]
      %v690 = vunpack.c.l.b16 %v682
      %v691 = vunpack.c.l.b16 %v683
      %v692 = vunpack.c.l.b16 %v684
      %v693 = vunpack.c.l.b16 %v685
      %v694 = vpack.c.b16 %v691, %v690
      %v695 = vpack.c.b16 %v693, %v692
      %vm698 = vcmask 261120
      %v700 = vsel %vm698, %v673, 0
      %v703 = vsel %vm698, %v674, 0
      %v706 = vsel %vm698, %v675, 0
      %v709 = vsel %vm698, %v676, 0
      %v712 = vsel %vm698, %v677, 0
      %v715 = vsel %vm698, %v678, 0
      %v718 = vsel %vm698, %v679, 0
      %v721 = vsel %vm698, %v680, 0
      %723 = vmatprep.subr.bf16.mxu0 0
      %724 = vmatpush1.bf16.msra.mxu0 0
      %725 = vmatprep.subr.bf16.mxu0 0
      %726 = vmatpush1.bf16.msra.mxu0 0
      %727 = vmatprep.subr.bf16.mxu0 0
      %728 = vmatpush1.bf16.msra.mxu0 0
      %729 = vmatprep.subr.bf16.mxu0 0
      %730 = vmatpush1.bf16.msra.mxu0 0
      %731 = vmatprep.subr.bf16.mxu0 0
      %732 = vmatpush1.bf16.msra.mxu0 0
      %733 = vmatprep.subr.bf16.mxu0 0
      %734 = vmatpush1.bf16.msra.mxu0 0
      %735 = vmatprep.subr.bf16.mxu0 0
      %736 = vmatpush1.bf16.msra.mxu0 %v695
      %737 = vmatprep.subr.bf16.mxu0 0
      %738 = vmatpush1.bf16.msra.mxu0 %v694
      %739 = vmatprep.subr.bf16.mxu0 0
      %740 = vmatpush2.bf16.msra.mxu0 0
      %741 = vmatprep.subr.bf16.mxu0 0
      %742 = vmatpush2.bf16.msra.mxu0 0
      %743 = vmatprep.subr.bf16.mxu0 0
      %744 = vmatpush2.bf16.msra.mxu0 0
      %745 = vmatprep.subr.bf16.mxu0 0
      %746 = vmatpush2.bf16.msra.mxu0 0
      %747 = vmatprep.subr.bf16.mxu0 0
      %748 = vmatpush2.bf16.msra.mxu0 0
      %749 = vmatprep.subr.bf16.mxu0 0
      %750 = vmatpush2.bf16.msra.mxu0 0
      %751 = vmatprep.subr.bf16.mxu0 0
      %752 = vmatpush2.bf16.msra.mxu0 0
      %753 = vmatprep.subr.bf16.mxu0 0
      %754 = vmatpush2.bf16.msra.mxu0 0
      %755 = vmatprep.mubr.bf16.mxu0 0
      %756 = vmatmul.mubr.bf16.gmra.mxu0 %v700
      %v757 = vpop.f32.mrf.mxu0
      %v758 = vadd.f32 0.0, %v757
      %v759 = vpop.f32.mrf.mxu0
      %v760 = vpop.f32.mrf.mxu0
      %v761 = vadd.f32 0.0, %v760
      %v762 = vpop.f32.mrf.mxu0
      %763 = vmatprep.mubr.bf16.mxu0 0
      %764 = vmatmul.mubr.bf16.gmra.mxu0 %v703
      %v765 = vpop.f32.mrf.mxu0
      %v766 = vadd.f32 0.0, %v765
      %v767 = vpop.f32.mrf.mxu0
      %v768 = vpop.f32.mrf.mxu0
      %v769 = vadd.f32 0.0, %v768
      %v770 = vpop.f32.mrf.mxu0
      %771 = vmatprep.mubr.bf16.mxu0 0
      %772 = vmatmul.mubr.bf16.gmra.mxu0 %v706
      %v773 = vpop.f32.mrf.mxu0
      %v774 = vadd.f32 0.0, %v773
      %v775 = vpop.f32.mrf.mxu0
      %v776 = vpop.f32.mrf.mxu0
      %v777 = vadd.f32 0.0, %v776
      %v778 = vpop.f32.mrf.mxu0
      %779 = vmatprep.mubr.bf16.mxu0 0
      %780 = vmatmul.mubr.bf16.gmra.mxu0 %v709
      %v781 = vpop.f32.mrf.mxu0
      %v782 = vadd.f32 0.0, %v781
      %v783 = vpop.f32.mrf.mxu0
      %v784 = vpop.f32.mrf.mxu0
      %v785 = vadd.f32 0.0, %v784
      %v786 = vpop.f32.mrf.mxu0
      %787 = vmatprep.mubr.bf16.mxu0 0
      %788 = vmatmul.mubr.bf16.gmra.mxu0 %v712
      %v789 = vpop.f32.mrf.mxu0
      %v790 = vadd.f32 0.0, %v789
      %v791 = vpop.f32.mrf.mxu0
      %v792 = vpop.f32.mrf.mxu0
      %v793 = vadd.f32 0.0, %v792
      %v794 = vpop.f32.mrf.mxu0
      %795 = vmatprep.mubr.bf16.mxu0 0
      %796 = vmatmul.mubr.bf16.gmra.mxu0 %v715
      %v797 = vpop.f32.mrf.mxu0
      %v798 = vadd.f32 0.0, %v797
      %v799 = vpop.f32.mrf.mxu0
      %v800 = vpop.f32.mrf.mxu0
      %v801 = vadd.f32 0.0, %v800
      %v802 = vpop.f32.mrf.mxu0
      %803 = vmatprep.mubr.bf16.mxu0 0
      %804 = vmatmul.mubr.bf16.gmra.mxu0 %v718
      %v805 = vpop.f32.mrf.mxu0
      %v806 = vadd.f32 0.0, %v805
      %v807 = vpop.f32.mrf.mxu0
      %v808 = vpop.f32.mrf.mxu0
      %v809 = vadd.f32 0.0, %v808
      %v810 = vpop.f32.mrf.mxu0
      %811 = vmatprep.mubr.bf16.mxu0 0
      %812 = vmatmul.mubr.bf16.gmra.mxu0 %v721
      %v813 = vpop.f32.mrf.mxu0
      %v814 = vadd.f32 0.0, %v813
      %v815 = vpop.f32.mrf.mxu0
      %v816 = vpop.f32.mrf.mxu0
      %v817 = vadd.f32 0.0, %v816
      %v818 = vpop.f32.mrf.mxu0
      %819 = vdwg.mxu0
      %v824 = vunpack.c.l.b16 %v386
      %v825 = vunpack.c.l.b16 %v387
      %v826 = vunpack.c.l.b16 %v388
      %v827 = vunpack.c.l.b16 %v389
      %v828 = vpack.c.b16 %v825, %v824
      %v829 = vpack.c.b16 %v827, %v826
      %v833 = vsel %vm698, %v378, 0
      %v836 = vsel %vm698, %v379, 0
      %v839 = vsel %vm698, %v380, 0
      %v842 = vsel %vm698, %v381, 0
      %v845 = vsel %vm698, %v382, 0
      %v848 = vsel %vm698, %v383, 0
      %v851 = vsel %vm698, %v384, 0
      %v854 = vsel %vm698, %v385, 0
      %856 = vmatprep.subr.bf16.mxu0 0
      %857 = vmatpush1.bf16.msra.mxu0 0
      %858 = vmatprep.subr.bf16.mxu0 0
      %859 = vmatpush1.bf16.msra.mxu0 0
      %860 = vmatprep.subr.bf16.mxu0 0
      %861 = vmatpush1.bf16.msra.mxu0 0
      %862 = vmatprep.subr.bf16.mxu0 0
      %863 = vmatpush1.bf16.msra.mxu0 0
      %864 = vmatprep.subr.bf16.mxu0 0
      %865 = vmatpush1.bf16.msra.mxu0 0
      %866 = vmatprep.subr.bf16.mxu0 0
      %867 = vmatpush1.bf16.msra.mxu0 0
      %868 = vmatprep.subr.bf16.mxu0 0
      %869 = vmatpush1.bf16.msra.mxu0 %v829
      %870 = vmatprep.subr.bf16.mxu0 0
      %871 = vmatpush1.bf16.msra.mxu0 %v828
      %872 = vmatprep.subr.bf16.mxu0 0
      %873 = vmatpush2.bf16.msra.mxu0 0
      %874 = vmatprep.subr.bf16.mxu0 0
      %875 = vmatpush2.bf16.msra.mxu0 0
      %876 = vmatprep.subr.bf16.mxu0 0
      %877 = vmatpush2.bf16.msra.mxu0 0
      %878 = vmatprep.subr.bf16.mxu0 0
      %879 = vmatpush2.bf16.msra.mxu0 0
      %880 = vmatprep.subr.bf16.mxu0 0
      %881 = vmatpush2.bf16.msra.mxu0 0
      %882 = vmatprep.subr.bf16.mxu0 0
      %883 = vmatpush2.bf16.msra.mxu0 0
      %884 = vmatprep.subr.bf16.mxu0 0
      %885 = vmatpush2.bf16.msra.mxu0 0
      %886 = vmatprep.subr.bf16.mxu0 0
      %887 = vmatpush2.bf16.msra.mxu0 0
      %888 = vmatprep.mubr.bf16.mxu0 0
      %889 = vmatmul.mubr.bf16.gmra.mxu0 %v833
      %v890 = vpop.f32.mrf.mxu0
      %v891 = vadd.f32 %v758, %v890
      %v892 = vpop.f32.mrf.mxu0
      %v893 = vpop.f32.mrf.mxu0
      %v894 = vadd.f32 %v761, %v893
      %v895 = vpop.f32.mrf.mxu0
      %896 = vmatprep.mubr.bf16.mxu0 0
      %897 = vmatmul.mubr.bf16.gmra.mxu0 %v836
      %v898 = vpop.f32.mrf.mxu0
      %v899 = vadd.f32 %v766, %v898
      %v900 = vpop.f32.mrf.mxu0
      %v901 = vpop.f32.mrf.mxu0
      %v902 = vadd.f32 %v769, %v901
      %v903 = vpop.f32.mrf.mxu0
      %904 = vmatprep.mubr.bf16.mxu0 0
      %905 = vmatmul.mubr.bf16.gmra.mxu0 %v839
      %v906 = vpop.f32.mrf.mxu0
      %v907 = vadd.f32 %v774, %v906
      %v908 = vpop.f32.mrf.mxu0
      %v909 = vpop.f32.mrf.mxu0
      %v910 = vadd.f32 %v777, %v909
      %v911 = vpop.f32.mrf.mxu0
      %912 = vmatprep.mubr.bf16.mxu0 0
      %913 = vmatmul.mubr.bf16.gmra.mxu0 %v842
      %v914 = vpop.f32.mrf.mxu0
      %v915 = vadd.f32 %v782, %v914
      %v916 = vpop.f32.mrf.mxu0
      %v917 = vpop.f32.mrf.mxu0
      %v918 = vadd.f32 %v785, %v917
      %v919 = vpop.f32.mrf.mxu0
      %920 = vmatprep.mubr.bf16.mxu0 0
      %921 = vmatmul.mubr.bf16.gmra.mxu0 %v845
      %v922 = vpop.f32.mrf.mxu0
      %v923 = vadd.f32 %v790, %v922
      %v924 = vpop.f32.mrf.mxu0
      %v925 = vpop.f32.mrf.mxu0
      %v926 = vadd.f32 %v793, %v925
      %v927 = vpop.f32.mrf.mxu0
      %928 = vmatprep.mubr.bf16.mxu0 0
      %929 = vmatmul.mubr.bf16.gmra.mxu0 %v848
      %v930 = vpop.f32.mrf.mxu0
      %v931 = vadd.f32 %v798, %v930
      %v932 = vpop.f32.mrf.mxu0
      %v933 = vpop.f32.mrf.mxu0
      %v934 = vadd.f32 %v801, %v933
      %v935 = vpop.f32.mrf.mxu0
      %936 = vmatprep.mubr.bf16.mxu0 0
      %937 = vmatmul.mubr.bf16.gmra.mxu0 %v851
      %v938 = vpop.f32.mrf.mxu0
      %v939 = vadd.f32 %v806, %v938
      %v940 = vpop.f32.mrf.mxu0
      %v941 = vpop.f32.mrf.mxu0
      %v942 = vadd.f32 %v809, %v941
      %v943 = vpop.f32.mrf.mxu0
      %944 = vmatprep.mubr.bf16.mxu0 0
      %945 = vmatmul.mubr.bf16.gmra.mxu0 %v854
      %v946 = vpop.f32.mrf.mxu0
      %v947 = vadd.f32 %v814, %v946
      %v948 = vpop.f32.mrf.mxu0
      %v949 = vpop.f32.mrf.mxu0
      %v950 = vadd.f32 %v817, %v949
      %v951 = vpop.f32.mrf.mxu0
      %952 = vdwg.mxu0
      %v953 = vld [vmem:[%s264] sm:$0xe]
      %v954 = vld [vmem:[%s264 + $0xc] sm:$0xe]
      %v955 = vld [vmem:[%s264 + $0x18] sm:$0xe]
      %v956 = vld [vmem:[%s264 + $0x24] sm:$0xe]
      %v957 = vld [vmem:[%s264 + $0x30] sm:$0xe]
      %v958 = vld [vmem:[%s264 + $0x3c] sm:$0xe]
      %v959 = vld [vmem:[%s264 + $0x48] sm:$0xe]
      %v960 = vld [vmem:[%s264 + $0x54] sm:$0xe]
      %vm985 = vcmask 1042432
      %vm986 = vcmask 1046532
      %vm987 = vmor %vm985, %vm986
      %v988 = vrot.slane %v953, 5
      %v989 = vrot.slane %v988, 4
      %v990 = vrot.slane %v287, 5
      %v991 = vsel %vm987, %v989, %v990
      %v992 = vrot.slane %v990, 4
      %v993 = vrot.slane %v390, 5
      %v994 = vsel %vm987, %v992, %v993
      %v995 = vrot.slane %v954, 5
      %v996 = vrot.slane %v995, 4
      %v997 = vrot.slane %v289, 5
      %v998 = vsel %vm987, %v996, %v997
      %v999 = vrot.slane %v997, 4
      %v1000 = vrot.slane %v391, 5
      %v1001 = vsel %vm987, %v999, %v1000
      %v1002 = vrot.slane %v955, 5
      %v1003 = vrot.slane %v1002, 4
      %v1004 = vrot.slane %v291, 5
      %v1005 = vsel %vm987, %v1003, %v1004
      %v1006 = vrot.slane %v1004, 4
      %v1007 = vrot.slane %v392, 5
      %v1008 = vsel %vm987, %v1006, %v1007
      %v1009 = vrot.slane %v956, 5
      %v1010 = vrot.slane %v1009, 4
      %v1011 = vrot.slane %v293, 5
      %v1012 = vsel %vm987, %v1010, %v1011
      %v1013 = vrot.slane %v1011, 4
      %v1014 = vrot.slane %v393, 5
      %v1015 = vsel %vm987, %v1013, %v1014
      %v1016 = vrot.slane %v957, 5
      %v1017 = vrot.slane %v1016, 4
      %v1018 = vrot.slane %v295, 5
      %v1019 = vsel %vm987, %v1017, %v1018
      %v1020 = vrot.slane %v1018, 4
      %v1021 = vrot.slane %v394, 5
      %v1022 = vsel %vm987, %v1020, %v1021
      %v1023 = vrot.slane %v958, 5
      %v1024 = vrot.slane %v1023, 4
      %v1025 = vrot.slane %v297, 5
      %v1026 = vsel %vm987, %v1024, %v1025
      %v1027 = vrot.slane %v1025, 4
      %v1028 = vrot.slane %v395, 5
      %v1029 = vsel %vm987, %v1027, %v1028
      %v1030 = vrot.slane %v959, 5
      %v1031 = vrot.slane %v1030, 4
      %v1032 = vrot.slane %v299, 5
      %v1033 = vsel %vm987, %v1031, %v1032
      %v1034 = vrot.slane %v1032, 4
      %v1035 = vrot.slane %v396, 5
      %v1036 = vsel %vm987, %v1034, %v1035
      %v1037 = vrot.slane %v960, 5
      %v1038 = vrot.slane %v1037, 4
      %v1039 = vrot.slane %v301, 5
      %v1040 = vsel %vm987, %v1038, %v1039
      %v1041 = vrot.slane %v1039, 4
      %v1042 = vrot.slane %v397, 5
      %v1043 = vsel %vm987, %v1041, %v1042
      %v1060 = vunpack.c.l.bf16 %v991
      %v1061 = vunpack.c.l.bf16 %v994
      %v1062 = vunpack.c.l.bf16 %v998
      %v1063 = vunpack.c.l.bf16 %v1001
      %v1064 = vunpack.c.l.bf16 %v1005
      %v1065 = vunpack.c.l.bf16 %v1008
      %v1066 = vunpack.c.l.bf16 %v1012
      %v1067 = vunpack.c.l.bf16 %v1015
      %v1068 = vunpack.c.l.bf16 %v1019
      %v1069 = vunpack.c.l.bf16 %v1022
      %v1070 = vunpack.c.l.bf16 %v1026
      %v1071 = vunpack.c.l.bf16 %v1029
      %v1072 = vunpack.c.l.bf16 %v1033
      %v1073 = vunpack.c.l.bf16 %v1036
      %v1074 = vunpack.c.l.bf16 %v1040
      %v1075 = vunpack.c.l.bf16 %v1043
      %v1076 = vmul.f32 %v1060, %v322
      %v1077 = vmul.f32 %v1061, %v322
      %v1078 = vmul.f32 %v1062, %v322
      %v1079 = vmul.f32 %v1063, %v322
      %v1080 = vmul.f32 %v1064, %v322
      %v1081 = vmul.f32 %v1065, %v322
      %v1082 = vmul.f32 %v1066, %v322
      %v1083 = vmul.f32 %v1067, %v322
      %v1084 = vmul.f32 %v1068, %v322
      %v1085 = vmul.f32 %v1069, %v322
      %v1086 = vmul.f32 %v1070, %v322
      %v1087 = vmul.f32 %v1071, %v322
      %v1088 = vmul.f32 %v1072, %v322
      %v1089 = vmul.f32 %v1073, %v322
      %v1090 = vmul.f32 %v1074, %v322
      %v1091 = vmul.f32 %v1075, %v322
      %v1092 = vadd.f32 %v1076, %v344
      %v1093 = vadd.f32 %v1077, %v344
      %v1094 = vadd.f32 %v1078, %v344
      %v1095 = vadd.f32 %v1079, %v344
      %v1096 = vadd.f32 %v1080, %v344
      %v1097 = vadd.f32 %v1081, %v344
      %v1098 = vadd.f32 %v1082, %v344
      %v1099 = vadd.f32 %v1083, %v344
      %v1100 = vadd.f32 %v1084, %v344
      %v1101 = vadd.f32 %v1085, %v344
      %v1102 = vadd.f32 %v1086, %v344
      %v1103 = vadd.f32 %v1087, %v344
      %v1104 = vadd.f32 %v1088, %v344
      %v1105 = vadd.f32 %v1089, %v344
      %v1106 = vadd.f32 %v1090, %v344
      %v1107 = vadd.f32 %v1091, %v344
      %v1108 = vmax.f32 %v1092, 0.0
      %v1109 = vmax.f32 %v1093, 0.0
      %v1110 = vmax.f32 %v1094, 0.0
      %v1111 = vmax.f32 %v1095, 0.0
      %v1112 = vmax.f32 %v1096, 0.0
      %v1113 = vmax.f32 %v1097, 0.0
      %v1114 = vmax.f32 %v1098, 0.0
      %v1115 = vmax.f32 %v1099, 0.0
      %v1116 = vmax.f32 %v1100, 0.0
      %v1117 = vmax.f32 %v1101, 0.0
      %v1118 = vmax.f32 %v1102, 0.0
      %v1119 = vmax.f32 %v1103, 0.0
      %v1120 = vmax.f32 %v1104, 0.0
      %v1121 = vmax.f32 %v1105, 0.0
      %v1122 = vmax.f32 %v1106, 0.0
      %v1123 = vmax.f32 %v1107, 0.0
      %v1124 = vpack.c.bf16 %v1109, %v1108
      %v1125 = vpack.c.bf16 %v1111, %v1110
      %v1126 = vpack.c.bf16 %v1113, %v1112
      %v1127 = vpack.c.bf16 %v1115, %v1114
      %v1128 = vpack.c.bf16 %v1117, %v1116
      %v1129 = vpack.c.bf16 %v1119, %v1118
      %v1130 = vpack.c.bf16 %v1121, %v1120
      %v1131 = vpack.c.bf16 %v1123, %v1122
      %s1132 = scalar_lea.vmem %s1, 32
      %v1133 = vld [vmem:[%s1132] sm:$0xf]
      %v1134 = vld [vmem:[%s1132 + $0x4] sm:$0xf]
      %v1135 = vld [vmem:[%s1132 + $0x8] sm:$0xf]
      %v1136 = vld [vmem:[%s1132 + $0xc] sm:$0xf]
      %v1141 = vunpack.c.l.b16 %v1133
      %v1142 = vunpack.c.l.b16 %v1134
      %v1143 = vunpack.c.l.b16 %v1135
      %v1144 = vunpack.c.l.b16 %v1136
      %v1145 = vpack.c.b16 %v1142, %v1141
      %v1146 = vpack.c.b16 %v1144, %v1143
      %v1150 = vsel %vm698, %v1124, 0
      %v1153 = vsel %vm698, %v1125, 0
      %v1156 = vsel %vm698, %v1126, 0
      %v1159 = vsel %vm698, %v1127, 0
      %v1162 = vsel %vm698, %v1128, 0
      %v1165 = vsel %vm698, %v1129, 0
      %v1168 = vsel %vm698, %v1130, 0
      %v1171 = vsel %vm698, %v1131, 0
      %1173 = vmatprep.subr.bf16.mxu0 0
      %1174 = vmatpush1.bf16.msra.mxu0 0
      %1175 = vmatprep.subr.bf16.mxu0 0
      %1176 = vmatpush1.bf16.msra.mxu0 0
      %1177 = vmatprep.subr.bf16.mxu0 0
      %1178 = vmatpush1.bf16.msra.mxu0 0
      %1179 = vmatprep.subr.bf16.mxu0 0
      %1180 = vmatpush1.bf16.msra.mxu0 0
      %1181 = vmatprep.subr.bf16.mxu0 0
      %1182 = vmatpush1.bf16.msra.mxu0 0
      %1183 = vmatprep.subr.bf16.mxu0 0
      %1184 = vmatpush1.bf16.msra.mxu0 0
      %1185 = vmatprep.subr.bf16.mxu0 0
      %1186 = vmatpush1.bf16.msra.mxu0 %v1146
      %1187 = vmatprep.subr.bf16.mxu0 0
      %1188 = vmatpush1.bf16.msra.mxu0 %v1145
      %1189 = vmatprep.subr.bf16.mxu0 0
      %1190 = vmatpush2.bf16.msra.mxu0 0
      %1191 = vmatprep.subr.bf16.mxu0 0
      %1192 = vmatpush2.bf16.msra.mxu0 0
      %1193 = vmatprep.subr.bf16.mxu0 0
      %1194 = vmatpush2.bf16.msra.mxu0 0
      %1195 = vmatprep.subr.bf16.mxu0 0
      %1196 = vmatpush2.bf16.msra.mxu0 0
      %1197 = vmatprep.subr.bf16.mxu0 0
      %1198 = vmatpush2.bf16.msra.mxu0 0
      %1199 = vmatprep.subr.bf16.mxu0 0
      %1200 = vmatpush2.bf16.msra.mxu0 0
      %1201 = vmatprep.subr.bf16.mxu0 0
      %1202 = vmatpush2.bf16.msra.mxu0 0
      %1203 = vmatprep.subr.bf16.mxu0 0
      %1204 = vmatpush2.bf16.msra.mxu0 0
      %1205 = vmatprep.mubr.bf16.mxu0 0
      %1206 = vmatmul.mubr.bf16.gmra.mxu0 %v1150
      %v1207 = vpop.f32.mrf.mxu0
      %v1208 = vadd.f32 0.0, %v1207
      %v1209 = vpop.f32.mrf.mxu0
      %v1210 = vpop.f32.mrf.mxu0
      %v1211 = vadd.f32 0.0, %v1210
      %v1212 = vpop.f32.mrf.mxu0
      %1213 = vmatprep.mubr.bf16.mxu0 0
      %1214 = vmatmul.mubr.bf16.gmra.mxu0 %v1153
      %v1215 = vpop.f32.mrf.mxu0
      %v1216 = vadd.f32 0.0, %v1215
      %v1217 = vpop.f32.mrf.mxu0
      %v1218 = vpop.f32.mrf.mxu0
      %v1219 = vadd.f32 0.0, %v1218
      %v1220 = vpop.f32.mrf.mxu0
      %1221 = vmatprep.mubr.bf16.mxu0 0
      %1222 = vmatmul.mubr.bf16.gmra.mxu0 %v1156
      %v1223 = vpop.f32.mrf.mxu0
      %v1224 = vadd.f32 0.0, %v1223
      %v1225 = vpop.f32.mrf.mxu0
      %v1226 = vpop.f32.mrf.mxu0
      %v1227 = vadd.f32 0.0, %v1226
      %v1228 = vpop.f32.mrf.mxu0
      %1229 = vmatprep.mubr.bf16.mxu0 0
      %1230 = vmatmul.mubr.bf16.gmra.mxu0 %v1159
      %v1231 = vpop.f32.mrf.mxu0
      %v1232 = vadd.f32 0.0, %v1231
      %v1233 = vpop.f32.mrf.mxu0
      %v1234 = vpop.f32.mrf.mxu0
      %v1235 = vadd.f32 0.0, %v1234
      %v1236 = vpop.f32.mrf.mxu0
      %1237 = vmatprep.mubr.bf16.mxu0 0
      %1238 = vmatmul.mubr.bf16.gmra.mxu0 %v1162
      %v1239 = vpop.f32.mrf.mxu0
      %v1240 = vadd.f32 0.0, %v1239
      %v1241 = vpop.f32.mrf.mxu0
      %v1242 = vpop.f32.mrf.mxu0
      %v1243 = vadd.f32 0.0, %v1242
      %v1244 = vpop.f32.mrf.mxu0
      %1245 = vmatprep.mubr.bf16.mxu0 0
      %1246 = vmatmul.mubr.bf16.gmra.mxu0 %v1165
      %v1247 = vpop.f32.mrf.mxu0
      %v1248 = vadd.f32 0.0, %v1247
      %v1249 = vpop.f32.mrf.mxu0
      %v1250 = vpop.f32.mrf.mxu0
      %v1251 = vadd.f32 0.0, %v1250
      %v1252 = vpop.f32.mrf.mxu0
      %1253 = vmatprep.mubr.bf16.mxu0 0
      %1254 = vmatmul.mubr.bf16.gmra.mxu0 %v1168
      %v1255 = vpop.f32.mrf.mxu0
      %v1256 = vadd.f32 0.0, %v1255
      %v1257 = vpop.f32.mrf.mxu0
      %v1258 = vpop.f32.mrf.mxu0
      %v1259 = vadd.f32 0.0, %v1258
      %v1260 = vpop.f32.mrf.mxu0
      %1261 = vmatprep.mubr.bf16.mxu0 0
      %1262 = vmatmul.mubr.bf16.gmra.mxu0 %v1171
      %v1263 = vpop.f32.mrf.mxu0
      %v1264 = vadd.f32 0.0, %v1263
      %v1265 = vpop.f32.mrf.mxu0
      %v1266 = vpop.f32.mrf.mxu0
      %v1267 = vadd.f32 0.0, %v1266
      %v1268 = vpop.f32.mrf.mxu0
      %1269 = vdwg.mxu0
      %v1270 = vadd.f32 %v891, %v1208
      %v1271 = vadd.f32 %v894, %v1211
      %v1272 = vadd.f32 %v899, %v1216
      %v1273 = vadd.f32 %v902, %v1219
      %v1274 = vadd.f32 %v907, %v1224
      %v1275 = vadd.f32 %v910, %v1227
      %v1276 = vadd.f32 %v915, %v1232
      %v1277 = vadd.f32 %v918, %v1235
      %v1278 = vadd.f32 %v923, %v1240
      %v1279 = vadd.f32 %v926, %v1243
      %v1280 = vadd.f32 %v931, %v1248
      %v1281 = vadd.f32 %v934, %v1251
      %v1282 = vadd.f32 %v939, %v1256
      %v1283 = vadd.f32 %v942, %v1259
      %v1284 = vadd.f32 %v947, %v1264
      %v1285 = vadd.f32 %v950, %v1267
      %s1286 = scalar_lea.vmem %s264, 12
      %v1287 = vld [vmem:[%s1286] sm:$0xf]
      %v1288 = vld [vmem:[%s1286 + $0x4] sm:$0xf]
      %v1289 = vld [vmem:[%s1286 + $0xc] sm:$0xf]
      %v1290 = vld [vmem:[%s1286 + $0x10] sm:$0xf]
      %v1291 = vld [vmem:[%s1286 + $0x18] sm:$0xf]
      %v1292 = vld [vmem:[%s1286 + $0x1c] sm:$0xf]
      %v1293 = vld [vmem:[%s1286 + $0x24] sm:$0xf]
      %v1294 = vld [vmem:[%s1286 + $0x28] sm:$0xf]
      %v1295 = vld [vmem:[%s1286 + $0x30] sm:$0xf]
      %v1296 = vld [vmem:[%s1286 + $0x34] sm:$0xf]
      %v1297 = vld [vmem:[%s1286 + $0x3c] sm:$0xf]
      %v1298 = vld [vmem:[%s1286 + $0x40] sm:$0xf]
      %v1299 = vld [vmem:[%s1286 + $0x48] sm:$0xf]
      %v1300 = vld [vmem:[%s1286 + $0x4c] sm:$0xf]
      %v1301 = vld [vmem:[%s1286 + $0x54] sm:$0xf]
      %v1302 = vld [vmem:[%s1286 + $0x58] sm:$0xf]
      %v1303 = vunpack.c.l.bf16 %v1287
      %v1304 = vunpack.c.l.bf16 %v1288
      %v1305 = vunpack.c.l.bf16 %v1289
      %v1306 = vunpack.c.l.bf16 %v1290
      %v1307 = vunpack.c.l.bf16 %v1291
      %v1308 = vunpack.c.l.bf16 %v1292
      %v1309 = vunpack.c.l.bf16 %v1293
      %v1310 = vunpack.c.l.bf16 %v1294
      %v1311 = vunpack.c.l.bf16 %v1295
      %v1312 = vunpack.c.l.bf16 %v1296
      %v1313 = vunpack.c.l.bf16 %v1297
      %v1314 = vunpack.c.l.bf16 %v1298
      %v1315 = vunpack.c.l.bf16 %v1299
      %v1316 = vunpack.c.l.bf16 %v1300
      %v1317 = vunpack.c.l.bf16 %v1301
      %v1318 = vunpack.c.l.bf16 %v1302
      %v1319 = vmul.f32 %v1303, %v322
      %v1320 = vmul.f32 %v1304, %v322
      %v1321 = vmul.f32 %v1305, %v322
      %v1322 = vmul.f32 %v1306, %v322
      %v1323 = vmul.f32 %v1307, %v322
      %v1324 = vmul.f32 %v1308, %v322
      %v1325 = vmul.f32 %v1309, %v322
      %v1326 = vmul.f32 %v1310, %v322
      %v1327 = vmul.f32 %v1311, %v322
      %v1328 = vmul.f32 %v1312, %v322
      %v1329 = vmul.f32 %v1313, %v322
      %v1330 = vmul.f32 %v1314, %v322
      %v1331 = vmul.f32 %v1315, %v322
      %v1332 = vmul.f32 %v1316, %v322
      %v1333 = vmul.f32 %v1317, %v322
      %v1334 = vmul.f32 %v1318, %v322
      %v1335 = vadd.f32 %v1319, %v344
      %v1336 = vadd.f32 %v1320, %v344
      %v1337 = vadd.f32 %v1321, %v344
      %v1338 = vadd.f32 %v1322, %v344
      %v1339 = vadd.f32 %v1323, %v344
      %v1340 = vadd.f32 %v1324, %v344
      %v1341 = vadd.f32 %v1325, %v344
      %v1342 = vadd.f32 %v1326, %v344
      %v1343 = vadd.f32 %v1327, %v344
      %v1344 = vadd.f32 %v1328, %v344
      %v1345 = vadd.f32 %v1329, %v344
      %v1346 = vadd.f32 %v1330, %v344
      %v1347 = vadd.f32 %v1331, %v344
      %v1348 = vadd.f32 %v1332, %v344
      %v1349 = vadd.f32 %v1333, %v344
      %v1350 = vadd.f32 %v1334, %v344
      %v1351 = vmax.f32 %v1335, 0.0
      %v1352 = vmax.f32 %v1336, 0.0
      %v1353 = vmax.f32 %v1337, 0.0
      %v1354 = vmax.f32 %v1338, 0.0
      %v1355 = vmax.f32 %v1339, 0.0
      %v1356 = vmax.f32 %v1340, 0.0
      %v1357 = vmax.f32 %v1341, 0.0
      %v1358 = vmax.f32 %v1342, 0.0
      %v1359 = vmax.f32 %v1343, 0.0
      %v1360 = vmax.f32 %v1344, 0.0
      %v1361 = vmax.f32 %v1345, 0.0
      %v1362 = vmax.f32 %v1346, 0.0
      %v1363 = vmax.f32 %v1347, 0.0
      %v1364 = vmax.f32 %v1348, 0.0
      %v1365 = vmax.f32 %v1349, 0.0
      %v1366 = vmax.f32 %v1350, 0.0
      %v1367 = vpack.c.bf16 %v1352, %v1351
      %v1368 = vpack.c.bf16 %v1354, %v1353
      %v1369 = vpack.c.bf16 %v1356, %v1355
      %v1370 = vpack.c.bf16 %v1358, %v1357
      %v1371 = vpack.c.bf16 %v1360, %v1359
      %v1372 = vpack.c.bf16 %v1362, %v1361
      %v1373 = vpack.c.bf16 %v1364, %v1363
      %v1374 = vpack.c.bf16 %v1366, %v1365
      %s1375 = scalar_lea.vmem %s1, 48
      %v1376 = vld [vmem:[%s1375] sm:$0xf]
      %v1377 = vld [vmem:[%s1375 + $0x4] sm:$0xf]
      %v1378 = vld [vmem:[%s1375 + $0x8] sm:$0xf]
      %v1379 = vld [vmem:[%s1375 + $0xc] sm:$0xf]
      %v1384 = vunpack.c.l.b16 %v1376
      %v1385 = vunpack.c.l.b16 %v1377
      %v1386 = vunpack.c.l.b16 %v1378
      %v1387 = vunpack.c.l.b16 %v1379
      %v1388 = vpack.c.b16 %v1385, %v1384
      %v1389 = vpack.c.b16 %v1387, %v1386
      %v1393 = vsel %vm698, %v1367, 0
      %v1396 = vsel %vm698, %v1368, 0
      %v1399 = vsel %vm698, %v1369, 0
      %v1402 = vsel %vm698, %v1370, 0
      %v1405 = vsel %vm698, %v1371, 0
      %v1408 = vsel %vm698, %v1372, 0
      %v1411 = vsel %vm698, %v1373, 0
      %v1414 = vsel %vm698, %v1374, 0
      %1416 = vmatprep.subr.bf16.mxu0 0
      %1417 = vmatpush1.bf16.msra.mxu0 0
      %1418 = vmatprep.subr.bf16.mxu0 0
      %1419 = vmatpush1.bf16.msra.mxu0 0
      %1420 = vmatprep.subr.bf16.mxu0 0
      %1421 = vmatpush1.bf16.msra.mxu0 0
      %1422 = vmatprep.subr.bf16.mxu0 0
      %1423 = vmatpush1.bf16.msra.mxu0 0
      %1424 = vmatprep.subr.bf16.mxu0 0
      %1425 = vmatpush1.bf16.msra.mxu0 0
      %1426 = vmatprep.subr.bf16.mxu0 0
      %1427 = vmatpush1.bf16.msra.mxu0 0
      %1428 = vmatprep.subr.bf16.mxu0 0
      %1429 = vmatpush1.bf16.msra.mxu0 %v1389
      %1430 = vmatprep.subr.bf16.mxu0 0
      %1431 = vmatpush1.bf16.msra.mxu0 %v1388
      %1432 = vmatprep.subr.bf16.mxu0 0
      %1433 = vmatpush2.bf16.msra.mxu0 0
      %1434 = vmatprep.subr.bf16.mxu0 0
      %1435 = vmatpush2.bf16.msra.mxu0 0
      %1436 = vmatprep.subr.bf16.mxu0 0
      %1437 = vmatpush2.bf16.msra.mxu0 0
      %1438 = vmatprep.subr.bf16.mxu0 0
      %1439 = vmatpush2.bf16.msra.mxu0 0
      %1440 = vmatprep.subr.bf16.mxu0 0
      %1441 = vmatpush2.bf16.msra.mxu0 0
      %1442 = vmatprep.subr.bf16.mxu0 0
      %1443 = vmatpush2.bf16.msra.mxu0 0
      %1444 = vmatprep.subr.bf16.mxu0 0
      %1445 = vmatpush2.bf16.msra.mxu0 0
      %1446 = vmatprep.subr.bf16.mxu0 0
      %1447 = vmatpush2.bf16.msra.mxu0 0
      %1448 = vmatprep.mubr.bf16.mxu0 0
      %1449 = vmatmul.mubr.bf16.gmra.mxu0 %v1393
      %v1450 = vpop.f32.mrf.mxu0
      %v1451 = vadd.f32 0.0, %v1450
      %v1452 = vpop.f32.mrf.mxu0
      %v1453 = vpop.f32.mrf.mxu0
      %v1454 = vadd.f32 0.0, %v1453
      %v1455 = vpop.f32.mrf.mxu0
      %1456 = vmatprep.mubr.bf16.mxu0 0
      %1457 = vmatmul.mubr.bf16.gmra.mxu0 %v1396
      %v1458 = vpop.f32.mrf.mxu0
      %v1459 = vadd.f32 0.0, %v1458
      %v1460 = vpop.f32.mrf.mxu0
      %v1461 = vpop.f32.mrf.mxu0
      %v1462 = vadd.f32 0.0, %v1461
      %v1463 = vpop.f32.mrf.mxu0
      %1464 = vmatprep.mubr.bf16.mxu0 0
      %1465 = vmatmul.mubr.bf16.gmra.mxu0 %v1399
      %v1466 = vpop.f32.mrf.mxu0
      %v1467 = vadd.f32 0.0, %v1466
      %v1468 = vpop.f32.mrf.mxu0
      %v1469 = vpop.f32.mrf.mxu0
      %v1470 = vadd.f32 0.0, %v1469
      %v1471 = vpop.f32.mrf.mxu0
      %1472 = vmatprep.mubr.bf16.mxu0 0
      %1473 = vmatmul.mubr.bf16.gmra.mxu0 %v1402
      %v1474 = vpop.f32.mrf.mxu0
      %v1475 = vadd.f32 0.0, %v1474
      %v1476 = vpop.f32.mrf.mxu0
      %v1477 = vpop.f32.mrf.mxu0
      %v1478 = vadd.f32 0.0, %v1477
      %v1479 = vpop.f32.mrf.mxu0
      %1480 = vmatprep.mubr.bf16.mxu0 0
      %1481 = vmatmul.mubr.bf16.gmra.mxu0 %v1405
      %v1482 = vpop.f32.mrf.mxu0
      %v1483 = vadd.f32 0.0, %v1482
      %v1484 = vpop.f32.mrf.mxu0
      %v1485 = vpop.f32.mrf.mxu0
      %v1486 = vadd.f32 0.0, %v1485
      %v1487 = vpop.f32.mrf.mxu0
      %1488 = vmatprep.mubr.bf16.mxu0 0
      %1489 = vmatmul.mubr.bf16.gmra.mxu0 %v1408
      %v1490 = vpop.f32.mrf.mxu0
      %v1491 = vadd.f32 0.0, %v1490
      %v1492 = vpop.f32.mrf.mxu0
      %v1493 = vpop.f32.mrf.mxu0
      %v1494 = vadd.f32 0.0, %v1493
      %v1495 = vpop.f32.mrf.mxu0
      %1496 = vmatprep.mubr.bf16.mxu0 0
      %1497 = vmatmul.mubr.bf16.gmra.mxu0 %v1411
      %v1498 = vpop.f32.mrf.mxu0
      %v1499 = vadd.f32 0.0, %v1498
      %v1500 = vpop.f32.mrf.mxu0
      %v1501 = vpop.f32.mrf.mxu0
      %v1502 = vadd.f32 0.0, %v1501
      %v1503 = vpop.f32.mrf.mxu0
      %1504 = vmatprep.mubr.bf16.mxu0 0
      %1505 = vmatmul.mubr.bf16.gmra.mxu0 %v1414
      %v1506 = vpop.f32.mrf.mxu0
      %v1507 = vadd.f32 0.0, %v1506
      %v1508 = vpop.f32.mrf.mxu0
      %v1509 = vpop.f32.mrf.mxu0
      %v1510 = vadd.f32 0.0, %v1509
      %v1511 = vpop.f32.mrf.mxu0
      %1512 = vdwg.mxu0
      %v1513 = vadd.f32 %v1270, %v1451
      %v1514 = vadd.f32 %v1271, %v1454
      %v1515 = vadd.f32 %v1272, %v1459
      %v1516 = vadd.f32 %v1273, %v1462
      %v1517 = vadd.f32 %v1274, %v1467
      %v1518 = vadd.f32 %v1275, %v1470
      %v1519 = vadd.f32 %v1276, %v1475
      %v1520 = vadd.f32 %v1277, %v1478
      %v1521 = vadd.f32 %v1278, %v1483
      %v1522 = vadd.f32 %v1279, %v1486
      %v1523 = vadd.f32 %v1280, %v1491
      %v1524 = vadd.f32 %v1281, %v1494
      %v1525 = vadd.f32 %v1282, %v1499
      %v1526 = vadd.f32 %v1283, %v1502
      %v1527 = vadd.f32 %v1284, %v1507
      %v1528 = vadd.f32 %v1285, %v1510
      %v1529 = vld [vmem:[%s1286] sm:$0xf]
      %v1530 = vld [vmem:[%s1286 + $0x4] sm:$0xf]
      %v1531 = vld [vmem:[%s1286 + $0x8] sm:$0x1]
      %v1532 = vld [vmem:[%s1286 + $0xc] sm:$0xf]
      %v1533 = vld [vmem:[%s1286 + $0x10] sm:$0xf]
      %v1534 = vld [vmem:[%s1286 + $0x14] sm:$0x1]
      %v1535 = vld [vmem:[%s1286 + $0x18] sm:$0xf]
      %v1536 = vld [vmem:[%s1286 + $0x1c] sm:$0xf]
      %v1537 = vld [vmem:[%s1286 + $0x20] sm:$0x1]
      %v1538 = vld [vmem:[%s1286 + $0x24] sm:$0xf]
      %v1539 = vld [vmem:[%s1286 + $0x28] sm:$0xf]
      %v1540 = vld [vmem:[%s1286 + $0x2c] sm:$0x1]
      %v1541 = vld [vmem:[%s1286 + $0x30] sm:$0xf]
      %v1542 = vld [vmem:[%s1286 + $0x34] sm:$0xf]
      %v1543 = vld [vmem:[%s1286 + $0x38] sm:$0x1]
      %v1544 = vld [vmem:[%s1286 + $0x3c] sm:$0xf]
      %v1545 = vld [vmem:[%s1286 + $0x40] sm:$0xf]
      %v1546 = vld [vmem:[%s1286 + $0x44] sm:$0x1]
      %v1547 = vld [vmem:[%s1286 + $0x48] sm:$0xf]
      %v1548 = vld [vmem:[%s1286 + $0x4c] sm:$0xf]
      %v1549 = vld [vmem:[%s1286 + $0x50] sm:$0x1]
      %v1550 = vld [vmem:[%s1286 + $0x54] sm:$0xf]
      %v1551 = vld [vmem:[%s1286 + $0x58] sm:$0xf]
      %v1552 = vld [vmem:[%s1286 + $0x5c] sm:$0x1]
      %v1554 = vshrl.u32 %v1529, 16
      %v1556 = vrot.slane %v1554, 4
      %v1557 = vshll.u32 %v1529, 16
      %v1559 = vrot.slane %v1557, 5
      %v1560 = vor.u32 %v1556, %v1559
      %v1561 = vrot.slane %v1560, 4
      %v1563 = vshll.u32 %v1530, 16
      %v1565 = vrot.slane %v1563, 5
      %v1566 = vsel %vm400, %v1561, %v1565
      %v1567 = vshrl.u32 %v1530, 16
      %v1569 = vrot.slane %v1567, 4
      %v1570 = vor.u32 %v1569, %v1565
      %v1571 = vrot.slane %v1570, 4
      %v1573 = vshll.u32 %v1531, 16
      %v1575 = vrot.slane %v1573, 5
      %v1576 = vsel %vm400, %v1571, %v1575
      %v1578 = vshrl.u32 %v1532, 16
      %v1580 = vrot.slane %v1578, 4
      %v1581 = vshll.u32 %v1532, 16
      %v1583 = vrot.slane %v1581, 5
      %v1584 = vor.u32 %v1580, %v1583
      %v1585 = vrot.slane %v1584, 4
      %v1587 = vshll.u32 %v1533, 16
      %v1589 = vrot.slane %v1587, 5
      %v1590 = vsel %vm400, %v1585, %v1589
      %v1591 = vshrl.u32 %v1533, 16
      %v1593 = vrot.slane %v1591, 4
      %v1594 = vor.u32 %v1593, %v1589
      %v1595 = vrot.slane %v1594, 4
      %v1597 = vshll.u32 %v1534, 16
      %v1599 = vrot.slane %v1597, 5
      %v1600 = vsel %vm400, %v1595, %v1599
      %v1602 = vshrl.u32 %v1535, 16
      %v1604 = vrot.slane %v1602, 4
      %v1605 = vshll.u32 %v1535, 16
      %v1607 = vrot.slane %v1605, 5
      %v1608 = vor.u32 %v1604, %v1607
      %v1609 = vrot.slane %v1608, 4
      %v1611 = vshll.u32 %v1536, 16
      %v1613 = vrot.slane %v1611, 5
      %v1614 = vsel %vm400, %v1609, %v1613
      %v1615 = vshrl.u32 %v1536, 16
      %v1617 = vrot.slane %v1615, 4
      %v1618 = vor.u32 %v1617, %v1613
      %v1619 = vrot.slane %v1618, 4
      %v1621 = vshll.u32 %v1537, 16
      %v1623 = vrot.slane %v1621, 5
      %v1624 = vsel %vm400, %v1619, %v1623
      %v1626 = vshrl.u32 %v1538, 16
      %v1628 = vrot.slane %v1626, 4
      %v1629 = vshll.u32 %v1538, 16
      %v1631 = vrot.slane %v1629, 5
      %v1632 = vor.u32 %v1628, %v1631
      %v1633 = vrot.slane %v1632, 4
      %v1635 = vshll.u32 %v1539, 16
      %v1637 = vrot.slane %v1635, 5
      %v1638 = vsel %vm400, %v1633, %v1637
      %v1639 = vshrl.u32 %v1539, 16
      %v1641 = vrot.slane %v1639, 4
      %v1642 = vor.u32 %v1641, %v1637
      %v1643 = vrot.slane %v1642, 4
      %v1645 = vshll.u32 %v1540, 16
      %v1647 = vrot.slane %v1645, 5
      %v1648 = vsel %vm400, %v1643, %v1647
      %v1650 = vshrl.u32 %v1541, 16
      %v1652 = vrot.slane %v1650, 4
      %v1653 = vshll.u32 %v1541, 16
      %v1655 = vrot.slane %v1653, 5
      %v1656 = vor.u32 %v1652, %v1655
      %v1657 = vrot.slane %v1656, 4
      %v1659 = vshll.u32 %v1542, 16
      %v1661 = vrot.slane %v1659, 5
      %v1662 = vsel %vm400, %v1657, %v1661
      %v1663 = vshrl.u32 %v1542, 16
      %v1665 = vrot.slane %v1663, 4
      %v1666 = vor.u32 %v1665, %v1661
      %v1667 = vrot.slane %v1666, 4
      %v1669 = vshll.u32 %v1543, 16
      %v1671 = vrot.slane %v1669, 5
      %v1672 = vsel %vm400, %v1667, %v1671
      %v1674 = vshrl.u32 %v1544, 16
      %v1676 = vrot.slane %v1674, 4
      %v1677 = vshll.u32 %v1544, 16
      %v1679 = vrot.slane %v1677, 5
      %v1680 = vor.u32 %v1676, %v1679
      %v1681 = vrot.slane %v1680, 4
      %v1683 = vshll.u32 %v1545, 16
      %v1685 = vrot.slane %v1683, 5
      %v1686 = vsel %vm400, %v1681, %v1685
      %v1687 = vshrl.u32 %v1545, 16
      %v1689 = vrot.slane %v1687, 4
      %v1690 = vor.u32 %v1689, %v1685
      %v1691 = vrot.slane %v1690, 4
      %v1693 = vshll.u32 %v1546, 16
      %v1695 = vrot.slane %v1693, 5
      %v1696 = vsel %vm400, %v1691, %v1695
      %v1698 = vshrl.u32 %v1547, 16
      %v1700 = vrot.slane %v1698, 4
      %v1701 = vshll.u32 %v1547, 16
      %v1703 = vrot.slane %v1701, 5
      %v1704 = vor.u32 %v1700, %v1703
      %v1705 = vrot.slane %v1704, 4
      %v1707 = vshll.u32 %v1548, 16
      %v1709 = vrot.slane %v1707, 5
      %v1710 = vsel %vm400, %v1705, %v1709
      %v1711 = vshrl.u32 %v1548, 16
      %v1713 = vrot.slane %v1711, 4
      %v1714 = vor.u32 %v1713, %v1709
      %v1715 = vrot.slane %v1714, 4
      %v1717 = vshll.u32 %v1549, 16
      %v1719 = vrot.slane %v1717, 5
      %v1720 = vsel %vm400, %v1715, %v1719
      %v1722 = vshrl.u32 %v1550, 16
      %v1724 = vrot.slane %v1722, 4
      %v1725 = vshll.u32 %v1550, 16
      %v1727 = vrot.slane %v1725, 5
      %v1728 = vor.u32 %v1724, %v1727
      %v1729 = vrot.slane %v1728, 4
      %v1731 = vshll.u32 %v1551, 16
      %v1733 = vrot.slane %v1731, 5
      %v1734 = vsel %vm400, %v1729, %v1733
      %v1735 = vshrl.u32 %v1551, 16
      %v1737 = vrot.slane %v1735, 4
      %v1738 = vor.u32 %v1737, %v1733
      %v1739 = vrot.slane %v1738, 4
      %v1741 = vshll.u32 %v1552, 16
      %v1743 = vrot.slane %v1741, 5
      %v1744 = vsel %vm400, %v1739, %v1743
      %v1761 = vunpack.c.l.bf16 %v1566
      %v1762 = vunpack.c.l.bf16 %v1576
      %v1763 = vunpack.c.l.bf16 %v1590
      %v1764 = vunpack.c.l.bf16 %v1600
      %v1765 = vunpack.c.l.bf16 %v1614
      %v1766 = vunpack.c.l.bf16 %v1624
      %v1767 = vunpack.c.l.bf16 %v1638
      %v1768 = vunpack.c.l.bf16 %v1648
      %v1769 = vunpack.c.l.bf16 %v1662
      %v1770 = vunpack.c.l.bf16 %v1672
      %v1771 = vunpack.c.l.bf16 %v1686
      %v1772 = vunpack.c.l.bf16 %v1696
      %v1773 = vunpack.c.l.bf16 %v1710
      %v1774 = vunpack.c.l.bf16 %v1720
      %v1775 = vunpack.c.l.bf16 %v1734
      %v1776 = vunpack.c.l.bf16 %v1744
      %v1777 = vmul.f32 %v1761, %v322
      %v1778 = vmul.f32 %v1762, %v322
      %v1779 = vmul.f32 %v1763, %v322
      %v1780 = vmul.f32 %v1764, %v322
      %v1781 = vmul.f32 %v1765, %v322
      %v1782 = vmul.f32 %v1766, %v322
      %v1783 = vmul.f32 %v1767, %v322
      %v1784 = vmul.f32 %v1768, %v322
      %v1785 = vmul.f32 %v1769, %v322
      %v1786 = vmul.f32 %v1770, %v322
      %v1787 = vmul.f32 %v1771, %v322
      %v1788 = vmul.f32 %v1772, %v322
      %v1789 = vmul.f32 %v1773, %v322
      %v1790 = vmul.f32 %v1774, %v322
      %v1791 = vmul.f32 %v1775, %v322
      %v1792 = vmul.f32 %v1776, %v322
      %v1793 = vadd.f32 %v1777, %v344
      %v1794 = vadd.f32 %v1778, %v344
      %v1795 = vadd.f32 %v1779, %v344
      %v1796 = vadd.f32 %v1780, %v344
      %v1797 = vadd.f32 %v1781, %v344
      %v1798 = vadd.f32 %v1782, %v344
      %v1799 = vadd.f32 %v1783, %v344
      %v1800 = vadd.f32 %v1784, %v344
      %v1801 = vadd.f32 %v1785, %v344
      %v1802 = vadd.f32 %v1786, %v344
      %v1803 = vadd.f32 %v1787, %v344
      %v1804 = vadd.f32 %v1788, %v344
      %v1805 = vadd.f32 %v1789, %v344
      %v1806 = vadd.f32 %v1790, %v344
      %v1807 = vadd.f32 %v1791, %v344
      %v1808 = vadd.f32 %v1792, %v344
      %v1809 = vmax.f32 %v1793, 0.0
      %v1810 = vmax.f32 %v1794, 0.0
      %v1811 = vmax.f32 %v1795, 0.0
      %v1812 = vmax.f32 %v1796, 0.0
      %v1813 = vmax.f32 %v1797, 0.0
      %v1814 = vmax.f32 %v1798, 0.0
      %v1815 = vmax.f32 %v1799, 0.0
      %v1816 = vmax.f32 %v1800, 0.0
      %v1817 = vmax.f32 %v1801, 0.0
      %v1818 = vmax.f32 %v1802, 0.0
      %v1819 = vmax.f32 %v1803, 0.0
      %v1820 = vmax.f32 %v1804, 0.0
      %v1821 = vmax.f32 %v1805, 0.0
      %v1822 = vmax.f32 %v1806, 0.0
      %v1823 = vmax.f32 %v1807, 0.0
      %v1824 = vmax.f32 %v1808, 0.0
      %v1825 = vpack.c.bf16 %v1810, %v1809
      %v1826 = vpack.c.bf16 %v1812, %v1811
      %v1827 = vpack.c.bf16 %v1814, %v1813
      %v1828 = vpack.c.bf16 %v1816, %v1815
      %v1829 = vpack.c.bf16 %v1818, %v1817
      %v1830 = vpack.c.bf16 %v1820, %v1819
      %v1831 = vpack.c.bf16 %v1822, %v1821
      %v1832 = vpack.c.bf16 %v1824, %v1823
      %s1833 = scalar_lea.vmem %s1, 64
      %v1834 = vld [vmem:[%s1833] sm:$0xf]
      %v1835 = vld [vmem:[%s1833 + $0x4] sm:$0xf]
      %v1836 = vld [vmem:[%s1833 + $0x8] sm:$0xf]
      %v1837 = vld [vmem:[%s1833 + $0xc] sm:$0xf]
      %v1842 = vunpack.c.l.b16 %v1834
      %v1843 = vunpack.c.l.b16 %v1835
      %v1844 = vunpack.c.l.b16 %v1836
      %v1845 = vunpack.c.l.b16 %v1837
      %v1846 = vpack.c.b16 %v1843, %v1842
      %v1847 = vpack.c.b16 %v1845, %v1844
      %v1851 = vsel %vm698, %v1825, 0
      %v1854 = vsel %vm698, %v1826, 0
      %v1857 = vsel %vm698, %v1827, 0
      %v1860 = vsel %vm698, %v1828, 0
      %v1863 = vsel %vm698, %v1829, 0
      %v1866 = vsel %vm698, %v1830, 0
      %v1869 = vsel %vm698, %v1831, 0
      %v1872 = vsel %vm698, %v1832, 0
      %1874 = vmatprep.subr.bf16.mxu0 0
      %1875 = vmatpush1.bf16.msra.mxu0 0
      %1876 = vmatprep.subr.bf16.mxu0 0
      %1877 = vmatpush1.bf16.msra.mxu0 0
      %1878 = vmatprep.subr.bf16.mxu0 0
      %1879 = vmatpush1.bf16.msra.mxu0 0
      %1880 = vmatprep.subr.bf16.mxu0 0
      %1881 = vmatpush1.bf16.msra.mxu0 0
      %1882 = vmatprep.subr.bf16.mxu0 0
      %1883 = vmatpush1.bf16.msra.mxu0 0
      %1884 = vmatprep.subr.bf16.mxu0 0
      %1885 = vmatpush1.bf16.msra.mxu0 0
      %1886 = vmatprep.subr.bf16.mxu0 0
      %1887 = vmatpush1.bf16.msra.mxu0 %v1847
      %1888 = vmatprep.subr.bf16.mxu0 0
      %1889 = vmatpush1.bf16.msra.mxu0 %v1846
      %1890 = vmatprep.subr.bf16.mxu0 0
      %1891 = vmatpush2.bf16.msra.mxu0 0
      %1892 = vmatprep.subr.bf16.mxu0 0
      %1893 = vmatpush2.bf16.msra.mxu0 0
      %1894 = vmatprep.subr.bf16.mxu0 0
      %1895 = vmatpush2.bf16.msra.mxu0 0
      %1896 = vmatprep.subr.bf16.mxu0 0
      %1897 = vmatpush2.bf16.msra.mxu0 0
      %1898 = vmatprep.subr.bf16.mxu0 0
      %1899 = vmatpush2.bf16.msra.mxu0 0
      %1900 = vmatprep.subr.bf16.mxu0 0
      %1901 = vmatpush2.bf16.msra.mxu0 0
      %1902 = vmatprep.subr.bf16.mxu0 0
      %1903 = vmatpush2.bf16.msra.mxu0 0
      %1904 = vmatprep.subr.bf16.mxu0 0
      %1905 = vmatpush2.bf16.msra.mxu0 0
      %1906 = vmatprep.mubr.bf16.mxu0 0
      %1907 = vmatmul.mubr.bf16.gmra.mxu0 %v1851
      %v1908 = vpop.f32.mrf.mxu0
      %v1909 = vadd.f32 0.0, %v1908
      %v1910 = vpop.f32.mrf.mxu0
      %v1911 = vpop.f32.mrf.mxu0
      %v1912 = vadd.f32 0.0, %v1911
      %v1913 = vpop.f32.mrf.mxu0
      %1914 = vmatprep.mubr.bf16.mxu0 0
      %1915 = vmatmul.mubr.bf16.gmra.mxu0 %v1854
      %v1916 = vpop.f32.mrf.mxu0
      %v1917 = vadd.f32 0.0, %v1916
      %v1918 = vpop.f32.mrf.mxu0
      %v1919 = vpop.f32.mrf.mxu0
      %v1920 = vadd.f32 0.0, %v1919
      %v1921 = vpop.f32.mrf.mxu0
      %1922 = vmatprep.mubr.bf16.mxu0 0
      %1923 = vmatmul.mubr.bf16.gmra.mxu0 %v1857
      %v1924 = vpop.f32.mrf.mxu0
      %v1925 = vadd.f32 0.0, %v1924
      %v1926 = vpop.f32.mrf.mxu0
      %v1927 = vpop.f32.mrf.mxu0
      %v1928 = vadd.f32 0.0, %v1927
      %v1929 = vpop.f32.mrf.mxu0
      %1930 = vmatprep.mubr.bf16.mxu0 0
      %1931 = vmatmul.mubr.bf16.gmra.mxu0 %v1860
      %v1932 = vpop.f32.mrf.mxu0
      %v1933 = vadd.f32 0.0, %v1932
      %v1934 = vpop.f32.mrf.mxu0
      %v1935 = vpop.f32.mrf.mxu0
      %v1936 = vadd.f32 0.0, %v1935
      %v1937 = vpop.f32.mrf.mxu0
      %1938 = vmatprep.mubr.bf16.mxu0 0
      %1939 = vmatmul.mubr.bf16.gmra.mxu0 %v1863
      %v1940 = vpop.f32.mrf.mxu0
      %v1941 = vadd.f32 0.0, %v1940
      %v1942 = vpop.f32.mrf.mxu0
      %v1943 = vpop.f32.mrf.mxu0
      %v1944 = vadd.f32 0.0, %v1943
      %v1945 = vpop.f32.mrf.mxu0
      %1946 = vmatprep.mubr.bf16.mxu0 0
      %1947 = vmatmul.mubr.bf16.gmra.mxu0 %v1866
      %v1948 = vpop.f32.mrf.mxu0
      %v1949 = vadd.f32 0.0, %v1948
      %v1950 = vpop.f32.mrf.mxu0
      %v1951 = vpop.f32.mrf.mxu0
      %v1952 = vadd.f32 0.0, %v1951
      %v1953 = vpop.f32.mrf.mxu0
      %1954 = vmatprep.mubr.bf16.mxu0 0
      %1955 = vmatmul.mubr.bf16.gmra.mxu0 %v1869
      %v1956 = vpop.f32.mrf.mxu0
      %v1957 = vadd.f32 0.0, %v1956
      %v1958 = vpop.f32.mrf.mxu0
      %v1959 = vpop.f32.mrf.mxu0
      %v1960 = vadd.f32 0.0, %v1959
      %v1961 = vpop.f32.mrf.mxu0
      %1962 = vmatprep.mubr.bf16.mxu0 0
      %1963 = vmatmul.mubr.bf16.gmra.mxu0 %v1872
      %v1964 = vpop.f32.mrf.mxu0
      %v1965 = vadd.f32 0.0, %v1964
      %v1966 = vpop.f32.mrf.mxu0
      %v1967 = vpop.f32.mrf.mxu0
      %v1968 = vadd.f32 0.0, %v1967
      %v1969 = vpop.f32.mrf.mxu0
      %1970 = vdwg.mxu0
      %v1971 = vadd.f32 %v1513, %v1909
      %v1972 = vadd.f32 %v1514, %v1912
      %v1973 = vadd.f32 %v1515, %v1917
      %v1974 = vadd.f32 %v1516, %v1920
      %v1975 = vadd.f32 %v1517, %v1925
      %v1976 = vadd.f32 %v1518, %v1928
      %v1977 = vadd.f32 %v1519, %v1933
      %v1978 = vadd.f32 %v1520, %v1936
      %v1979 = vadd.f32 %v1521, %v1941
      %v1980 = vadd.f32 %v1522, %v1944
      %v1981 = vadd.f32 %v1523, %v1949
      %v1982 = vadd.f32 %v1524, %v1952
      %v1983 = vadd.f32 %v1525, %v1957
      %v1984 = vadd.f32 %v1526, %v1960
      %v1985 = vadd.f32 %v1527, %v1965
      %v1986 = vadd.f32 %v1528, %v1968
      %v1987 = vld [vmem:[%s1286] sm:$0xe]
      %v1988 = vld [vmem:[%s1286 + $0xc] sm:$0xe]
      %v1989 = vld [vmem:[%s1286 + $0x18] sm:$0xe]
      %v1990 = vld [vmem:[%s1286 + $0x24] sm:$0xe]
      %v1991 = vld [vmem:[%s1286 + $0x30] sm:$0xe]
      %v1992 = vld [vmem:[%s1286 + $0x3c] sm:$0xe]
      %v1993 = vld [vmem:[%s1286 + $0x48] sm:$0xe]
      %v1994 = vld [vmem:[%s1286 + $0x54] sm:$0xe]
      %v2019 = vrot.slane %v1987, 5
      %v2020 = vrot.slane %v2019, 4
      %v2021 = vrot.slane %v1530, 5
      %v2022 = vsel %vm987, %v2020, %v2021
      %v2023 = vrot.slane %v2021, 4
      %v2024 = vrot.slane %v1531, 5
      %v2025 = vsel %vm987, %v2023, %v2024
      %v2026 = vrot.slane %v1988, 5
      %v2027 = vrot.slane %v2026, 4
      %v2028 = vrot.slane %v1533, 5
      %v2029 = vsel %vm987, %v2027, %v2028
      %v2030 = vrot.slane %v2028, 4
      %v2031 = vrot.slane %v1534, 5
      %v2032 = vsel %vm987, %v2030, %v2031
      %v2033 = vrot.slane %v1989, 5
      %v2034 = vrot.slane %v2033, 4
      %v2035 = vrot.slane %v1536, 5
      %v2036 = vsel %vm987, %v2034, %v2035
      %v2037 = vrot.slane %v2035, 4
      %v2038 = vrot.slane %v1537, 5
      %v2039 = vsel %vm987, %v2037, %v2038
      %v2040 = vrot.slane %v1990, 5
      %v2041 = vrot.slane %v2040, 4
      %v2042 = vrot.slane %v1539, 5
      %v2043 = vsel %vm987, %v2041, %v2042
      %v2044 = vrot.slane %v2042, 4
      %v2045 = vrot.slane %v1540, 5
      %v2046 = vsel %vm987, %v2044, %v2045
      %v2047 = vrot.slane %v1991, 5
      %v2048 = vrot.slane %v2047, 4
      %v2049 = vrot.slane %v1542, 5
      %v2050 = vsel %vm987, %v2048, %v2049
      %v2051 = vrot.slane %v2049, 4
      %v2052 = vrot.slane %v1543, 5
      %v2053 = vsel %vm987, %v2051, %v2052
      %v2054 = vrot.slane %v1992, 5
      %v2055 = vrot.slane %v2054, 4
      %v2056 = vrot.slane %v1545, 5
      %v2057 = vsel %vm987, %v2055, %v2056
      %v2058 = vrot.slane %v2056, 4
      %v2059 = vrot.slane %v1546, 5
      %v2060 = vsel %vm987, %v2058, %v2059
      %v2061 = vrot.slane %v1993, 5
      %v2062 = vrot.slane %v2061, 4
      %v2063 = vrot.slane %v1548, 5
      %v2064 = vsel %vm987, %v2062, %v2063
      %v2065 = vrot.slane %v2063, 4
      %v2066 = vrot.slane %v1549, 5
      %v2067 = vsel %vm987, %v2065, %v2066
      %v2068 = vrot.slane %v1994, 5
      %v2069 = vrot.slane %v2068, 4
      %v2070 = vrot.slane %v1551, 5
      %v2071 = vsel %vm987, %v2069, %v2070
      %v2072 = vrot.slane %v2070, 4
      %v2073 = vrot.slane %v1552, 5
      %v2074 = vsel %vm987, %v2072, %v2073
      %v2091 = vunpack.c.l.bf16 %v2022
      %v2092 = vunpack.c.l.bf16 %v2025
      %v2093 = vunpack.c.l.bf16 %v2029
      %v2094 = vunpack.c.l.bf16 %v2032
      %v2095 = vunpack.c.l.bf16 %v2036
      %v2096 = vunpack.c.l.bf16 %v2039
      %v2097 = vunpack.c.l.bf16 %v2043
      %v2098 = vunpack.c.l.bf16 %v2046
      %v2099 = vunpack.c.l.bf16 %v2050
      %v2100 = vunpack.c.l.bf16 %v2053
      %v2101 = vunpack.c.l.bf16 %v2057
      %v2102 = vunpack.c.l.bf16 %v2060
      %v2103 = vunpack.c.l.bf16 %v2064
      %v2104 = vunpack.c.l.bf16 %v2067
      %v2105 = vunpack.c.l.bf16 %v2071
      %v2106 = vunpack.c.l.bf16 %v2074
      %v2107 = vmul.f32 %v2091, %v322
      %v2108 = vmul.f32 %v2092, %v322
      %v2109 = vmul.f32 %v2093, %v322
      %v2110 = vmul.f32 %v2094, %v322
      %v2111 = vmul.f32 %v2095, %v322
      %v2112 = vmul.f32 %v2096, %v322
      %v2113 = vmul.f32 %v2097, %v322
      %v2114 = vmul.f32 %v2098, %v322
      %v2115 = vmul.f32 %v2099, %v322
      %v2116 = vmul.f32 %v2100, %v322
      %v2117 = vmul.f32 %v2101, %v322
      %v2118 = vmul.f32 %v2102, %v322
      %v2119 = vmul.f32 %v2103, %v322
      %v2120 = vmul.f32 %v2104, %v322
      %v2121 = vmul.f32 %v2105, %v322
      %v2122 = vmul.f32 %v2106, %v322
      %v2123 = vadd.f32 %v2107, %v344
      %v2124 = vadd.f32 %v2108, %v344
      %v2125 = vadd.f32 %v2109, %v344
      %v2126 = vadd.f32 %v2110, %v344
      %v2127 = vadd.f32 %v2111, %v344
      %v2128 = vadd.f32 %v2112, %v344
      %v2129 = vadd.f32 %v2113, %v344
      %v2130 = vadd.f32 %v2114, %v344
      %v2131 = vadd.f32 %v2115, %v344
      %v2132 = vadd.f32 %v2116, %v344
      %v2133 = vadd.f32 %v2117, %v344
      %v2134 = vadd.f32 %v2118, %v344
      %v2135 = vadd.f32 %v2119, %v344
      %v2136 = vadd.f32 %v2120, %v344
      %v2137 = vadd.f32 %v2121, %v344
      %v2138 = vadd.f32 %v2122, %v344
      %v2139 = vmax.f32 %v2123, 0.0
      %v2140 = vmax.f32 %v2124, 0.0
      %v2141 = vmax.f32 %v2125, 0.0
      %v2142 = vmax.f32 %v2126, 0.0
      %v2143 = vmax.f32 %v2127, 0.0
      %v2144 = vmax.f32 %v2128, 0.0
      %v2145 = vmax.f32 %v2129, 0.0
      %v2146 = vmax.f32 %v2130, 0.0
      %v2147 = vmax.f32 %v2131, 0.0
      %v2148 = vmax.f32 %v2132, 0.0
      %v2149 = vmax.f32 %v2133, 0.0
      %v2150 = vmax.f32 %v2134, 0.0
      %v2151 = vmax.f32 %v2135, 0.0
      %v2152 = vmax.f32 %v2136, 0.0
      %v2153 = vmax.f32 %v2137, 0.0
      %v2154 = vmax.f32 %v2138, 0.0
      %v2155 = vpack.c.bf16 %v2140, %v2139
      %v2156 = vpack.c.bf16 %v2142, %v2141
      %v2157 = vpack.c.bf16 %v2144, %v2143
      %v2158 = vpack.c.bf16 %v2146, %v2145
      %v2159 = vpack.c.bf16 %v2148, %v2147
      %v2160 = vpack.c.bf16 %v2150, %v2149
      %v2161 = vpack.c.bf16 %v2152, %v2151
      %v2162 = vpack.c.bf16 %v2154, %v2153
      %s2163 = scalar_lea.vmem %s1, 80
      %v2164 = vld [vmem:[%s2163] sm:$0xf]
      %v2165 = vld [vmem:[%s2163 + $0x4] sm:$0xf]
      %v2166 = vld [vmem:[%s2163 + $0x8] sm:$0xf]
      %v2167 = vld [vmem:[%s2163 + $0xc] sm:$0xf]
      %v2172 = vunpack.c.l.b16 %v2164
      %v2173 = vunpack.c.l.b16 %v2165
      %v2174 = vunpack.c.l.b16 %v2166
      %v2175 = vunpack.c.l.b16 %v2167
      %v2176 = vpack.c.b16 %v2173, %v2172
      %v2177 = vpack.c.b16 %v2175, %v2174
      %v2181 = vsel %vm698, %v2155, 0
      %v2184 = vsel %vm698, %v2156, 0
      %v2187 = vsel %vm698, %v2157, 0
      %v2190 = vsel %vm698, %v2158, 0
      %v2193 = vsel %vm698, %v2159, 0
      %v2196 = vsel %vm698, %v2160, 0
      %v2199 = vsel %vm698, %v2161, 0
      %v2202 = vsel %vm698, %v2162, 0
      %2204 = vmatprep.subr.bf16.mxu0 0
      %2205 = vmatpush1.bf16.msra.mxu0 0
      %2206 = vmatprep.subr.bf16.mxu0 0
      %2207 = vmatpush1.bf16.msra.mxu0 0
      %2208 = vmatprep.subr.bf16.mxu0 0
      %2209 = vmatpush1.bf16.msra.mxu0 0
      %2210 = vmatprep.subr.bf16.mxu0 0
      %2211 = vmatpush1.bf16.msra.mxu0 0
      %2212 = vmatprep.subr.bf16.mxu0 0
      %2213 = vmatpush1.bf16.msra.mxu0 0
      %2214 = vmatprep.subr.bf16.mxu0 0
      %2215 = vmatpush1.bf16.msra.mxu0 0
      %2216 = vmatprep.subr.bf16.mxu0 0
      %2217 = vmatpush1.bf16.msra.mxu0 %v2177
      %2218 = vmatprep.subr.bf16.mxu0 0
      %2219 = vmatpush1.bf16.msra.mxu0 %v2176
      %2220 = vmatprep.subr.bf16.mxu0 0
      %2221 = vmatpush2.bf16.msra.mxu0 0
      %2222 = vmatprep.subr.bf16.mxu0 0
      %2223 = vmatpush2.bf16.msra.mxu0 0
      %2224 = vmatprep.subr.bf16.mxu0 0
      %2225 = vmatpush2.bf16.msra.mxu0 0
      %2226 = vmatprep.subr.bf16.mxu0 0
      %2227 = vmatpush2.bf16.msra.mxu0 0
      %2228 = vmatprep.subr.bf16.mxu0 0
      %2229 = vmatpush2.bf16.msra.mxu0 0
      %2230 = vmatprep.subr.bf16.mxu0 0
      %2231 = vmatpush2.bf16.msra.mxu0 0
      %2232 = vmatprep.subr.bf16.mxu0 0
      %2233 = vmatpush2.bf16.msra.mxu0 0
      %2234 = vmatprep.subr.bf16.mxu0 0
      %2235 = vmatpush2.bf16.msra.mxu0 0
      %2236 = vmatprep.mubr.bf16.mxu0 0
      %2237 = vmatmul.mubr.bf16.gmra.mxu0 %v2181
      %v2238 = vpop.f32.mrf.mxu0
      %v2239 = vadd.f32 0.0, %v2238
      %v2240 = vpop.f32.mrf.mxu0
      %v2241 = vpop.f32.mrf.mxu0
      %v2242 = vadd.f32 0.0, %v2241
      %v2243 = vpop.f32.mrf.mxu0
      %2244 = vmatprep.mubr.bf16.mxu0 0
      %2245 = vmatmul.mubr.bf16.gmra.mxu0 %v2184
      %v2246 = vpop.f32.mrf.mxu0
      %v2247 = vadd.f32 0.0, %v2246
      %v2248 = vpop.f32.mrf.mxu0
      %v2249 = vpop.f32.mrf.mxu0
      %v2250 = vadd.f32 0.0, %v2249
      %v2251 = vpop.f32.mrf.mxu0
      %2252 = vmatprep.mubr.bf16.mxu0 0
      %2253 = vmatmul.mubr.bf16.gmra.mxu0 %v2187
      %v2254 = vpop.f32.mrf.mxu0
      %v2255 = vadd.f32 0.0, %v2254
      %v2256 = vpop.f32.mrf.mxu0
      %v2257 = vpop.f32.mrf.mxu0
      %v2258 = vadd.f32 0.0, %v2257
      %v2259 = vpop.f32.mrf.mxu0
      %2260 = vmatprep.mubr.bf16.mxu0 0
      %2261 = vmatmul.mubr.bf16.gmra.mxu0 %v2190
      %v2262 = vpop.f32.mrf.mxu0
      %v2263 = vadd.f32 0.0, %v2262
      %v2264 = vpop.f32.mrf.mxu0
      %v2265 = vpop.f32.mrf.mxu0
      %v2266 = vadd.f32 0.0, %v2265
      %v2267 = vpop.f32.mrf.mxu0
      %2268 = vmatprep.mubr.bf16.mxu0 0
      %2269 = vmatmul.mubr.bf16.gmra.mxu0 %v2193
      %v2270 = vpop.f32.mrf.mxu0
      %v2271 = vadd.f32 0.0, %v2270
      %v2272 = vpop.f32.mrf.mxu0
      %v2273 = vpop.f32.mrf.mxu0
      %v2274 = vadd.f32 0.0, %v2273
      %v2275 = vpop.f32.mrf.mxu0
      %2276 = vmatprep.mubr.bf16.mxu0 0
      %2277 = vmatmul.mubr.bf16.gmra.mxu0 %v2196
      %v2278 = vpop.f32.mrf.mxu0
      %v2279 = vadd.f32 0.0, %v2278
      %v2280 = vpop.f32.mrf.mxu0
      %v2281 = vpop.f32.mrf.mxu0
      %v2282 = vadd.f32 0.0, %v2281
      %v2283 = vpop.f32.mrf.mxu0
      %2284 = vmatprep.mubr.bf16.mxu0 0
      %2285 = vmatmul.mubr.bf16.gmra.mxu0 %v2199
      %v2286 = vpop.f32.mrf.mxu0
      %v2287 = vadd.f32 0.0, %v2286
      %v2288 = vpop.f32.mrf.mxu0
      %v2289 = vpop.f32.mrf.mxu0
      %v2290 = vadd.f32 0.0, %v2289
      %v2291 = vpop.f32.mrf.mxu0
      %2292 = vmatprep.mubr.bf16.mxu0 0
      %2293 = vmatmul.mubr.bf16.gmra.mxu0 %v2202
      %v2294 = vpop.f32.mrf.mxu0
      %v2295 = vadd.f32 0.0, %v2294
      %v2296 = vpop.f32.mrf.mxu0
      %v2297 = vpop.f32.mrf.mxu0
      %v2298 = vadd.f32 0.0, %v2297
      %v2299 = vpop.f32.mrf.mxu0
      %2300 = vdwg.mxu0
      %v2301 = vadd.f32 %v1971, %v2239
      %v2302 = vadd.f32 %v1972, %v2242
      %v2303 = vadd.f32 %v1973, %v2247
      %v2304 = vadd.f32 %v1974, %v2250
      %v2305 = vadd.f32 %v1975, %v2255
      %v2306 = vadd.f32 %v1976, %v2258
      %v2307 = vadd.f32 %v1977, %v2263
      %v2308 = vadd.f32 %v1978, %v2266
      %v2309 = vadd.f32 %v1979, %v2271
      %v2310 = vadd.f32 %v1980, %v2274
      %v2311 = vadd.f32 %v1981, %v2279
      %v2312 = vadd.f32 %v1982, %v2282
      %v2313 = vadd.f32 %v1983, %v2287
      %v2314 = vadd.f32 %v1984, %v2290
      %v2315 = vadd.f32 %v1985, %v2295
      %v2316 = vadd.f32 %v1986, %v2298
      %s2317 = scalar_lea.vmem %s264, 24
      %v2318 = vld [vmem:[%s2317] sm:$0xf]
      %v2319 = vld [vmem:[%s2317 + $0x4] sm:$0xf]
      %v2320 = vld [vmem:[%s2317 + $0xc] sm:$0xf]
      %v2321 = vld [vmem:[%s2317 + $0x10] sm:$0xf]
      %v2322 = vld [vmem:[%s2317 + $0x18] sm:$0xf]
      %v2323 = vld [vmem:[%s2317 + $0x1c] sm:$0xf]
      %v2324 = vld [vmem:[%s2317 + $0x24] sm:$0xf]
      %v2325 = vld [vmem:[%s2317 + $0x28] sm:$0xf]
      %v2326 = vld [vmem:[%s2317 + $0x30] sm:$0xf]
      %v2327 = vld [vmem:[%s2317 + $0x34] sm:$0xf]
      %v2328 = vld [vmem:[%s2317 + $0x3c] sm:$0xf]
      %v2329 = vld [vmem:[%s2317 + $0x40] sm:$0xf]
      %v2330 = vld [vmem:[%s2317 + $0x48] sm:$0xf]
      %v2331 = vld [vmem:[%s2317 + $0x4c] sm:$0xf]
      %v2332 = vld [vmem:[%s2317 + $0x54] sm:$0xf]
      %v2333 = vld [vmem:[%s2317 + $0x58] sm:$0xf]
      %v2334 = vunpack.c.l.bf16 %v2318
      %v2335 = vunpack.c.l.bf16 %v2319
      %v2336 = vunpack.c.l.bf16 %v2320
      %v2337 = vunpack.c.l.bf16 %v2321
      %v2338 = vunpack.c.l.bf16 %v2322
      %v2339 = vunpack.c.l.bf16 %v2323
      %v2340 = vunpack.c.l.bf16 %v2324
      %v2341 = vunpack.c.l.bf16 %v2325
      %v2342 = vunpack.c.l.bf16 %v2326
      %v2343 = vunpack.c.l.bf16 %v2327
      %v2344 = vunpack.c.l.bf16 %v2328
      %v2345 = vunpack.c.l.bf16 %v2329
      %v2346 = vunpack.c.l.bf16 %v2330
      %v2347 = vunpack.c.l.bf16 %v2331
      %v2348 = vunpack.c.l.bf16 %v2332
      %v2349 = vunpack.c.l.bf16 %v2333
      %v2350 = vmul.f32 %v2334, %v322
      %v2351 = vmul.f32 %v2335, %v322
      %v2352 = vmul.f32 %v2336, %v322
      %v2353 = vmul.f32 %v2337, %v322
      %v2354 = vmul.f32 %v2338, %v322
      %v2355 = vmul.f32 %v2339, %v322
      %v2356 = vmul.f32 %v2340, %v322
      %v2357 = vmul.f32 %v2341, %v322
      %v2358 = vmul.f32 %v2342, %v322
      %v2359 = vmul.f32 %v2343, %v322
      %v2360 = vmul.f32 %v2344, %v322
      %v2361 = vmul.f32 %v2345, %v322
      %v2362 = vmul.f32 %v2346, %v322
      %v2363 = vmul.f32 %v2347, %v322
      %v2364 = vmul.f32 %v2348, %v322
      %v2365 = vmul.f32 %v2349, %v322
      %v2366 = vadd.f32 %v2350, %v344
      %v2367 = vadd.f32 %v2351, %v344
      %v2368 = vadd.f32 %v2352, %v344
      %v2369 = vadd.f32 %v2353, %v344
      %v2370 = vadd.f32 %v2354, %v344
      %v2371 = vadd.f32 %v2355, %v344
      %v2372 = vadd.f32 %v2356, %v344
      %v2373 = vadd.f32 %v2357, %v344
      %v2374 = vadd.f32 %v2358, %v344
      %v2375 = vadd.f32 %v2359, %v344
      %v2376 = vadd.f32 %v2360, %v344
      %v2377 = vadd.f32 %v2361, %v344
      %v2378 = vadd.f32 %v2362, %v344
      %v2379 = vadd.f32 %v2363, %v344
      %v2380 = vadd.f32 %v2364, %v344
      %v2381 = vadd.f32 %v2365, %v344
      %v2382 = vmax.f32 %v2366, 0.0
      %v2383 = vmax.f32 %v2367, 0.0
      %v2384 = vmax.f32 %v2368, 0.0
      %v2385 = vmax.f32 %v2369, 0.0
      %v2386 = vmax.f32 %v2370, 0.0
      %v2387 = vmax.f32 %v2371, 0.0
      %v2388 = vmax.f32 %v2372, 0.0
      %v2389 = vmax.f32 %v2373, 0.0
      %v2390 = vmax.f32 %v2374, 0.0
      %v2391 = vmax.f32 %v2375, 0.0
      %v2392 = vmax.f32 %v2376, 0.0
      %v2393 = vmax.f32 %v2377, 0.0
      %v2394 = vmax.f32 %v2378, 0.0
      %v2395 = vmax.f32 %v2379, 0.0
      %v2396 = vmax.f32 %v2380, 0.0
      %v2397 = vmax.f32 %v2381, 0.0
      %v2398 = vpack.c.bf16 %v2383, %v2382
      %v2399 = vpack.c.bf16 %v2385, %v2384
      %v2400 = vpack.c.bf16 %v2387, %v2386
      %v2401 = vpack.c.bf16 %v2389, %v2388
      %v2402 = vpack.c.bf16 %v2391, %v2390
      %v2403 = vpack.c.bf16 %v2393, %v2392
      %v2404 = vpack.c.bf16 %v2395, %v2394
      %v2405 = vpack.c.bf16 %v2397, %v2396
      %s2406 = scalar_lea.vmem %s1, 96
      %v2407 = vld [vmem:[%s2406] sm:$0xf]
      %v2408 = vld [vmem:[%s2406 + $0x4] sm:$0xf]
      %v2409 = vld [vmem:[%s2406 + $0x8] sm:$0xf]
      %v2410 = vld [vmem:[%s2406 + $0xc] sm:$0xf]
      %v2415 = vunpack.c.l.b16 %v2407
      %v2416 = vunpack.c.l.b16 %v2408
      %v2417 = vunpack.c.l.b16 %v2409
      %v2418 = vunpack.c.l.b16 %v2410
      %v2419 = vpack.c.b16 %v2416, %v2415
      %v2420 = vpack.c.b16 %v2418, %v2417
      %v2424 = vsel %vm698, %v2398, 0
      %v2427 = vsel %vm698, %v2399, 0
      %v2430 = vsel %vm698, %v2400, 0
      %v2433 = vsel %vm698, %v2401, 0
      %v2436 = vsel %vm698, %v2402, 0
      %v2439 = vsel %vm698, %v2403, 0
      %v2442 = vsel %vm698, %v2404, 0
      %v2445 = vsel %vm698, %v2405, 0
      %2447 = vmatprep.subr.bf16.mxu0 0
      %2448 = vmatpush1.bf16.msra.mxu0 0
      %2449 = vmatprep.subr.bf16.mxu0 0
      %2450 = vmatpush1.bf16.msra.mxu0 0
      %2451 = vmatprep.subr.bf16.mxu0 0
      %2452 = vmatpush1.bf16.msra.mxu0 0
      %2453 = vmatprep.subr.bf16.mxu0 0
      %2454 = vmatpush1.bf16.msra.mxu0 0
      %2455 = vmatprep.subr.bf16.mxu0 0
      %2456 = vmatpush1.bf16.msra.mxu0 0
      %2457 = vmatprep.subr.bf16.mxu0 0
      %2458 = vmatpush1.bf16.msra.mxu0 0
      %2459 = vmatprep.subr.bf16.mxu0 0
      %2460 = vmatpush1.bf16.msra.mxu0 %v2420
      %2461 = vmatprep.subr.bf16.mxu0 0
      %2462 = vmatpush1.bf16.msra.mxu0 %v2419
      %2463 = vmatprep.subr.bf16.mxu0 0
      %2464 = vmatpush2.bf16.msra.mxu0 0
      %2465 = vmatprep.subr.bf16.mxu0 0
      %2466 = vmatpush2.bf16.msra.mxu0 0
      %2467 = vmatprep.subr.bf16.mxu0 0
      %2468 = vmatpush2.bf16.msra.mxu0 0
      %2469 = vmatprep.subr.bf16.mxu0 0
      %2470 = vmatpush2.bf16.msra.mxu0 0
      %2471 = vmatprep.subr.bf16.mxu0 0
      %2472 = vmatpush2.bf16.msra.mxu0 0
      %2473 = vmatprep.subr.bf16.mxu0 0
      %2474 = vmatpush2.bf16.msra.mxu0 0
      %2475 = vmatprep.subr.bf16.mxu0 0
      %2476 = vmatpush2.bf16.msra.mxu0 0
      %2477 = vmatprep.subr.bf16.mxu0 0
      %2478 = vmatpush2.bf16.msra.mxu0 0
      %2479 = vmatprep.mubr.bf16.mxu0 0
      %2480 = vmatmul.mubr.bf16.gmra.mxu0 %v2424
      %v2481 = vpop.f32.mrf.mxu0
      %v2482 = vadd.f32 0.0, %v2481
      %v2483 = vpop.f32.mrf.mxu0
      %v2484 = vpop.f32.mrf.mxu0
      %v2485 = vadd.f32 0.0, %v2484
      %v2486 = vpop.f32.mrf.mxu0
      %2487 = vmatprep.mubr.bf16.mxu0 0
      %2488 = vmatmul.mubr.bf16.gmra.mxu0 %v2427
      %v2489 = vpop.f32.mrf.mxu0
      %v2490 = vadd.f32 0.0, %v2489
      %v2491 = vpop.f32.mrf.mxu0
      %v2492 = vpop.f32.mrf.mxu0
      %v2493 = vadd.f32 0.0, %v2492
      %v2494 = vpop.f32.mrf.mxu0
      %2495 = vmatprep.mubr.bf16.mxu0 0
      %2496 = vmatmul.mubr.bf16.gmra.mxu0 %v2430
      %v2497 = vpop.f32.mrf.mxu0
      %v2498 = vadd.f32 0.0, %v2497
      %v2499 = vpop.f32.mrf.mxu0
      %v2500 = vpop.f32.mrf.mxu0
      %v2501 = vadd.f32 0.0, %v2500
      %v2502 = vpop.f32.mrf.mxu0
      %2503 = vmatprep.mubr.bf16.mxu0 0
      %2504 = vmatmul.mubr.bf16.gmra.mxu0 %v2433
      %v2505 = vpop.f32.mrf.mxu0
      %v2506 = vadd.f32 0.0, %v2505
      %v2507 = vpop.f32.mrf.mxu0
      %v2508 = vpop.f32.mrf.mxu0
      %v2509 = vadd.f32 0.0, %v2508
      %v2510 = vpop.f32.mrf.mxu0
      %2511 = vmatprep.mubr.bf16.mxu0 0
      %2512 = vmatmul.mubr.bf16.gmra.mxu0 %v2436
      %v2513 = vpop.f32.mrf.mxu0
      %v2514 = vadd.f32 0.0, %v2513
      %v2515 = vpop.f32.mrf.mxu0
      %v2516 = vpop.f32.mrf.mxu0
      %v2517 = vadd.f32 0.0, %v2516
      %v2518 = vpop.f32.mrf.mxu0
      %2519 = vmatprep.mubr.bf16.mxu0 0
      %2520 = vmatmul.mubr.bf16.gmra.mxu0 %v2439
      %v2521 = vpop.f32.mrf.mxu0
      %v2522 = vadd.f32 0.0, %v2521
      %v2523 = vpop.f32.mrf.mxu0
      %v2524 = vpop.f32.mrf.mxu0
      %v2525 = vadd.f32 0.0, %v2524
      %v2526 = vpop.f32.mrf.mxu0
      %2527 = vmatprep.mubr.bf16.mxu0 0
      %2528 = vmatmul.mubr.bf16.gmra.mxu0 %v2442
      %v2529 = vpop.f32.mrf.mxu0
      %v2530 = vadd.f32 0.0, %v2529
      %v2531 = vpop.f32.mrf.mxu0
      %v2532 = vpop.f32.mrf.mxu0
      %v2533 = vadd.f32 0.0, %v2532
      %v2534 = vpop.f32.mrf.mxu0
      %2535 = vmatprep.mubr.bf16.mxu0 0
      %2536 = vmatmul.mubr.bf16.gmra.mxu0 %v2445
      %v2537 = vpop.f32.mrf.mxu0
      %v2538 = vadd.f32 0.0, %v2537
      %v2539 = vpop.f32.mrf.mxu0
      %v2540 = vpop.f32.mrf.mxu0
      %v2541 = vadd.f32 0.0, %v2540
      %v2542 = vpop.f32.mrf.mxu0
      %2543 = vdwg.mxu0
      %v2544 = vadd.f32 %v2301, %v2482
      %v2545 = vadd.f32 %v2302, %v2485
      %v2546 = vadd.f32 %v2303, %v2490
      %v2547 = vadd.f32 %v2304, %v2493
      %v2548 = vadd.f32 %v2305, %v2498
      %v2549 = vadd.f32 %v2306, %v2501
      %v2550 = vadd.f32 %v2307, %v2506
      %v2551 = vadd.f32 %v2308, %v2509
      %v2552 = vadd.f32 %v2309, %v2514
      %v2553 = vadd.f32 %v2310, %v2517
      %v2554 = vadd.f32 %v2311, %v2522
      %v2555 = vadd.f32 %v2312, %v2525
      %v2556 = vadd.f32 %v2313, %v2530
      %v2557 = vadd.f32 %v2314, %v2533
      %v2558 = vadd.f32 %v2315, %v2538
      %v2559 = vadd.f32 %v2316, %v2541
      %v2560 = vld [vmem:[%s2317] sm:$0xf]
      %v2561 = vld [vmem:[%s2317 + $0x4] sm:$0xf]
      %v2562 = vld [vmem:[%s2317 + $0x8] sm:$0x1]
      %v2563 = vld [vmem:[%s2317 + $0xc] sm:$0xf]
      %v2564 = vld [vmem:[%s2317 + $0x10] sm:$0xf]
      %v2565 = vld [vmem:[%s2317 + $0x14] sm:$0x1]
      %v2566 = vld [vmem:[%s2317 + $0x18] sm:$0xf]
      %v2567 = vld [vmem:[%s2317 + $0x1c] sm:$0xf]
      %v2568 = vld [vmem:[%s2317 + $0x20] sm:$0x1]
      %v2569 = vld [vmem:[%s2317 + $0x24] sm:$0xf]
      %v2570 = vld [vmem:[%s2317 + $0x28] sm:$0xf]
      %v2571 = vld [vmem:[%s2317 + $0x2c] sm:$0x1]
      %v2572 = vld [vmem:[%s2317 + $0x30] sm:$0xf]
      %v2573 = vld [vmem:[%s2317 + $0x34] sm:$0xf]
      %v2574 = vld [vmem:[%s2317 + $0x38] sm:$0x1]
      %v2575 = vld [vmem:[%s2317 + $0x3c] sm:$0xf]
      %v2576 = vld [vmem:[%s2317 + $0x40] sm:$0xf]
      %v2577 = vld [vmem:[%s2317 + $0x44] sm:$0x1]
      %v2578 = vld [vmem:[%s2317 + $0x48] sm:$0xf]
      %v2579 = vld [vmem:[%s2317 + $0x4c] sm:$0xf]
      %v2580 = vld [vmem:[%s2317 + $0x50] sm:$0x1]
      %v2581 = vld [vmem:[%s2317 + $0x54] sm:$0xf]
      %v2582 = vld [vmem:[%s2317 + $0x58] sm:$0xf]
      %v2583 = vld [vmem:[%s2317 + $0x5c] sm:$0x1]
      %v2585 = vshrl.u32 %v2560, 16
      %v2587 = vrot.slane %v2585, 4
      %v2588 = vshll.u32 %v2560, 16
      %v2590 = vrot.slane %v2588, 5
      %v2591 = vor.u32 %v2587, %v2590
      %v2592 = vrot.slane %v2591, 4
      %v2594 = vshll.u32 %v2561, 16
      %v2596 = vrot.slane %v2594, 5
      %v2597 = vsel %vm400, %v2592, %v2596
      %v2598 = vshrl.u32 %v2561, 16
      %v2600 = vrot.slane %v2598, 4
      %v2601 = vor.u32 %v2600, %v2596
      %v2602 = vrot.slane %v2601, 4
      %v2604 = vshll.u32 %v2562, 16
      %v2606 = vrot.slane %v2604, 5
      %v2607 = vsel %vm400, %v2602, %v2606
      %v2609 = vshrl.u32 %v2563, 16
      %v2611 = vrot.slane %v2609, 4
      %v2612 = vshll.u32 %v2563, 16
      %v2614 = vrot.slane %v2612, 5
      %v2615 = vor.u32 %v2611, %v2614
      %v2616 = vrot.slane %v2615, 4
      %v2618 = vshll.u32 %v2564, 16
      %v2620 = vrot.slane %v2618, 5
      %v2621 = vsel %vm400, %v2616, %v2620
      %v2622 = vshrl.u32 %v2564, 16
      %v2624 = vrot.slane %v2622, 4
      %v2625 = vor.u32 %v2624, %v2620
      %v2626 = vrot.slane %v2625, 4
      %v2628 = vshll.u32 %v2565, 16
      %v2630 = vrot.slane %v2628, 5
      %v2631 = vsel %vm400, %v2626, %v2630
      %v2633 = vshrl.u32 %v2566, 16
      %v2635 = vrot.slane %v2633, 4
      %v2636 = vshll.u32 %v2566, 16
      %v2638 = vrot.slane %v2636, 5
      %v2639 = vor.u32 %v2635, %v2638
      %v2640 = vrot.slane %v2639, 4
      %v2642 = vshll.u32 %v2567, 16
      %v2644 = vrot.slane %v2642, 5
      %v2645 = vsel %vm400, %v2640, %v2644
      %v2646 = vshrl.u32 %v2567, 16
      %v2648 = vrot.slane %v2646, 4
      %v2649 = vor.u32 %v2648, %v2644
      %v2650 = vrot.slane %v2649, 4
      %v2652 = vshll.u32 %v2568, 16
      %v2654 = vrot.slane %v2652, 5
      %v2655 = vsel %vm400, %v2650, %v2654
      %v2657 = vshrl.u32 %v2569, 16
      %v2659 = vrot.slane %v2657, 4
      %v2660 = vshll.u32 %v2569, 16
      %v2662 = vrot.slane %v2660, 5
      %v2663 = vor.u32 %v2659, %v2662
      %v2664 = vrot.slane %v2663, 4
      %v2666 = vshll.u32 %v2570, 16
      %v2668 = vrot.slane %v2666, 5
      %v2669 = vsel %vm400, %v2664, %v2668
      %v2670 = vshrl.u32 %v2570, 16
      %v2672 = vrot.slane %v2670, 4
      %v2673 = vor.u32 %v2672, %v2668
      %v2674 = vrot.slane %v2673, 4
      %v2676 = vshll.u32 %v2571, 16
      %v2678 = vrot.slane %v2676, 5
      %v2679 = vsel %vm400, %v2674, %v2678
      %v2681 = vshrl.u32 %v2572, 16
      %v2683 = vrot.slane %v2681, 4
      %v2684 = vshll.u32 %v2572, 16
      %v2686 = vrot.slane %v2684, 5
      %v2687 = vor.u32 %v2683, %v2686
      %v2688 = vrot.slane %v2687, 4
      %v2690 = vshll.u32 %v2573, 16
      %v2692 = vrot.slane %v2690, 5
      %v2693 = vsel %vm400, %v2688, %v2692
      %v2694 = vshrl.u32 %v2573, 16
      %v2696 = vrot.slane %v2694, 4
      %v2697 = vor.u32 %v2696, %v2692
      %v2698 = vrot.slane %v2697, 4
      %v2700 = vshll.u32 %v2574, 16
      %v2702 = vrot.slane %v2700, 5
      %v2703 = vsel %vm400, %v2698, %v2702
      %v2705 = vshrl.u32 %v2575, 16
      %v2707 = vrot.slane %v2705, 4
      %v2708 = vshll.u32 %v2575, 16
      %v2710 = vrot.slane %v2708, 5
      %v2711 = vor.u32 %v2707, %v2710
      %v2712 = vrot.slane %v2711, 4
      %v2714 = vshll.u32 %v2576, 16
      %v2716 = vrot.slane %v2714, 5
      %v2717 = vsel %vm400, %v2712, %v2716
      %v2718 = vshrl.u32 %v2576, 16
      %v2720 = vrot.slane %v2718, 4
      %v2721 = vor.u32 %v2720, %v2716
      %v2722 = vrot.slane %v2721, 4
      %v2724 = vshll.u32 %v2577, 16
      %v2726 = vrot.slane %v2724, 5
      %v2727 = vsel %vm400, %v2722, %v2726
      %v2729 = vshrl.u32 %v2578, 16
      %v2731 = vrot.slane %v2729, 4
      %v2732 = vshll.u32 %v2578, 16
      %v2734 = vrot.slane %v2732, 5
      %v2735 = vor.u32 %v2731, %v2734
      %v2736 = vrot.slane %v2735, 4
      %v2738 = vshll.u32 %v2579, 16
      %v2740 = vrot.slane %v2738, 5
      %v2741 = vsel %vm400, %v2736, %v2740
      %v2742 = vshrl.u32 %v2579, 16
      %v2744 = vrot.slane %v2742, 4
      %v2745 = vor.u32 %v2744, %v2740
      %v2746 = vrot.slane %v2745, 4
      %v2748 = vshll.u32 %v2580, 16
      %v2750 = vrot.slane %v2748, 5
      %v2751 = vsel %vm400, %v2746, %v2750
      %v2753 = vshrl.u32 %v2581, 16
      %v2755 = vrot.slane %v2753, 4
      %v2756 = vshll.u32 %v2581, 16
      %v2758 = vrot.slane %v2756, 5
      %v2759 = vor.u32 %v2755, %v2758
      %v2760 = vrot.slane %v2759, 4
      %v2762 = vshll.u32 %v2582, 16
      %v2764 = vrot.slane %v2762, 5
      %v2765 = vsel %vm400, %v2760, %v2764
      %v2766 = vshrl.u32 %v2582, 16
      %v2768 = vrot.slane %v2766, 4
      %v2769 = vor.u32 %v2768, %v2764
      %v2770 = vrot.slane %v2769, 4
      %v2772 = vshll.u32 %v2583, 16
      %v2774 = vrot.slane %v2772, 5
      %v2775 = vsel %vm400, %v2770, %v2774
      %v2792 = vunpack.c.l.bf16 %v2597
      %v2793 = vunpack.c.l.bf16 %v2607
      %v2794 = vunpack.c.l.bf16 %v2621
      %v2795 = vunpack.c.l.bf16 %v2631
      %v2796 = vunpack.c.l.bf16 %v2645
      %v2797 = vunpack.c.l.bf16 %v2655
      %v2798 = vunpack.c.l.bf16 %v2669
      %v2799 = vunpack.c.l.bf16 %v2679
      %v2800 = vunpack.c.l.bf16 %v2693
      %v2801 = vunpack.c.l.bf16 %v2703
      %v2802 = vunpack.c.l.bf16 %v2717
      %v2803 = vunpack.c.l.bf16 %v2727
      %v2804 = vunpack.c.l.bf16 %v2741
      %v2805 = vunpack.c.l.bf16 %v2751
      %v2806 = vunpack.c.l.bf16 %v2765
      %v2807 = vunpack.c.l.bf16 %v2775
      %v2808 = vmul.f32 %v2792, %v322
      %v2809 = vmul.f32 %v2793, %v322
      %v2810 = vmul.f32 %v2794, %v322
      %v2811 = vmul.f32 %v2795, %v322
      %v2812 = vmul.f32 %v2796, %v322
      %v2813 = vmul.f32 %v2797, %v322
      %v2814 = vmul.f32 %v2798, %v322
      %v2815 = vmul.f32 %v2799, %v322
      %v2816 = vmul.f32 %v2800, %v322
      %v2817 = vmul.f32 %v2801, %v322
      %v2818 = vmul.f32 %v2802, %v322
      %v2819 = vmul.f32 %v2803, %v322
      %v2820 = vmul.f32 %v2804, %v322
      %v2821 = vmul.f32 %v2805, %v322
      %v2822 = vmul.f32 %v2806, %v322
      %v2823 = vmul.f32 %v2807, %v322
      %v2824 = vadd.f32 %v2808, %v344
      %v2825 = vadd.f32 %v2809, %v344
      %v2826 = vadd.f32 %v2810, %v344
      %v2827 = vadd.f32 %v2811, %v344
      %v2828 = vadd.f32 %v2812, %v344
      %v2829 = vadd.f32 %v2813, %v344
      %v2830 = vadd.f32 %v2814, %v344
      %v2831 = vadd.f32 %v2815, %v344
      %v2832 = vadd.f32 %v2816, %v344
      %v2833 = vadd.f32 %v2817, %v344
      %v2834 = vadd.f32 %v2818, %v344
      %v2835 = vadd.f32 %v2819, %v344
      %v2836 = vadd.f32 %v2820, %v344
      %v2837 = vadd.f32 %v2821, %v344
      %v2838 = vadd.f32 %v2822, %v344
      %v2839 = vadd.f32 %v2823, %v344
      %v2840 = vmax.f32 %v2824, 0.0
      %v2841 = vmax.f32 %v2825, 0.0
      %v2842 = vmax.f32 %v2826, 0.0
      %v2843 = vmax.f32 %v2827, 0.0
      %v2844 = vmax.f32 %v2828, 0.0
      %v2845 = vmax.f32 %v2829, 0.0
      %v2846 = vmax.f32 %v2830, 0.0
      %v2847 = vmax.f32 %v2831, 0.0
      %v2848 = vmax.f32 %v2832, 0.0
      %v2849 = vmax.f32 %v2833, 0.0
      %v2850 = vmax.f32 %v2834, 0.0
      %v2851 = vmax.f32 %v2835, 0.0
      %v2852 = vmax.f32 %v2836, 0.0
      %v2853 = vmax.f32 %v2837, 0.0
      %v2854 = vmax.f32 %v2838, 0.0
      %v2855 = vmax.f32 %v2839, 0.0
      %v2856 = vpack.c.bf16 %v2841, %v2840
      %v2857 = vpack.c.bf16 %v2843, %v2842
      %v2858 = vpack.c.bf16 %v2845, %v2844
      %v2859 = vpack.c.bf16 %v2847, %v2846
      %v2860 = vpack.c.bf16 %v2849, %v2848
      %v2861 = vpack.c.bf16 %v2851, %v2850
      %v2862 = vpack.c.bf16 %v2853, %v2852
      %v2863 = vpack.c.bf16 %v2855, %v2854
      %s2864 = scalar_lea.vmem %s1, 112
      %v2865 = vld [vmem:[%s2864] sm:$0xf]
      %v2866 = vld [vmem:[%s2864 + $0x4] sm:$0xf]
      %v2867 = vld [vmem:[%s2864 + $0x8] sm:$0xf]
      %v2868 = vld [vmem:[%s2864 + $0xc] sm:$0xf]
      %v2873 = vunpack.c.l.b16 %v2865
      %v2874 = vunpack.c.l.b16 %v2866
      %v2875 = vunpack.c.l.b16 %v2867
      %v2876 = vunpack.c.l.b16 %v2868
      %v2877 = vpack.c.b16 %v2874, %v2873
      %v2878 = vpack.c.b16 %v2876, %v2875
      %v2882 = vsel %vm698, %v2856, 0
      %v2885 = vsel %vm698, %v2857, 0
      %v2888 = vsel %vm698, %v2858, 0
      %v2891 = vsel %vm698, %v2859, 0
      %v2894 = vsel %vm698, %v2860, 0
      %v2897 = vsel %vm698, %v2861, 0
      %v2900 = vsel %vm698, %v2862, 0
      %v2903 = vsel %vm698, %v2863, 0
      %2905 = vmatprep.subr.bf16.mxu0 0
      %2906 = vmatpush1.bf16.msra.mxu0 0
      %2907 = vmatprep.subr.bf16.mxu0 0
      %2908 = vmatpush1.bf16.msra.mxu0 0
      %2909 = vmatprep.subr.bf16.mxu0 0
      %2910 = vmatpush1.bf16.msra.mxu0 0
      %2911 = vmatprep.subr.bf16.mxu0 0
      %2912 = vmatpush1.bf16.msra.mxu0 0
      %2913 = vmatprep.subr.bf16.mxu0 0
      %2914 = vmatpush1.bf16.msra.mxu0 0
      %2915 = vmatprep.subr.bf16.mxu0 0
      %2916 = vmatpush1.bf16.msra.mxu0 0
      %2917 = vmatprep.subr.bf16.mxu0 0
      %2918 = vmatpush1.bf16.msra.mxu0 %v2878
      %2919 = vmatprep.subr.bf16.mxu0 0
      %2920 = vmatpush1.bf16.msra.mxu0 %v2877
      %2921 = vmatprep.subr.bf16.mxu0 0
      %2922 = vmatpush2.bf16.msra.mxu0 0
      %2923 = vmatprep.subr.bf16.mxu0 0
      %2924 = vmatpush2.bf16.msra.mxu0 0
      %2925 = vmatprep.subr.bf16.mxu0 0
      %2926 = vmatpush2.bf16.msra.mxu0 0
      %2927 = vmatprep.subr.bf16.mxu0 0
      %2928 = vmatpush2.bf16.msra.mxu0 0
      %2929 = vmatprep.subr.bf16.mxu0 0
      %2930 = vmatpush2.bf16.msra.mxu0 0
      %2931 = vmatprep.subr.bf16.mxu0 0
      %2932 = vmatpush2.bf16.msra.mxu0 0
      %2933 = vmatprep.subr.bf16.mxu0 0
      %2934 = vmatpush2.bf16.msra.mxu0 0
      %2935 = vmatprep.subr.bf16.mxu0 0
      %2936 = vmatpush2.bf16.msra.mxu0 0
      %2937 = vmatprep.mubr.bf16.mxu0 0
      %2938 = vmatmul.mubr.bf16.gmra.mxu0 %v2882
      %v2939 = vpop.f32.mrf.mxu0
      %v2940 = vadd.f32 0.0, %v2939
      %v2941 = vpop.f32.mrf.mxu0
      %v2942 = vpop.f32.mrf.mxu0
      %v2943 = vadd.f32 0.0, %v2942
      %v2944 = vpop.f32.mrf.mxu0
      %2945 = vmatprep.mubr.bf16.mxu0 0
      %2946 = vmatmul.mubr.bf16.gmra.mxu0 %v2885
      %v2947 = vpop.f32.mrf.mxu0
      %v2948 = vadd.f32 0.0, %v2947
      %v2949 = vpop.f32.mrf.mxu0
      %v2950 = vpop.f32.mrf.mxu0
      %v2951 = vadd.f32 0.0, %v2950
      %v2952 = vpop.f32.mrf.mxu0
      %2953 = vmatprep.mubr.bf16.mxu0 0
      %2954 = vmatmul.mubr.bf16.gmra.mxu0 %v2888
      %v2955 = vpop.f32.mrf.mxu0
      %v2956 = vadd.f32 0.0, %v2955
      %v2957 = vpop.f32.mrf.mxu0
      %v2958 = vpop.f32.mrf.mxu0
      %v2959 = vadd.f32 0.0, %v2958
      %v2960 = vpop.f32.mrf.mxu0
      %2961 = vmatprep.mubr.bf16.mxu0 0
      %2962 = vmatmul.mubr.bf16.gmra.mxu0 %v2891
      %v2963 = vpop.f32.mrf.mxu0
      %v2964 = vadd.f32 0.0, %v2963
      %v2965 = vpop.f32.mrf.mxu0
      %v2966 = vpop.f32.mrf.mxu0
      %v2967 = vadd.f32 0.0, %v2966
      %v2968 = vpop.f32.mrf.mxu0
      %2969 = vmatprep.mubr.bf16.mxu0 0
      %2970 = vmatmul.mubr.bf16.gmra.mxu0 %v2894
      %v2971 = vpop.f32.mrf.mxu0
      %v2972 = vadd.f32 0.0, %v2971
      %v2973 = vpop.f32.mrf.mxu0
      %v2974 = vpop.f32.mrf.mxu0
      %v2975 = vadd.f32 0.0, %v2974
      %v2976 = vpop.f32.mrf.mxu0
      %2977 = vmatprep.mubr.bf16.mxu0 0
      %2978 = vmatmul.mubr.bf16.gmra.mxu0 %v2897
      %v2979 = vpop.f32.mrf.mxu0
      %v2980 = vadd.f32 0.0, %v2979
      %v2981 = vpop.f32.mrf.mxu0
      %v2982 = vpop.f32.mrf.mxu0
      %v2983 = vadd.f32 0.0, %v2982
      %v2984 = vpop.f32.mrf.mxu0
      %2985 = vmatprep.mubr.bf16.mxu0 0
      %2986 = vmatmul.mubr.bf16.gmra.mxu0 %v2900
      %v2987 = vpop.f32.mrf.mxu0
      %v2988 = vadd.f32 0.0, %v2987
      %v2989 = vpop.f32.mrf.mxu0
      %v2990 = vpop.f32.mrf.mxu0
      %v2991 = vadd.f32 0.0, %v2990
      %v2992 = vpop.f32.mrf.mxu0
      %2993 = vmatprep.mubr.bf16.mxu0 0
      %2994 = vmatmul.mubr.bf16.gmra.mxu0 %v2903
      %v2995 = vpop.f32.mrf.mxu0
      %v2996 = vadd.f32 0.0, %v2995
      %v2997 = vpop.f32.mrf.mxu0
      %v2998 = vpop.f32.mrf.mxu0
      %v2999 = vadd.f32 0.0, %v2998
      %v3000 = vpop.f32.mrf.mxu0
      %3001 = vdwg.mxu0
      %v3002 = vadd.f32 %v2544, %v2940
      %v3003 = vadd.f32 %v2545, %v2943
      %v3004 = vadd.f32 %v2546, %v2948
      %v3005 = vadd.f32 %v2547, %v2951
      %v3006 = vadd.f32 %v2548, %v2956
      %v3007 = vadd.f32 %v2549, %v2959
      %v3008 = vadd.f32 %v2550, %v2964
      %v3009 = vadd.f32 %v2551, %v2967
      %v3010 = vadd.f32 %v2552, %v2972
      %v3011 = vadd.f32 %v2553, %v2975
      %v3012 = vadd.f32 %v2554, %v2980
      %v3013 = vadd.f32 %v2555, %v2983
      %v3014 = vadd.f32 %v2556, %v2988
      %v3015 = vadd.f32 %v2557, %v2991
      %v3016 = vadd.f32 %v2558, %v2996
      %v3017 = vadd.f32 %v2559, %v2999
      %v3018 = vld [vmem:[%s2317] sm:$0xe]
      %v3019 = vld [vmem:[%s2317 + $0xc] sm:$0xe]
      %v3020 = vld [vmem:[%s2317 + $0x18] sm:$0xe]
      %v3021 = vld [vmem:[%s2317 + $0x24] sm:$0xe]
      %v3022 = vld [vmem:[%s2317 + $0x30] sm:$0xe]
      %v3023 = vld [vmem:[%s2317 + $0x3c] sm:$0xe]
      %v3024 = vld [vmem:[%s2317 + $0x48] sm:$0xe]
      %v3025 = vld [vmem:[%s2317 + $0x54] sm:$0xe]
      %v3050 = vrot.slane %v3018, 5
      %v3051 = vrot.slane %v3050, 4
      %v3052 = vrot.slane %v2561, 5
      %v3053 = vsel %vm987, %v3051, %v3052
      %v3054 = vrot.slane %v3052, 4
      %v3055 = vrot.slane %v2562, 5
      %v3056 = vsel %vm987, %v3054, %v3055
      %v3057 = vrot.slane %v3019, 5
      %v3058 = vrot.slane %v3057, 4
      %v3059 = vrot.slane %v2564, 5
      %v3060 = vsel %vm987, %v3058, %v3059
      %v3061 = vrot.slane %v3059, 4
      %v3062 = vrot.slane %v2565, 5
      %v3063 = vsel %vm987, %v3061, %v3062
      %v3064 = vrot.slane %v3020, 5
      %v3065 = vrot.slane %v3064, 4
      %v3066 = vrot.slane %v2567, 5
      %v3067 = vsel %vm987, %v3065, %v3066
      %v3068 = vrot.slane %v3066, 4
      %v3069 = vrot.slane %v2568, 5
      %v3070 = vsel %vm987, %v3068, %v3069
      %v3071 = vrot.slane %v3021, 5
      %v3072 = vrot.slane %v3071, 4
      %v3073 = vrot.slane %v2570, 5
      %v3074 = vsel %vm987, %v3072, %v3073
      %v3075 = vrot.slane %v3073, 4
      %v3076 = vrot.slane %v2571, 5
      %v3077 = vsel %vm987, %v3075, %v3076
      %v3078 = vrot.slane %v3022, 5
      %v3079 = vrot.slane %v3078, 4
      %v3080 = vrot.slane %v2573, 5
      %v3081 = vsel %vm987, %v3079, %v3080
      %v3082 = vrot.slane %v3080, 4
      %v3083 = vrot.slane %v2574, 5
      %v3084 = vsel %vm987, %v3082, %v3083
      %v3085 = vrot.slane %v3023, 5
      %v3086 = vrot.slane %v3085, 4
      %v3087 = vrot.slane %v2576, 5
      %v3088 = vsel %vm987, %v3086, %v3087
      %v3089 = vrot.slane %v3087, 4
      %v3090 = vrot.slane %v2577, 5
      %v3091 = vsel %vm987, %v3089, %v3090
      %v3092 = vrot.slane %v3024, 5
      %v3093 = vrot.slane %v3092, 4
      %v3094 = vrot.slane %v2579, 5
      %v3095 = vsel %vm987, %v3093, %v3094
      %v3096 = vrot.slane %v3094, 4
      %v3097 = vrot.slane %v2580, 5
      %v3098 = vsel %vm987, %v3096, %v3097
      %v3099 = vrot.slane %v3025, 5
      %v3100 = vrot.slane %v3099, 4
      %v3101 = vrot.slane %v2582, 5
      %v3102 = vsel %vm987, %v3100, %v3101
      %v3103 = vrot.slane %v3101, 4
      %v3104 = vrot.slane %v2583, 5
      %v3105 = vsel %vm987, %v3103, %v3104
      %v3122 = vunpack.c.l.bf16 %v3053
      %v3123 = vunpack.c.l.bf16 %v3056
      %v3124 = vunpack.c.l.bf16 %v3060
      %v3125 = vunpack.c.l.bf16 %v3063
      %v3126 = vunpack.c.l.bf16 %v3067
      %v3127 = vunpack.c.l.bf16 %v3070
      %v3128 = vunpack.c.l.bf16 %v3074
      %v3129 = vunpack.c.l.bf16 %v3077
      %v3130 = vunpack.c.l.bf16 %v3081
      %v3131 = vunpack.c.l.bf16 %v3084
      %v3132 = vunpack.c.l.bf16 %v3088
      %v3133 = vunpack.c.l.bf16 %v3091
      %v3134 = vunpack.c.l.bf16 %v3095
      %v3135 = vunpack.c.l.bf16 %v3098
      %v3136 = vunpack.c.l.bf16 %v3102
      %v3137 = vunpack.c.l.bf16 %v3105
      %v3138 = vmul.f32 %v3122, %v322
      %v3139 = vmul.f32 %v3123, %v322
      %v3140 = vmul.f32 %v3124, %v322
      %v3141 = vmul.f32 %v3125, %v322
      %v3142 = vmul.f32 %v3126, %v322
      %v3143 = vmul.f32 %v3127, %v322
      %v3144 = vmul.f32 %v3128, %v322
      %v3145 = vmul.f32 %v3129, %v322
      %v3146 = vmul.f32 %v3130, %v322
      %v3147 = vmul.f32 %v3131, %v322
      %v3148 = vmul.f32 %v3132, %v322
      %v3149 = vmul.f32 %v3133, %v322
      %v3150 = vmul.f32 %v3134, %v322
      %v3151 = vmul.f32 %v3135, %v322
      %v3152 = vmul.f32 %v3136, %v322
      %v3153 = vmul.f32 %v3137, %v322
      %v3154 = vadd.f32 %v3138, %v344
      %v3155 = vadd.f32 %v3139, %v344
      %v3156 = vadd.f32 %v3140, %v344
      %v3157 = vadd.f32 %v3141, %v344
      %v3158 = vadd.f32 %v3142, %v344
      %v3159 = vadd.f32 %v3143, %v344
      %v3160 = vadd.f32 %v3144, %v344
      %v3161 = vadd.f32 %v3145, %v344
      %v3162 = vadd.f32 %v3146, %v344
      %v3163 = vadd.f32 %v3147, %v344
      %v3164 = vadd.f32 %v3148, %v344
      %v3165 = vadd.f32 %v3149, %v344
      %v3166 = vadd.f32 %v3150, %v344
      %v3167 = vadd.f32 %v3151, %v344
      %v3168 = vadd.f32 %v3152, %v344
      %v3169 = vadd.f32 %v3153, %v344
      %v3170 = vmax.f32 %v3154, 0.0
      %v3171 = vmax.f32 %v3155, 0.0
      %v3172 = vmax.f32 %v3156, 0.0
      %v3173 = vmax.f32 %v3157, 0.0
      %v3174 = vmax.f32 %v3158, 0.0
      %v3175 = vmax.f32 %v3159, 0.0
      %v3176 = vmax.f32 %v3160, 0.0
      %v3177 = vmax.f32 %v3161, 0.0
      %v3178 = vmax.f32 %v3162, 0.0
      %v3179 = vmax.f32 %v3163, 0.0
      %v3180 = vmax.f32 %v3164, 0.0
      %v3181 = vmax.f32 %v3165, 0.0
      %v3182 = vmax.f32 %v3166, 0.0
      %v3183 = vmax.f32 %v3167, 0.0
      %v3184 = vmax.f32 %v3168, 0.0
      %v3185 = vmax.f32 %v3169, 0.0
      %v3186 = vpack.c.bf16 %v3171, %v3170
      %v3187 = vpack.c.bf16 %v3173, %v3172
      %v3188 = vpack.c.bf16 %v3175, %v3174
      %v3189 = vpack.c.bf16 %v3177, %v3176
      %v3190 = vpack.c.bf16 %v3179, %v3178
      %v3191 = vpack.c.bf16 %v3181, %v3180
      %v3192 = vpack.c.bf16 %v3183, %v3182
      %v3193 = vpack.c.bf16 %v3185, %v3184
      %s3194 = scalar_lea.vmem %s1, 128
      %v3195 = vld [vmem:[%s3194] sm:$0xf]
      %v3196 = vld [vmem:[%s3194 + $0x4] sm:$0xf]
      %v3197 = vld [vmem:[%s3194 + $0x8] sm:$0xf]
      %v3198 = vld [vmem:[%s3194 + $0xc] sm:$0xf]
      %v3203 = vunpack.c.l.b16 %v3195
      %v3204 = vunpack.c.l.b16 %v3196
      %v3205 = vunpack.c.l.b16 %v3197
      %v3206 = vunpack.c.l.b16 %v3198
      %v3207 = vpack.c.b16 %v3204, %v3203
      %v3208 = vpack.c.b16 %v3206, %v3205
      %v3212 = vsel %vm698, %v3186, 0
      %v3215 = vsel %vm698, %v3187, 0
      %v3218 = vsel %vm698, %v3188, 0
      %v3221 = vsel %vm698, %v3189, 0
      %v3224 = vsel %vm698, %v3190, 0
      %v3227 = vsel %vm698, %v3191, 0
      %v3230 = vsel %vm698, %v3192, 0
      %v3233 = vsel %vm698, %v3193, 0
      %3235 = vmatprep.subr.bf16.mxu0 0
      %3236 = vmatpush1.bf16.msra.mxu0 0
      %3237 = vmatprep.subr.bf16.mxu0 0
      %3238 = vmatpush1.bf16.msra.mxu0 0
      %3239 = vmatprep.subr.bf16.mxu0 0
      %3240 = vmatpush1.bf16.msra.mxu0 0
      %3241 = vmatprep.subr.bf16.mxu0 0
      %3242 = vmatpush1.bf16.msra.mxu0 0
      %3243 = vmatprep.subr.bf16.mxu0 0
      %3244 = vmatpush1.bf16.msra.mxu0 0
      %3245 = vmatprep.subr.bf16.mxu0 0
      %3246 = vmatpush1.bf16.msra.mxu0 0
      %3247 = vmatprep.subr.bf16.mxu0 0
      %3248 = vmatpush1.bf16.msra.mxu0 %v3208
      %3249 = vmatprep.subr.bf16.mxu0 0
      %3250 = vmatpush1.bf16.msra.mxu0 %v3207
      %3251 = vmatprep.subr.bf16.mxu0 0
      %3252 = vmatpush2.bf16.msra.mxu0 0
      %3253 = vmatprep.subr.bf16.mxu0 0
      %3254 = vmatpush2.bf16.msra.mxu0 0
      %3255 = vmatprep.subr.bf16.mxu0 0
      %3256 = vmatpush2.bf16.msra.mxu0 0
      %3257 = vmatprep.subr.bf16.mxu0 0
      %3258 = vmatpush2.bf16.msra.mxu0 0
      %3259 = vmatprep.subr.bf16.mxu0 0
      %3260 = vmatpush2.bf16.msra.mxu0 0
      %3261 = vmatprep.subr.bf16.mxu0 0
      %3262 = vmatpush2.bf16.msra.mxu0 0
      %3263 = vmatprep.subr.bf16.mxu0 0
      %3264 = vmatpush2.bf16.msra.mxu0 0
      %3265 = vmatprep.subr.bf16.mxu0 0
      %3266 = vmatpush2.bf16.msra.mxu0 0
      %3267 = vmatprep.mubr.bf16.mxu0 0
      %3268 = vmatmul.mubr.bf16.gmra.mxu0 %v3212
      %v3269 = vpop.f32.mrf.mxu0
      %v3270 = vadd.f32 0.0, %v3269
      %v3271 = vpop.f32.mrf.mxu0
      %v3272 = vpop.f32.mrf.mxu0
      %v3273 = vadd.f32 0.0, %v3272
      %v3274 = vpop.f32.mrf.mxu0
      %3275 = vmatprep.mubr.bf16.mxu0 0
      %3276 = vmatmul.mubr.bf16.gmra.mxu0 %v3215
      %v3277 = vpop.f32.mrf.mxu0
      %v3278 = vadd.f32 0.0, %v3277
      %v3279 = vpop.f32.mrf.mxu0
      %v3280 = vpop.f32.mrf.mxu0
      %v3281 = vadd.f32 0.0, %v3280
      %v3282 = vpop.f32.mrf.mxu0
      %3283 = vmatprep.mubr.bf16.mxu0 0
      %3284 = vmatmul.mubr.bf16.gmra.mxu0 %v3218
      %v3285 = vpop.f32.mrf.mxu0
      %v3286 = vadd.f32 0.0, %v3285
      %v3287 = vpop.f32.mrf.mxu0
      %v3288 = vpop.f32.mrf.mxu0
      %v3289 = vadd.f32 0.0, %v3288
      %v3290 = vpop.f32.mrf.mxu0
      %3291 = vmatprep.mubr.bf16.mxu0 0
      %3292 = vmatmul.mubr.bf16.gmra.mxu0 %v3221
      %v3293 = vpop.f32.mrf.mxu0
      %v3294 = vadd.f32 0.0, %v3293
      %v3295 = vpop.f32.mrf.mxu0
      %v3296 = vpop.f32.mrf.mxu0
      %v3297 = vadd.f32 0.0, %v3296
      %v3298 = vpop.f32.mrf.mxu0
      %3299 = vmatprep.mubr.bf16.mxu0 0
      %3300 = vmatmul.mubr.bf16.gmra.mxu0 %v3224
      %v3301 = vpop.f32.mrf.mxu0
      %v3302 = vadd.f32 0.0, %v3301
      %v3303 = vpop.f32.mrf.mxu0
      %v3304 = vpop.f32.mrf.mxu0
      %v3305 = vadd.f32 0.0, %v3304
      %v3306 = vpop.f32.mrf.mxu0
      %3307 = vmatprep.mubr.bf16.mxu0 0
      %3308 = vmatmul.mubr.bf16.gmra.mxu0 %v3227
      %v3309 = vpop.f32.mrf.mxu0
      %v3310 = vadd.f32 0.0, %v3309
      %v3311 = vpop.f32.mrf.mxu0
      %v3312 = vpop.f32.mrf.mxu0
      %v3313 = vadd.f32 0.0, %v3312
      %v3314 = vpop.f32.mrf.mxu0
      %3315 = vmatprep.mubr.bf16.mxu0 0
      %3316 = vmatmul.mubr.bf16.gmra.mxu0 %v3230
      %v3317 = vpop.f32.mrf.mxu0
      %v3318 = vadd.f32 0.0, %v3317
      %v3319 = vpop.f32.mrf.mxu0
      %v3320 = vpop.f32.mrf.mxu0
      %v3321 = vadd.f32 0.0, %v3320
      %v3322 = vpop.f32.mrf.mxu0
      %3323 = vmatprep.mubr.bf16.mxu0 0
      %3324 = vmatmul.mubr.bf16.gmra.mxu0 %v3233
      %v3325 = vpop.f32.mrf.mxu0
      %v3326 = vadd.f32 0.0, %v3325
      %v3327 = vpop.f32.mrf.mxu0
      %v3328 = vpop.f32.mrf.mxu0
      %v3329 = vadd.f32 0.0, %v3328
      %v3330 = vpop.f32.mrf.mxu0
      %3331 = vdwg.mxu0
      %v3332 = vadd.f32 %v3002, %v3270
      %v3333 = vadd.f32 %v3003, %v3273
      %v3334 = vadd.f32 %v3004, %v3278
      %v3335 = vadd.f32 %v3005, %v3281
      %v3336 = vadd.f32 %v3006, %v3286
      %v3337 = vadd.f32 %v3007, %v3289
      %v3338 = vadd.f32 %v3008, %v3294
      %v3339 = vadd.f32 %v3009, %v3297
      %v3340 = vadd.f32 %v3010, %v3302
      %v3341 = vadd.f32 %v3011, %v3305
      %v3342 = vadd.f32 %v3012, %v3310
      %v3343 = vadd.f32 %v3013, %v3313
      %v3344 = vadd.f32 %v3014, %v3318
      %v3345 = vadd.f32 %v3015, %v3321
      %v3346 = vadd.f32 %v3016, %v3326
      %v3347 = vadd.f32 %v3017, %v3329
      %v3348 = vpack.c.bf16 %v3333, %v3332
      %v3349 = vpack.c.bf16 %v3335, %v3334
      %v3350 = vpack.c.bf16 %v3337, %v3336
      %v3351 = vpack.c.bf16 %v3339, %v3338
      %v3352 = vpack.c.bf16 %v3341, %v3340
      %v3353 = vpack.c.bf16 %v3343, %v3342
      %v3354 = vpack.c.bf16 %v3345, %v3344
      %v3355 = vpack.c.bf16 %v3347, %v3346
      %v3364 = vunpack.c.l.b16 %v3348
      %v3365 = vunpack.c.h.b16 %v3348
      %v3366 = vunpack.c.l.b16 %v3349
      %v3367 = vunpack.c.h.b16 %v3349
      %v3368 = vunpack.c.l.b16 %v3350
      %v3369 = vunpack.c.h.b16 %v3350
      %v3370 = vunpack.c.l.b16 %v3351
      %v3371 = vunpack.c.h.b16 %v3351
      %v3372 = vunpack.c.l.b16 %v3352
      %v3373 = vunpack.c.h.b16 %v3352
      %v3374 = vunpack.c.l.b16 %v3353
      %v3375 = vunpack.c.h.b16 %v3353
      %v3376 = vunpack.c.l.b16 %v3354
      %v3377 = vunpack.c.h.b16 %v3354
      %v3378 = vunpack.c.l.b16 %v3355
      %v3379 = vunpack.c.h.b16 %v3355
      %v3380 = vpack.c.b16 %v3364, %v3364
      %v3381 = vpack.c.b16 %v3365, %v3365
      %v3382 = vpack.c.b16 %v3366, %v3366
      %v3383 = vpack.c.b16 %v3367, %v3367
      %v3384 = vpack.c.b16 %v3368, %v3368
      %v3385 = vpack.c.b16 %v3369, %v3369
      %v3386 = vpack.c.b16 %v3370, %v3370
      %v3387 = vpack.c.b16 %v3371, %v3371
      %v3388 = vpack.c.b16 %v3372, %v3372
      %v3389 = vpack.c.b16 %v3373, %v3373
      %v3390 = vpack.c.b16 %v3374, %v3374
      %v3391 = vpack.c.b16 %v3375, %v3375
      %v3392 = vpack.c.b16 %v3376, %v3376
      %v3393 = vpack.c.b16 %v3377, %v3377
      %v3394 = vpack.c.b16 %v3378, %v3378
      %v3395 = vpack.c.b16 %v3379, %v3379
      %vm3412 = vcmask 257024
      %3413 = vst.msk [vmem:[%s271] sm:$0xf] %vm3412, %v3380
      %3414 = vst.msk [vmem:[%s271 + $0x4] sm:$0xf] %vm3412, %v3381
      %3415 = vst.msk [vmem:[%s271 + $0x8] sm:$0xf] %vm3412, %v3382
      %3416 = vst.msk [vmem:[%s271 + $0xc] sm:$0xf] %vm3412, %v3383
      %3417 = vst.msk [vmem:[%s271 + $0x10] sm:$0xf] %vm3412, %v3384
      %3418 = vst.msk [vmem:[%s271 + $0x14] sm:$0xf] %vm3412, %v3385
      %3419 = vst.msk [vmem:[%s271 + $0x18] sm:$0xf] %vm3412, %v3386
      %3420 = vst.msk [vmem:[%s271 + $0x1c] sm:$0xf] %vm3412, %v3387
      %3421 = vst.msk [vmem:[%s271 + $0x20] sm:$0xf] %vm3412, %v3388
      %3422 = vst.msk [vmem:[%s271 + $0x24] sm:$0xf] %vm3412, %v3389
      %3423 = vst.msk [vmem:[%s271 + $0x28] sm:$0xf] %vm3412, %v3390
      %3424 = vst.msk [vmem:[%s271 + $0x2c] sm:$0xf] %vm3412, %v3391
      %3425 = vst.msk [vmem:[%s271 + $0x30] sm:$0xf] %vm3412, %v3392
      %3426 = vst.msk [vmem:[%s271 + $0x34] sm:$0xf] %vm3412, %v3393
      %3427 = vst.msk [vmem:[%s271 + $0x38] sm:$0xf] %vm3412, %v3394
      %3428 = vst.msk [vmem:[%s271 + $0x3c] sm:$0xf] %vm3412, %v3395
      %v3429 = vsel %vm698, %v3332, 0.0
      %v3430 = vsel %vm698, %v3333, 0.0
      %v3431 = vadd.f32 %v3429, %v3430
      %v3432 = vsel %vm698, %v3334, 0.0
      %v3433 = vadd.f32 %v3431, %v3432
      %v3434 = vsel %vm698, %v3335, 0.0
      %v3435 = vadd.f32 %v3433, %v3434
      %v3436 = vsel %vm698, %v3336, 0.0
      %v3437 = vadd.f32 %v3435, %v3436
      %v3438 = vsel %vm698, %v3337, 0.0
      %v3439 = vadd.f32 %v3437, %v3438
      %v3440 = vsel %vm698, %v3338, 0.0
      %v3441 = vadd.f32 %v3439, %v3440
      %v3442 = vsel %vm698, %v3339, 0.0
      %v3443 = vadd.f32 %v3441, %v3442
      %v3444 = vsel %vm698, %v3340, 0.0
      %v3445 = vadd.f32 %v3443, %v3444
      %v3446 = vsel %vm698, %v3341, 0.0
      %v3447 = vadd.f32 %v3445, %v3446
      %v3448 = vsel %vm698, %v3342, 0.0
      %v3449 = vadd.f32 %v3447, %v3448
      %v3450 = vsel %vm698, %v3343, 0.0
      %v3451 = vadd.f32 %v3449, %v3450
      %v3452 = vsel %vm698, %v3344, 0.0
      %v3453 = vadd.f32 %v3451, %v3452
      %v3454 = vsel %vm698, %v3345, 0.0
      %v3455 = vadd.f32 %v3453, %v3454
      %v3456 = vsel %vm698, %v3346, 0.0
      %v3457 = vadd.f32 %v3455, %v3456
      %v3458 = vsel %vm698, %v3347, 0.0
      %v3459 = vadd.f32 %v3457, %v3458
      %v3460 = vrot.slane %v3459, 4
      %v3461 = vadd.f32 %v3459, %v3460
      %v3462 = vrot.slane %v3461, 2
      %v3463 = vadd.f32 %v3461, %v3462
      %v3464 = vrot.slane %v3463, 1
      %v3465 = vadd.f32 %v3463, %v3464
      %vm3466 = vcmask 253952
      %3467 = vst.msk [vmem:[%s280] sm:$0x1] %vm3466, %v3465
      %v3468 = vmul.f32 %v3332, %v3332
      %v3469 = vmul.f32 %v3333, %v3333
      %v3470 = vmul.f32 %v3334, %v3334
      %v3471 = vmul.f32 %v3335, %v3335
      %v3472 = vmul.f32 %v3336, %v3336
      %v3473 = vmul.f32 %v3337, %v3337
      %v3474 = vmul.f32 %v3338, %v3338
      %v3475 = vmul.f32 %v3339, %v3339
      %v3476 = vmul.f32 %v3340, %v3340
      %v3477 = vmul.f32 %v3341, %v3341
      %v3478 = vmul.f32 %v3342, %v3342
      %v3479 = vmul.f32 %v3343, %v3343
      %v3480 = vmul.f32 %v3344, %v3344
      %v3481 = vmul.f32 %v3345, %v3345
      %v3482 = vmul.f32 %v3346, %v3346
      %v3483 = vmul.f32 %v3347, %v3347
      %v3484 = vsel %vm698, %v3468, 0.0
      %v3485 = vsel %vm698, %v3469, 0.0
      %v3486 = vadd.f32 %v3484, %v3485
      %v3487 = vsel %vm698, %v3470, 0.0
      %v3488 = vadd.f32 %v3486, %v3487
      %v3489 = vsel %vm698, %v3471, 0.0
      %v3490 = vadd.f32 %v3488, %v3489
      %v3491 = vsel %vm698, %v3472, 0.0
      %v3492 = vadd.f32 %v3490, %v3491
      %v3493 = vsel %vm698, %v3473, 0.0
      %v3494 = vadd.f32 %v3492, %v3493
      %v3495 = vsel %vm698, %v3474, 0.0
      %v3496 = vadd.f32 %v3494, %v3495
      %v3497 = vsel %vm698, %v3475, 0.0
      %v3498 = vadd.f32 %v3496, %v3497
      %v3499 = vsel %vm698, %v3476, 0.0
      %v3500 = vadd.f32 %v3498, %v3499
      %v3501 = vsel %vm698, %v3477, 0.0
      %v3502 = vadd.f32 %v3500, %v3501
      %v3503 = vsel %vm698, %v3478, 0.0
      %v3504 = vadd.f32 %v3502, %v3503
      %v3505 = vsel %vm698, %v3479, 0.0
      %v3506 = vadd.f32 %v3504, %v3505
      %v3507 = vsel %vm698, %v3480, 0.0
      %v3508 = vadd.f32 %v3506, %v3507
      %v3509 = vsel %vm698, %v3481, 0.0
      %v3510 = vadd.f32 %v3508, %v3509
      %v3511 = vsel %vm698, %v3482, 0.0
      %v3512 = vadd.f32 %v3510, %v3511
      %v3513 = vsel %vm698, %v3483, 0.0
      %v3514 = vadd.f32 %v3512, %v3513
      %v3515 = vrot.slane %v3514, 4
      %v3516 = vadd.f32 %v3514, %v3515
      %v3517 = vrot.slane %v3516, 2
      %v3518 = vadd.f32 %v3516, %v3517
      %v3519 = vrot.slane %v3518, 1
      %v3520 = vadd.f32 %v3518, %v3519
      %3521 = vst.msk [vmem:[%s280 + $0x1] sm:$0x1] %vm3466, %v3520
      %s3522 = smul.u32 %s21, 2
      %s3523 = sadd.s32 %s3522, %s22
      %s3524 = smul.u32 16, %s3523
      %p3525 = scmp.lt.s32.totalorder %s3524, 63
      %s3526 = scalar_select %p3525, %s3524, 63
      %s3527 = smul.addr %s3526, 4
      %s3528 = scalar_lea.vmem %s4, %s3527
      %s3529 = smul.u32 %s21, 2
      %s3530 = sadd.s32 %s3529, %s22
      %p3531 = scmp.lt.s32.totalorder %s3530, 3
      %s3532 = scalar_select %p3531, %s3530, 3
      %s3533 = smul.addr %s3532, 2
      %s3534 = scalar_lea.vmem %s5, %s3533
      // Predicated region
      $region37: #{resnet_block_forward.4} parent=35 // pred_check
        %p3535 = pneg %p142
      $region38: #{resnet_block_forward.4} parent=35 // pred_check_branch
        %3537 = sbr.rel (%p3535) target = $region40
      $region39: #{resnet_block_forward.4} parent=35 // pred_region
        %s3538 = smul.u32 %s21, 2
        %s3539 = sadd.s32 %s3538, %s22
        %s3540 = smul.u32 16, %s3539
      $region40: #{resnet_block_forward.4} parent=35 // pred_fallthru
        _
      // Predicated region
      $region41: #{resnet_block_forward.4} parent=35 // pred_check
        %p3541 = pneg %p172
      $region42: #{resnet_block_forward.4} parent=35 // pred_check_branch
        %3543 = sbr.rel (%p3541) target = $region44
      $region43: #{resnet_block_forward.4} parent=35 // pred_region
        %s3544 = smul.u32 %s21, 2
        %s3545 = sadd.s32 %s3544, %s22
      $region44: #{resnet_block_forward.4} parent=35 // pred_fallthru
        _
    $region36: #{resnet_block_forward.4} parent=5 // pred_fallthru
      _
    %p3546 = scmp.le.s32.totalorder 2, %s12
    // Predicated region
    $region45: #{resnet_block_forward.4} parent=5 // pred_check
      %p3547 = pneg %p3546
    $region46: #{resnet_block_forward.4} parent=5 // pred_check_branch
      %3549 = sbr.rel (%p3547) target = $region48
    $region47: #{resnet_block_forward.4} parent=5 // pred_region
      %s3550 = ssub.s32 %s12, 2
      // Predicated region
      $region49: #{resnet_block_forward.4} parent=47 // pred_check
        %p3551 = pneg %p148
      $region50: #{resnet_block_forward.4} parent=47 // pred_check_branch
        %3553 = sbr.rel (%p3551) target = $region52
      $region51: #{resnet_block_forward.4} parent=47 // pred_region
        %s3554 = smul.u32 %s23, 2
        %s3555 = sadd.s32 %s3554, %s24
        %s3556 = smul.u32 16, %s3555
        %p3557 = scmp.lt.s32.totalorder %s3556, 63
        %s3558 = scalar_select %p3557, %s3556, 63
        %s3559 = smul.addr %s3558, 4
        %s3560 = scalar_lea.vmem %s4, %s3559
      $region52: #{resnet_block_forward.4} parent=47 // pred_fallthru
        _
      // Predicated region
      $region53: #{resnet_block_forward.4} parent=47 // pred_check
        %p3561 = pneg %p178
      $region54: #{resnet_block_forward.4} parent=47 // pred_check_branch
        %3563 = sbr.rel (%p3561) target = $region56
      $region55: #{resnet_block_forward.4} parent=47 // pred_region
        %s3564 = smul.u32 %s23, 2
        %s3565 = sadd.s32 %s3564, %s24
        %p3566 = scmp.lt.s32.totalorder %s3565, 3
        %s3567 = scalar_select %p3566, %s3565, 3
        %s3568 = smul.addr %s3567, 2
        %s3569 = scalar_lea.vmem %s5, %s3568
      $region56: #{resnet_block_forward.4} parent=47 // pred_fallthru
        _
    $region48: #{resnet_block_forward.4} parent=5 // pred_fallthru
      _
  $region6: #{resnet_block_forward.4} parent=0 // loop_footer
    %s16 = sadd.s32 1, %s12
  $region7: #{resnet_block_forward.4} parent=0 // loop_footer_branch
    %11 = sbr.rel target = $region3
  $region8: #{resnet_block_forward.4} parent=0 // loop_exit
    _

</llo_original>
